<compile_context>
chip_gen: v6e
topology: v6e:2x2x1
jax: 0.10.0
libtpu: 0.0.40
codegen_flags: <defaults>
</compile_context>

<pallas_src>
import functools

import jax
import jax.numpy as jnp
from jax.experimental import pallas as pl
from jax.experimental.pallas import tpu as pltpu

EPS = 1e-5
LANE = 128


def _round_up(n, m):
    return (n + m - 1) // m * m


def bn_fold(gamma, beta, mean, var, bias=None):
    scale = gamma / jnp.sqrt(var + EPS)
    b = bias if bias is not None else 0.0
    shift = beta + scale * (b - mean)
    return scale, shift


def _shift_masks(hc, wc, radius, n_pad):
    """(k*k, n_pad) validity masks for roll-based k x k 'same' conv on a flat
    (hc*wc) canvas whose lane axis is zero-padded to n_pad."""
    idx = jnp.arange(n_pad)
    r = idx // wc
    c = idx % wc
    inside = idx < hc * wc
    masks = []
    for dh in range(-radius, radius + 1):
        for dw in range(-radius, radius + 1):
            ok = inside & (r + dh >= 0) & (r + dh < hc) & (c + dw >= 0) & (c + dw < wc)
            masks.append(ok)
    return jnp.stack(masks).astype(jnp.float32)


def _interior_mask(hp, wp, n_pad):
    idx = jnp.arange(n_pad)
    r = idx // wp
    c = idx % wp
    ok = (idx < hp * wp) & (r >= 1) & (r < hp - 1) & (c >= 1) & (c < wp - 1)
    return ok.astype(jnp.float32).reshape(1, n_pad)


# ----------------------------------------------------------------------------
# Kernel 1: inverted residual block (one image per grid step)
# ----------------------------------------------------------------------------
def _irb_kernel(x_ref, wcat_ref, scat_ref, tcat_ref, wd_ref, s2_ref, t2_ref,
                w3_ref, s3_ref, t3_ref, m3_ref, o_ref, *, P, W):
    x = x_ref[...]                                            # (Cin, Sv) bf16
    # expand 1x1 (+BN1+ReLU) and shortcut 1x1 (+BNs): one fused MXU call.
    ycat = jnp.dot(wcat_ref[...], x, preferred_element_type=jnp.float32)
    ycat = ycat * scat_ref[...] + tcat_ref[...]               # (P+Co, Sv)
    h1 = jnp.maximum(ycat[:P], 0.0)                           # (P, Sv)
    shortcut = ycat[P:]                                       # (Co, Sv)

    # depthwise 3x3 (stride 1, pad 1): 9 masked lane-rolled taps (VPU + XLU).
    wd = wd_ref[...]                                          # (P, 9)
    m3 = m3_ref[...]                                          # (9, Sv)
    sv = h1.shape[1]
    acc = jnp.zeros_like(h1)
    t = 0
    for dh in (-1, 0, 1):
        for dw in (-1, 0, 1):
            d = dh * W + dw
            r = h1 if d == 0 else pltpu.roll(h1, (-d) % sv, axis=1)
            acc = acc + wd[:, t:t + 1] * (m3[t:t + 1, :] * r)
            t += 1
    h2 = jnp.maximum(acc * s2_ref[...] + t2_ref[...], 0.0)    # (P, Sv)

    # project 1x1 + BN3 + shortcut add
    y3 = jnp.dot(w3_ref[...], h2.astype(jnp.bfloat16),
                 preferred_element_type=jnp.float32)
    o_ref[...] = y3 * s3_ref[...] + t3_ref[...] + shortcut


# ----------------------------------------------------------------------------
# Kernel 2: fused CBAM (one image per grid step, on the (H+2, W+2) canvas)
# ----------------------------------------------------------------------------
def _cbam_kernel(ypad_ref, cw1_ref, sc1_ref, tc1_ref, cw2_ref, sc2_ref, tc2_ref,
                 mlpa_ref, mlpb_ref, wsa_ref, m3_ref, m7_ref, mI_ref, o_ref,
                 *, Wp, n_valid):
    yp = ypad_ref[...]                                        # (Co, Spv) f32
    spv = yp.shape[1]
    m3 = m3_ref[...]                                          # (9, Spv)
    mI = mI_ref[...]                                          # (1, Spv)

    def conv3_stack(inp):
        # taps-major stack of 9 masked, shifted copies -> one MXU matmul
        parts = []
        t = 0
        for dh in (-1, 0, 1):
            for dw in (-1, 0, 1):
                d = dh * Wp + dw
                r = inp if d == 0 else pltpu.roll(inp, (-d) % spv, axis=1)
                parts.append(m3[t:t + 1, :] * r)
                t += 1
        return jnp.concatenate(parts, axis=0).astype(jnp.bfloat16)  # (9*Co, Spv)

    # conv1 (3x3, pad=2 on the HxW grid == 'same' conv on the padded canvas)
    c1 = jnp.dot(cw1_ref[...], conv3_stack(yp), preferred_element_type=jnp.float32)
    c1 = jnp.maximum(c1 * sc1_ref[...] + tc1_ref[...], 0.0)   # (Co, Spv)

    # conv2 (3x3, pad=0) == 'same' conv on the canvas, valid on the interior
    y = jnp.dot(cw2_ref[...], conv3_stack(c1), preferred_element_type=jnp.float32)
    y = y * sc2_ref[...] + tc2_ref[...]                       # (Co, Spv)

    # ---- channel attention: pool over the valid interior only ----
    avg = jnp.sum(y * mI, axis=1, keepdims=True) * (1.0 / n_valid)   # (Co, 1)
    mx = jnp.max(jnp.where(mI > 0.0, y, -jnp.inf), axis=1, keepdims=True)

    def shared_mlp(v):                                        # v: (Co, 1)
        h = jnp.maximum(jnp.sum(mlpa_ref[...] * v, axis=0, keepdims=True), 0.0)
        return jnp.sum(mlpb_ref[...] * h, axis=1, keepdims=True)      # (Co, 1)

    ca = jax.nn.sigmoid(shared_mlp(avg) + shared_mlp(mx))     # (Co, 1)
    z = ca * (y * mI)                                         # CA applied; ring zeroed

    # ---- spatial attention: 7x7 conv over [channel-mean, channel-max] (VPU taps)
    cmean = jnp.mean(z, axis=0, keepdims=True)                # (1, Spv)
    cmax = jnp.max(z, axis=0, keepdims=True)                  # (1, Spv)
    m7 = m7_ref[...]                                          # (49, Spv)
    wsa = wsa_ref[...]                                        # (2, 49)
    acc = jnp.zeros_like(cmean)
    t = 0
    for dh in range(-3, 4):
        for dw in range(-3, 4):
            d = dh * Wp + dw
            sh = (-d) % spv
            r0 = cmean if d == 0 else pltpu.roll(cmean, sh, axis=1)
            r1 = cmax if d == 0 else pltpu.roll(cmax, sh, axis=1)
            acc = acc + m7[t:t + 1, :] * (wsa[0:1, t:t + 1] * r0 +
                                          wsa[1:2, t:t + 1] * r1)
            t += 1
    sa = jax.nn.sigmoid(acc)                                  # (1, Spv)

    # ---- combine: relu(sa * z + residual); residual == padded IRB output ----
    o_ref[...] = jnp.maximum(sa * z + yp, 0.0)


# ----------------------------------------------------------------------------
# Forward pass of Block(in_planes, out_planes, expansion, stride=1)
# ----------------------------------------------------------------------------
def block_forward(x, params):
    B, Cin, H, W = x.shape
    P = params["w1"].shape[0]
    Co = params["w3"].shape[0]
    S = H * W
    Hp, Wp = H + 2, W + 2
    Sp = Hp * Wp
    Sv = _round_up(S, LANE)
    Spv = _round_up(Sp, LANE)
    f32, bf16 = jnp.float32, jnp.bfloat16

    # ---- fold BN, pack weights into kernel layouts (tiny, done under jit) ----
    s1, t1 = bn_fold(*params["bn1"])
    ss, ts = bn_fold(*params["bns"])
    wcat = jnp.concatenate([params["w1"], params["ws"]], axis=0).astype(bf16)
    scat = jnp.concatenate([s1, ss]).reshape(P + Co, 1).astype(f32)
    tcat = jnp.concatenate([t1, ts]).reshape(P + Co, 1).astype(f32)
    s2, t2 = bn_fold(*params["bn2"])
    s2, t2 = s2.reshape(P, 1), t2.reshape(P, 1)
    s3, t3 = bn_fold(*params["bn3"])
    s3, t3 = s3.reshape(Co, 1), t3.reshape(Co, 1)
    wd = params["wd"].reshape(P, 9)
    w3 = params["w3"].astype(bf16)

    sc1, tc1 = bn_fold(*params["cbam_bn1"], bias=params["cb1"])
    sc2, tc2 = bn_fold(*params["cbam_bn2"], bias=params["cb2"])
    sc1, tc1 = sc1.reshape(Co, 1), tc1.reshape(Co, 1)
    sc2, tc2 = sc2.reshape(Co, 1), tc2.reshape(Co, 1)
    # (Co, Ci, 3, 3) -> (Co, 9*Ci), columns ordered [tap, ci] to match the stacks
    cw1 = jnp.transpose(params["cw1"], (0, 2, 3, 1)).reshape(Co, 9 * Co).astype(bf16)
    cw2 = jnp.transpose(params["cw2"], (0, 2, 3, 1)).reshape(Co, 9 * Co).astype(bf16)
    mlpa = jnp.transpose(params["mw1"])            # (Co, hidden)
    mlpb = params["mw2"]                           # (Co, hidden)
    wsa = params["saw"].reshape(2, 49)

    m3s = _shift_masks(H, W, 1, Sv)                # (9, Sv)
    m3p = _shift_masks(Hp, Wp, 1, Spv)             # (9, Spv)
    m7p = _shift_masks(Hp, Wp, 3, Spv)             # (49, Spv)
    mI = _interior_mask(Hp, Wp, Spv)               # (1, Spv)

    vmem = 32 * 1024 * 1024
    bcast2 = lambda b: (0, 0)
    img_map = lambda b: (b, 0, 0)

    # ---------------- kernel 1: inverted residual block ----------------
    x_cs = x.reshape(B, Cin, S)
    if Sv != S:
        x_cs = jnp.pad(x_cs, ((0, 0), (0, 0), (0, Sv - S)))
    x_cs = x_cs.astype(bf16)

    irb = pl.pallas_call(
        functools.partial(_irb_kernel, P=P, W=W),
        out_shape=jax.ShapeDtypeStruct((B, Co, Sv), f32),
        grid=(B,),
        in_specs=[
            pl.BlockSpec((None, Cin, Sv), img_map),
            pl.BlockSpec((P + Co, Cin), bcast2),
            pl.BlockSpec((P + Co, 1), bcast2),
            pl.BlockSpec((P + Co, 1), bcast2),
            pl.BlockSpec((P, 9), bcast2),
            pl.BlockSpec((P, 1), bcast2),
            pl.BlockSpec((P, 1), bcast2),
            pl.BlockSpec((Co, P), bcast2),
            pl.BlockSpec((Co, 1), bcast2),
            pl.BlockSpec((Co, 1), bcast2),
            pl.BlockSpec((9, Sv), bcast2),
        ],
        out_specs=pl.BlockSpec((None, Co, Sv), img_map),
        compiler_params=pltpu.CompilerParams(
            dimension_semantics=("parallel",), vmem_limit_bytes=vmem),
        cost_estimate=pl.CostEstimate(
            flops=int(B * 2 * Sv * ((P + Co) * Cin + 9 * P + Co * P)),
            transcendentals=0,
            bytes_accessed=int(B * Sv * (2 * Cin + 4 * Co)
                               + 2 * ((P + Co) * Cin + Co * P) + 4 * 9 * Sv)),
    )(x_cs, wcat, scat, tcat, wd, s2, t2, w3, s3, t3, m3s)

    # ---- glue: zero-pad the IRB output onto the (H+2, W+2) CBAM canvas ----
    irb_img = irb[:, :, :S].reshape(B, Co, H, W)
    ypad = jnp.pad(irb_img, ((0, 0), (0, 0), (1, 1), (1, 1))).reshape(B, Co, Sp)
    if Spv != Sp:
        ypad = jnp.pad(ypad, ((0, 0), (0, 0), (0, Spv - Sp)))

    # ---------------- kernel 2: fused CBAM ----------------
    out_pad = pl.pallas_call(
        functools.partial(_cbam_kernel, Wp=Wp, n_valid=float(S)),
        out_shape=jax.ShapeDtypeStruct((B, Co, Spv), f32),
        grid=(B,),
        in_specs=[
            pl.BlockSpec((None, Co, Spv), img_map),
            pl.BlockSpec((Co, 9 * Co), bcast2),
            pl.BlockSpec((Co, 1), bcast2),
            pl.BlockSpec((Co, 1), bcast2),
            pl.BlockSpec((Co, 9 * Co), bcast2),
            pl.BlockSpec((Co, 1), bcast2),
            pl.BlockSpec((Co, 1), bcast2),
            pl.BlockSpec(mlpa.shape, bcast2),
            pl.BlockSpec(mlpb.shape, bcast2),
            pl.BlockSpec((2, 49), bcast2),
            pl.BlockSpec((9, Spv), bcast2),
            pl.BlockSpec((49, Spv), bcast2),
            pl.BlockSpec((1, Spv), bcast2),
        ],
        out_specs=pl.BlockSpec((None, Co, Spv), img_map),
        compiler_params=pltpu.CompilerParams(
            dimension_semantics=("parallel",), vmem_limit_bytes=vmem),
        cost_estimate=pl.CostEstimate(
            flops=int(B * (4 * Co * 9 * Co * Spv + 400 * Spv + 10 * Co * Spv)),
            transcendentals=int(B * (Spv + 4 * Co)),
            bytes_accessed=int(B * Co * Spv * 8 + 4 * Co * 9 * Co + 4 * 59 * Spv)),
    )(ypad, cw1, sc1, tc1, cw2, sc2, tc2, mlpa, mlpb, wsa, m3p, m7p, mI)

    # ---- extract the valid interior -> NCHW (pure slice, no transpose) ----
    return out_pad[:, :, :Sp].reshape(B, Co, Hp, Wp)[:, :, 1:H + 1, 1:W + 1]


# ----------------------------------------------------------------------------
# Deterministic synthetic parameters (PyTorch layouts, eval-mode BN stats)
# ----------------------------------------------------------------------------
def _bn_init(key, c):
    k1, k2, k3, k4 = jax.random.split(key, 4)
    gamma = jax.random.uniform(k1, (c,), jnp.float32, 0.5, 1.5)
    beta = 0.1 * jax.random.normal(k2, (c,), jnp.float32)
    mean = 0.1 * jax.random.normal(k3, (c,), jnp.float32)
    var = jax.random.uniform(k4, (c,), jnp.float32, 0.5, 1.5)
    return gamma, beta, mean, var


def init_params(key, in_planes, out_planes, expansion):
    P = expansion * in_planes
    Co = out_planes
    hidden = Co // 16
    assert hidden >= 1, "out_planes must be >= 16 for ChannelAttention(ratio=16)"
    assert in_planes != out_planes, "identity shortcut not wired up (see TODO)"
    ks = jax.random.split(key, 20)
    n = lambda k, shape, s=0.1: s * jax.random.normal(k, shape, jnp.float32)
    return {
        # Inverted residual block
        "w1": n(ks[0], (P, in_planes)),          # conv1 1x1, no bias
        "bn1": _bn_init(ks[1], P),
        "wd": n(ks[2], (P, 3, 3)),               # depthwise 3x3, no bias
        "bn2": _bn_init(ks[3], P),
        "w3": n(ks[4], (Co, P)),                 # conv3 1x1, no bias
        "bn3": _bn_init(ks[5], Co),
        "ws": n(ks[6], (Co, in_planes)),         # shortcut conv 1x1, no bias
        "bns": _bn_init(ks[7], Co),
        # CBAM
        "cw1": n(ks[8], (Co, Co, 3, 3)),         # conv1 3x3 pad=2 (has bias)
        "cb1": n(ks[9], (Co,)),
        "cbam_bn1": _bn_init(ks[10], Co),
        "cw2": n(ks[11], (Co, Co, 3, 3)),        # conv2 3x3 pad=0 (has bias)
        "cb2": n(ks[12], (Co,)),
        "cbam_bn2": _bn_init(ks[13], Co),
        "mw1": n(ks[14], (hidden, Co)),          # channel-attention MLP, no bias
        "mw2": n(ks[15], (Co, hidden)),
        "saw": n(ks[16], (2, 7, 7)),             # spatial-attention 7x7, no bias
    }


if __name__ == "__main__":
    key = jax.random.PRNGKey(0)
    kx, kp = jax.random.split(key)

    B, Cin, H, W = 2, 8, 16, 16
    out_planes, expansion = 16, 2

    x = jax.random.normal(kx, (B, Cin, H, W), jnp.float32)
    params = init_params(kp, Cin, out_planes, expansion)

    fwd = jax.jit(block_forward)
    out = jax.block_until_ready(fwd(x, params))

    assert out.shape == (B, out_planes, H, W), out.shape
    assert bool(jnp.all(jnp.isfinite(out)))
    assert bool(jnp.all(out >= 0.0))  # final ReLU
    print("KERNEL_OK")
</pallas_src>

<mosaic_0001>
module attributes {stable_mosaic.version = 11 : i64} {
  func.func @_irb_kernel(%arg0: i32, %arg1: memref<1x8x256xbf16, #tpu.memory_space<vmem>>, %arg2: memref<32x8xbf16, #tpu.memory_space<vmem>>, %arg3: memref<32x1xf32, #tpu.memory_space<vmem>>, %arg4: memref<32x1xf32, #tpu.memory_space<vmem>>, %arg5: memref<16x9xf32, #tpu.memory_space<vmem>>, %arg6: memref<16x1xf32, #tpu.memory_space<vmem>>, %arg7: memref<16x1xf32, #tpu.memory_space<vmem>>, %arg8: memref<16x16xbf16, #tpu.memory_space<vmem>>, %arg9: memref<16x1xf32, #tpu.memory_space<vmem>>, %arg10: memref<16x1xf32, #tpu.memory_space<vmem>>, %arg11: memref<9x256xf32, #tpu.memory_space<vmem>>, %arg12: memref<1x16x256xf32, #tpu.memory_space<vmem>>) attributes {dimension_semantics = [#tpu.dimension_semantics<parallel>], iteration_bounds = array<i64: 2>, scalar_prefetch = 0 : i64, scratch_operands = 0 : i64, tpu.core_type = #tpu.core_type<tc>, window_params = [{transform_indices = @transform_0, window_bounds = array<i64: 1, 8, 256>}, {pipeline_mode = #tpu.pipeline_mode<synchronous>, transform_indices = @transform_1, window_bounds = array<i64: 32, 8>}, {pipeline_mode = #tpu.pipeline_mode<synchronous>, transform_indices = @transform_2, window_bounds = array<i64: 32, 1>}, {pipeline_mode = #tpu.pipeline_mode<synchronous>, transform_indices = @transform_3, window_bounds = array<i64: 32, 1>}, {pipeline_mode = #tpu.pipeline_mode<synchronous>, transform_indices = @transform_4, window_bounds = array<i64: 16, 9>}, {pipeline_mode = #tpu.pipeline_mode<synchronous>, transform_indices = @transform_5, window_bounds = array<i64: 16, 1>}, {pipeline_mode = #tpu.pipeline_mode<synchronous>, transform_indices = @transform_6, window_bounds = array<i64: 16, 1>}, {pipeline_mode = #tpu.pipeline_mode<synchronous>, transform_indices = @transform_7, window_bounds = array<i64: 16, 16>}, {pipeline_mode = #tpu.pipeline_mode<synchronous>, transform_indices = @transform_8, window_bounds = array<i64: 16, 1>}, {pipeline_mode = #tpu.pipeline_mode<synchronous>, transform_indices = @transform_9, window_bounds = array<i64: 16, 1>}, {pipeline_mode = #tpu.pipeline_mode<synchronous>, transform_indices = @transform_10, window_bounds = array<i64: 9, 256>}, {transform_indices = @transform_11, window_bounds = array<i64: 1, 16, 256>}]} {
    %c0 = arith.constant 0 : index
    %c0_0 = arith.constant 0 : index
    %c0_1 = arith.constant 0 : index
    %0 = vector.load %arg1[%c0, %c0_0, %c0_1] : memref<1x8x256xbf16, #tpu.memory_space<vmem>>, vector<1x8x256xbf16>
    %1 = vector.shape_cast %0 : vector<1x8x256xbf16> to vector<8x256xbf16>
    %c0_2 = arith.constant 0 : index
    %c0_3 = arith.constant 0 : index
    %2 = vector.load %arg2[%c0_2, %c0_3] : memref<32x8xbf16, #tpu.memory_space<vmem>>, vector<32x8xbf16>
    %cst = arith.constant dense<0.000000e+00> : vector<32x256xf32>
    %3 = tpu.matmul %2, %1, %cst {dimension_numbers = #tpu.dot_dimension_numbers<[1], [0], [0], [1], [0, 0, 1, 1], [], []>} : vector<32x8xbf16>, vector<8x256xbf16>, vector<32x256xf32> -> vector<32x256xf32>
    %c0_4 = arith.constant 0 : index
    %c0_5 = arith.constant 0 : index
    %4 = vector.load %arg3[%c0_4, %c0_5] : memref<32x1xf32, #tpu.memory_space<vmem>>, vector<32x1xf32>
    %5 = vector.broadcast %4 : vector<32x1xf32> to vector<32x256xf32>
    %6 = arith.mulf %3, %5 : vector<32x256xf32>
    %c0_6 = arith.constant 0 : index
    %c0_7 = arith.constant 0 : index
    %7 = vector.load %arg4[%c0_6, %c0_7] : memref<32x1xf32, #tpu.memory_space<vmem>>, vector<32x1xf32>
    %8 = vector.broadcast %7 : vector<32x1xf32> to vector<32x256xf32>
    %9 = arith.addf %6, %8 : vector<32x256xf32>
    %10 = vector.extract_strided_slice %9 {offsets = [0, 0], sizes = [16, 256], strides = [1, 1]} : vector<32x256xf32> to vector<16x256xf32>
    %cst_8 = arith.constant 0.000000e+00 : f32
    %11 = vector.broadcast %cst_8 : f32 to vector<16x256xf32>
    %12 = arith.maximumf %10, %11 : vector<16x256xf32>
    %13 = vector.extract_strided_slice %9 {offsets = [16, 0], sizes = [16, 256], strides = [1, 1]} : vector<32x256xf32> to vector<16x256xf32>
    %c0_9 = arith.constant 0 : index
    %c0_10 = arith.constant 0 : index
    %14 = vector.load %arg5[%c0_9, %c0_10] : memref<16x9xf32, #tpu.memory_space<vmem>>, vector<16x9xf32>
    %c0_11 = arith.constant 0 : index
    %c0_12 = arith.constant 0 : index
    %15 = vector.load %arg11[%c0_11, %c0_12] : memref<9x256xf32, #tpu.memory_space<vmem>>, vector<9x256xf32>
    %cst_13 = arith.constant 0.000000e+00 : f32
    %16 = vector.broadcast %cst_13 : f32 to vector<16x256xf32>
    %c17_i32 = arith.constant 17 : i32
    %17 = tpu.dynamic_rotate %12 by %c17_i32 dim 1 : vector<16x256xf32>, i32 -> vector<16x256xf32>
    %18 = vector.extract_strided_slice %14 {offsets = [0, 0], sizes = [16, 1], strides = [1, 1]} : vector<16x9xf32> to vector<16x1xf32>
    %19 = vector.extract_strided_slice %15 {offsets = [0, 0], sizes = [1, 256], strides = [1, 1]} : vector<9x256xf32> to vector<1x256xf32>
    %20 = vector.broadcast %19 : vector<1x256xf32> to vector<16x256xf32>
    %21 = arith.mulf %20, %17 : vector<16x256xf32>
    %22 = vector.broadcast %18 : vector<16x1xf32> to vector<16x256xf32>
    %23 = arith.mulf %22, %21 : vector<16x256xf32>
    %24 = arith.addf %16, %23 : vector<16x256xf32>
    %c16_i32 = arith.constant 16 : i32
    %25 = tpu.dynamic_rotate %12 by %c16_i32 dim 1 : vector<16x256xf32>, i32 -> vector<16x256xf32>
    %26 = vector.extract_strided_slice %14 {offsets = [0, 1], sizes = [16, 1], strides = [1, 1]} : vector<16x9xf32> to vector<16x1xf32>
    %27 = vector.extract_strided_slice %15 {offsets = [1, 0], sizes = [1, 256], strides = [1, 1]} : vector<9x256xf32> to vector<1x256xf32>
    %28 = vector.broadcast %27 : vector<1x256xf32> to vector<16x256xf32>
    %29 = arith.mulf %28, %25 : vector<16x256xf32>
    %30 = vector.broadcast %26 : vector<16x1xf32> to vector<16x256xf32>
    %31 = arith.mulf %30, %29 : vector<16x256xf32>
    %32 = arith.addf %24, %31 : vector<16x256xf32>
    %c15_i32 = arith.constant 15 : i32
    %33 = tpu.dynamic_rotate %12 by %c15_i32 dim 1 : vector<16x256xf32>, i32 -> vector<16x256xf32>
    %34 = vector.extract_strided_slice %14 {offsets = [0, 2], sizes = [16, 1], strides = [1, 1]} : vector<16x9xf32> to vector<16x1xf32>
    %35 = vector.extract_strided_slice %15 {offsets = [2, 0], sizes = [1, 256], strides = [1, 1]} : vector<9x256xf32> to vector<1x256xf32>
    %36 = vector.broadcast %35 : vector<1x256xf32> to vector<16x256xf32>
    %37 = arith.mulf %36, %33 : vector<16x256xf32>
    %38 = vector.broadcast %34 : vector<16x1xf32> to vector<16x256xf32>
    %39 = arith.mulf %38, %37 : vector<16x256xf32>
    %40 = arith.addf %32, %39 : vector<16x256xf32>
    %c1_i32 = arith.constant 1 : i32
    %41 = tpu.dynamic_rotate %12 by %c1_i32 dim 1 : vector<16x256xf32>, i32 -> vector<16x256xf32>
    %42 = vector.extract_strided_slice %14 {offsets = [0, 3], sizes = [16, 1], strides = [1, 1]} : vector<16x9xf32> to vector<16x1xf32>
    %43 = vector.extract_strided_slice %15 {offsets = [3, 0], sizes = [1, 256], strides = [1, 1]} : vector<9x256xf32> to vector<1x256xf32>
    %44 = vector.broadcast %43 : vector<1x256xf32> to vector<16x256xf32>
    %45 = arith.mulf %44, %41 : vector<16x256xf32>
    %46 = vector.broadcast %42 : vector<16x1xf32> to vector<16x256xf32>
    %47 = arith.mulf %46, %45 : vector<16x256xf32>
    %48 = arith.addf %40, %47 : vector<16x256xf32>
    %49 = vector.extract_strided_slice %14 {offsets = [0, 4], sizes = [16, 1], strides = [1, 1]} : vector<16x9xf32> to vector<16x1xf32>
    %50 = vector.extract_strided_slice %15 {offsets = [4, 0], sizes = [1, 256], strides = [1, 1]} : vector<9x256xf32> to vector<1x256xf32>
    %51 = vector.broadcast %50 : vector<1x256xf32> to vector<16x256xf32>
    %52 = arith.mulf %51, %12 : vector<16x256xf32>
    %53 = vector.broadcast %49 : vector<16x1xf32> to vector<16x256xf32>
    %54 = arith.mulf %53, %52 : vector<16x256xf32>
    %55 = arith.addf %48, %54 : vector<16x256xf32>
    %c255_i32 = arith.constant 255 : i32
    %56 = tpu.dynamic_rotate %12 by %c255_i32 dim 1 : vector<16x256xf32>, i32 -> vector<16x256xf32>
    %57 = vector.extract_strided_slice %14 {offsets = [0, 5], sizes = [16, 1], strides = [1, 1]} : vector<16x9xf32> to vector<16x1xf32>
    %58 = vector.extract_strided_slice %15 {offsets = [5, 0], sizes = [1, 256], strides = [1, 1]} : vector<9x256xf32> to vector<1x256xf32>
    %59 = vector.broadcast %58 : vector<1x256xf32> to vector<16x256xf32>
    %60 = arith.mulf %59, %56 : vector<16x256xf32>
    %61 = vector.broadcast %57 : vector<16x1xf32> to vector<16x256xf32>
    %62 = arith.mulf %61, %60 : vector<16x256xf32>
    %63 = arith.addf %55, %62 : vector<16x256xf32>
    %c241_i32 = arith.constant 241 : i32
    %64 = tpu.dynamic_rotate %12 by %c241_i32 dim 1 : vector<16x256xf32>, i32 -> vector<16x256xf32>
    %65 = vector.extract_strided_slice %14 {offsets = [0, 6], sizes = [16, 1], strides = [1, 1]} : vector<16x9xf32> to vector<16x1xf32>
    %66 = vector.extract_strided_slice %15 {offsets = [6, 0], sizes = [1, 256], strides = [1, 1]} : vector<9x256xf32> to vector<1x256xf32>
    %67 = vector.broadcast %66 : vector<1x256xf32> to vector<16x256xf32>
    %68 = arith.mulf %67, %64 : vector<16x256xf32>
    %69 = vector.broadcast %65 : vector<16x1xf32> to vector<16x256xf32>
    %70 = arith.mulf %69, %68 : vector<16x256xf32>
    %71 = arith.addf %63, %70 : vector<16x256xf32>
    %c240_i32 = arith.constant 240 : i32
    %72 = tpu.dynamic_rotate %12 by %c240_i32 dim 1 : vector<16x256xf32>, i32 -> vector<16x256xf32>
    %73 = vector.extract_strided_slice %14 {offsets = [0, 7], sizes = [16, 1], strides = [1, 1]} : vector<16x9xf32> to vector<16x1xf32>
    %74 = vector.extract_strided_slice %15 {offsets = [7, 0], sizes = [1, 256], strides = [1, 1]} : vector<9x256xf32> to vector<1x256xf32>
    %75 = vector.broadcast %74 : vector<1x256xf32> to vector<16x256xf32>
    %76 = arith.mulf %75, %72 : vector<16x256xf32>
    %77 = vector.broadcast %73 : vector<16x1xf32> to vector<16x256xf32>
    %78 = arith.mulf %77, %76 : vector<16x256xf32>
    %79 = arith.addf %71, %78 : vector<16x256xf32>
    %c239_i32 = arith.constant 239 : i32
    %80 = tpu.dynamic_rotate %12 by %c239_i32 dim 1 : vector<16x256xf32>, i32 -> vector<16x256xf32>
    %81 = vector.extract_strided_slice %14 {offsets = [0, 8], sizes = [16, 1], strides = [1, 1]} : vector<16x9xf32> to vector<16x1xf32>
    %82 = vector.extract_strided_slice %15 {offsets = [8, 0], sizes = [1, 256], strides = [1, 1]} : vector<9x256xf32> to vector<1x256xf32>
    %83 = vector.broadcast %82 : vector<1x256xf32> to vector<16x256xf32>
    %84 = arith.mulf %83, %80 : vector<16x256xf32>
    %85 = vector.broadcast %81 : vector<16x1xf32> to vector<16x256xf32>
    %86 = arith.mulf %85, %84 : vector<16x256xf32>
    %87 = arith.addf %79, %86 : vector<16x256xf32>
    %c0_14 = arith.constant 0 : index
    %c0_15 = arith.constant 0 : index
    %88 = vector.load %arg6[%c0_14, %c0_15] : memref<16x1xf32, #tpu.memory_space<vmem>>, vector<16x1xf32>
    %89 = vector.broadcast %88 : vector<16x1xf32> to vector<16x256xf32>
    %90 = arith.mulf %87, %89 : vector<16x256xf32>
    %c0_16 = arith.constant 0 : index
    %c0_17 = arith.constant 0 : index
    %91 = vector.load %arg7[%c0_16, %c0_17] : memref<16x1xf32, #tpu.memory_space<vmem>>, vector<16x1xf32>
    %92 = vector.broadcast %91 : vector<16x1xf32> to vector<16x256xf32>
    %93 = arith.addf %90, %92 : vector<16x256xf32>
    %cst_18 = arith.constant 0.000000e+00 : f32
    %94 = vector.broadcast %cst_18 : f32 to vector<16x256xf32>
    %95 = arith.maximumf %93, %94 : vector<16x256xf32>
    %c0_19 = arith.constant 0 : index
    %c0_20 = arith.constant 0 : index
    %96 = vector.load %arg8[%c0_19, %c0_20] : memref<16x16xbf16, #tpu.memory_space<vmem>>, vector<16x16xbf16>
    %97 = arith.truncf %95 : vector<16x256xf32> to vector<16x256xbf16>
    %cst_21 = arith.constant dense<0.000000e+00> : vector<16x256xf32>
    %98 = tpu.matmul %96, %97, %cst_21 {dimension_numbers = #tpu.dot_dimension_numbers<[1], [0], [0], [1], [0, 0, 1, 1], [], []>} : vector<16x16xbf16>, vector<16x256xbf16>, vector<16x256xf32> -> vector<16x256xf32>
    %c0_22 = arith.constant 0 : index
    %c0_23 = arith.constant 0 : index
    %99 = vector.load %arg9[%c0_22, %c0_23] : memref<16x1xf32, #tpu.memory_space<vmem>>, vector<16x1xf32>
    %100 = vector.broadcast %99 : vector<16x1xf32> to vector<16x256xf32>
    %101 = arith.mulf %98, %100 : vector<16x256xf32>
    %c0_24 = arith.constant 0 : index
    %c0_25 = arith.constant 0 : index
    %102 = vector.load %arg10[%c0_24, %c0_25] : memref<16x1xf32, #tpu.memory_space<vmem>>, vector<16x1xf32>
    %103 = vector.broadcast %102 : vector<16x1xf32> to vector<16x256xf32>
    %104 = arith.addf %101, %103 : vector<16x256xf32>
    %105 = arith.addf %104, %13 : vector<16x256xf32>
    %c0_26 = arith.constant 0 : index
    %c0_27 = arith.constant 0 : index
    %c0_28 = arith.constant 0 : index
    %106 = vector.load %arg12[%c0_26, %c0_27, %c0_28] : memref<1x16x256xf32, #tpu.memory_space<vmem>>, vector<1x16x256xf32>
    %107 = vector.shape_cast %106 : vector<1x16x256xf32> to vector<16x256xf32>
    %108 = vector.shape_cast %105 : vector<16x256xf32> to vector<1x16x256xf32>
    tpu.vector_store %arg12[%c0_26, %c0_27, %c0_28], %108 {strides = array<i32>} : memref<1x16x256xf32, #tpu.memory_space<vmem>>, vector<1x16x256xf32>,
    return
  }
  func.func @transform_0(%arg0: i32) -> (i32, i32, i32) {
    %c0_i32 = arith.constant 0 : i32
    %c0_i32_0 = arith.constant 0 : i32
    %c0_i32_1 = arith.constant 0 : i32
    return %arg0, %c0_i32, %c0_i32_0 : i32, i32, i32
  }
  func.func @transform_1(%arg0: i32) -> (i32, i32) {
    %c0_i32 = arith.constant 0 : i32
    %c0_i32_0 = arith.constant 0 : i32
    %c0_i32_1 = arith.constant 0 : i32
    return %c0_i32, %c0_i32_0 : i32, i32
  }
  func.func @transform_2(%arg0: i32) -> (i32, i32) {
    %c0_i32 = arith.constant 0 : i32
    %c0_i32_0 = arith.constant 0 : i32
    %c0_i32_1 = arith.constant 0 : i32
    return %c0_i32, %c0_i32_0 : i32, i32
  }
  func.func @transform_3(%arg0: i32) -> (i32, i32) {
    %c0_i32 = arith.constant 0 : i32
    %c0_i32_0 = arith.constant 0 : i32
    %c0_i32_1 = arith.constant 0 : i32
    return %c0_i32, %c0_i32_0 : i32, i32
  }
  func.func @transform_4(%arg0: i32) -> (i32, i32) {
    %c0_i32 = arith.constant 0 : i32
    %c0_i32_0 = arith.constant 0 : i32
    %c0_i32_1 = arith.constant 0 : i32
    return %c0_i32, %c0_i32_0 : i32, i32
  }
  func.func @transform_5(%arg0: i32) -> (i32, i32) {
    %c0_i32 = arith.constant 0 : i32
    %c0_i32_0 = arith.constant 0 : i32
    %c0_i32_1 = arith.constant 0 : i32
    return %c0_i32, %c0_i32_0 : i32, i32
  }
  func.func @transform_6(%arg0: i32) -> (i32, i32) {
    %c0_i32 = arith.constant 0 : i32
    %c0_i32_0 = arith.constant 0 : i32
    %c0_i32_1 = arith.constant 0 : i32
    return %c0_i32, %c0_i32_0 : i32, i32
  }
  func.func @transform_7(%arg0: i32) -> (i32, i32) {
    %c0_i32 = arith.constant 0 : i32
    %c0_i32_0 = arith.constant 0 : i32
    %c0_i32_1 = arith.constant 0 : i32
    return %c0_i32, %c0_i32_0 : i32, i32
  }
  func.func @transform_8(%arg0: i32) -> (i32, i32) {
    %c0_i32 = arith.constant 0 : i32
    %c0_i32_0 = arith.constant 0 : i32
    %c0_i32_1 = arith.constant 0 : i32
    return %c0_i32, %c0_i32_0 : i32, i32
  }
  func.func @transform_9(%arg0: i32) -> (i32, i32) {
    %c0_i32 = arith.constant 0 : i32
    %c0_i32_0 = arith.constant 0 : i32
    %c0_i32_1 = arith.constant 0 : i32
    return %c0_i32, %c0_i32_0 : i32, i32
  }
  func.func @transform_10(%arg0: i32) -> (i32, i32) {
    %c0_i32 = arith.constant 0 : i32
    %c0_i32_0 = arith.constant 0 : i32
    %c0_i32_1 = arith.constant 0 : i32
    return %c0_i32, %c0_i32_0 : i32, i32
  }
  func.func @transform_11(%arg0: i32) -> (i32, i32, i32) {
    %c0_i32 = arith.constant 0 : i32
    %c0_i32_0 = arith.constant 0 : i32
    %c0_i32_1 = arith.constant 0 : i32
    return %arg0, %c0_i32, %c0_i32_0 : i32, i32, i32
  }
}

module attributes {stable_mosaic.version = 11 : i64} {
  func.func @_cbam_kernel(%arg0: i32, %arg1: memref<1x16x384xf32, #tpu.memory_space<vmem>>, %arg2: memref<16x144xbf16, #tpu.memory_space<vmem>>, %arg3: memref<16x1xf32, #tpu.memory_space<vmem>>, %arg4: memref<16x1xf32, #tpu.memory_space<vmem>>, %arg5: memref<16x144xbf16, #tpu.memory_space<vmem>>, %arg6: memref<16x1xf32, #tpu.memory_space<vmem>>, %arg7: memref<16x1xf32, #tpu.memory_space<vmem>>, %arg8: memref<16x1xf32, #tpu.memory_space<vmem>>, %arg9: memref<16x1xf32, #tpu.memory_space<vmem>>, %arg10: memref<2x49xf32, #tpu.memory_space<vmem>>, %arg11: memref<9x384xf32, #tpu.memory_space<vmem>>, %arg12: memref<49x384xf32, #tpu.memory_space<vmem>>, %arg13: memref<1x384xf32, #tpu.memory_space<vmem>>, %arg14: memref<1x16x384xf32, #tpu.memory_space<vmem>>) attributes {dimension_semantics = [#tpu.dimension_semantics<parallel>], iteration_bounds = array<i64: 2>, scalar_prefetch = 0 : i64, scratch_operands = 0 : i64, tpu.core_type = #tpu.core_type<tc>, window_params = [{transform_indices = @transform_0, window_bounds = array<i64: 1, 16, 384>}, {pipeline_mode = #tpu.pipeline_mode<synchronous>, transform_indices = @transform_1, window_bounds = array<i64: 16, 144>}, {pipeline_mode = #tpu.pipeline_mode<synchronous>, transform_indices = @transform_2, window_bounds = array<i64: 16, 1>}, {pipeline_mode = #tpu.pipeline_mode<synchronous>, transform_indices = @transform_3, window_bounds = array<i64: 16, 1>}, {pipeline_mode = #tpu.pipeline_mode<synchronous>, transform_indices = @transform_4, window_bounds = array<i64: 16, 144>}, {pipeline_mode = #tpu.pipeline_mode<synchronous>, transform_indices = @transform_5, window_bounds = array<i64: 16, 1>}, {pipeline_mode = #tpu.pipeline_mode<synchronous>, transform_indices = @transform_6, window_bounds = array<i64: 16, 1>}, {pipeline_mode = #tpu.pipeline_mode<synchronous>, transform_indices = @transform_7, window_bounds = array<i64: 16, 1>}, {pipeline_mode = #tpu.pipeline_mode<synchronous>, transform_indices = @transform_8, window_bounds = array<i64: 16, 1>}, {pipeline_mode = #tpu.pipeline_mode<synchronous>, transform_indices = @transform_9, window_bounds = array<i64: 2, 49>}, {pipeline_mode = #tpu.pipeline_mode<synchronous>, transform_indices = @transform_10, window_bounds = array<i64: 9, 384>}, {pipeline_mode = #tpu.pipeline_mode<synchronous>, transform_indices = @transform_11, window_bounds = array<i64: 49, 384>}, {pipeline_mode = #tpu.pipeline_mode<synchronous>, transform_indices = @transform_12, window_bounds = array<i64: 1, 384>}, {transform_indices = @transform_13, window_bounds = array<i64: 1, 16, 384>}]} {
    %c0 = arith.constant 0 : index
    %c0_0 = arith.constant 0 : index
    %c0_1 = arith.constant 0 : index
    %0 = vector.load %arg1[%c0, %c0_0, %c0_1] : memref<1x16x384xf32, #tpu.memory_space<vmem>>, vector<1x16x384xf32>
    %1 = vector.shape_cast %0 : vector<1x16x384xf32> to vector<16x384xf32>
    %c0_2 = arith.constant 0 : index
    %c0_3 = arith.constant 0 : index
    %2 = vector.load %arg11[%c0_2, %c0_3] : memref<9x384xf32, #tpu.memory_space<vmem>>, vector<9x384xf32>
    %c0_4 = arith.constant 0 : index
    %c0_5 = arith.constant 0 : index
    %3 = vector.load %arg13[%c0_4, %c0_5] : memref<1x384xf32, #tpu.memory_space<vmem>>, vector<1x384xf32>
    %c0_6 = arith.constant 0 : index
    %c0_7 = arith.constant 0 : index
    %4 = vector.load %arg2[%c0_6, %c0_7] : memref<16x144xbf16, #tpu.memory_space<vmem>>, vector<16x144xbf16>
    %c19_i32 = arith.constant 19 : i32
    %5 = tpu.dynamic_rotate %1 by %c19_i32 dim 1 : vector<16x384xf32>, i32 -> vector<16x384xf32>
    %6 = vector.extract_strided_slice %2 {offsets = [0, 0], sizes = [1, 384], strides = [1, 1]} : vector<9x384xf32> to vector<1x384xf32>
    %7 = vector.broadcast %6 : vector<1x384xf32> to vector<16x384xf32>
    %8 = arith.mulf %7, %5 : vector<16x384xf32>
    %c18_i32 = arith.constant 18 : i32
    %9 = tpu.dynamic_rotate %1 by %c18_i32 dim 1 : vector<16x384xf32>, i32 -> vector<16x384xf32>
    %10 = vector.extract_strided_slice %2 {offsets = [1, 0], sizes = [1, 384], strides = [1, 1]} : vector<9x384xf32> to vector<1x384xf32>
    %11 = vector.broadcast %10 : vector<1x384xf32> to vector<16x384xf32>
    %12 = arith.mulf %11, %9 : vector<16x384xf32>
    %c17_i32 = arith.constant 17 : i32
    %13 = tpu.dynamic_rotate %1 by %c17_i32 dim 1 : vector<16x384xf32>, i32 -> vector<16x384xf32>
    %14 = vector.extract_strided_slice %2 {offsets = [2, 0], sizes = [1, 384], strides = [1, 1]} : vector<9x384xf32> to vector<1x384xf32>
    %15 = vector.broadcast %14 : vector<1x384xf32> to vector<16x384xf32>
    %16 = arith.mulf %15, %13 : vector<16x384xf32>
    %c1_i32 = arith.constant 1 : i32
    %17 = tpu.dynamic_rotate %1 by %c1_i32 dim 1 : vector<16x384xf32>, i32 -> vector<16x384xf32>
    %18 = vector.extract_strided_slice %2 {offsets = [3, 0], sizes = [1, 384], strides = [1, 1]} : vector<9x384xf32> to vector<1x384xf32>
    %19 = vector.broadcast %18 : vector<1x384xf32> to vector<16x384xf32>
    %20 = arith.mulf %19, %17 : vector<16x384xf32>
    %21 = vector.extract_strided_slice %2 {offsets = [4, 0], sizes = [1, 384], strides = [1, 1]} : vector<9x384xf32> to vector<1x384xf32>
    %22 = vector.broadcast %21 : vector<1x384xf32> to vector<16x384xf32>
    %23 = arith.mulf %22, %1 : vector<16x384xf32>
    %c383_i32 = arith.constant 383 : i32
    %24 = tpu.dynamic_rotate %1 by %c383_i32 dim 1 : vector<16x384xf32>, i32 -> vector<16x384xf32>
    %25 = vector.extract_strided_slice %2 {offsets = [5, 0], sizes = [1, 384], strides = [1, 1]} : vector<9x384xf32> to vector<1x384xf32>
    %26 = vector.broadcast %25 : vector<1x384xf32> to vector<16x384xf32>
    %27 = arith.mulf %26, %24 : vector<16x384xf32>
    %c367_i32 = arith.constant 367 : i32
    %28 = tpu.dynamic_rotate %1 by %c367_i32 dim 1 : vector<16x384xf32>, i32 -> vector<16x384xf32>
    %29 = vector.extract_strided_slice %2 {offsets = [6, 0], sizes = [1, 384], strides = [1, 1]} : vector<9x384xf32> to vector<1x384xf32>
    %30 = vector.broadcast %29 : vector<1x384xf32> to vector<16x384xf32>
    %31 = arith.mulf %30, %28 : vector<16x384xf32>
    %c366_i32 = arith.constant 366 : i32
    %32 = tpu.dynamic_rotate %1 by %c366_i32 dim 1 : vector<16x384xf32>, i32 -> vector<16x384xf32>
    %33 = vector.extract_strided_slice %2 {offsets = [7, 0], sizes = [1, 384], strides = [1, 1]} : vector<9x384xf32> to vector<1x384xf32>
    %34 = vector.broadcast %33 : vector<1x384xf32> to vector<16x384xf32>
    %35 = arith.mulf %34, %32 : vector<16x384xf32>
    %c365_i32 = arith.constant 365 : i32
    %36 = tpu.dynamic_rotate %1 by %c365_i32 dim 1 : vector<16x384xf32>, i32 -> vector<16x384xf32>
    %37 = vector.extract_strided_slice %2 {offsets = [8, 0], sizes = [1, 384], strides = [1, 1]} : vector<9x384xf32> to vector<1x384xf32>
    %38 = vector.broadcast %37 : vector<1x384xf32> to vector<16x384xf32>
    %39 = arith.mulf %38, %36 : vector<16x384xf32>
    %40 = tpu.concatenate %8, %12, %16, %20, %23, %27, %31, %35, %39 in 0 : vector<16x384xf32>, vector<16x384xf32>, vector<16x384xf32>, vector<16x384xf32>, vector<16x384xf32>, vector<16x384xf32>, vector<16x384xf32>, vector<16x384xf32>, vector<16x384xf32> -> vector<144x384xf32>
    %41 = arith.truncf %40 : vector<144x384xf32> to vector<144x384xbf16>
    %cst = arith.constant dense<0.000000e+00> : vector<16x384xf32>
    %42 = tpu.matmul %4, %41, %cst {dimension_numbers = #tpu.dot_dimension_numbers<[1], [0], [0], [1], [0, 0, 1, 1], [], []>} : vector<16x144xbf16>, vector<144x384xbf16>, vector<16x384xf32> -> vector<16x384xf32>
    %c0_8 = arith.constant 0 : index
    %c0_9 = arith.constant 0 : index
    %43 = vector.load %arg3[%c0_8, %c0_9] : memref<16x1xf32, #tpu.memory_space<vmem>>, vector<16x1xf32>
    %44 = vector.broadcast %43 : vector<16x1xf32> to vector<16x384xf32>
    %45 = arith.mulf %42, %44 : vector<16x384xf32>
    %c0_10 = arith.constant 0 : index
    %c0_11 = arith.constant 0 : index
    %46 = vector.load %arg4[%c0_10, %c0_11] : memref<16x1xf32, #tpu.memory_space<vmem>>, vector<16x1xf32>
    %47 = vector.broadcast %46 : vector<16x1xf32> to vector<16x384xf32>
    %48 = arith.addf %45, %47 : vector<16x384xf32>
    %cst_12 = arith.constant 0.000000e+00 : f32
    %49 = vector.broadcast %cst_12 : f32 to vector<16x384xf32>
    %50 = arith.maximumf %48, %49 : vector<16x384xf32>
    %c0_13 = arith.constant 0 : index
    %c0_14 = arith.constant 0 : index
    %51 = vector.load %arg5[%c0_13, %c0_14] : memref<16x144xbf16, #tpu.memory_space<vmem>>, vector<16x144xbf16>
    %c19_i32_15 = arith.constant 19 : i32
    %52 = tpu.dynamic_rotate %50 by %c19_i32_15 dim 1 : vector<16x384xf32>, i32 -> vector<16x384xf32>
    %53 = vector.extract_strided_slice %2 {offsets = [0, 0], sizes = [1, 384], strides = [1, 1]} : vector<9x384xf32> to vector<1x384xf32>
    %54 = vector.broadcast %53 : vector<1x384xf32> to vector<16x384xf32>
    %55 = arith.mulf %54, %52 : vector<16x384xf32>
    %c18_i32_16 = arith.constant 18 : i32
    %56 = tpu.dynamic_rotate %50 by %c18_i32_16 dim 1 : vector<16x384xf32>, i32 -> vector<16x384xf32>
    %57 = vector.extract_strided_slice %2 {offsets = [1, 0], sizes = [1, 384], strides = [1, 1]} : vector<9x384xf32> to vector<1x384xf32>
    %58 = vector.broadcast %57 : vector<1x384xf32> to vector<16x384xf32>
    %59 = arith.mulf %58, %56 : vector<16x384xf32>
    %c17_i32_17 = arith.constant 17 : i32
    %60 = tpu.dynamic_rotate %50 by %c17_i32_17 dim 1 : vector<16x384xf32>, i32 -> vector<16x384xf32>
    %61 = vector.extract_strided_slice %2 {offsets = [2, 0], sizes = [1, 384], strides = [1, 1]} : vector<9x384xf32> to vector<1x384xf32>
    %62 = vector.broadcast %61 : vector<1x384xf32> to vector<16x384xf32>
    %63 = arith.mulf %62, %60 : vector<16x384xf32>
    %c1_i32_18 = arith.constant 1 : i32
    %64 = tpu.dynamic_rotate %50 by %c1_i32_18 dim 1 : vector<16x384xf32>, i32 -> vector<16x384xf32>
    %65 = vector.extract_strided_slice %2 {offsets = [3, 0], sizes = [1, 384], strides = [1, 1]} : vector<9x384xf32> to vector<1x384xf32>
    %66 = vector.broadcast %65 : vector<1x384xf32> to vector<16x384xf32>
    %67 = arith.mulf %66, %64 : vector<16x384xf32>
    %68 = vector.extract_strided_slice %2 {offsets = [4, 0], sizes = [1, 384], strides = [1, 1]} : vector<9x384xf32> to vector<1x384xf32>
    %69 = vector.broadcast %68 : vector<1x384xf32> to vector<16x384xf32>
    %70 = arith.mulf %69, %50 : vector<16x384xf32>
    %c383_i32_19 = arith.constant 383 : i32
    %71 = tpu.dynamic_rotate %50 by %c383_i32_19 dim 1 : vector<16x384xf32>, i32 -> vector<16x384xf32>
    %72 = vector.extract_strided_slice %2 {offsets = [5, 0], sizes = [1, 384], strides = [1, 1]} : vector<9x384xf32> to vector<1x384xf32>
    %73 = vector.broadcast %72 : vector<1x384xf32> to vector<16x384xf32>
    %74 = arith.mulf %73, %71 : vector<16x384xf32>
    %c367_i32_20 = arith.constant 367 : i32
    %75 = tpu.dynamic_rotate %50 by %c367_i32_20 dim 1 : vector<16x384xf32>, i32 -> vector<16x384xf32>
    %76 = vector.extract_strided_slice %2 {offsets = [6, 0], sizes = [1, 384], strides = [1, 1]} : vector<9x384xf32> to vector<1x384xf32>
    %77 = vector.broadcast %76 : vector<1x384xf32> to vector<16x384xf32>
    %78 = arith.mulf %77, %75 : vector<16x384xf32>
    %c366_i32_21 = arith.constant 366 : i32
    %79 = tpu.dynamic_rotate %50 by %c366_i32_21 dim 1 : vector<16x384xf32>, i32 -> vector<16x384xf32>
    %80 = vector.extract_strided_slice %2 {offsets = [7, 0], sizes = [1, 384], strides = [1, 1]} : vector<9x384xf32> to vector<1x384xf32>
    %81 = vector.broadcast %80 : vector<1x384xf32> to vector<16x384xf32>
    %82 = arith.mulf %81, %79 : vector<16x384xf32>
    %c365_i32_22 = arith.constant 365 : i32
    %83 = tpu.dynamic_rotate %50 by %c365_i32_22 dim 1 : vector<16x384xf32>, i32 -> vector<16x384xf32>
    %84 = vector.extract_strided_slice %2 {offsets = [8, 0], sizes = [1, 384], strides = [1, 1]} : vector<9x384xf32> to vector<1x384xf32>
    %85 = vector.broadcast %84 : vector<1x384xf32> to vector<16x384xf32>
    %86 = arith.mulf %85, %83 : vector<16x384xf32>
    %87 = tpu.concatenate %55, %59, %63, %67, %70, %74, %78, %82, %86 in 0 : vector<16x384xf32>, vector<16x384xf32>, vector<16x384xf32>, vector<16x384xf32>, vector<16x384xf32>, vector<16x384xf32>, vector<16x384xf32>, vector<16x384xf32>, vector<16x384xf32> -> vector<144x384xf32>
    %88 = arith.truncf %87 : vector<144x384xf32> to vector<144x384xbf16>
    %cst_23 = arith.constant dense<0.000000e+00> : vector<16x384xf32>
    %89 = tpu.matmul %51, %88, %cst_23 {dimension_numbers = #tpu.dot_dimension_numbers<[1], [0], [0], [1], [0, 0, 1, 1], [], []>} : vector<16x144xbf16>, vector<144x384xbf16>, vector<16x384xf32> -> vector<16x384xf32>
    %c0_24 = arith.constant 0 : index
    %c0_25 = arith.constant 0 : index
    %90 = vector.load %arg6[%c0_24, %c0_25] : memref<16x1xf32, #tpu.memory_space<vmem>>, vector<16x1xf32>
    %91 = vector.broadcast %90 : vector<16x1xf32> to vector<16x384xf32>
    %92 = arith.mulf %89, %91 : vector<16x384xf32>
    %c0_26 = arith.constant 0 : index
    %c0_27 = arith.constant 0 : index
    %93 = vector.load %arg7[%c0_26, %c0_27] : memref<16x1xf32, #tpu.memory_space<vmem>>, vector<16x1xf32>
    %94 = vector.broadcast %93 : vector<16x1xf32> to vector<16x384xf32>
    %95 = arith.addf %92, %94 : vector<16x384xf32>
    %96 = vector.broadcast %3 : vector<1x384xf32> to vector<16x384xf32>
    %97 = arith.mulf %95, %96 : vector<16x384xf32>
    %cst_28 = arith.constant dense<0.000000e+00> : vector<16xf32>
    %98 = vector.multi_reduction <add>, %97, %cst_28 [1] : vector<16x384xf32> to vector<16xf32>
    %99 = vector.shape_cast %98 : vector<16xf32> to vector<16x1xf32>
    %cst_29 = arith.constant 3.906250e-03 : f32
    %100 = vector.broadcast %cst_29 : f32 to vector<16x1xf32>
    %101 = arith.mulf %99, %100 : vector<16x1xf32>
    %cst_30 = arith.constant 0.000000e+00 : f32
    %102 = vector.broadcast %cst_30 : f32 to vector<1x384xf32>
    %103 = arith.cmpf ogt, %3, %102 : vector<1x384xf32>
    %cst_31 = arith.constant 0xFF800000 : f32
    %104 = vector.shape_cast %103 : vector<1x384xi1> to vector<1x384xi1>
    %105 = vector.broadcast %104 : vector<1x384xi1> to vector<16x384xi1>
    %106 = vector.broadcast %cst_31 : f32 to vector<16x384xf32>
    %107 = arith.select %105, %95, %106 : vector<16x384xi1>, vector<16x384xf32>
    %cst_32 = arith.constant dense<0xFF800000> : vector<16xf32>
    %108 = vector.multi_reduction <maximumf>, %107, %cst_32 [1] : vector<16x384xf32> to vector<16xf32>
    %109 = vector.shape_cast %108 : vector<16xf32> to vector<16x1xf32>
    %c0_33 = arith.constant 0 : index
    %c0_34 = arith.constant 0 : index
    %110 = vector.load %arg8[%c0_33, %c0_34] : memref<16x1xf32, #tpu.memory_space<vmem>>, vector<16x1xf32>
    %111 = arith.mulf %110, %101 : vector<16x1xf32>
    %cst_35 = arith.constant dense<0.000000e+00> : vector<1xf32>
    %112 = vector.multi_reduction <add>, %111, %cst_35 [0] : vector<16x1xf32> to vector<1xf32>
    %113 = vector.shape_cast %112 : vector<1xf32> to vector<1x1xf32>
    %cst_36 = arith.constant 0.000000e+00 : f32
    %114 = vector.broadcast %cst_36 : f32 to vector<1x1xf32>
    %115 = arith.maximumf %113, %114 : vector<1x1xf32>
    %c0_37 = arith.constant 0 : index
    %c0_38 = arith.constant 0 : index
    %116 = vector.load %arg9[%c0_37, %c0_38] : memref<16x1xf32, #tpu.memory_space<vmem>>, vector<16x1xf32>
    %117 = vector.broadcast %115 : vector<1x1xf32> to vector<16x1xf32>
    %118 = arith.mulf %116, %117 : vector<16x1xf32>
    %cst_39 = arith.constant dense<0.000000e+00> : vector<16xf32>
    %119 = vector.multi_reduction <add>, %118, %cst_39 [1] : vector<16x1xf32> to vector<16xf32>
    %120 = vector.shape_cast %119 : vector<16xf32> to vector<16x1xf32>
    %c0_40 = arith.constant 0 : index
    %c0_41 = arith.constant 0 : index
    %121 = vector.load %arg8[%c0_40, %c0_41] : memref<16x1xf32, #tpu.memory_space<vmem>>, vector<16x1xf32>
    %122 = arith.mulf %121, %109 : vector<16x1xf32>
    %cst_42 = arith.constant dense<0.000000e+00> : vector<1xf32>
    %123 = vector.multi_reduction <add>, %122, %cst_42 [0] : vector<16x1xf32> to vector<1xf32>
    %124 = vector.shape_cast %123 : vector<1xf32> to vector<1x1xf32>
    %cst_43 = arith.constant 0.000000e+00 : f32
    %125 = vector.broadcast %cst_43 : f32 to vector<1x1xf32>
    %126 = arith.maximumf %124, %125 : vector<1x1xf32>
    %c0_44 = arith.constant 0 : index
    %c0_45 = arith.constant 0 : index
    %127 = vector.load %arg9[%c0_44, %c0_45] : memref<16x1xf32, #tpu.memory_space<vmem>>, vector<16x1xf32>
    %128 = vector.broadcast %126 : vector<1x1xf32> to vector<16x1xf32>
    %129 = arith.mulf %127, %128 : vector<16x1xf32>
    %cst_46 = arith.constant dense<0.000000e+00> : vector<16xf32>
    %130 = vector.multi_reduction <add>, %129, %cst_46 [1] : vector<16x1xf32> to vector<16xf32>
    %131 = vector.shape_cast %130 : vector<16xf32> to vector<16x1xf32>
    %132 = arith.addf %120, %131 : vector<16x1xf32>
    %133 = arith.negf %132 : vector<16x1xf32>
    %134 = math.exp %133 : vector<16x1xf32>
    %cst_47 = arith.constant 1.000000e+00 : f32
    %135 = vector.broadcast %cst_47 : f32 to vector<16x1xf32>
    %136 = arith.addf %135, %134 : vector<16x1xf32>
    %137 = arith.divf %135, %136 : vector<16x1xf32>
    %138 = vector.broadcast %3 : vector<1x384xf32> to vector<16x384xf32>
    %139 = arith.mulf %95, %138 : vector<16x384xf32>
    %140 = vector.broadcast %137 : vector<16x1xf32> to vector<16x384xf32>
    %141 = arith.mulf %140, %139 : vector<16x384xf32>
    %cst_48 = arith.constant dense<0.000000e+00> : vector<384xf32>
    %142 = vector.multi_reduction <add>, %141, %cst_48 [0] : vector<16x384xf32> to vector<384xf32>
    %143 = vector.shape_cast %142 : vector<384xf32> to vector<1x384xf32>
    %cst_49 = arith.constant 1.600000e+01 : f32
    %144 = vector.broadcast %cst_49 : f32 to vector<1x384xf32>
    %145 = arith.divf %143, %144 : vector<1x384xf32>
    %cst_50 = arith.constant dense<0xFF800000> : vector<384xf32>
    %146 = vector.multi_reduction <maximumf>, %141, %cst_50 [0] : vector<16x384xf32> to vector<384xf32>
    %147 = vector.shape_cast %146 : vector<384xf32> to vector<1x384xf32>
    %c0_51 = arith.constant 0 : index
    %c0_52 = arith.constant 0 : index
    %148 = vector.load %arg12[%c0_51, %c0_52] : memref<49x384xf32, #tpu.memory_space<vmem>>, vector<49x384xf32>
    %c0_53 = arith.constant 0 : index
    %c0_54 = arith.constant 0 : index
    %149 = vector.load %arg10[%c0_53, %c0_54] : memref<2x49xf32, #tpu.memory_space<vmem>>, vector<2x49xf32>
    %cst_55 = arith.constant 0.000000e+00 : f32
    %150 = vector.broadcast %cst_55 : f32 to vector<1x384xf32>
    %c57_i32 = arith.constant 57 : i32
    %151 = tpu.dynamic_rotate %145 by %c57_i32 dim 1 : vector<1x384xf32>, i32 -> vector<1x384xf32>
    %c57_i32_56 = arith.constant 57 : i32
    %152 = tpu.dynamic_rotate %147 by %c57_i32_56 dim 1 : vector<1x384xf32>, i32 -> vector<1x384xf32>
    %153 = vector.extract_strided_slice %148 {offsets = [0, 0], sizes = [1, 384], strides = [1, 1]} : vector<49x384xf32> to vector<1x384xf32>
    %154 = vector.extract_strided_slice %149 {offsets = [0, 0], sizes = [1, 1], strides = [1, 1]} : vector<2x49xf32> to vector<1x1xf32>
    %155 = vector.broadcast %154 : vector<1x1xf32> to vector<1x384xf32>
    %156 = arith.mulf %155, %151 : vector<1x384xf32>
    %157 = vector.extract_strided_slice %149 {offsets = [1, 0], sizes = [1, 1], strides = [1, 1]} : vector<2x49xf32> to vector<1x1xf32>
    %158 = vector.broadcast %157 : vector<1x1xf32> to vector<1x384xf32>
    %159 = arith.mulf %158, %152 : vector<1x384xf32>
    %160 = arith.addf %156, %159 : vector<1x384xf32>
    %161 = arith.mulf %153, %160 : vector<1x384xf32>
    %162 = arith.addf %150, %161 : vector<1x384xf32>
    %c56_i32 = arith.constant 56 : i32
    %163 = tpu.dynamic_rotate %145 by %c56_i32 dim 1 : vector<1x384xf32>, i32 -> vector<1x384xf32>
    %c56_i32_57 = arith.constant 56 : i32
    %164 = tpu.dynamic_rotate %147 by %c56_i32_57 dim 1 : vector<1x384xf32>, i32 -> vector<1x384xf32>
    %165 = vector.extract_strided_slice %148 {offsets = [1, 0], sizes = [1, 384], strides = [1, 1]} : vector<49x384xf32> to vector<1x384xf32>
    %166 = vector.extract_strided_slice %149 {offsets = [0, 1], sizes = [1, 1], strides = [1, 1]} : vector<2x49xf32> to vector<1x1xf32>
    %167 = vector.broadcast %166 : vector<1x1xf32> to vector<1x384xf32>
    %168 = arith.mulf %167, %163 : vector<1x384xf32>
    %169 = vector.extract_strided_slice %149 {offsets = [1, 1], sizes = [1, 1], strides = [1, 1]} : vector<2x49xf32> to vector<1x1xf32>
    %170 = vector.broadcast %169 : vector<1x1xf32> to vector<1x384xf32>
    %171 = arith.mulf %170, %164 : vector<1x384xf32>
    %172 = arith.addf %168, %171 : vector<1x384xf32>
    %173 = arith.mulf %165, %172 : vector<1x384xf32>
    %174 = arith.addf %162, %173 : vector<1x384xf32>
    %c55_i32 = arith.constant 55 : i32
    %175 = tpu.dynamic_rotate %145 by %c55_i32 dim 1 : vector<1x384xf32>, i32 -> vector<1x384xf32>
    %c55_i32_58 = arith.constant 55 : i32
    %176 = tpu.dynamic_rotate %147 by %c55_i32_58 dim 1 : vector<1x384xf32>, i32 -> vector<1x384xf32>
    %177 = vector.extract_strided_slice %148 {offsets = [2, 0], sizes = [1, 384], strides = [1, 1]} : vector<49x384xf32> to vector<1x384xf32>
    %178 = vector.extract_strided_slice %149 {offsets = [0, 2], sizes = [1, 1], strides = [1, 1]} : vector<2x49xf32> to vector<1x1xf32>
    %179 = vector.broadcast %178 : vector<1x1xf32> to vector<1x384xf32>
    %180 = arith.mulf %179, %175 : vector<1x384xf32>
    %181 = vector.extract_strided_slice %149 {offsets = [1, 2], sizes = [1, 1], strides = [1, 1]} : vector<2x49xf32> to vector<1x1xf32>
    %182 = vector.broadcast %181 : vector<1x1xf32> to vector<1x384xf32>
    %183 = arith.mulf %182, %176 : vector<1x384xf32>
    %184 = arith.addf %180, %183 : vector<1x384xf32>
    %185 = arith.mulf %177, %184 : vector<1x384xf32>
    %186 = arith.addf %174, %185 : vector<1x384xf32>
    %c54_i32 = arith.constant 54 : i32
    %187 = tpu.dynamic_rotate %145 by %c54_i32 dim 1 : vector<1x384xf32>, i32 -> vector<1x384xf32>
    %c54_i32_59 = arith.constant 54 : i32
    %188 = tpu.dynamic_rotate %147 by %c54_i32_59 dim 1 : vector<1x384xf32>, i32 -> vector<1x384xf32>
    %189 = vector.extract_strided_slice %148 {offsets = [3, 0], sizes = [1, 384], strides = [1, 1]} : vector<49x384xf32> to vector<1x384xf32>
    %190 = vector.extract_strided_slice %149 {offsets = [0, 3], sizes = [1, 1], strides = [1, 1]} : vector<2x49xf32> to vector<1x1xf32>
    %191 = vector.broadcast %190 : vector<1x1xf32> to vector<1x384xf32>
    %192 = arith.mulf %191, %187 : vector<1x384xf32>
    %193 = vector.extract_strided_slice %149 {offsets = [1, 3], sizes = [1, 1], strides = [1, 1]} : vector<2x49xf32> to vector<1x1xf32>
    %194 = vector.broadcast %193 : vector<1x1xf32> to vector<1x384xf32>
    %195 = arith.mulf %194, %188 : vector<1x384xf32>
    %196 = arith.addf %192, %195 : vector<1x384xf32>
    %197 = arith.mulf %189, %196 : vector<1x384xf32>
    %198 = arith.addf %186, %197 : vector<1x384xf32>
    %c53_i32 = arith.constant 53 : i32
    %199 = tpu.dynamic_rotate %145 by %c53_i32 dim 1 : vector<1x384xf32>, i32 -> vector<1x384xf32>
    %c53_i32_60 = arith.constant 53 : i32
    %200 = tpu.dynamic_rotate %147 by %c53_i32_60 dim 1 : vector<1x384xf32>, i32 -> vector<1x384xf32>
    %201 = vector.extract_strided_slice %148 {offsets = [4, 0], sizes = [1, 384], strides = [1, 1]} : vector<49x384xf32> to vector<1x384xf32>
    %202 = vector.extract_strided_slice %149 {offsets = [0, 4], sizes = [1, 1], strides = [1, 1]} : vector<2x49xf32> to vector<1x1xf32>
    %203 = vector.broadcast %202 : vector<1x1xf32> to vector<1x384xf32>
    %204 = arith.mulf %203, %199 : vector<1x384xf32>
    %205 = vector.extract_strided_slice %149 {offsets = [1, 4], sizes = [1, 1], strides = [1, 1]} : vector<2x49xf32> to vector<1x1xf32>
    %206 = vector.broadcast %205 : vector<1x1xf32> to vector<1x384xf32>
    %207 = arith.mulf %206, %200 : vector<1x384xf32>
    %208 = arith.addf %204, %207 : vector<1x384xf32>
    %209 = arith.mulf %201, %208 : vector<1x384xf32>
    %210 = arith.addf %198, %209 : vector<1x384xf32>
    %c52_i32 = arith.constant 52 : i32
    %211 = tpu.dynamic_rotate %145 by %c52_i32 dim 1 : vector<1x384xf32>, i32 -> vector<1x384xf32>
    %c52_i32_61 = arith.constant 52 : i32
    %212 = tpu.dynamic_rotate %147 by %c52_i32_61 dim 1 : vector<1x384xf32>, i32 -> vector<1x384xf32>
    %213 = vector.extract_strided_slice %148 {offsets = [5, 0], sizes = [1, 384], strides = [1, 1]} : vector<49x384xf32> to vector<1x384xf32>
    %214 = vector.extract_strided_slice %149 {offsets = [0, 5], sizes = [1, 1], strides = [1, 1]} : vector<2x49xf32> to vector<1x1xf32>
    %215 = vector.broadcast %214 : vector<1x1xf32> to vector<1x384xf32>
    %216 = arith.mulf %215, %211 : vector<1x384xf32>
    %217 = vector.extract_strided_slice %149 {offsets = [1, 5], sizes = [1, 1], strides = [1, 1]} : vector<2x49xf32> to vector<1x1xf32>
    %218 = vector.broadcast %217 : vector<1x1xf32> to vector<1x384xf32>
    %219 = arith.mulf %218, %212 : vector<1x384xf32>
    %220 = arith.addf %216, %219 : vector<1x384xf32>
    %221 = arith.mulf %213, %220 : vector<1x384xf32>
    %222 = arith.addf %210, %221 : vector<1x384xf32>
    %c51_i32 = arith.constant 51 : i32
    %223 = tpu.dynamic_rotate %145 by %c51_i32 dim 1 : vector<1x384xf32>, i32 -> vector<1x384xf32>
    %c51_i32_62 = arith.constant 51 : i32
    %224 = tpu.dynamic_rotate %147 by %c51_i32_62 dim 1 : vector<1x384xf32>, i32 -> vector<1x384xf32>
    %225 = vector.extract_strided_slice %148 {offsets = [6, 0], sizes = [1, 384], strides = [1, 1]} : vector<49x384xf32> to vector<1x384xf32>
    %226 = vector.extract_strided_slice %149 {offsets = [0, 6], sizes = [1, 1], strides = [1, 1]} : vector<2x49xf32> to vector<1x1xf32>
    %227 = vector.broadcast %226 : vector<1x1xf32> to vector<1x384xf32>
    %228 = arith.mulf %227, %223 : vector<1x384xf32>
    %229 = vector.extract_strided_slice %149 {offsets = [1, 6], sizes = [1, 1], strides = [1, 1]} : vector<2x49xf32> to vector<1x1xf32>
    %230 = vector.broadcast %229 : vector<1x1xf32> to vector<1x384xf32>
    %231 = arith.mulf %230, %224 : vector<1x384xf32>
    %232 = arith.addf %228, %231 : vector<1x384xf32>
    %233 = arith.mulf %225, %232 : vector<1x384xf32>
    %234 = arith.addf %222, %233 : vector<1x384xf32>
    %c39_i32 = arith.constant 39 : i32
    %235 = tpu.dynamic_rotate %145 by %c39_i32 dim 1 : vector<1x384xf32>, i32 -> vector<1x384xf32>
    %c39_i32_63 = arith.constant 39 : i32
    %236 = tpu.dynamic_rotate %147 by %c39_i32_63 dim 1 : vector<1x384xf32>, i32 -> vector<1x384xf32>
    %237 = vector.extract_strided_slice %148 {offsets = [7, 0], sizes = [1, 384], strides = [1, 1]} : vector<49x384xf32> to vector<1x384xf32>
    %238 = vector.extract_strided_slice %149 {offsets = [0, 7], sizes = [1, 1], strides = [1, 1]} : vector<2x49xf32> to vector<1x1xf32>
    %239 = vector.broadcast %238 : vector<1x1xf32> to vector<1x384xf32>
    %240 = arith.mulf %239, %235 : vector<1x384xf32>
    %241 = vector.extract_strided_slice %149 {offsets = [1, 7], sizes = [1, 1], strides = [1, 1]} : vector<2x49xf32> to vector<1x1xf32>
    %242 = vector.broadcast %241 : vector<1x1xf32> to vector<1x384xf32>
    %243 = arith.mulf %242, %236 : vector<1x384xf32>
    %244 = arith.addf %240, %243 : vector<1x384xf32>
    %245 = arith.mulf %237, %244 : vector<1x384xf32>
    %246 = arith.addf %234, %245 : vector<1x384xf32>
    %c38_i32 = arith.constant 38 : i32
    %247 = tpu.dynamic_rotate %145 by %c38_i32 dim 1 : vector<1x384xf32>, i32 -> vector<1x384xf32>
    %c38_i32_64 = arith.constant 38 : i32
    %248 = tpu.dynamic_rotate %147 by %c38_i32_64 dim 1 : vector<1x384xf32>, i32 -> vector<1x384xf32>
    %249 = vector.extract_strided_slice %148 {offsets = [8, 0], sizes = [1, 384], strides = [1, 1]} : vector<49x384xf32> to vector<1x384xf32>
    %250 = vector.extract_strided_slice %149 {offsets = [0, 8], sizes = [1, 1], strides = [1, 1]} : vector<2x49xf32> to vector<1x1xf32>
    %251 = vector.broadcast %250 : vector<1x1xf32> to vector<1x384xf32>
    %252 = arith.mulf %251, %247 : vector<1x384xf32>
    %253 = vector.extract_strided_slice %149 {offsets = [1, 8], sizes = [1, 1], strides = [1, 1]} : vector<2x49xf32> to vector<1x1xf32>
    %254 = vector.broadcast %253 : vector<1x1xf32> to vector<1x384xf32>
    %255 = arith.mulf %254, %248 : vector<1x384xf32>
    %256 = arith.addf %252, %255 : vector<1x384xf32>
    %257 = arith.mulf %249, %256 : vector<1x384xf32>
    %258 = arith.addf %246, %257 : vector<1x384xf32>
    %c37_i32 = arith.constant 37 : i32
    %259 = tpu.dynamic_rotate %145 by %c37_i32 dim 1 : vector<1x384xf32>, i32 -> vector<1x384xf32>
    %c37_i32_65 = arith.constant 37 : i32
    %260 = tpu.dynamic_rotate %147 by %c37_i32_65 dim 1 : vector<1x384xf32>, i32 -> vector<1x384xf32>
    %261 = vector.extract_strided_slice %148 {offsets = [9, 0], sizes = [1, 384], strides = [1, 1]} : vector<49x384xf32> to vector<1x384xf32>
    %262 = vector.extract_strided_slice %149 {offsets = [0, 9], sizes = [1, 1], strides = [1, 1]} : vector<2x49xf32> to vector<1x1xf32>
    %263 = vector.broadcast %262 : vector<1x1xf32> to vector<1x384xf32>
    %264 = arith.mulf %263, %259 : vector<1x384xf32>
    %265 = vector.extract_strided_slice %149 {offsets = [1, 9], sizes = [1, 1], strides = [1, 1]} : vector<2x49xf32> to vector<1x1xf32>
    %266 = vector.broadcast %265 : vector<1x1xf32> to vector<1x384xf32>
    %267 = arith.mulf %266, %260 : vector<1x384xf32>
    %268 = arith.addf %264, %267 : vector<1x384xf32>
    %269 = arith.mulf %261, %268 : vector<1x384xf32>
    %270 = arith.addf %258, %269 : vector<1x384xf32>
    %c36_i32 = arith.constant 36 : i32
    %271 = tpu.dynamic_rotate %145 by %c36_i32 dim 1 : vector<1x384xf32>, i32 -> vector<1x384xf32>
    %c36_i32_66 = arith.constant 36 : i32
    %272 = tpu.dynamic_rotate %147 by %c36_i32_66 dim 1 : vector<1x384xf32>, i32 -> vector<1x384xf32>
    %273 = vector.extract_strided_slice %148 {offsets = [10, 0], sizes = [1, 384], strides = [1, 1]} : vector<49x384xf32> to vector<1x384xf32>
    %274 = vector.extract_strided_slice %149 {offsets = [0, 10], sizes = [1, 1], strides = [1, 1]} : vector<2x49xf32> to vector<1x1xf32>
    %275 = vector.broadcast %274 : vector<1x1xf32> to vector<1x384xf32>
    %276 = arith.mulf %275, %271 : vector<1x384xf32>
    %277 = vector.extract_strided_slice %149 {offsets = [1, 10], sizes = [1, 1], strides = [1, 1]} : vector<2x49xf32> to vector<1x1xf32>
    %278 = vector.broadcast %277 : vector<1x1xf32> to vector<1x384xf32>
    %279 = arith.mulf %278, %272 : vector<1x384xf32>
    %280 = arith.addf %276, %279 : vector<1x384xf32>
    %281 = arith.mulf %273, %280 : vector<1x384xf32>
    %282 = arith.addf %270, %281 : vector<1x384xf32>
    %c35_i32 = arith.constant 35 : i32
    %283 = tpu.dynamic_rotate %145 by %c35_i32 dim 1 : vector<1x384xf32>, i32 -> vector<1x384xf32>
    %c35_i32_67 = arith.constant 35 : i32
    %284 = tpu.dynamic_rotate %147 by %c35_i32_67 dim 1 : vector<1x384xf32>, i32 -> vector<1x384xf32>
    %285 = vector.extract_strided_slice %148 {offsets = [11, 0], sizes = [1, 384], strides = [1, 1]} : vector<49x384xf32> to vector<1x384xf32>
    %286 = vector.extract_strided_slice %149 {offsets = [0, 11], sizes = [1, 1], strides = [1, 1]} : vector<2x49xf32> to vector<1x1xf32>
    %287 = vector.broadcast %286 : vector<1x1xf32> to vector<1x384xf32>
    %288 = arith.mulf %287, %283 : vector<1x384xf32>
    %289 = vector.extract_strided_slice %149 {offsets = [1, 11], sizes = [1, 1], strides = [1, 1]} : vector<2x49xf32> to vector<1x1xf32>
    %290 = vector.broadcast %289 : vector<1x1xf32> to vector<1x384xf32>
    %291 = arith.mulf %290, %284 : vector<1x384xf32>
    %292 = arith.addf %288, %291 : vector<1x384xf32>
    %293 = arith.mulf %285, %292 : vector<1x384xf32>
    %294 = arith.addf %282, %293 : vector<1x384xf32>
    %c34_i32 = arith.constant 34 : i32
    %295 = tpu.dynamic_rotate %145 by %c34_i32 dim 1 : vector<1x384xf32>, i32 -> vector<1x384xf32>
    %c34_i32_68 = arith.constant 34 : i32
    %296 = tpu.dynamic_rotate %147 by %c34_i32_68 dim 1 : vector<1x384xf32>, i32 -> vector<1x384xf32>
    %297 = vector.extract_strided_slice %148 {offsets = [12, 0], sizes = [1, 384], strides = [1, 1]} : vector<49x384xf32> to vector<1x384xf32>
    %298 = vector.extract_strided_slice %149 {offsets = [0, 12], sizes = [1, 1], strides = [1, 1]} : vector<2x49xf32> to vector<1x1xf32>
    %299 = vector.broadcast %298 : vector<1x1xf32> to vector<1x384xf32>
    %300 = arith.mulf %299, %295 : vector<1x384xf32>
    %301 = vector.extract_strided_slice %149 {offsets = [1, 12], sizes = [1, 1], strides = [1, 1]} : vector<2x49xf32> to vector<1x1xf32>
    %302 = vector.broadcast %301 : vector<1x1xf32> to vector<1x384xf32>
    %303 = arith.mulf %302, %296 : vector<1x384xf32>
    %304 = arith.addf %300, %303 : vector<1x384xf32>
    %305 = arith.mulf %297, %304 : vector<1x384xf32>
    %306 = arith.addf %294, %305 : vector<1x384xf32>
    %c33_i32 = arith.constant 33 : i32
    %307 = tpu.dynamic_rotate %145 by %c33_i32 dim 1 : vector<1x384xf32>, i32 -> vector<1x384xf32>
    %c33_i32_69 = arith.constant 33 : i32
    %308 = tpu.dynamic_rotate %147 by %c33_i32_69 dim 1 : vector<1x384xf32>, i32 -> vector<1x384xf32>
    %309 = vector.extract_strided_slice %148 {offsets = [13, 0], sizes = [1, 384], strides = [1, 1]} : vector<49x384xf32> to vector<1x384xf32>
    %310 = vector.extract_strided_slice %149 {offsets = [0, 13], sizes = [1, 1], strides = [1, 1]} : vector<2x49xf32> to vector<1x1xf32>
    %311 = vector.broadcast %310 : vector<1x1xf32> to vector<1x384xf32>
    %312 = arith.mulf %311, %307 : vector<1x384xf32>
    %313 = vector.extract_strided_slice %149 {offsets = [1, 13], sizes = [1, 1], strides = [1, 1]} : vector<2x49xf32> to vector<1x1xf32>
    %314 = vector.broadcast %313 : vector<1x1xf32> to vector<1x384xf32>
    %315 = arith.mulf %314, %308 : vector<1x384xf32>
    %316 = arith.addf %312, %315 : vector<1x384xf32>
    %317 = arith.mulf %309, %316 : vector<1x384xf32>
    %318 = arith.addf %306, %317 : vector<1x384xf32>
    %c21_i32 = arith.constant 21 : i32
    %319 = tpu.dynamic_rotate %145 by %c21_i32 dim 1 : vector<1x384xf32>, i32 -> vector<1x384xf32>
    %c21_i32_70 = arith.constant 21 : i32
    %320 = tpu.dynamic_rotate %147 by %c21_i32_70 dim 1 : vector<1x384xf32>, i32 -> vector<1x384xf32>
    %321 = vector.extract_strided_slice %148 {offsets = [14, 0], sizes = [1, 384], strides = [1, 1]} : vector<49x384xf32> to vector<1x384xf32>
    %322 = vector.extract_strided_slice %149 {offsets = [0, 14], sizes = [1, 1], strides = [1, 1]} : vector<2x49xf32> to vector<1x1xf32>
    %323 = vector.broadcast %322 : vector<1x1xf32> to vector<1x384xf32>
    %324 = arith.mulf %323, %319 : vector<1x384xf32>
    %325 = vector.extract_strided_slice %149 {offsets = [1, 14], sizes = [1, 1], strides = [1, 1]} : vector<2x49xf32> to vector<1x1xf32>
    %326 = vector.broadcast %325 : vector<1x1xf32> to vector<1x384xf32>
    %327 = arith.mulf %326, %320 : vector<1x384xf32>
    %328 = arith.addf %324, %327 : vector<1x384xf32>
    %329 = arith.mulf %321, %328 : vector<1x384xf32>
    %330 = arith.addf %318, %329 : vector<1x384xf32>
    %c20_i32 = arith.constant 20 : i32
    %331 = tpu.dynamic_rotate %145 by %c20_i32 dim 1 : vector<1x384xf32>, i32 -> vector<1x384xf32>
    %c20_i32_71 = arith.constant 20 : i32
    %332 = tpu.dynamic_rotate %147 by %c20_i32_71 dim 1 : vector<1x384xf32>, i32 -> vector<1x384xf32>
    %333 = vector.extract_strided_slice %148 {offsets = [15, 0], sizes = [1, 384], strides = [1, 1]} : vector<49x384xf32> to vector<1x384xf32>
    %334 = vector.extract_strided_slice %149 {offsets = [0, 15], sizes = [1, 1], strides = [1, 1]} : vector<2x49xf32> to vector<1x1xf32>
    %335 = vector.broadcast %334 : vector<1x1xf32> to vector<1x384xf32>
    %336 = arith.mulf %335, %331 : vector<1x384xf32>
    %337 = vector.extract_strided_slice %149 {offsets = [1, 15], sizes = [1, 1], strides = [1, 1]} : vector<2x49xf32> to vector<1x1xf32>
    %338 = vector.broadcast %337 : vector<1x1xf32> to vector<1x384xf32>
    %339 = arith.mulf %338, %332 : vector<1x384xf32>
    %340 = arith.addf %336, %339 : vector<1x384xf32>
    %341 = arith.mulf %333, %340 : vector<1x384xf32>
    %342 = arith.addf %330, %341 : vector<1x384xf32>
    %c19_i32_72 = arith.constant 19 : i32
    %343 = tpu.dynamic_rotate %145 by %c19_i32_72 dim 1 : vector<1x384xf32>, i32 -> vector<1x384xf32>
    %c19_i32_73 = arith.constant 19 : i32
    %344 = tpu.dynamic_rotate %147 by %c19_i32_73 dim 1 : vector<1x384xf32>, i32 -> vector<1x384xf32>
    %345 = vector.extract_strided_slice %148 {offsets = [16, 0], sizes = [1, 384], strides = [1, 1]} : vector<49x384xf32> to vector<1x384xf32>
    %346 = vector.extract_strided_slice %149 {offsets = [0, 16], sizes = [1, 1], strides = [1, 1]} : vector<2x49xf32> to vector<1x1xf32>
    %347 = vector.broadcast %346 : vector<1x1xf32> to vector<1x384xf32>
    %348 = arith.mulf %347, %343 : vector<1x384xf32>
    %349 = vector.extract_strided_slice %149 {offsets = [1, 16], sizes = [1, 1], strides = [1, 1]} : vector<2x49xf32> to vector<1x1xf32>
    %350 = vector.broadcast %349 : vector<1x1xf32> to vector<1x384xf32>
    %351 = arith.mulf %350, %344 : vector<1x384xf32>
    %352 = arith.addf %348, %351 : vector<1x384xf32>
    %353 = arith.mulf %345, %352 : vector<1x384xf32>
    %354 = arith.addf %342, %353 : vector<1x384xf32>
    %c18_i32_74 = arith.constant 18 : i32
    %355 = tpu.dynamic_rotate %145 by %c18_i32_74 dim 1 : vector<1x384xf32>, i32 -> vector<1x384xf32>
    %c18_i32_75 = arith.constant 18 : i32
    %356 = tpu.dynamic_rotate %147 by %c18_i32_75 dim 1 : vector<1x384xf32>, i32 -> vector<1x384xf32>
    %357 = vector.extract_strided_slice %148 {offsets = [17, 0], sizes = [1, 384], strides = [1, 1]} : vector<49x384xf32> to vector<1x384xf32>
    %358 = vector.extract_strided_slice %149 {offsets = [0, 17], sizes = [1, 1], strides = [1, 1]} : vector<2x49xf32> to vector<1x1xf32>
    %359 = vector.broadcast %358 : vector<1x1xf32> to vector<1x384xf32>
    %360 = arith.mulf %359, %355 : vector<1x384xf32>
    %361 = vector.extract_strided_slice %149 {offsets = [1, 17], sizes = [1, 1], strides = [1, 1]} : vector<2x49xf32> to vector<1x1xf32>
    %362 = vector.broadcast %361 : vector<1x1xf32> to vector<1x384xf32>
    %363 = arith.mulf %362, %356 : vector<1x384xf32>
    %364 = arith.addf %360, %363 : vector<1x384xf32>
    %365 = arith.mulf %357, %364 : vector<1x384xf32>
    %366 = arith.addf %354, %365 : vector<1x384xf32>
    %c17_i32_76 = arith.constant 17 : i32
    %367 = tpu.dynamic_rotate %145 by %c17_i32_76 dim 1 : vector<1x384xf32>, i32 -> vector<1x384xf32>
    %c17_i32_77 = arith.constant 17 : i32
    %368 = tpu.dynamic_rotate %147 by %c17_i32_77 dim 1 : vector<1x384xf32>, i32 -> vector<1x384xf32>
    %369 = vector.extract_strided_slice %148 {offsets = [18, 0], sizes = [1, 384], strides = [1, 1]} : vector<49x384xf32> to vector<1x384xf32>
    %370 = vector.extract_strided_slice %149 {offsets = [0, 18], sizes = [1, 1], strides = [1, 1]} : vector<2x49xf32> to vector<1x1xf32>
    %371 = vector.broadcast %370 : vector<1x1xf32> to vector<1x384xf32>
    %372 = arith.mulf %371, %367 : vector<1x384xf32>
    %373 = vector.extract_strided_slice %149 {offsets = [1, 18], sizes = [1, 1], strides = [1, 1]} : vector<2x49xf32> to vector<1x1xf32>
    %374 = vector.broadcast %373 : vector<1x1xf32> to vector<1x384xf32>
    %375 = arith.mulf %374, %368 : vector<1x384xf32>
    %376 = arith.addf %372, %375 : vector<1x384xf32>
    %377 = arith.mulf %369, %376 : vector<1x384xf32>
    %378 = arith.addf %366, %377 : vector<1x384xf32>
    %c16_i32 = arith.constant 16 : i32
    %379 = tpu.dynamic_rotate %145 by %c16_i32 dim 1 : vector<1x384xf32>, i32 -> vector<1x384xf32>
    %c16_i32_78 = arith.constant 16 : i32
    %380 = tpu.dynamic_rotate %147 by %c16_i32_78 dim 1 : vector<1x384xf32>, i32 -> vector<1x384xf32>
    %381 = vector.extract_strided_slice %148 {offsets = [19, 0], sizes = [1, 384], strides = [1, 1]} : vector<49x384xf32> to vector<1x384xf32>
    %382 = vector.extract_strided_slice %149 {offsets = [0, 19], sizes = [1, 1], strides = [1, 1]} : vector<2x49xf32> to vector<1x1xf32>
    %383 = vector.broadcast %382 : vector<1x1xf32> to vector<1x384xf32>
    %384 = arith.mulf %383, %379 : vector<1x384xf32>
    %385 = vector.extract_strided_slice %149 {offsets = [1, 19], sizes = [1, 1], strides = [1, 1]} : vector<2x49xf32> to vector<1x1xf32>
    %386 = vector.broadcast %385 : vector<1x1xf32> to vector<1x384xf32>
    %387 = arith.mulf %386, %380 : vector<1x384xf32>
    %388 = arith.addf %384, %387 : vector<1x384xf32>
    %389 = arith.mulf %381, %388 : vector<1x384xf32>
    %390 = arith.addf %378, %389 : vector<1x384xf32>
    %c15_i32 = arith.constant 15 : i32
    %391 = tpu.dynamic_rotate %145 by %c15_i32 dim 1 : vector<1x384xf32>, i32 -> vector<1x384xf32>
    %c15_i32_79 = arith.constant 15 : i32
    %392 = tpu.dynamic_rotate %147 by %c15_i32_79 dim 1 : vector<1x384xf32>, i32 -> vector<1x384xf32>
    %393 = vector.extract_strided_slice %148 {offsets = [20, 0], sizes = [1, 384], strides = [1, 1]} : vector<49x384xf32> to vector<1x384xf32>
    %394 = vector.extract_strided_slice %149 {offsets = [0, 20], sizes = [1, 1], strides = [1, 1]} : vector<2x49xf32> to vector<1x1xf32>
    %395 = vector.broadcast %394 : vector<1x1xf32> to vector<1x384xf32>
    %396 = arith.mulf %395, %391 : vector<1x384xf32>
    %397 = vector.extract_strided_slice %149 {offsets = [1, 20], sizes = [1, 1], strides = [1, 1]} : vector<2x49xf32> to vector<1x1xf32>
    %398 = vector.broadcast %397 : vector<1x1xf32> to vector<1x384xf32>
    %399 = arith.mulf %398, %392 : vector<1x384xf32>
    %400 = arith.addf %396, %399 : vector<1x384xf32>
    %401 = arith.mulf %393, %400 : vector<1x384xf32>
    %402 = arith.addf %390, %401 : vector<1x384xf32>
    %c3_i32 = arith.constant 3 : i32
    %403 = tpu.dynamic_rotate %145 by %c3_i32 dim 1 : vector<1x384xf32>, i32 -> vector<1x384xf32>
    %c3_i32_80 = arith.constant 3 : i32
    %404 = tpu.dynamic_rotate %147 by %c3_i32_80 dim 1 : vector<1x384xf32>, i32 -> vector<1x384xf32>
    %405 = vector.extract_strided_slice %148 {offsets = [21, 0], sizes = [1, 384], strides = [1, 1]} : vector<49x384xf32> to vector<1x384xf32>
    %406 = vector.extract_strided_slice %149 {offsets = [0, 21], sizes = [1, 1], strides = [1, 1]} : vector<2x49xf32> to vector<1x1xf32>
    %407 = vector.broadcast %406 : vector<1x1xf32> to vector<1x384xf32>
    %408 = arith.mulf %407, %403 : vector<1x384xf32>
    %409 = vector.extract_strided_slice %149 {offsets = [1, 21], sizes = [1, 1], strides = [1, 1]} : vector<2x49xf32> to vector<1x1xf32>
    %410 = vector.broadcast %409 : vector<1x1xf32> to vector<1x384xf32>
    %411 = arith.mulf %410, %404 : vector<1x384xf32>
    %412 = arith.addf %408, %411 : vector<1x384xf32>
    %413 = arith.mulf %405, %412 : vector<1x384xf32>
    %414 = arith.addf %402, %413 : vector<1x384xf32>
    %c2_i32 = arith.constant 2 : i32
    %415 = tpu.dynamic_rotate %145 by %c2_i32 dim 1 : vector<1x384xf32>, i32 -> vector<1x384xf32>
    %c2_i32_81 = arith.constant 2 : i32
    %416 = tpu.dynamic_rotate %147 by %c2_i32_81 dim 1 : vector<1x384xf32>, i32 -> vector<1x384xf32>
    %417 = vector.extract_strided_slice %148 {offsets = [22, 0], sizes = [1, 384], strides = [1, 1]} : vector<49x384xf32> to vector<1x384xf32>
    %418 = vector.extract_strided_slice %149 {offsets = [0, 22], sizes = [1, 1], strides = [1, 1]} : vector<2x49xf32> to vector<1x1xf32>
    %419 = vector.broadcast %418 : vector<1x1xf32> to vector<1x384xf32>
    %420 = arith.mulf %419, %415 : vector<1x384xf32>
    %421 = vector.extract_strided_slice %149 {offsets = [1, 22], sizes = [1, 1], strides = [1, 1]} : vector<2x49xf32> to vector<1x1xf32>
    %422 = vector.broadcast %421 : vector<1x1xf32> to vector<1x384xf32>
    %423 = arith.mulf %422, %416 : vector<1x384xf32>
    %424 = arith.addf %420, %423 : vector<1x384xf32>
    %425 = arith.mulf %417, %424 : vector<1x384xf32>
    %426 = arith.addf %414, %425 : vector<1x384xf32>
    %c1_i32_82 = arith.constant 1 : i32
    %427 = tpu.dynamic_rotate %145 by %c1_i32_82 dim 1 : vector<1x384xf32>, i32 -> vector<1x384xf32>
    %c1_i32_83 = arith.constant 1 : i32
    %428 = tpu.dynamic_rotate %147 by %c1_i32_83 dim 1 : vector<1x384xf32>, i32 -> vector<1x384xf32>
    %429 = vector.extract_strided_slice %148 {offsets = [23, 0], sizes = [1, 384], strides = [1, 1]} : vector<49x384xf32> to vector<1x384xf32>
    %430 = vector.extract_strided_slice %149 {offsets = [0, 23], sizes = [1, 1], strides = [1, 1]} : vector<2x49xf32> to vector<1x1xf32>
    %431 = vector.broadcast %430 : vector<1x1xf32> to vector<1x384xf32>
    %432 = arith.mulf %431, %427 : vector<1x384xf32>
    %433 = vector.extract_strided_slice %149 {offsets = [1, 23], sizes = [1, 1], strides = [1, 1]} : vector<2x49xf32> to vector<1x1xf32>
    %434 = vector.broadcast %433 : vector<1x1xf32> to vector<1x384xf32>
    %435 = arith.mulf %434, %428 : vector<1x384xf32>
    %436 = arith.addf %432, %435 : vector<1x384xf32>
    %437 = arith.mulf %429, %436 : vector<1x384xf32>
    %438 = arith.addf %426, %437 : vector<1x384xf32>
    %439 = vector.extract_strided_slice %148 {offsets = [24, 0], sizes = [1, 384], strides = [1, 1]} : vector<49x384xf32> to vector<1x384xf32>
    %440 = vector.extract_strided_slice %149 {offsets = [0, 24], sizes = [1, 1], strides = [1, 1]} : vector<2x49xf32> to vector<1x1xf32>
    %441 = vector.broadcast %440 : vector<1x1xf32> to vector<1x384xf32>
    %442 = arith.mulf %441, %145 : vector<1x384xf32>
    %443 = vector.extract_strided_slice %149 {offsets = [1, 24], sizes = [1, 1], strides = [1, 1]} : vector<2x49xf32> to vector<1x1xf32>
    %444 = vector.broadcast %443 : vector<1x1xf32> to vector<1x384xf32>
    %445 = arith.mulf %444, %147 : vector<1x384xf32>
    %446 = arith.addf %442, %445 : vector<1x384xf32>
    %447 = arith.mulf %439, %446 : vector<1x384xf32>
    %448 = arith.addf %438, %447 : vector<1x384xf32>
    %c383_i32_84 = arith.constant 383 : i32
    %449 = tpu.dynamic_rotate %145 by %c383_i32_84 dim 1 : vector<1x384xf32>, i32 -> vector<1x384xf32>
    %c383_i32_85 = arith.constant 383 : i32
    %450 = tpu.dynamic_rotate %147 by %c383_i32_85 dim 1 : vector<1x384xf32>, i32 -> vector<1x384xf32>
    %451 = vector.extract_strided_slice %148 {offsets = [25, 0], sizes = [1, 384], strides = [1, 1]} : vector<49x384xf32> to vector<1x384xf32>
    %452 = vector.extract_strided_slice %149 {offsets = [0, 25], sizes = [1, 1], strides = [1, 1]} : vector<2x49xf32> to vector<1x1xf32>
    %453 = vector.broadcast %452 : vector<1x1xf32> to vector<1x384xf32>
    %454 = arith.mulf %453, %449 : vector<1x384xf32>
    %455 = vector.extract_strided_slice %149 {offsets = [1, 25], sizes = [1, 1], strides = [1, 1]} : vector<2x49xf32> to vector<1x1xf32>
    %456 = vector.broadcast %455 : vector<1x1xf32> to vector<1x384xf32>
    %457 = arith.mulf %456, %450 : vector<1x384xf32>
    %458 = arith.addf %454, %457 : vector<1x384xf32>
    %459 = arith.mulf %451, %458 : vector<1x384xf32>
    %460 = arith.addf %448, %459 : vector<1x384xf32>
    %c382_i32 = arith.constant 382 : i32
    %461 = tpu.dynamic_rotate %145 by %c382_i32 dim 1 : vector<1x384xf32>, i32 -> vector<1x384xf32>
    %c382_i32_86 = arith.constant 382 : i32
    %462 = tpu.dynamic_rotate %147 by %c382_i32_86 dim 1 : vector<1x384xf32>, i32 -> vector<1x384xf32>
    %463 = vector.extract_strided_slice %148 {offsets = [26, 0], sizes = [1, 384], strides = [1, 1]} : vector<49x384xf32> to vector<1x384xf32>
    %464 = vector.extract_strided_slice %149 {offsets = [0, 26], sizes = [1, 1], strides = [1, 1]} : vector<2x49xf32> to vector<1x1xf32>
    %465 = vector.broadcast %464 : vector<1x1xf32> to vector<1x384xf32>
    %466 = arith.mulf %465, %461 : vector<1x384xf32>
    %467 = vector.extract_strided_slice %149 {offsets = [1, 26], sizes = [1, 1], strides = [1, 1]} : vector<2x49xf32> to vector<1x1xf32>
    %468 = vector.broadcast %467 : vector<1x1xf32> to vector<1x384xf32>
    %469 = arith.mulf %468, %462 : vector<1x384xf32>
    %470 = arith.addf %466, %469 : vector<1x384xf32>
    %471 = arith.mulf %463, %470 : vector<1x384xf32>
    %472 = arith.addf %460, %471 : vector<1x384xf32>
    %c381_i32 = arith.constant 381 : i32
    %473 = tpu.dynamic_rotate %145 by %c381_i32 dim 1 : vector<1x384xf32>, i32 -> vector<1x384xf32>
    %c381_i32_87 = arith.constant 381 : i32
    %474 = tpu.dynamic_rotate %147 by %c381_i32_87 dim 1 : vector<1x384xf32>, i32 -> vector<1x384xf32>
    %475 = vector.extract_strided_slice %148 {offsets = [27, 0], sizes = [1, 384], strides = [1, 1]} : vector<49x384xf32> to vector<1x384xf32>
    %476 = vector.extract_strided_slice %149 {offsets = [0, 27], sizes = [1, 1], strides = [1, 1]} : vector<2x49xf32> to vector<1x1xf32>
    %477 = vector.broadcast %476 : vector<1x1xf32> to vector<1x384xf32>
    %478 = arith.mulf %477, %473 : vector<1x384xf32>
    %479 = vector.extract_strided_slice %149 {offsets = [1, 27], sizes = [1, 1], strides = [1, 1]} : vector<2x49xf32> to vector<1x1xf32>
    %480 = vector.broadcast %479 : vector<1x1xf32> to vector<1x384xf32>
    %481 = arith.mulf %480, %474 : vector<1x384xf32>
    %482 = arith.addf %478, %481 : vector<1x384xf32>
    %483 = arith.mulf %475, %482 : vector<1x384xf32>
    %484 = arith.addf %472, %483 : vector<1x384xf32>
    %c369_i32 = arith.constant 369 : i32
    %485 = tpu.dynamic_rotate %145 by %c369_i32 dim 1 : vector<1x384xf32>, i32 -> vector<1x384xf32>
    %c369_i32_88 = arith.constant 369 : i32
    %486 = tpu.dynamic_rotate %147 by %c369_i32_88 dim 1 : vector<1x384xf32>, i32 -> vector<1x384xf32>
    %487 = vector.extract_strided_slice %148 {offsets = [28, 0], sizes = [1, 384], strides = [1, 1]} : vector<49x384xf32> to vector<1x384xf32>
    %488 = vector.extract_strided_slice %149 {offsets = [0, 28], sizes = [1, 1], strides = [1, 1]} : vector<2x49xf32> to vector<1x1xf32>
    %489 = vector.broadcast %488 : vector<1x1xf32> to vector<1x384xf32>
    %490 = arith.mulf %489, %485 : vector<1x384xf32>
    %491 = vector.extract_strided_slice %149 {offsets = [1, 28], sizes = [1, 1], strides = [1, 1]} : vector<2x49xf32> to vector<1x1xf32>
    %492 = vector.broadcast %491 : vector<1x1xf32> to vector<1x384xf32>
    %493 = arith.mulf %492, %486 : vector<1x384xf32>
    %494 = arith.addf %490, %493 : vector<1x384xf32>
    %495 = arith.mulf %487, %494 : vector<1x384xf32>
    %496 = arith.addf %484, %495 : vector<1x384xf32>
    %c368_i32 = arith.constant 368 : i32
    %497 = tpu.dynamic_rotate %145 by %c368_i32 dim 1 : vector<1x384xf32>, i32 -> vector<1x384xf32>
    %c368_i32_89 = arith.constant 368 : i32
    %498 = tpu.dynamic_rotate %147 by %c368_i32_89 dim 1 : vector<1x384xf32>, i32 -> vector<1x384xf32>
    %499 = vector.extract_strided_slice %148 {offsets = [29, 0], sizes = [1, 384], strides = [1, 1]} : vector<49x384xf32> to vector<1x384xf32>
    %500 = vector.extract_strided_slice %149 {offsets = [0, 29], sizes = [1, 1], strides = [1, 1]} : vector<2x49xf32> to vector<1x1xf32>
    %501 = vector.broadcast %500 : vector<1x1xf32> to vector<1x384xf32>
    %502 = arith.mulf %501, %497 : vector<1x384xf32>
    %503 = vector.extract_strided_slice %149 {offsets = [1, 29], sizes = [1, 1], strides = [1, 1]} : vector<2x49xf32> to vector<1x1xf32>
    %504 = vector.broadcast %503 : vector<1x1xf32> to vector<1x384xf32>
    %505 = arith.mulf %504, %498 : vector<1x384xf32>
    %506 = arith.addf %502, %505 : vector<1x384xf32>
    %507 = arith.mulf %499, %506 : vector<1x384xf32>
    %508 = arith.addf %496, %507 : vector<1x384xf32>
    %c367_i32_90 = arith.constant 367 : i32
    %509 = tpu.dynamic_rotate %145 by %c367_i32_90 dim 1 : vector<1x384xf32>, i32 -> vector<1x384xf32>
    %c367_i32_91 = arith.constant 367 : i32
    %510 = tpu.dynamic_rotate %147 by %c367_i32_91 dim 1 : vector<1x384xf32>, i32 -> vector<1x384xf32>
    %511 = vector.extract_strided_slice %148 {offsets = [30, 0], sizes = [1, 384], strides = [1, 1]} : vector<49x384xf32> to vector<1x384xf32>
    %512 = vector.extract_strided_slice %149 {offsets = [0, 30], sizes = [1, 1], strides = [1, 1]} : vector<2x49xf32> to vector<1x1xf32>
    %513 = vector.broadcast %512 : vector<1x1xf32> to vector<1x384xf32>
    %514 = arith.mulf %513, %509 : vector<1x384xf32>
    %515 = vector.extract_strided_slice %149 {offsets = [1, 30], sizes = [1, 1], strides = [1, 1]} : vector<2x49xf32> to vector<1x1xf32>
    %516 = vector.broadcast %515 : vector<1x1xf32> to vector<1x384xf32>
    %517 = arith.mulf %516, %510 : vector<1x384xf32>
    %518 = arith.addf %514, %517 : vector<1x384xf32>
    %519 = arith.mulf %511, %518 : vector<1x384xf32>
    %520 = arith.addf %508, %519 : vector<1x384xf32>
    %c366_i32_92 = arith.constant 366 : i32
    %521 = tpu.dynamic_rotate %145 by %c366_i32_92 dim 1 : vector<1x384xf32>, i32 -> vector<1x384xf32>
    %c366_i32_93 = arith.constant 366 : i32
    %522 = tpu.dynamic_rotate %147 by %c366_i32_93 dim 1 : vector<1x384xf32>, i32 -> vector<1x384xf32>
    %523 = vector.extract_strided_slice %148 {offsets = [31, 0], sizes = [1, 384], strides = [1, 1]} : vector<49x384xf32> to vector<1x384xf32>
    %524 = vector.extract_strided_slice %149 {offsets = [0, 31], sizes = [1, 1], strides = [1, 1]} : vector<2x49xf32> to vector<1x1xf32>
    %525 = vector.broadcast %524 : vector<1x1xf32> to vector<1x384xf32>
    %526 = arith.mulf %525, %521 : vector<1x384xf32>
    %527 = vector.extract_strided_slice %149 {offsets = [1, 31], sizes = [1, 1], strides = [1, 1]} : vector<2x49xf32> to vector<1x1xf32>
    %528 = vector.broadcast %527 : vector<1x1xf32> to vector<1x384xf32>
    %529 = arith.mulf %528, %522 : vector<1x384xf32>
    %530 = arith.addf %526, %529 : vector<1x384xf32>
    %531 = arith.mulf %523, %530 : vector<1x384xf32>
    %532 = arith.addf %520, %531 : vector<1x384xf32>
    %c365_i32_94 = arith.constant 365 : i32
    %533 = tpu.dynamic_rotate %145 by %c365_i32_94 dim 1 : vector<1x384xf32>, i32 -> vector<1x384xf32>
    %c365_i32_95 = arith.constant 365 : i32
    %534 = tpu.dynamic_rotate %147 by %c365_i32_95 dim 1 : vector<1x384xf32>, i32 -> vector<1x384xf32>
    %535 = vector.extract_strided_slice %148 {offsets = [32, 0], sizes = [1, 384], strides = [1, 1]} : vector<49x384xf32> to vector<1x384xf32>
    %536 = vector.extract_strided_slice %149 {offsets = [0, 32], sizes = [1, 1], strides = [1, 1]} : vector<2x49xf32> to vector<1x1xf32>
    %537 = vector.broadcast %536 : vector<1x1xf32> to vector<1x384xf32>
    %538 = arith.mulf %537, %533 : vector<1x384xf32>
    %539 = vector.extract_strided_slice %149 {offsets = [1, 32], sizes = [1, 1], strides = [1, 1]} : vector<2x49xf32> to vector<1x1xf32>
    %540 = vector.broadcast %539 : vector<1x1xf32> to vector<1x384xf32>
    %541 = arith.mulf %540, %534 : vector<1x384xf32>
    %542 = arith.addf %538, %541 : vector<1x384xf32>
    %543 = arith.mulf %535, %542 : vector<1x384xf32>
    %544 = arith.addf %532, %543 : vector<1x384xf32>
    %c364_i32 = arith.constant 364 : i32
    %545 = tpu.dynamic_rotate %145 by %c364_i32 dim 1 : vector<1x384xf32>, i32 -> vector<1x384xf32>
    %c364_i32_96 = arith.constant 364 : i32
    %546 = tpu.dynamic_rotate %147 by %c364_i32_96 dim 1 : vector<1x384xf32>, i32 -> vector<1x384xf32>
    %547 = vector.extract_strided_slice %148 {offsets = [33, 0], sizes = [1, 384], strides = [1, 1]} : vector<49x384xf32> to vector<1x384xf32>
    %548 = vector.extract_strided_slice %149 {offsets = [0, 33], sizes = [1, 1], strides = [1, 1]} : vector<2x49xf32> to vector<1x1xf32>
    %549 = vector.broadcast %548 : vector<1x1xf32> to vector<1x384xf32>
    %550 = arith.mulf %549, %545 : vector<1x384xf32>
    %551 = vector.extract_strided_slice %149 {offsets = [1, 33], sizes = [1, 1], strides = [1, 1]} : vector<2x49xf32> to vector<1x1xf32>
    %552 = vector.broadcast %551 : vector<1x1xf32> to vector<1x384xf32>
    %553 = arith.mulf %552, %546 : vector<1x384xf32>
    %554 = arith.addf %550, %553 : vector<1x384xf32>
    %555 = arith.mulf %547, %554 : vector<1x384xf32>
    %556 = arith.addf %544, %555 : vector<1x384xf32>
    %c363_i32 = arith.constant 363 : i32
    %557 = tpu.dynamic_rotate %145 by %c363_i32 dim 1 : vector<1x384xf32>, i32 -> vector<1x384xf32>
    %c363_i32_97 = arith.constant 363 : i32
    %558 = tpu.dynamic_rotate %147 by %c363_i32_97 dim 1 : vector<1x384xf32>, i32 -> vector<1x384xf32>
    %559 = vector.extract_strided_slice %148 {offsets = [34, 0], sizes = [1, 384], strides = [1, 1]} : vector<49x384xf32> to vector<1x384xf32>
    %560 = vector.extract_strided_slice %149 {offsets = [0, 34], sizes = [1, 1], strides = [1, 1]} : vector<2x49xf32> to vector<1x1xf32>
    %561 = vector.broadcast %560 : vector<1x1xf32> to vector<1x384xf32>
    %562 = arith.mulf %561, %557 : vector<1x384xf32>
    %563 = vector.extract_strided_slice %149 {offsets = [1, 34], sizes = [1, 1], strides = [1, 1]} : vector<2x49xf32> to vector<1x1xf32>
    %564 = vector.broadcast %563 : vector<1x1xf32> to vector<1x384xf32>
    %565 = arith.mulf %564, %558 : vector<1x384xf32>
    %566 = arith.addf %562, %565 : vector<1x384xf32>
    %567 = arith.mulf %559, %566 : vector<1x384xf32>
    %568 = arith.addf %556, %567 : vector<1x384xf32>
    %c351_i32 = arith.constant 351 : i32
    %569 = tpu.dynamic_rotate %145 by %c351_i32 dim 1 : vector<1x384xf32>, i32 -> vector<1x384xf32>
    %c351_i32_98 = arith.constant 351 : i32
    %570 = tpu.dynamic_rotate %147 by %c351_i32_98 dim 1 : vector<1x384xf32>, i32 -> vector<1x384xf32>
    %571 = vector.extract_strided_slice %148 {offsets = [35, 0], sizes = [1, 384], strides = [1, 1]} : vector<49x384xf32> to vector<1x384xf32>
    %572 = vector.extract_strided_slice %149 {offsets = [0, 35], sizes = [1, 1], strides = [1, 1]} : vector<2x49xf32> to vector<1x1xf32>
    %573 = vector.broadcast %572 : vector<1x1xf32> to vector<1x384xf32>
    %574 = arith.mulf %573, %569 : vector<1x384xf32>
    %575 = vector.extract_strided_slice %149 {offsets = [1, 35], sizes = [1, 1], strides = [1, 1]} : vector<2x49xf32> to vector<1x1xf32>
    %576 = vector.broadcast %575 : vector<1x1xf32> to vector<1x384xf32>
    %577 = arith.mulf %576, %570 : vector<1x384xf32>
    %578 = arith.addf %574, %577 : vector<1x384xf32>
    %579 = arith.mulf %571, %578 : vector<1x384xf32>
    %580 = arith.addf %568, %579 : vector<1x384xf32>
    %c350_i32 = arith.constant 350 : i32
    %581 = tpu.dynamic_rotate %145 by %c350_i32 dim 1 : vector<1x384xf32>, i32 -> vector<1x384xf32>
    %c350_i32_99 = arith.constant 350 : i32
    %582 = tpu.dynamic_rotate %147 by %c350_i32_99 dim 1 : vector<1x384xf32>, i32 -> vector<1x384xf32>
    %583 = vector.extract_strided_slice %148 {offsets = [36, 0], sizes = [1, 384], strides = [1, 1]} : vector<49x384xf32> to vector<1x384xf32>
    %584 = vector.extract_strided_slice %149 {offsets = [0, 36], sizes = [1, 1], strides = [1, 1]} : vector<2x49xf32> to vector<1x1xf32>
    %585 = vector.broadcast %584 : vector<1x1xf32> to vector<1x384xf32>
    %586 = arith.mulf %585, %581 : vector<1x384xf32>
    %587 = vector.extract_strided_slice %149 {offsets = [1, 36], sizes = [1, 1], strides = [1, 1]} : vector<2x49xf32> to vector<1x1xf32>
    %588 = vector.broadcast %587 : vector<1x1xf32> to vector<1x384xf32>
    %589 = arith.mulf %588, %582 : vector<1x384xf32>
    %590 = arith.addf %586, %589 : vector<1x384xf32>
    %591 = arith.mulf %583, %590 : vector<1x384xf32>
    %592 = arith.addf %580, %591 : vector<1x384xf32>
    %c349_i32 = arith.constant 349 : i32
    %593 = tpu.dynamic_rotate %145 by %c349_i32 dim 1 : vector<1x384xf32>, i32 -> vector<1x384xf32>
    %c349_i32_100 = arith.constant 349 : i32
    %594 = tpu.dynamic_rotate %147 by %c349_i32_100 dim 1 : vector<1x384xf32>, i32 -> vector<1x384xf32>
    %595 = vector.extract_strided_slice %148 {offsets = [37, 0], sizes = [1, 384], strides = [1, 1]} : vector<49x384xf32> to vector<1x384xf32>
    %596 = vector.extract_strided_slice %149 {offsets = [0, 37], sizes = [1, 1], strides = [1, 1]} : vector<2x49xf32> to vector<1x1xf32>
    %597 = vector.broadcast %596 : vector<1x1xf32> to vector<1x384xf32>
    %598 = arith.mulf %597, %593 : vector<1x384xf32>
    %599 = vector.extract_strided_slice %149 {offsets = [1, 37], sizes = [1, 1], strides = [1, 1]} : vector<2x49xf32> to vector<1x1xf32>
    %600 = vector.broadcast %599 : vector<1x1xf32> to vector<1x384xf32>
    %601 = arith.mulf %600, %594 : vector<1x384xf32>
    %602 = arith.addf %598, %601 : vector<1x384xf32>
    %603 = arith.mulf %595, %602 : vector<1x384xf32>
    %604 = arith.addf %592, %603 : vector<1x384xf32>
    %c348_i32 = arith.constant 348 : i32
    %605 = tpu.dynamic_rotate %145 by %c348_i32 dim 1 : vector<1x384xf32>, i32 -> vector<1x384xf32>
    %c348_i32_101 = arith.constant 348 : i32
    %606 = tpu.dynamic_rotate %147 by %c348_i32_101 dim 1 : vector<1x384xf32>, i32 -> vector<1x384xf32>
    %607 = vector.extract_strided_slice %148 {offsets = [38, 0], sizes = [1, 384], strides = [1, 1]} : vector<49x384xf32> to vector<1x384xf32>
    %608 = vector.extract_strided_slice %149 {offsets = [0, 38], sizes = [1, 1], strides = [1, 1]} : vector<2x49xf32> to vector<1x1xf32>
    %609 = vector.broadcast %608 : vector<1x1xf32> to vector<1x384xf32>
    %610 = arith.mulf %609, %605 : vector<1x384xf32>
    %611 = vector.extract_strided_slice %149 {offsets = [1, 38], sizes = [1, 1], strides = [1, 1]} : vector<2x49xf32> to vector<1x1xf32>
    %612 = vector.broadcast %611 : vector<1x1xf32> to vector<1x384xf32>
    %613 = arith.mulf %612, %606 : vector<1x384xf32>
    %614 = arith.addf %610, %613 : vector<1x384xf32>
    %615 = arith.mulf %607, %614 : vector<1x384xf32>
    %616 = arith.addf %604, %615 : vector<1x384xf32>
    %c347_i32 = arith.constant 347 : i32
    %617 = tpu.dynamic_rotate %145 by %c347_i32 dim 1 : vector<1x384xf32>, i32 -> vector<1x384xf32>
    %c347_i32_102 = arith.constant 347 : i32
    %618 = tpu.dynamic_rotate %147 by %c347_i32_102 dim 1 : vector<1x384xf32>, i32 -> vector<1x384xf32>
    %619 = vector.extract_strided_slice %148 {offsets = [39, 0], sizes = [1, 384], strides = [1, 1]} : vector<49x384xf32> to vector<1x384xf32>
    %620 = vector.extract_strided_slice %149 {offsets = [0, 39], sizes = [1, 1], strides = [1, 1]} : vector<2x49xf32> to vector<1x1xf32>
    %621 = vector.broadcast %620 : vector<1x1xf32> to vector<1x384xf32>
    %622 = arith.mulf %621, %617 : vector<1x384xf32>
    %623 = vector.extract_strided_slice %149 {offsets = [1, 39], sizes = [1, 1], strides = [1, 1]} : vector<2x49xf32> to vector<1x1xf32>
    %624 = vector.broadcast %623 : vector<1x1xf32> to vector<1x384xf32>
    %625 = arith.mulf %624, %618 : vector<1x384xf32>
    %626 = arith.addf %622, %625 : vector<1x384xf32>
    %627 = arith.mulf %619, %626 : vector<1x384xf32>
    %628 = arith.addf %616, %627 : vector<1x384xf32>
    %c346_i32 = arith.constant 346 : i32
    %629 = tpu.dynamic_rotate %145 by %c346_i32 dim 1 : vector<1x384xf32>, i32 -> vector<1x384xf32>
    %c346_i32_103 = arith.constant 346 : i32
    %630 = tpu.dynamic_rotate %147 by %c346_i32_103 dim 1 : vector<1x384xf32>, i32 -> vector<1x384xf32>
    %631 = vector.extract_strided_slice %148 {offsets = [40, 0], sizes = [1, 384], strides = [1, 1]} : vector<49x384xf32> to vector<1x384xf32>
    %632 = vector.extract_strided_slice %149 {offsets = [0, 40], sizes = [1, 1], strides = [1, 1]} : vector<2x49xf32> to vector<1x1xf32>
    %633 = vector.broadcast %632 : vector<1x1xf32> to vector<1x384xf32>
    %634 = arith.mulf %633, %629 : vector<1x384xf32>
    %635 = vector.extract_strided_slice %149 {offsets = [1, 40], sizes = [1, 1], strides = [1, 1]} : vector<2x49xf32> to vector<1x1xf32>
    %636 = vector.broadcast %635 : vector<1x1xf32> to vector<1x384xf32>
    %637 = arith.mulf %636, %630 : vector<1x384xf32>
    %638 = arith.addf %634, %637 : vector<1x384xf32>
    %639 = arith.mulf %631, %638 : vector<1x384xf32>
    %640 = arith.addf %628, %639 : vector<1x384xf32>
    %c345_i32 = arith.constant 345 : i32
    %641 = tpu.dynamic_rotate %145 by %c345_i32 dim 1 : vector<1x384xf32>, i32 -> vector<1x384xf32>
    %c345_i32_104 = arith.constant 345 : i32
    %642 = tpu.dynamic_rotate %147 by %c345_i32_104 dim 1 : vector<1x384xf32>, i32 -> vector<1x384xf32>
    %643 = vector.extract_strided_slice %148 {offsets = [41, 0], sizes = [1, 384], strides = [1, 1]} : vector<49x384xf32> to vector<1x384xf32>
    %644 = vector.extract_strided_slice %149 {offsets = [0, 41], sizes = [1, 1], strides = [1, 1]} : vector<2x49xf32> to vector<1x1xf32>
    %645 = vector.broadcast %644 : vector<1x1xf32> to vector<1x384xf32>
    %646 = arith.mulf %645, %641 : vector<1x384xf32>
    %647 = vector.extract_strided_slice %149 {offsets = [1, 41], sizes = [1, 1], strides = [1, 1]} : vector<2x49xf32> to vector<1x1xf32>
    %648 = vector.broadcast %647 : vector<1x1xf32> to vector<1x384xf32>
    %649 = arith.mulf %648, %642 : vector<1x384xf32>
    %650 = arith.addf %646, %649 : vector<1x384xf32>
    %651 = arith.mulf %643, %650 : vector<1x384xf32>
    %652 = arith.addf %640, %651 : vector<1x384xf32>
    %c333_i32 = arith.constant 333 : i32
    %653 = tpu.dynamic_rotate %145 by %c333_i32 dim 1 : vector<1x384xf32>, i32 -> vector<1x384xf32>
    %c333_i32_105 = arith.constant 333 : i32
    %654 = tpu.dynamic_rotate %147 by %c333_i32_105 dim 1 : vector<1x384xf32>, i32 -> vector<1x384xf32>
    %655 = vector.extract_strided_slice %148 {offsets = [42, 0], sizes = [1, 384], strides = [1, 1]} : vector<49x384xf32> to vector<1x384xf32>
    %656 = vector.extract_strided_slice %149 {offsets = [0, 42], sizes = [1, 1], strides = [1, 1]} : vector<2x49xf32> to vector<1x1xf32>
    %657 = vector.broadcast %656 : vector<1x1xf32> to vector<1x384xf32>
    %658 = arith.mulf %657, %653 : vector<1x384xf32>
    %659 = vector.extract_strided_slice %149 {offsets = [1, 42], sizes = [1, 1], strides = [1, 1]} : vector<2x49xf32> to vector<1x1xf32>
    %660 = vector.broadcast %659 : vector<1x1xf32> to vector<1x384xf32>
    %661 = arith.mulf %660, %654 : vector<1x384xf32>
    %662 = arith.addf %658, %661 : vector<1x384xf32>
    %663 = arith.mulf %655, %662 : vector<1x384xf32>
    %664 = arith.addf %652, %663 : vector<1x384xf32>
    %c332_i32 = arith.constant 332 : i32
    %665 = tpu.dynamic_rotate %145 by %c332_i32 dim 1 : vector<1x384xf32>, i32 -> vector<1x384xf32>
    %c332_i32_106 = arith.constant 332 : i32
    %666 = tpu.dynamic_rotate %147 by %c332_i32_106 dim 1 : vector<1x384xf32>, i32 -> vector<1x384xf32>
    %667 = vector.extract_strided_slice %148 {offsets = [43, 0], sizes = [1, 384], strides = [1, 1]} : vector<49x384xf32> to vector<1x384xf32>
    %668 = vector.extract_strided_slice %149 {offsets = [0, 43], sizes = [1, 1], strides = [1, 1]} : vector<2x49xf32> to vector<1x1xf32>
    %669 = vector.broadcast %668 : vector<1x1xf32> to vector<1x384xf32>
    %670 = arith.mulf %669, %665 : vector<1x384xf32>
    %671 = vector.extract_strided_slice %149 {offsets = [1, 43], sizes = [1, 1], strides = [1, 1]} : vector<2x49xf32> to vector<1x1xf32>
    %672 = vector.broadcast %671 : vector<1x1xf32> to vector<1x384xf32>
    %673 = arith.mulf %672, %666 : vector<1x384xf32>
    %674 = arith.addf %670, %673 : vector<1x384xf32>
    %675 = arith.mulf %667, %674 : vector<1x384xf32>
    %676 = arith.addf %664, %675 : vector<1x384xf32>
    %c331_i32 = arith.constant 331 : i32
    %677 = tpu.dynamic_rotate %145 by %c331_i32 dim 1 : vector<1x384xf32>, i32 -> vector<1x384xf32>
    %c331_i32_107 = arith.constant 331 : i32
    %678 = tpu.dynamic_rotate %147 by %c331_i32_107 dim 1 : vector<1x384xf32>, i32 -> vector<1x384xf32>
    %679 = vector.extract_strided_slice %148 {offsets = [44, 0], sizes = [1, 384], strides = [1, 1]} : vector<49x384xf32> to vector<1x384xf32>
    %680 = vector.extract_strided_slice %149 {offsets = [0, 44], sizes = [1, 1], strides = [1, 1]} : vector<2x49xf32> to vector<1x1xf32>
    %681 = vector.broadcast %680 : vector<1x1xf32> to vector<1x384xf32>
    %682 = arith.mulf %681, %677 : vector<1x384xf32>
    %683 = vector.extract_strided_slice %149 {offsets = [1, 44], sizes = [1, 1], strides = [1, 1]} : vector<2x49xf32> to vector<1x1xf32>
    %684 = vector.broadcast %683 : vector<1x1xf32> to vector<1x384xf32>
    %685 = arith.mulf %684, %678 : vector<1x384xf32>
    %686 = arith.addf %682, %685 : vector<1x384xf32>
    %687 = arith.mulf %679, %686 : vector<1x384xf32>
    %688 = arith.addf %676, %687 : vector<1x384xf32>
    %c330_i32 = arith.constant 330 : i32
    %689 = tpu.dynamic_rotate %145 by %c330_i32 dim 1 : vector<1x384xf32>, i32 -> vector<1x384xf32>
    %c330_i32_108 = arith.constant 330 : i32
    %690 = tpu.dynamic_rotate %147 by %c330_i32_108 dim 1 : vector<1x384xf32>, i32 -> vector<1x384xf32>
    %691 = vector.extract_strided_slice %148 {offsets = [45, 0], sizes = [1, 384], strides = [1, 1]} : vector<49x384xf32> to vector<1x384xf32>
    %692 = vector.extract_strided_slice %149 {offsets = [0, 45], sizes = [1, 1], strides = [1, 1]} : vector<2x49xf32> to vector<1x1xf32>
    %693 = vector.broadcast %692 : vector<1x1xf32> to vector<1x384xf32>
    %694 = arith.mulf %693, %689 : vector<1x384xf32>
    %695 = vector.extract_strided_slice %149 {offsets = [1, 45], sizes = [1, 1], strides = [1, 1]} : vector<2x49xf32> to vector<1x1xf32>
    %696 = vector.broadcast %695 : vector<1x1xf32> to vector<1x384xf32>
    %697 = arith.mulf %696, %690 : vector<1x384xf32>
    %698 = arith.addf %694, %697 : vector<1x384xf32>
    %699 = arith.mulf %691, %698 : vector<1x384xf32>
    %700 = arith.addf %688, %699 : vector<1x384xf32>
    %c329_i32 = arith.constant 329 : i32
    %701 = tpu.dynamic_rotate %145 by %c329_i32 dim 1 : vector<1x384xf32>, i32 -> vector<1x384xf32>
    %c329_i32_109 = arith.constant 329 : i32
    %702 = tpu.dynamic_rotate %147 by %c329_i32_109 dim 1 : vector<1x384xf32>, i32 -> vector<1x384xf32>
    %703 = vector.extract_strided_slice %148 {offsets = [46, 0], sizes = [1, 384], strides = [1, 1]} : vector<49x384xf32> to vector<1x384xf32>
    %704 = vector.extract_strided_slice %149 {offsets = [0, 46], sizes = [1, 1], strides = [1, 1]} : vector<2x49xf32> to vector<1x1xf32>
    %705 = vector.broadcast %704 : vector<1x1xf32> to vector<1x384xf32>
    %706 = arith.mulf %705, %701 : vector<1x384xf32>
    %707 = vector.extract_strided_slice %149 {offsets = [1, 46], sizes = [1, 1], strides = [1, 1]} : vector<2x49xf32> to vector<1x1xf32>
    %708 = vector.broadcast %707 : vector<1x1xf32> to vector<1x384xf32>
    %709 = arith.mulf %708, %702 : vector<1x384xf32>
    %710 = arith.addf %706, %709 : vector<1x384xf32>
    %711 = arith.mulf %703, %710 : vector<1x384xf32>
    %712 = arith.addf %700, %711 : vector<1x384xf32>
    %c328_i32 = arith.constant 328 : i32
    %713 = tpu.dynamic_rotate %145 by %c328_i32 dim 1 : vector<1x384xf32>, i32 -> vector<1x384xf32>
    %c328_i32_110 = arith.constant 328 : i32
    %714 = tpu.dynamic_rotate %147 by %c328_i32_110 dim 1 : vector<1x384xf32>, i32 -> vector<1x384xf32>
    %715 = vector.extract_strided_slice %148 {offsets = [47, 0], sizes = [1, 384], strides = [1, 1]} : vector<49x384xf32> to vector<1x384xf32>
    %716 = vector.extract_strided_slice %149 {offsets = [0, 47], sizes = [1, 1], strides = [1, 1]} : vector<2x49xf32> to vector<1x1xf32>
    %717 = vector.broadcast %716 : vector<1x1xf32> to vector<1x384xf32>
    %718 = arith.mulf %717, %713 : vector<1x384xf32>
    %719 = vector.extract_strided_slice %149 {offsets = [1, 47], sizes = [1, 1], strides = [1, 1]} : vector<2x49xf32> to vector<1x1xf32>
    %720 = vector.broadcast %719 : vector<1x1xf32> to vector<1x384xf32>
    %721 = arith.mulf %720, %714 : vector<1x384xf32>
    %722 = arith.addf %718, %721 : vector<1x384xf32>
    %723 = arith.mulf %715, %722 : vector<1x384xf32>
    %724 = arith.addf %712, %723 : vector<1x384xf32>
    %c327_i32 = arith.constant 327 : i32
    %725 = tpu.dynamic_rotate %145 by %c327_i32 dim 1 : vector<1x384xf32>, i32 -> vector<1x384xf32>
    %c327_i32_111 = arith.constant 327 : i32
    %726 = tpu.dynamic_rotate %147 by %c327_i32_111 dim 1 : vector<1x384xf32>, i32 -> vector<1x384xf32>
    %727 = vector.extract_strided_slice %148 {offsets = [48, 0], sizes = [1, 384], strides = [1, 1]} : vector<49x384xf32> to vector<1x384xf32>
    %728 = vector.extract_strided_slice %149 {offsets = [0, 48], sizes = [1, 1], strides = [1, 1]} : vector<2x49xf32> to vector<1x1xf32>
    %729 = vector.broadcast %728 : vector<1x1xf32> to vector<1x384xf32>
    %730 = arith.mulf %729, %725 : vector<1x384xf32>
    %731 = vector.extract_strided_slice %149 {offsets = [1, 48], sizes = [1, 1], strides = [1, 1]} : vector<2x49xf32> to vector<1x1xf32>
    %732 = vector.broadcast %731 : vector<1x1xf32> to vector<1x384xf32>
    %733 = arith.mulf %732, %726 : vector<1x384xf32>
    %734 = arith.addf %730, %733 : vector<1x384xf32>
    %735 = arith.mulf %727, %734 : vector<1x384xf32>
    %736 = arith.addf %724, %735 : vector<1x384xf32>
    %737 = arith.negf %736 : vector<1x384xf32>
    %738 = math.exp %737 : vector<1x384xf32>
    %cst_112 = arith.constant 1.000000e+00 : f32
    %739 = vector.broadcast %cst_112 : f32 to vector<1x384xf32>
    %740 = arith.addf %739, %738 : vector<1x384xf32>
    %741 = arith.divf %739, %740 : vector<1x384xf32>
    %742 = vector.broadcast %741 : vector<1x384xf32> to vector<16x384xf32>
    %743 = arith.mulf %742, %141 : vector<16x384xf32>
    %744 = arith.addf %743, %1 : vector<16x384xf32>
    %cst_113 = arith.constant 0.000000e+00 : f32
    %745 = vector.broadcast %cst_113 : f32 to vector<16x384xf32>
    %746 = arith.maximumf %744, %745 : vector<16x384xf32>
    %c0_114 = arith.constant 0 : index
    %c0_115 = arith.constant 0 : index
    %c0_116 = arith.constant 0 : index
    %747 = vector.load %arg14[%c0_114, %c0_115, %c0_116] : memref<1x16x384xf32, #tpu.memory_space<vmem>>, vector<1x16x384xf32>
    %748 = vector.shape_cast %747 : vector<1x16x384xf32> to vector<16x384xf32>
    %749 = vector.shape_cast %746 : vector<16x384xf32> to vector<1x16x384xf32>
    tpu.vector_store %arg14[%c0_114, %c0_115, %c0_116], %749 {strides = array<i32>} : memref<1x16x384xf32, #tpu.memory_space<vmem>>, vector<1x16x384xf32>,
    return
  }
  func.func @transform_0(%arg0: i32) -> (i32, i32, i32) {
    %c0_i32 = arith.constant 0 : i32
    %c0_i32_0 = arith.constant 0 : i32
    %c0_i32_1 = arith.constant 0 : i32
    return %arg0, %c0_i32, %c0_i32_0 : i32, i32, i32
  }
  func.func @transform_1(%arg0: i32) -> (i32, i32) {
    %c0_i32 = arith.constant 0 : i32
    %c0_i32_0 = arith.constant 0 : i32
    %c0_i32_1 = arith.constant 0 : i32
    return %c0_i32, %c0_i32_0 : i32, i32
  }
  func.func @transform_2(%arg0: i32) -> (i32, i32) {
    %c0_i32 = arith.constant 0 : i32
    %c0_i32_0 = arith.constant 0 : i32
    %c0_i32_1 = arith.constant 0 : i32
    return %c0_i32, %c0_i32_0 : i32, i32
  }
  func.func @transform_3(%arg0: i32) -> (i32, i32) {
    %c0_i32 = arith.constant 0 : i32
    %c0_i32_0 = arith.constant 0 : i32
    %c0_i32_1 = arith.constant 0 : i32
    return %c0_i32, %c0_i32_0 : i32, i32
  }
  func.func @transform_4(%arg0: i32) -> (i32, i32) {
    %c0_i32 = arith.constant 0 : i32
    %c0_i32_0 = arith.constant 0 : i32
    %c0_i32_1 = arith.constant 0 : i32
    return %c0_i32, %c0_i32_0 : i32, i32
  }
  func.func @transform_5(%arg0: i32) -> (i32, i32) {
    %c0_i32 = arith.constant 0 : i32
    %c0_i32_0 = arith.constant 0 : i32
    %c0_i32_1 = arith.constant 0 : i32
    return %c0_i32, %c0_i32_0 : i32, i32
  }
  func.func @transform_6(%arg0: i32) -> (i32, i32) {
    %c0_i32 = arith.constant 0 : i32
    %c0_i32_0 = arith.constant 0 : i32
    %c0_i32_1 = arith.constant 0 : i32
    return %c0_i32, %c0_i32_0 : i32, i32
  }
  func.func @transform_7(%arg0: i32) -> (i32, i32) {
    %c0_i32 = arith.constant 0 : i32
    %c0_i32_0 = arith.constant 0 : i32
    %c0_i32_1 = arith.constant 0 : i32
    return %c0_i32, %c0_i32_0 : i32, i32
  }
  func.func @transform_8(%arg0: i32) -> (i32, i32) {
    %c0_i32 = arith.constant 0 : i32
    %c0_i32_0 = arith.constant 0 : i32
    %c0_i32_1 = arith.constant 0 : i32
    return %c0_i32, %c0_i32_0 : i32, i32
  }
  func.func @transform_9(%arg0: i32) -> (i32, i32) {
    %c0_i32 = arith.constant 0 : i32
    %c0_i32_0 = arith.constant 0 : i32
    %c0_i32_1 = arith.constant 0 : i32
    return %c0_i32, %c0_i32_0 : i32, i32
  }
  func.func @transform_10(%arg0: i32) -> (i32, i32) {
    %c0_i32 = arith.constant 0 : i32
    %c0_i32_0 = arith.constant 0 : i32
    %c0_i32_1 = arith.constant 0 : i32
    return %c0_i32, %c0_i32_0 : i32, i32
  }
  func.func @transform_11(%arg0: i32) -> (i32, i32) {
    %c0_i32 = arith.constant 0 : i32
    %c0_i32_0 = arith.constant 0 : i32
    %c0_i32_1 = arith.constant 0 : i32
    return %c0_i32, %c0_i32_0 : i32, i32
  }
  func.func @transform_12(%arg0: i32) -> (i32, i32) {
    %c0_i32 = arith.constant 0 : i32
    %c0_i32_0 = arith.constant 0 : i32
    %c0_i32_1 = arith.constant 0 : i32
    return %c0_i32, %c0_i32_0 : i32, i32
  }
  func.func @transform_13(%arg0: i32) -> (i32, i32, i32) {
    %c0_i32 = arith.constant 0 : i32
    %c0_i32_0 = arith.constant 0 : i32
    %c0_i32_1 = arith.constant 0 : i32
    return %arg0, %c0_i32, %c0_i32_0 : i32, i32, i32
  }
}

</mosaic_0001>

<llo_original>
// kernel: block_forward.2
$region0: #{block_forward.2}
  #allocation0 [shape = 'u32[]', space=smem, size = 0x4, offset = 0x4, fixed_abs, tag = 'smem constant byte address 0x4 - core index']
  #allocation1 [shape = 'u32[144,128]{1,0:T(1,128)}', space=vmem, size = 0x12000, scoped, tag = 'internal scratch']
  %s0 = inlined_call_operand.vmem [shape: bf16[2,8,256], index: 0, kind: input, shape index: {}]
  %s1 = inlined_call_operand.vmem [shape: bf16[32,8], index: 1, kind: input, shape index: {}]
  %s2 = inlined_call_operand.vmem [shape: f32[32,1], index: 2, kind: input, shape index: {}]
  %s3 = inlined_call_operand.vmem [shape: f32[32,1], index: 3, kind: input, shape index: {}]
  %s4 = inlined_call_operand.vmem [shape: f32[16,9], index: 4, kind: input, shape index: {}]
  %s5 = inlined_call_operand.vmem [shape: f32[16,1], index: 5, kind: input, shape index: {}]
  %s6 = inlined_call_operand.vmem [shape: f32[16,1], index: 6, kind: input, shape index: {}]
  %s7 = inlined_call_operand.vmem [shape: bf16[16,16], index: 7, kind: input, shape index: {}]
  %s8 = inlined_call_operand.vmem [shape: f32[16,1], index: 8, kind: input, shape index: {}]
  %s9 = inlined_call_operand.vmem [shape: f32[16,1], index: 9, kind: input, shape index: {}]
  %s10 = inlined_call_operand.vmem [shape: f32[9,256], index: 10, kind: input, shape index: {}]
  %s11 = inlined_call_operand.vmem [shape: f32[2,16,256], index: 11, kind: output, shape index: {}]
  %s12 = sld [smem:[#allocation0]]
  $region77: #{block_forward.2} parent=0
    _
  %s14 = ssub.s32 1, %s12
  %s15 = scalar_select 0, %s14, %s12
  loop: start=0, step=1, limit=4
  $region2: #{block_forward.2} parent=0 // loop_pre_header
    _
  $region3: #{block_forward.2} parent=0 // loop_header
    %s17 = sphi 0, %s21
    %p18 = scmp.ge.s32.totalorder %s17, 4
    %s27 = sphi 0, %s29
    %s30 = sphi 0, %s27
    %s31 = sphi 0, %s30
    %s47 = sphi 0, %s31
    %s51 = sphi 0, %s51
    %s53 = sphi 0, %s51
    %s54 = sphi 0, %s53
    %s68 = sphi 0, %s54
    %s72 = sphi 0, %s72
    %s74 = sphi 0, %s72
    %s75 = sphi 0, %s74
    %s89 = sphi 0, %s75
    %s93 = sphi 0, %s93
    %s95 = sphi 0, %s93
    %s96 = sphi 0, %s95
    %s110 = sphi 0, %s96
    %s114 = sphi 0, %s114
    %s116 = sphi 0, %s114
    %s117 = sphi 0, %s116
    %s131 = sphi 0, %s117
    %s135 = sphi 0, %s135
    %s137 = sphi 0, %s135
    %s138 = sphi 0, %s137
    %s152 = sphi 0, %s138
    %s156 = sphi 0, %s156
    %s158 = sphi 0, %s156
    %s159 = sphi 0, %s158
    %s173 = sphi 0, %s159
    %s177 = sphi 0, %s177
    %s179 = sphi 0, %s177
    %s180 = sphi 0, %s179
    %s194 = sphi 0, %s180
    %s198 = sphi 0, %s198
    %s200 = sphi 0, %s198
    %s201 = sphi 0, %s200
    %s215 = sphi 0, %s201
    %s219 = sphi 0, %s219
    %s221 = sphi 0, %s219
    %s222 = sphi 0, %s221
    %s236 = sphi 0, %s222
    %s240 = sphi 0, %s240
    %s242 = sphi 0, %s240
    %s243 = sphi 0, %s242
    %s257 = sphi 0, %s243
    %s263 = sphi 0, %s265
    %s266 = sphi 0, %s263
    %s267 = sphi 0, %s266
    %s283 = sphi 0, %s267
  $region4: #{block_forward.2} parent=0 // loop_header_branch
    %20 = sbr.rel (%p18) target = $region8
  $region5: #{block_forward.2} parent=0 // loop_body
    %s22 = ssub.s32 %s17, 1
    %s23 = ssub.s32 %s17, 2
    %s24 = sadd.s32 %s17, 1
    %s25 = ssub.s32 %s17, %s24
    %p26 = scmp.eq.s32.totalorder %s25, 0
    %s28 = sadd.s32 %s27, 1
    %s29 = scalar_select %p26, %s27, %s28
    %p32 = pneg %p26
    %p33 = scmp.eq.s32.totalorder %s17, 1
    %p34 = por %p32, %p33
    %p35 = scmp.ne.s32.totalorder %s27, %s30
    %p36 = scmp.eq.s32.totalorder %s17, 0
    %p37 = por %p35, %p36
    %p38 = scmp.ne.s32.totalorder %s27, %s30
    %p39 = scmp.eq.s32.totalorder %s22, 1
    %p40 = por %p38, %p39
    %p41 = scmp.ne.s32.totalorder %s30, %s31
    %p42 = scmp.eq.s32.totalorder %s22, 0
    %p43 = por %p41, %p42
    %p44 = scmp.ne.s32.totalorder %s30, %s31
    %p45 = scmp.eq.s32.totalorder %s23, 1
    %p46 = por %p44, %p45
    %p48 = scmp.ne.s32.totalorder %s31, %s47
    %p49 = scmp.eq.s32.totalorder %s23, 0
    %p50 = por %p48, %p49
    %s52 = sadd.s32 %s51, 1
    %p55 = scmp.eq.s32.totalorder %s17, 1
    %p56 = scmp.ne.s32.totalorder %s51, %s53
    %p57 = scmp.eq.s32.totalorder %s17, 0
    %p58 = por %p56, %p57
    %p59 = scmp.ne.s32.totalorder %s51, %s53
    %p60 = scmp.eq.s32.totalorder %s22, 1
    %p61 = por %p59, %p60
    %p62 = scmp.ne.s32.totalorder %s53, %s54
    %p63 = scmp.eq.s32.totalorder %s22, 0
    %p64 = por %p62, %p63
    %p65 = scmp.ne.s32.totalorder %s53, %s54
    %p66 = scmp.eq.s32.totalorder %s23, 1
    %p67 = por %p65, %p66
    %p69 = scmp.ne.s32.totalorder %s54, %s68
    %p70 = scmp.eq.s32.totalorder %s23, 0
    %p71 = por %p69, %p70
    %s73 = sadd.s32 %s72, 1
    %p76 = scmp.eq.s32.totalorder %s17, 1
    %p77 = scmp.ne.s32.totalorder %s72, %s74
    %p78 = scmp.eq.s32.totalorder %s17, 0
    %p79 = por %p77, %p78
    %p80 = scmp.ne.s32.totalorder %s72, %s74
    %p81 = scmp.eq.s32.totalorder %s22, 1
    %p82 = por %p80, %p81
    %p83 = scmp.ne.s32.totalorder %s74, %s75
    %p84 = scmp.eq.s32.totalorder %s22, 0
    %p85 = por %p83, %p84
    %p86 = scmp.ne.s32.totalorder %s74, %s75
    %p87 = scmp.eq.s32.totalorder %s23, 1
    %p88 = por %p86, %p87
    %p90 = scmp.ne.s32.totalorder %s75, %s89
    %p91 = scmp.eq.s32.totalorder %s23, 0
    %p92 = por %p90, %p91
    %s94 = sadd.s32 %s93, 1
    %p97 = scmp.eq.s32.totalorder %s17, 1
    %p98 = scmp.ne.s32.totalorder %s93, %s95
    %p99 = scmp.eq.s32.totalorder %s17, 0
    %p100 = por %p98, %p99
    %p101 = scmp.ne.s32.totalorder %s93, %s95
    %p102 = scmp.eq.s32.totalorder %s22, 1
    %p103 = por %p101, %p102
    %p104 = scmp.ne.s32.totalorder %s95, %s96
    %p105 = scmp.eq.s32.totalorder %s22, 0
    %p106 = por %p104, %p105
    %p107 = scmp.ne.s32.totalorder %s95, %s96
    %p108 = scmp.eq.s32.totalorder %s23, 1
    %p109 = por %p107, %p108
    %p111 = scmp.ne.s32.totalorder %s96, %s110
    %p112 = scmp.eq.s32.totalorder %s23, 0
    %p113 = por %p111, %p112
    %s115 = sadd.s32 %s114, 1
    %p118 = scmp.eq.s32.totalorder %s17, 1
    %p119 = scmp.ne.s32.totalorder %s114, %s116
    %p120 = scmp.eq.s32.totalorder %s17, 0
    %p121 = por %p119, %p120
    %p122 = scmp.ne.s32.totalorder %s114, %s116
    %p123 = scmp.eq.s32.totalorder %s22, 1
    %p124 = por %p122, %p123
    %p125 = scmp.ne.s32.totalorder %s116, %s117
    %p126 = scmp.eq.s32.totalorder %s22, 0
    %p127 = por %p125, %p126
    %p128 = scmp.ne.s32.totalorder %s116, %s117
    %p129 = scmp.eq.s32.totalorder %s23, 1
    %p130 = por %p128, %p129
    %p132 = scmp.ne.s32.totalorder %s117, %s131
    %p133 = scmp.eq.s32.totalorder %s23, 0
    %p134 = por %p132, %p133
    %s136 = sadd.s32 %s135, 1
    %p139 = scmp.eq.s32.totalorder %s17, 1
    %p140 = scmp.ne.s32.totalorder %s135, %s137
    %p141 = scmp.eq.s32.totalorder %s17, 0
    %p142 = por %p140, %p141
    %p143 = scmp.ne.s32.totalorder %s135, %s137
    %p144 = scmp.eq.s32.totalorder %s22, 1
    %p145 = por %p143, %p144
    %p146 = scmp.ne.s32.totalorder %s137, %s138
    %p147 = scmp.eq.s32.totalorder %s22, 0
    %p148 = por %p146, %p147
    %p149 = scmp.ne.s32.totalorder %s137, %s138
    %p150 = scmp.eq.s32.totalorder %s23, 1
    %p151 = por %p149, %p150
    %p153 = scmp.ne.s32.totalorder %s138, %s152
    %p154 = scmp.eq.s32.totalorder %s23, 0
    %p155 = por %p153, %p154
    %s157 = sadd.s32 %s156, 1
    %p160 = scmp.eq.s32.totalorder %s17, 1
    %p161 = scmp.ne.s32.totalorder %s156, %s158
    %p162 = scmp.eq.s32.totalorder %s17, 0
    %p163 = por %p161, %p162
    %p164 = scmp.ne.s32.totalorder %s156, %s158
    %p165 = scmp.eq.s32.totalorder %s22, 1
    %p166 = por %p164, %p165
    %p167 = scmp.ne.s32.totalorder %s158, %s159
    %p168 = scmp.eq.s32.totalorder %s22, 0
    %p169 = por %p167, %p168
    %p170 = scmp.ne.s32.totalorder %s158, %s159
    %p171 = scmp.eq.s32.totalorder %s23, 1
    %p172 = por %p170, %p171
    %p174 = scmp.ne.s32.totalorder %s159, %s173
    %p175 = scmp.eq.s32.totalorder %s23, 0
    %p176 = por %p174, %p175
    %s178 = sadd.s32 %s177, 1
    %p181 = scmp.eq.s32.totalorder %s17, 1
    %p182 = scmp.ne.s32.totalorder %s177, %s179
    %p183 = scmp.eq.s32.totalorder %s17, 0
    %p184 = por %p182, %p183
    %p185 = scmp.ne.s32.totalorder %s177, %s179
    %p186 = scmp.eq.s32.totalorder %s22, 1
    %p187 = por %p185, %p186
    %p188 = scmp.ne.s32.totalorder %s179, %s180
    %p189 = scmp.eq.s32.totalorder %s22, 0
    %p190 = por %p188, %p189
    %p191 = scmp.ne.s32.totalorder %s179, %s180
    %p192 = scmp.eq.s32.totalorder %s23, 1
    %p193 = por %p191, %p192
    %p195 = scmp.ne.s32.totalorder %s180, %s194
    %p196 = scmp.eq.s32.totalorder %s23, 0
    %p197 = por %p195, %p196
    %s199 = sadd.s32 %s198, 1
    %p202 = scmp.eq.s32.totalorder %s17, 1
    %p203 = scmp.ne.s32.totalorder %s198, %s200
    %p204 = scmp.eq.s32.totalorder %s17, 0
    %p205 = por %p203, %p204
    %p206 = scmp.ne.s32.totalorder %s198, %s200
    %p207 = scmp.eq.s32.totalorder %s22, 1
    %p208 = por %p206, %p207
    %p209 = scmp.ne.s32.totalorder %s200, %s201
    %p210 = scmp.eq.s32.totalorder %s22, 0
    %p211 = por %p209, %p210
    %p212 = scmp.ne.s32.totalorder %s200, %s201
    %p213 = scmp.eq.s32.totalorder %s23, 1
    %p214 = por %p212, %p213
    %p216 = scmp.ne.s32.totalorder %s201, %s215
    %p217 = scmp.eq.s32.totalorder %s23, 0
    %p218 = por %p216, %p217
    %s220 = sadd.s32 %s219, 1
    %p223 = scmp.eq.s32.totalorder %s17, 1
    %p224 = scmp.ne.s32.totalorder %s219, %s221
    %p225 = scmp.eq.s32.totalorder %s17, 0
    %p226 = por %p224, %p225
    %p227 = scmp.ne.s32.totalorder %s219, %s221
    %p228 = scmp.eq.s32.totalorder %s22, 1
    %p229 = por %p227, %p228
    %p230 = scmp.ne.s32.totalorder %s221, %s222
    %p231 = scmp.eq.s32.totalorder %s22, 0
    %p232 = por %p230, %p231
    %p233 = scmp.ne.s32.totalorder %s221, %s222
    %p234 = scmp.eq.s32.totalorder %s23, 1
    %p235 = por %p233, %p234
    %p237 = scmp.ne.s32.totalorder %s222, %s236
    %p238 = scmp.eq.s32.totalorder %s23, 0
    %p239 = por %p237, %p238
    %s241 = sadd.s32 %s240, 1
    %p244 = scmp.eq.s32.totalorder %s17, 1
    %p245 = scmp.ne.s32.totalorder %s240, %s242
    %p246 = scmp.eq.s32.totalorder %s17, 0
    %p247 = por %p245, %p246
    %p248 = scmp.ne.s32.totalorder %s240, %s242
    %p249 = scmp.eq.s32.totalorder %s22, 1
    %p250 = por %p248, %p249
    %p251 = scmp.ne.s32.totalorder %s242, %s243
    %p252 = scmp.eq.s32.totalorder %s22, 0
    %p253 = por %p251, %p252
    %p254 = scmp.ne.s32.totalorder %s242, %s243
    %p255 = scmp.eq.s32.totalorder %s23, 1
    %p256 = por %p254, %p255
    %p258 = scmp.ne.s32.totalorder %s243, %s257
    %p259 = scmp.eq.s32.totalorder %s23, 0
    %p260 = por %p258, %p259
    %s261 = ssub.s32 %s17, %s24
    %p262 = scmp.eq.s32.totalorder %s261, 0
    %s264 = sadd.s32 %s263, 1
    %s265 = scalar_select %p262, %s263, %s264
    %p268 = pneg %p262
    %p269 = scmp.eq.s32.totalorder %s17, 1
    %p270 = por %p268, %p269
    %p271 = scmp.ne.s32.totalorder %s263, %s266
    %p272 = scmp.eq.s32.totalorder %s17, 0
    %p273 = por %p271, %p272
    %p274 = scmp.ne.s32.totalorder %s263, %s266
    %p275 = scmp.eq.s32.totalorder %s22, 1
    %p276 = por %p274, %p275
    %p277 = scmp.ne.s32.totalorder %s266, %s267
    %p278 = scmp.eq.s32.totalorder %s22, 0
    %p279 = por %p277, %p278
    %p280 = scmp.ne.s32.totalorder %s266, %s267
    %p281 = scmp.eq.s32.totalorder %s23, 1
    %p282 = por %p280, %p281
    %p284 = scmp.ne.s32.totalorder %s267, %s283
    %p285 = scmp.eq.s32.totalorder %s23, 0
    %p286 = por %p284, %p285
    %p287 = scmp.le.s32.totalorder 1, %s17
    %p288 = scmp.lt.s32.totalorder %s17, 3
    %p289 = pnand %p287, %p288
    %p290 = pneg %p289
    // Predicated region
    $region9: #{block_forward.2} parent=5 // pred_check
      _
    $region10: #{block_forward.2} parent=5 // pred_check_branch
      %292 = sbr.rel (%p289) target = $region12
    $region11: #{block_forward.2} parent=5 // pred_region
      %s293 = ssub.s32 %s17, 1
      // Predicated region
      $region13: #{block_forward.2} parent=11 // pred_check
        %p294 = pneg %p64
      $region14: #{block_forward.2} parent=11 // pred_check_branch
        %296 = sbr.rel (%p294) target = $region16
      $region15: #{block_forward.2} parent=11 // pred_region
        _
      $region16: #{block_forward.2} parent=11 // pred_fallthru
        _
      // Predicated region
      $region17: #{block_forward.2} parent=11 // pred_check
        %p297 = pneg %p85
      $region18: #{block_forward.2} parent=11 // pred_check_branch
        %299 = sbr.rel (%p297) target = $region20
      $region19: #{block_forward.2} parent=11 // pred_region
        _
      $region20: #{block_forward.2} parent=11 // pred_fallthru
        _
      // Predicated region
      $region21: #{block_forward.2} parent=11 // pred_check
        %p300 = pneg %p106
      $region22: #{block_forward.2} parent=11 // pred_check_branch
        %302 = sbr.rel (%p300) target = $region24
      $region23: #{block_forward.2} parent=11 // pred_region
        _
      $region24: #{block_forward.2} parent=11 // pred_fallthru
        _
      // Predicated region
      $region25: #{block_forward.2} parent=11 // pred_check
        %p303 = pneg %p127
      $region26: #{block_forward.2} parent=11 // pred_check_branch
        %305 = sbr.rel (%p303) target = $region28
      $region27: #{block_forward.2} parent=11 // pred_region
        _
      $region28: #{block_forward.2} parent=11 // pred_fallthru
        _
      // Predicated region
      $region29: #{block_forward.2} parent=11 // pred_check
        %p306 = pneg %p148
      $region30: #{block_forward.2} parent=11 // pred_check_branch
        %308 = sbr.rel (%p306) target = $region32
      $region31: #{block_forward.2} parent=11 // pred_region
        _
      $region32: #{block_forward.2} parent=11 // pred_fallthru
        _
      // Predicated region
      $region33: #{block_forward.2} parent=11 // pred_check
        %p309 = pneg %p169
      $region34: #{block_forward.2} parent=11 // pred_check_branch
        %311 = sbr.rel (%p309) target = $region36
      $region35: #{block_forward.2} parent=11 // pred_region
        _
      $region36: #{block_forward.2} parent=11 // pred_fallthru
        _
      // Predicated region
      $region37: #{block_forward.2} parent=11 // pred_check
        %p312 = pneg %p190
      $region38: #{block_forward.2} parent=11 // pred_check_branch
        %314 = sbr.rel (%p312) target = $region40
      $region39: #{block_forward.2} parent=11 // pred_region
        _
      $region40: #{block_forward.2} parent=11 // pred_fallthru
        _
      // Predicated region
      $region41: #{block_forward.2} parent=11 // pred_check
        %p315 = pneg %p211
      $region42: #{block_forward.2} parent=11 // pred_check_branch
        %317 = sbr.rel (%p315) target = $region44
      $region43: #{block_forward.2} parent=11 // pred_region
        _
      $region44: #{block_forward.2} parent=11 // pred_fallthru
        _
      // Predicated region
      $region45: #{block_forward.2} parent=11 // pred_check
        %p318 = pneg %p232
      $region46: #{block_forward.2} parent=11 // pred_check_branch
        %320 = sbr.rel (%p318) target = $region48
      $region47: #{block_forward.2} parent=11 // pred_region
        _
      $region48: #{block_forward.2} parent=11 // pred_fallthru
        _
      // Predicated region
      $region49: #{block_forward.2} parent=11 // pred_check
        %p321 = pneg %p253
      $region50: #{block_forward.2} parent=11 // pred_check_branch
        %323 = sbr.rel (%p321) target = $region52
      $region51: #{block_forward.2} parent=11 // pred_region
        _
      $region52: #{block_forward.2} parent=11 // pred_fallthru
        _
    $region12: #{block_forward.2} parent=5 // pred_fallthru
      _
    %p324 = scmp.lt.s32.totalorder %s17, 2
    // Predicated region
    $region53: #{block_forward.2} parent=5 // pred_check
      %p325 = pneg %p324
    $region54: #{block_forward.2} parent=5 // pred_check_branch
      %327 = sbr.rel (%p325) target = $region56
    $region55: #{block_forward.2} parent=5 // pred_region
      // Predicated region
      $region57: #{block_forward.2} parent=55 // pred_check
        %p328 = pneg %p37
      $region58: #{block_forward.2} parent=55 // pred_check_branch
        %330 = sbr.rel (%p328) target = $region60
      $region59: #{block_forward.2} parent=55 // pred_region
        %p331 = scmp.lt.s32.totalorder %s17, 1
        %s332 = scalar_select %p331, %s17, 1
        %s333 = smul.addr %s332, 2
        %s334 = smul.addr %s333, 4
        %s335 = scalar_lea.vmem %s0, %s334
      $region60: #{block_forward.2} parent=55 // pred_fallthru
        _
    $region56: #{block_forward.2} parent=5 // pred_fallthru
      _
    %p336 = scmp.le.s32.totalorder 1, %s17
    %p337 = scmp.lt.s32.totalorder %s17, 3
    %p338 = pnand %p336, %p337
    %p339 = pneg %p338
    // Predicated region
    $region61: #{block_forward.2} parent=5 // pred_check
      _
    $region62: #{block_forward.2} parent=5 // pred_check_branch
      %341 = sbr.rel (%p338) target = $region64
    $region63: #{block_forward.2} parent=5 // pred_region
      %s342 = ssub.s32 %s17, 1
      %p343 = scmp.lt.s32.totalorder %s22, 1
      %s344 = scalar_select %p343, %s22, 1
      %s345 = smul.addr %s344, 2
      %s346 = smul.addr %s345, 4
      %s347 = scalar_lea.vmem %s0, %s346
      %p348 = pneg %p43
      %p349 = pneg %p40
      %p350 = pneg %p64
      %p351 = pneg %p61
      %p352 = pneg %p85
      %p353 = pneg %p82
      %p354 = pneg %p106
      %p355 = pneg %p103
      %p356 = pneg %p127
      %p357 = pneg %p124
      %p358 = pneg %p148
      %p359 = pneg %p145
      %p360 = pneg %p169
      %p361 = pneg %p166
      %p362 = pneg %p190
      %p363 = pneg %p187
      %p364 = pneg %p211
      %p365 = pneg %p208
      %p366 = pneg %p232
      %p367 = pneg %p229
      %p368 = pneg %p253
      %p369 = pneg %p250
      %p370 = pneg %p279
      %p371 = pneg %p276
      %p372 = scmp.lt.s32.totalorder %s22, 1
      %s373 = scalar_select %p372, %s22, 1
      %s374 = smul.addr %s373, 4
      %s375 = smul.addr %s374, 8
      %s376 = scalar_lea.vmem %s11, %s375
      %p377 = scmp.lt.s32.totalorder %s22, 1
      %s378 = scalar_select %p377, %s22, 1
      %s379 = smul.addr %s378, 2
      %s380 = smul.addr %s379, 4
      %s381 = scalar_lea.vmem %s0, %s380
      %p382 = scmp.lt.s32.totalorder %s22, 1
      %s383 = scalar_select %p382, %s22, 1
      %s384 = smul.addr %s383, 4
      %s385 = smul.addr %s384, 8
      %s386 = scalar_lea.vmem %s11, %s385
      %v388 = vld [vmem:[%s381] sm:$0xff]
      %v389 = vld [vmem:[%s1] sm:$0xf]
      %v390 = vld [vmem:[%s1 + $0x4] sm:$0xf]
      %v391 = vld [vmem:[%s1 + $0x8] sm:$0xf]
      %v392 = vld [vmem:[%s1 + $0xc] sm:$0xf]
      %v397 = vunpack.c.l.b16 %v389
      %v398 = vunpack.c.l.b16 %v390
      %v399 = vunpack.c.l.b16 %v391
      %v400 = vunpack.c.l.b16 %v392
      %v401 = vpack.c.b16 %v398, %v397
      %v402 = vpack.c.b16 %v400, %v399
      %v404 = vunpack.c.l.b16 %v388
      %v405 = vunpack.c.h.b16 %v388
      %v406 = vpack.c.b16 %v404, %v404
      %v407 = vpack.c.b16 %v405, %v405
      %vm408 = vcmask 64512
      %v410 = vsel %vm408, %v401, 0
      %v413 = vsel %vm408, %v402, 0
      %vm415 = vcmask 1043456
      %v417 = vsel %vm415, %v406, 0
      %v420 = vsel %vm415, %v407, 0
      %422 = vmatprep.subr.bf16.mxu0 0
      %423 = vmatpush1.bf16.msra.mxu0 0
      %424 = vmatprep.subr.bf16.mxu0 0
      %425 = vmatpush1.bf16.msra.mxu0 0
      %426 = vmatprep.subr.bf16.mxu0 0
      %427 = vmatpush1.bf16.msra.mxu0 0
      %428 = vmatprep.subr.bf16.mxu0 0
      %429 = vmatpush1.bf16.msra.mxu0 0
      %430 = vmatprep.subr.bf16.mxu0 0
      %431 = vmatpush1.bf16.msra.mxu0 0
      %432 = vmatprep.subr.bf16.mxu0 0
      %433 = vmatpush1.bf16.msra.mxu0 0
      %434 = vmatprep.subr.bf16.mxu0 0
      %435 = vmatpush1.bf16.msra.mxu0 0
      %436 = vmatprep.subr.bf16.mxu0 %v420
      %437 = vmatpush1.bf16.msra.mxu0 %v417
      %438 = vmatprep.subr.bf16.mxu0 0
      %439 = vmatpush2.bf16.msra.mxu0 0
      %440 = vmatprep.subr.bf16.mxu0 0
      %441 = vmatpush2.bf16.msra.mxu0 0
      %442 = vmatprep.subr.bf16.mxu0 0
      %443 = vmatpush2.bf16.msra.mxu0 0
      %444 = vmatprep.subr.bf16.mxu0 0
      %445 = vmatpush2.bf16.msra.mxu0 0
      %446 = vmatprep.subr.bf16.mxu0 0
      %447 = vmatpush2.bf16.msra.mxu0 0
      %448 = vmatprep.subr.bf16.mxu0 0
      %449 = vmatpush2.bf16.msra.mxu0 0
      %450 = vmatprep.subr.bf16.mxu0 0
      %451 = vmatpush2.bf16.msra.mxu0 0
      %452 = vmatprep.subr.bf16.mxu0 0
      %453 = vmatpush2.bf16.msra.mxu0 0
      %454 = vmatprep.mubr.bf16.mxu0 0
      %455 = vmatmul.mubr.bf16.gmra.mxu0 %v410
      %v456 = vpop.f32.mrf.mxu0
      %v457 = vadd.f32 0.0, %v456
      %v458 = vpop.f32.mrf.mxu0
      %v459 = vadd.f32 0.0, %v458
      %v460 = vpop.f32.mrf.mxu0
      %v461 = vadd.f32 0.0, %v460
      %v462 = vpop.f32.mrf.mxu0
      %v463 = vadd.f32 0.0, %v462
      %464 = vmatprep.mubr.bf16.mxu0 0
      %465 = vmatmul.mubr.bf16.gmra.mxu0 %v413
      %v466 = vpop.f32.mrf.mxu0
      %v467 = vadd.f32 0.0, %v466
      %v468 = vpop.f32.mrf.mxu0
      %v469 = vadd.f32 0.0, %v468
      %v470 = vpop.f32.mrf.mxu0
      %v471 = vadd.f32 0.0, %v470
      %v472 = vpop.f32.mrf.mxu0
      %v473 = vadd.f32 0.0, %v472
      %474 = vdwg.mxu0
      %v475 = vld [vmem:[%s2] sm:$0xff]
      %v476 = vld [vmem:[%s2 + $0x8] sm:$0xff]
      %v477 = vld [vmem:[%s2 + $0x10] sm:$0xff]
      %v478 = vld [vmem:[%s2 + $0x18] sm:$0xff]
      %480 = vset.pattern.permute.xlu0 0
      %481 = vperm.xlu0 %480, %v475
      %v482 = vpop.permute.xlu0 %481
      %485 = vset.pattern.permute.xlu0 0
      %486 = vperm.xlu0 %485, %v476
      %v487 = vpop.permute.xlu0 %486
      %490 = vset.pattern.permute.xlu0 0
      %491 = vperm.xlu0 %490, %v477
      %v492 = vpop.permute.xlu0 %491
      %495 = vset.pattern.permute.xlu0 0
      %496 = vperm.xlu0 %495, %v478
      %v497 = vpop.permute.xlu0 %496
      %v499 = vmul.f32 %v457, %v482
      %v500 = vmul.f32 %v459, %v482
      %v501 = vmul.f32 %v461, %v487
      %v502 = vmul.f32 %v463, %v487
      %v503 = vmul.f32 %v467, %v492
      %v504 = vmul.f32 %v469, %v492
      %v505 = vmul.f32 %v471, %v497
      %v506 = vmul.f32 %v473, %v497
      %v507 = vld [vmem:[%s3] sm:$0xff]
      %v508 = vld [vmem:[%s3 + $0x8] sm:$0xff]
      %v509 = vld [vmem:[%s3 + $0x10] sm:$0xff]
      %v510 = vld [vmem:[%s3 + $0x18] sm:$0xff]
      %512 = vset.pattern.permute.xlu0 0
      %513 = vperm.xlu0 %512, %v507
      %v514 = vpop.permute.xlu0 %513
      %517 = vset.pattern.permute.xlu0 0
      %518 = vperm.xlu0 %517, %v508
      %v519 = vpop.permute.xlu0 %518
      %522 = vset.pattern.permute.xlu0 0
      %523 = vperm.xlu0 %522, %v509
      %v524 = vpop.permute.xlu0 %523
      %527 = vset.pattern.permute.xlu0 0
      %528 = vperm.xlu0 %527, %v510
      %v529 = vpop.permute.xlu0 %528
      %v531 = vadd.f32 %v499, %v514
      %v532 = vadd.f32 %v500, %v514
      %v533 = vadd.f32 %v501, %v519
      %v534 = vadd.f32 %v502, %v519
      %v535 = vadd.f32 %v503, %v524
      %v536 = vadd.f32 %v504, %v524
      %v537 = vadd.f32 %v505, %v529
      %v538 = vadd.f32 %v506, %v529
      %v539 = vmax.f32 %v531, 0.0
      %v540 = vmax.f32 %v532, 0.0
      %v541 = vmax.f32 %v533, 0.0
      %v542 = vmax.f32 %v534, 0.0
      %v543 = vld [vmem:[%s4] sm:$0xff]
      %v544 = vld [vmem:[%s4 + $0x8] sm:$0xff]
      %v545 = vld [vmem:[%s10] sm:$0xff]
      %v546 = vld [vmem:[%s10 + $0x8] sm:$0xff]
      %v547 = vld [vmem:[%s10 + $0x10] sm:$0x1]
      %v548 = vld [vmem:[%s10 + $0x18] sm:$0x1]
      %549 = vrot.lane.b32.xlu0 %v539, 17
      %v550 = vpop.permute.xlu0 %549
      %551 = vrot.lane.b32.xlu0 %v541, 17
      %v552 = vpop.permute.xlu0 %551
      %553 = vrot.lane.b32.xlu0 %v540, 17
      %v554 = vpop.permute.xlu0 %553
      %555 = vrot.lane.b32.xlu0 %v542, 17
      %v556 = vpop.permute.xlu0 %555
      %v557 = vlaneseq
      %v558 = vand.u32 %v557, 127
      %vm559 = vcmp.lt.s32.totalorder %v558, 17
      %v560 = vsel %vm559, %v550, %v554
      %v561 = vsel %vm559, %v552, %v556
      %v562 = vsel %vm559, %v554, %v550
      %v563 = vsel %vm559, %v556, %v552
      %v564 = vlaneseq
      %v565 = vshrl.u32 %v564, 7
      %v566 = vsub.s32 0, %v565
      %v567 = vrot.slane %v545, %v566
      %v568 = vlaneseq
      %v569 = vshrl.u32 %v568, 7
      %v570 = vsub.s32 0, %v569
      %v571 = vrot.slane %v546, %v570
      %v572 = vmul.f32 %v567, %v562
      %v573 = vmul.f32 %v571, %v560
      %v574 = vmul.f32 %v567, %v563
      %v575 = vmul.f32 %v571, %v561
      %577 = vset.pattern.permute.xlu0 0
      %578 = vperm.xlu0 %577, %v543
      %v579 = vpop.permute.xlu0 %578
      %582 = vset.pattern.permute.xlu0 0
      %583 = vperm.xlu0 %582, %v544
      %v584 = vpop.permute.xlu0 %583
      %v586 = vmul.f32 %v579, %v572
      %v587 = vmul.f32 %v579, %v573
      %v588 = vmul.f32 %v584, %v574
      %v589 = vmul.f32 %v584, %v575
      %v590 = vadd.f32 %v586, 0.0
      %v591 = vadd.f32 %v587, 0.0
      %v592 = vadd.f32 %v588, 0.0
      %v593 = vadd.f32 %v589, 0.0
      %594 = vrot.lane.b32.xlu0 %v539, 16
      %v595 = vpop.permute.xlu0 %594
      %596 = vrot.lane.b32.xlu0 %v541, 16
      %v597 = vpop.permute.xlu0 %596
      %598 = vrot.lane.b32.xlu0 %v540, 16
      %v599 = vpop.permute.xlu0 %598
      %600 = vrot.lane.b32.xlu0 %v542, 16
      %v601 = vpop.permute.xlu0 %600
      %vm602 = vcmp.lt.s32.totalorder %v558, 16
      %v603 = vsel %vm602, %v595, %v599
      %v604 = vsel %vm602, %v597, %v601
      %v605 = vsel %vm602, %v599, %v595
      %v606 = vsel %vm602, %v601, %v597
      %v607 = vlaneseq
      %v608 = vshrl.u32 %v607, 7
      %v609 = vsub.s32 1, %v608
      %v610 = vrot.slane %v545, %v609
      %v611 = vlaneseq
      %v612 = vshrl.u32 %v611, 7
      %v613 = vsub.s32 1, %v612
      %v614 = vrot.slane %v546, %v613
      %v615 = vmul.f32 %v610, %v605
      %v616 = vmul.f32 %v614, %v603
      %v617 = vmul.f32 %v610, %v606
      %v618 = vmul.f32 %v614, %v604
      %619 = vset.pattern.permute.xlu0 1
      %620 = vperm.xlu0 %619, %v543
      %v621 = vpop.permute.xlu0 %620
      %623 = vset.pattern.permute.xlu0 1
      %624 = vperm.xlu0 %623, %v544
      %v625 = vpop.permute.xlu0 %624
      %v627 = vmul.f32 %v621, %v615
      %v628 = vmul.f32 %v621, %v616
      %v629 = vmul.f32 %v625, %v617
      %v630 = vmul.f32 %v625, %v618
      %v631 = vadd.f32 %v590, %v627
      %v632 = vadd.f32 %v591, %v628
      %v633 = vadd.f32 %v592, %v629
      %v634 = vadd.f32 %v593, %v630
      %635 = vrot.lane.b32.xlu0 %v539, 15
      %v636 = vpop.permute.xlu0 %635
      %637 = vrot.lane.b32.xlu0 %v541, 15
      %v638 = vpop.permute.xlu0 %637
      %639 = vrot.lane.b32.xlu0 %v540, 15
      %v640 = vpop.permute.xlu0 %639
      %641 = vrot.lane.b32.xlu0 %v542, 15
      %v642 = vpop.permute.xlu0 %641
      %vm643 = vcmp.lt.s32.totalorder %v558, 15
      %v644 = vsel %vm643, %v636, %v640
      %v645 = vsel %vm643, %v638, %v642
      %v646 = vsel %vm643, %v640, %v636
      %v647 = vsel %vm643, %v642, %v638
      %v648 = vlaneseq
      %v649 = vshrl.u32 %v648, 7
      %v650 = vsub.s32 2, %v649
      %v651 = vrot.slane %v545, %v650
      %v652 = vlaneseq
      %v653 = vshrl.u32 %v652, 7
      %v654 = vsub.s32 2, %v653
      %v655 = vrot.slane %v546, %v654
      %v656 = vmul.f32 %v651, %v646
      %v657 = vmul.f32 %v655, %v644
      %v658 = vmul.f32 %v651, %v647
      %v659 = vmul.f32 %v655, %v645
      %660 = vset.pattern.permute.xlu0 2
      %661 = vperm.xlu0 %660, %v543
      %v662 = vpop.permute.xlu0 %661
      %664 = vset.pattern.permute.xlu0 2
      %665 = vperm.xlu0 %664, %v544
      %v666 = vpop.permute.xlu0 %665
      %v668 = vmul.f32 %v662, %v656
      %v669 = vmul.f32 %v662, %v657
      %v670 = vmul.f32 %v666, %v658
      %v671 = vmul.f32 %v666, %v659
      %v672 = vadd.f32 %v631, %v668
      %v673 = vadd.f32 %v632, %v669
      %v674 = vadd.f32 %v633, %v670
      %v675 = vadd.f32 %v634, %v671
      %676 = vrot.lane.b32.xlu0 %v539, 1
      %v677 = vpop.permute.xlu0 %676
      %678 = vrot.lane.b32.xlu0 %v541, 1
      %v679 = vpop.permute.xlu0 %678
      %680 = vrot.lane.b32.xlu0 %v540, 1
      %v681 = vpop.permute.xlu0 %680
      %682 = vrot.lane.b32.xlu0 %v542, 1
      %v683 = vpop.permute.xlu0 %682
      %vm684 = vcmp.lt.s32.totalorder %v558, 1
      %v685 = vsel %vm684, %v677, %v681
      %v686 = vsel %vm684, %v679, %v683
      %v687 = vsel %vm684, %v681, %v677
      %v688 = vsel %vm684, %v683, %v679
      %v689 = vlaneseq
      %v690 = vshrl.u32 %v689, 7
      %v691 = vsub.s32 3, %v690
      %v692 = vrot.slane %v545, %v691
      %v693 = vlaneseq
      %v694 = vshrl.u32 %v693, 7
      %v695 = vsub.s32 3, %v694
      %v696 = vrot.slane %v546, %v695
      %v697 = vmul.f32 %v692, %v687
      %v698 = vmul.f32 %v696, %v685
      %v699 = vmul.f32 %v692, %v688
      %v700 = vmul.f32 %v696, %v686
      %701 = vset.pattern.permute.xlu0 3
      %702 = vperm.xlu0 %701, %v543
      %v703 = vpop.permute.xlu0 %702
      %705 = vset.pattern.permute.xlu0 3
      %706 = vperm.xlu0 %705, %v544
      %v707 = vpop.permute.xlu0 %706
      %v709 = vmul.f32 %v703, %v697
      %v710 = vmul.f32 %v703, %v698
      %v711 = vmul.f32 %v707, %v699
      %v712 = vmul.f32 %v707, %v700
      %v713 = vadd.f32 %v672, %v709
      %v714 = vadd.f32 %v673, %v710
      %v715 = vadd.f32 %v674, %v711
      %v716 = vadd.f32 %v675, %v712
      %v717 = vlaneseq
      %v718 = vshrl.u32 %v717, 7
      %v719 = vsub.s32 4, %v718
      %v720 = vrot.slane %v545, %v719
      %v721 = vlaneseq
      %v722 = vshrl.u32 %v721, 7
      %v723 = vsub.s32 4, %v722
      %v724 = vrot.slane %v546, %v723
      %v725 = vmul.f32 %v720, %v539
      %v726 = vmul.f32 %v724, %v540
      %v727 = vmul.f32 %v720, %v541
      %v728 = vmul.f32 %v724, %v542
      %729 = vset.pattern.permute.xlu0 4
      %730 = vperm.xlu0 %729, %v543
      %v731 = vpop.permute.xlu0 %730
      %733 = vset.pattern.permute.xlu0 4
      %734 = vperm.xlu0 %733, %v544
      %v735 = vpop.permute.xlu0 %734
      %v737 = vmul.f32 %v731, %v725
      %v738 = vmul.f32 %v731, %v726
      %v739 = vmul.f32 %v735, %v727
      %v740 = vmul.f32 %v735, %v728
      %v741 = vadd.f32 %v713, %v737
      %v742 = vadd.f32 %v714, %v738
      %v743 = vadd.f32 %v715, %v739
      %v744 = vadd.f32 %v716, %v740
      %745 = vrot.lane.b32.xlu0 %v539, 127
      %v746 = vpop.permute.xlu0 %745
      %747 = vrot.lane.b32.xlu0 %v541, 127
      %v748 = vpop.permute.xlu0 %747
      %749 = vrot.lane.b32.xlu0 %v540, 127
      %v750 = vpop.permute.xlu0 %749
      %751 = vrot.lane.b32.xlu0 %v542, 127
      %v752 = vpop.permute.xlu0 %751
      %vm753 = vcmp.lt.s32.totalorder %v558, 127
      %v754 = vsel %vm753, %v746, %v750
      %v755 = vsel %vm753, %v748, %v752
      %v756 = vsel %vm753, %v750, %v746
      %v757 = vsel %vm753, %v752, %v748
      %v758 = vlaneseq
      %v759 = vshrl.u32 %v758, 7
      %v760 = vsub.s32 5, %v759
      %v761 = vrot.slane %v545, %v760
      %v762 = vlaneseq
      %v763 = vshrl.u32 %v762, 7
      %v764 = vsub.s32 5, %v763
      %v765 = vrot.slane %v546, %v764
      %v766 = vmul.f32 %v761, %v754
      %v767 = vmul.f32 %v765, %v756
      %v768 = vmul.f32 %v761, %v755
      %v769 = vmul.f32 %v765, %v757
      %770 = vset.pattern.permute.xlu0 5
      %771 = vperm.xlu0 %770, %v543
      %v772 = vpop.permute.xlu0 %771
      %774 = vset.pattern.permute.xlu0 5
      %775 = vperm.xlu0 %774, %v544
      %v776 = vpop.permute.xlu0 %775
      %v778 = vmul.f32 %v772, %v766
      %v779 = vmul.f32 %v772, %v767
      %v780 = vmul.f32 %v776, %v768
      %v781 = vmul.f32 %v776, %v769
      %v782 = vadd.f32 %v741, %v778
      %v783 = vadd.f32 %v742, %v779
      %v784 = vadd.f32 %v743, %v780
      %v785 = vadd.f32 %v744, %v781
      %786 = vrot.lane.b32.xlu0 %v539, 113
      %v787 = vpop.permute.xlu0 %786
      %788 = vrot.lane.b32.xlu0 %v541, 113
      %v789 = vpop.permute.xlu0 %788
      %790 = vrot.lane.b32.xlu0 %v540, 113
      %v791 = vpop.permute.xlu0 %790
      %792 = vrot.lane.b32.xlu0 %v542, 113
      %v793 = vpop.permute.xlu0 %792
      %vm794 = vcmp.lt.s32.totalorder %v558, 113
      %v795 = vsel %vm794, %v787, %v791
      %v796 = vsel %vm794, %v789, %v793
      %v797 = vsel %vm794, %v791, %v787
      %v798 = vsel %vm794, %v793, %v789
      %v799 = vlaneseq
      %v800 = vshrl.u32 %v799, 7
      %v801 = vsub.s32 6, %v800
      %v802 = vrot.slane %v545, %v801
      %v803 = vlaneseq
      %v804 = vshrl.u32 %v803, 7
      %v805 = vsub.s32 6, %v804
      %v806 = vrot.slane %v546, %v805
      %v807 = vmul.f32 %v802, %v795
      %v808 = vmul.f32 %v806, %v797
      %v809 = vmul.f32 %v802, %v796
      %v810 = vmul.f32 %v806, %v798
      %811 = vset.pattern.permute.xlu0 6
      %812 = vperm.xlu0 %811, %v543
      %v813 = vpop.permute.xlu0 %812
      %815 = vset.pattern.permute.xlu0 6
      %816 = vperm.xlu0 %815, %v544
      %v817 = vpop.permute.xlu0 %816
      %v819 = vmul.f32 %v813, %v807
      %v820 = vmul.f32 %v813, %v808
      %v821 = vmul.f32 %v817, %v809
      %v822 = vmul.f32 %v817, %v810
      %v823 = vadd.f32 %v782, %v819
      %v824 = vadd.f32 %v783, %v820
      %v825 = vadd.f32 %v784, %v821
      %v826 = vadd.f32 %v785, %v822
      %827 = vrot.lane.b32.xlu0 %v539, 112
      %v828 = vpop.permute.xlu0 %827
      %829 = vrot.lane.b32.xlu0 %v541, 112
      %v830 = vpop.permute.xlu0 %829
      %831 = vrot.lane.b32.xlu0 %v540, 112
      %v832 = vpop.permute.xlu0 %831
      %833 = vrot.lane.b32.xlu0 %v542, 112
      %v834 = vpop.permute.xlu0 %833
      %vm835 = vcmp.lt.s32.totalorder %v558, 112
      %v836 = vsel %vm835, %v828, %v832
      %v837 = vsel %vm835, %v830, %v834
      %v838 = vsel %vm835, %v832, %v828
      %v839 = vsel %vm835, %v834, %v830
      %v840 = vlaneseq
      %v841 = vshrl.u32 %v840, 7
      %v842 = vsub.s32 7, %v841
      %v843 = vrot.slane %v545, %v842
      %v844 = vlaneseq
      %v845 = vshrl.u32 %v844, 7
      %v846 = vsub.s32 7, %v845
      %v847 = vrot.slane %v546, %v846
      %v848 = vmul.f32 %v843, %v836
      %v849 = vmul.f32 %v847, %v838
      %v850 = vmul.f32 %v843, %v837
      %v851 = vmul.f32 %v847, %v839
      %852 = vset.pattern.permute.xlu0 7
      %853 = vperm.xlu0 %852, %v543
      %v854 = vpop.permute.xlu0 %853
      %856 = vset.pattern.permute.xlu0 7
      %857 = vperm.xlu0 %856, %v544
      %v858 = vpop.permute.xlu0 %857
      %v860 = vmul.f32 %v854, %v848
      %v861 = vmul.f32 %v854, %v849
      %v862 = vmul.f32 %v858, %v850
      %v863 = vmul.f32 %v858, %v851
      %v864 = vadd.f32 %v823, %v860
      %v865 = vadd.f32 %v824, %v861
      %v866 = vadd.f32 %v825, %v862
      %v867 = vadd.f32 %v826, %v863
      %868 = vrot.lane.b32.xlu0 %v539, 111
      %v869 = vpop.permute.xlu0 %868
      %870 = vrot.lane.b32.xlu0 %v541, 111
      %v871 = vpop.permute.xlu0 %870
      %872 = vrot.lane.b32.xlu0 %v540, 111
      %v873 = vpop.permute.xlu0 %872
      %874 = vrot.lane.b32.xlu0 %v542, 111
      %v875 = vpop.permute.xlu0 %874
      %vm876 = vcmp.lt.s32.totalorder %v558, 111
      %v877 = vsel %vm876, %v869, %v873
      %v878 = vsel %vm876, %v871, %v875
      %v879 = vsel %vm876, %v873, %v869
      %v880 = vsel %vm876, %v875, %v871
      %v881 = vlaneseq
      %v882 = vshrl.u32 %v881, 7
      %v883 = vsub.s32 0, %v882
      %v884 = vrot.slane %v547, %v883
      %v885 = vlaneseq
      %v886 = vshrl.u32 %v885, 7
      %v887 = vsub.s32 0, %v886
      %v888 = vrot.slane %v548, %v887
      %v889 = vmul.f32 %v884, %v877
      %v890 = vmul.f32 %v888, %v879
      %v891 = vmul.f32 %v884, %v878
      %v892 = vmul.f32 %v888, %v880
      %893 = vset.pattern.permute.xlu0 8
      %894 = vperm.xlu0 %893, %v543
      %v895 = vpop.permute.xlu0 %894
      %897 = vset.pattern.permute.xlu0 8
      %898 = vperm.xlu0 %897, %v544
      %v899 = vpop.permute.xlu0 %898
      %v901 = vmul.f32 %v895, %v889
      %v902 = vmul.f32 %v895, %v890
      %v903 = vmul.f32 %v899, %v891
      %v904 = vmul.f32 %v899, %v892
      %v905 = vadd.f32 %v864, %v901
      %v906 = vadd.f32 %v865, %v902
      %v907 = vadd.f32 %v866, %v903
      %v908 = vadd.f32 %v867, %v904
      %v909 = vld [vmem:[%s5] sm:$0xff]
      %v910 = vld [vmem:[%s5 + $0x8] sm:$0xff]
      %912 = vset.pattern.permute.xlu0 0
      %913 = vperm.xlu0 %912, %v909
      %v914 = vpop.permute.xlu0 %913
      %917 = vset.pattern.permute.xlu0 0
      %918 = vperm.xlu0 %917, %v910
      %v919 = vpop.permute.xlu0 %918
      %v921 = vmul.f32 %v905, %v914
      %v922 = vmul.f32 %v906, %v914
      %v923 = vmul.f32 %v907, %v919
      %v924 = vmul.f32 %v908, %v919
      %v925 = vld [vmem:[%s6] sm:$0xff]
      %v926 = vld [vmem:[%s6 + $0x8] sm:$0xff]
      %928 = vset.pattern.permute.xlu0 0
      %929 = vperm.xlu0 %928, %v925
      %v930 = vpop.permute.xlu0 %929
      %933 = vset.pattern.permute.xlu0 0
      %934 = vperm.xlu0 %933, %v926
      %v935 = vpop.permute.xlu0 %934
      %v937 = vadd.f32 %v921, %v930
      %v938 = vadd.f32 %v922, %v930
      %v939 = vadd.f32 %v923, %v935
      %v940 = vadd.f32 %v924, %v935
      %v941 = vmax.f32 %v937, 0.0
      %v942 = vmax.f32 %v938, 0.0
      %v943 = vmax.f32 %v939, 0.0
      %v944 = vmax.f32 %v940, 0.0
      %v945 = vld [vmem:[%s7] sm:$0xf]
      %v946 = vld [vmem:[%s7 + $0x4] sm:$0xf]
      %v947 = vpack.c.bf16 %v943, %v941
      %v948 = vpack.c.bf16 %v944, %v942
      %v951 = vunpack.c.l.b16 %v945
      %v952 = vunpack.c.l.b16 %v946
      %v953 = vpack.c.b16 %v952, %v951
      %vm954 = vcmask 130048
      %v956 = vsel %vm954, %v953, 0
      %958 = vmatprep.subr.bf16.mxu0 0
      %959 = vmatpush1.bf16.msra.mxu0 0
      %960 = vmatprep.subr.bf16.mxu0 0
      %961 = vmatpush1.bf16.msra.mxu0 0
      %962 = vmatprep.subr.bf16.mxu0 0
      %963 = vmatpush1.bf16.msra.mxu0 0
      %964 = vmatprep.subr.bf16.mxu0 0
      %965 = vmatpush1.bf16.msra.mxu0 0
      %966 = vmatprep.subr.bf16.mxu0 0
      %967 = vmatpush1.bf16.msra.mxu0 0
      %968 = vmatprep.subr.bf16.mxu0 0
      %969 = vmatpush1.bf16.msra.mxu0 0
      %970 = vmatprep.subr.bf16.mxu0 0
      %971 = vmatpush1.bf16.msra.mxu0 0
      %972 = vmatprep.subr.bf16.mxu0 %v948
      %973 = vmatpush1.bf16.msra.mxu0 %v947
      %974 = vmatprep.subr.bf16.mxu0 0
      %975 = vmatpush2.bf16.msra.mxu0 0
      %976 = vmatprep.subr.bf16.mxu0 0
      %977 = vmatpush2.bf16.msra.mxu0 0
      %978 = vmatprep.subr.bf16.mxu0 0
      %979 = vmatpush2.bf16.msra.mxu0 0
      %980 = vmatprep.subr.bf16.mxu0 0
      %981 = vmatpush2.bf16.msra.mxu0 0
      %982 = vmatprep.subr.bf16.mxu0 0
      %983 = vmatpush2.bf16.msra.mxu0 0
      %984 = vmatprep.subr.bf16.mxu0 0
      %985 = vmatpush2.bf16.msra.mxu0 0
      %986 = vmatprep.subr.bf16.mxu0 0
      %987 = vmatpush2.bf16.msra.mxu0 0
      %988 = vmatprep.subr.bf16.mxu0 0
      %989 = vmatpush2.bf16.msra.mxu0 0
      %990 = vmatprep.mubr.bf16.mxu0 0
      %991 = vmatmul.mubr.bf16.gmra.mxu0 %v956
      %v992 = vpop.f32.mrf.mxu0
      %v993 = vadd.f32 0.0, %v992
      %v994 = vpop.f32.mrf.mxu0
      %v995 = vadd.f32 0.0, %v994
      %v996 = vpop.f32.mrf.mxu0
      %v997 = vadd.f32 0.0, %v996
      %v998 = vpop.f32.mrf.mxu0
      %v999 = vadd.f32 0.0, %v998
      %1000 = vdwg.mxu0
      %v1001 = vld [vmem:[%s8] sm:$0xff]
      %v1002 = vld [vmem:[%s8 + $0x8] sm:$0xff]
      %1004 = vset.pattern.permute.xlu0 0
      %1005 = vperm.xlu0 %1004, %v1001
      %v1006 = vpop.permute.xlu0 %1005
      %1009 = vset.pattern.permute.xlu0 0
      %1010 = vperm.xlu0 %1009, %v1002
      %v1011 = vpop.permute.xlu0 %1010
      %v1013 = vmul.f32 %v993, %v1006
      %v1014 = vmul.f32 %v995, %v1006
      %v1015 = vmul.f32 %v997, %v1011
      %v1016 = vmul.f32 %v999, %v1011
      %v1017 = vld [vmem:[%s9] sm:$0xff]
      %v1018 = vld [vmem:[%s9 + $0x8] sm:$0xff]
      %1020 = vset.pattern.permute.xlu0 0
      %1021 = vperm.xlu0 %1020, %v1017
      %v1022 = vpop.permute.xlu0 %1021
      %1025 = vset.pattern.permute.xlu0 0
      %1026 = vperm.xlu0 %1025, %v1018
      %v1027 = vpop.permute.xlu0 %1026
      %v1029 = vadd.f32 %v1013, %v1022
      %v1030 = vadd.f32 %v1014, %v1022
      %v1031 = vadd.f32 %v1015, %v1027
      %v1032 = vadd.f32 %v1016, %v1027
      %v1033 = vadd.f32 %v1029, %v535
      %v1034 = vadd.f32 %v1030, %v536
      %v1035 = vadd.f32 %v1031, %v537
      %v1036 = vadd.f32 %v1032, %v538
      %1037 = vst [vmem:[%s386] sm:$0xff] %v1033
      %1038 = vst [vmem:[%s386 + $0x8] sm:$0xff] %v1034
      %1039 = vst [vmem:[%s386 + $0x10] sm:$0xff] %v1035
      %1040 = vst [vmem:[%s386 + $0x18] sm:$0xff] %v1036
      %p1041 = scmp.lt.s32.totalorder %s22, 1
      %s1042 = scalar_select %p1041, %s22, 1
      %s1043 = smul.addr %s1042, 4
      %s1044 = smul.addr %s1043, 8
      %s1045 = scalar_lea.vmem %s11, %s1044
      // Predicated region
      $region65: #{block_forward.2} parent=63 // pred_check
        %p1046 = pneg %p276
      $region66: #{block_forward.2} parent=63 // pred_check_branch
        %1048 = sbr.rel (%p1046) target = $region68
      $region67: #{block_forward.2} parent=63 // pred_region
        _
      $region68: #{block_forward.2} parent=63 // pred_fallthru
        _
    $region64: #{block_forward.2} parent=5 // pred_fallthru
      _
    %p1049 = scmp.le.s32.totalorder 2, %s17
    // Predicated region
    $region69: #{block_forward.2} parent=5 // pred_check
      %p1050 = pneg %p1049
    $region70: #{block_forward.2} parent=5 // pred_check_branch
      %1052 = sbr.rel (%p1050) target = $region72
    $region71: #{block_forward.2} parent=5 // pred_region
      %s1053 = ssub.s32 %s17, 2
      // Predicated region
      $region73: #{block_forward.2} parent=71 // pred_check
        %p1054 = pneg %p282
      $region74: #{block_forward.2} parent=71 // pred_check_branch
        %1056 = sbr.rel (%p1054) target = $region76
      $region75: #{block_forward.2} parent=71 // pred_region
        %p1057 = scmp.lt.s32.totalorder %s23, 1
        %s1058 = scalar_select %p1057, %s23, 1
        %s1059 = smul.addr %s1058, 4
        %s1060 = smul.addr %s1059, 8
        %s1061 = scalar_lea.vmem %s11, %s1060
      $region76: #{block_forward.2} parent=71 // pred_fallthru
        _
    $region72: #{block_forward.2} parent=5 // pred_fallthru
      _
  $region6: #{block_forward.2} parent=0 // loop_footer
    %s21 = sadd.s32 1, %s17
  $region7: #{block_forward.2} parent=0 // loop_footer_branch
    %16 = sbr.rel target = $region3
  $region8: #{block_forward.2} parent=0 // loop_exit
    _

// kernel: block_forward.3
$region0: #{block_forward.3}
  #allocation0 [shape = 'u32[]', space=smem, size = 0x4, offset = 0x4, fixed_abs, tag = 'smem constant byte address 0x4 - core index']
  #allocation1 [shape = 'u32[144,128]{1,0:T(1,128)}', space=vmem, size = 0x12000, scoped, tag = 'internal scratch']
  %s0 = inlined_call_operand.vmem [shape: f32[2,16,384], index: 0, kind: input, shape index: {}]
  %s1 = inlined_call_operand.vmem [shape: bf16[16,144], index: 1, kind: input, shape index: {}]
  %s2 = inlined_call_operand.vmem [shape: f32[16,1], index: 2, kind: input, shape index: {}]
  %s3 = inlined_call_operand.vmem [shape: f32[16,1], index: 3, kind: input, shape index: {}]
  %s4 = inlined_call_operand.vmem [shape: bf16[16,144], index: 4, kind: input, shape index: {}]
  %s5 = inlined_call_operand.vmem [shape: f32[16,1], index: 5, kind: input, shape index: {}]
  %s6 = inlined_call_operand.vmem [shape: f32[16,1], index: 6, kind: input, shape index: {}]
  %s7 = inlined_call_operand.vmem [shape: f32[16,1], index: 7, kind: input, shape index: {}]
  %s8 = inlined_call_operand.vmem [shape: f32[16,1], index: 8, kind: input, shape index: {}]
  %s9 = inlined_call_operand.vmem [shape: f32[2,49], index: 9, kind: input, shape index: {}]
  %s10 = inlined_call_operand.vmem [shape: f32[9,384], index: 10, kind: input, shape index: {}]
  %s11 = inlined_call_operand.vmem [shape: f32[49,384], index: 11, kind: input, shape index: {}]
  %s12 = inlined_call_operand.vmem [shape: f32[1,384], index: 12, kind: input, shape index: {}]
  %s13 = inlined_call_operand.vmem [shape: f32[2,16,384], index: 13, kind: output, shape index: {}]
  %s14 = sld [smem:[#allocation0]]
  $region85: #{block_forward.3} parent=0
    _
  %s16 = ssub.s32 1, %s14
  %s17 = scalar_select 0, %s16, %s14
  loop: start=0, step=1, limit=4
  $region2: #{block_forward.3} parent=0 // loop_pre_header
    _
  $region3: #{block_forward.3} parent=0 // loop_header
    %s19 = sphi 0, %s23
    %p20 = scmp.ge.s32.totalorder %s19, 4
    %s29 = sphi 0, %s31
    %s32 = sphi 0, %s29
    %s33 = sphi 0, %s32
    %s49 = sphi 0, %s33
    %s53 = sphi 0, %s53
    %s55 = sphi 0, %s53
    %s56 = sphi 0, %s55
    %s70 = sphi 0, %s56
    %s74 = sphi 0, %s74
    %s76 = sphi 0, %s74
    %s77 = sphi 0, %s76
    %s91 = sphi 0, %s77
    %s95 = sphi 0, %s95
    %s97 = sphi 0, %s95
    %s98 = sphi 0, %s97
    %s112 = sphi 0, %s98
    %s116 = sphi 0, %s116
    %s118 = sphi 0, %s116
    %s119 = sphi 0, %s118
    %s133 = sphi 0, %s119
    %s137 = sphi 0, %s137
    %s139 = sphi 0, %s137
    %s140 = sphi 0, %s139
    %s154 = sphi 0, %s140
    %s158 = sphi 0, %s158
    %s160 = sphi 0, %s158
    %s161 = sphi 0, %s160
    %s175 = sphi 0, %s161
    %s179 = sphi 0, %s179
    %s181 = sphi 0, %s179
    %s182 = sphi 0, %s181
    %s196 = sphi 0, %s182
    %s200 = sphi 0, %s200
    %s202 = sphi 0, %s200
    %s203 = sphi 0, %s202
    %s217 = sphi 0, %s203
    %s221 = sphi 0, %s221
    %s223 = sphi 0, %s221
    %s224 = sphi 0, %s223
    %s238 = sphi 0, %s224
    %s242 = sphi 0, %s242
    %s244 = sphi 0, %s242
    %s245 = sphi 0, %s244
    %s259 = sphi 0, %s245
    %s263 = sphi 0, %s263
    %s265 = sphi 0, %s263
    %s266 = sphi 0, %s265
    %s280 = sphi 0, %s266
    %s284 = sphi 0, %s284
    %s286 = sphi 0, %s284
    %s287 = sphi 0, %s286
    %s301 = sphi 0, %s287
    %s307 = sphi 0, %s309
    %s310 = sphi 0, %s307
    %s311 = sphi 0, %s310
    %s327 = sphi 0, %s311
  $region4: #{block_forward.3} parent=0 // loop_header_branch
    %22 = sbr.rel (%p20) target = $region8
  $region5: #{block_forward.3} parent=0 // loop_body
    %s24 = ssub.s32 %s19, 1
    %s25 = ssub.s32 %s19, 2
    %s26 = sadd.s32 %s19, 1
    %s27 = ssub.s32 %s19, %s26
    %p28 = scmp.eq.s32.totalorder %s27, 0
    %s30 = sadd.s32 %s29, 1
    %s31 = scalar_select %p28, %s29, %s30
    %p34 = pneg %p28
    %p35 = scmp.eq.s32.totalorder %s19, 1
    %p36 = por %p34, %p35
    %p37 = scmp.ne.s32.totalorder %s29, %s32
    %p38 = scmp.eq.s32.totalorder %s19, 0
    %p39 = por %p37, %p38
    %p40 = scmp.ne.s32.totalorder %s29, %s32
    %p41 = scmp.eq.s32.totalorder %s24, 1
    %p42 = por %p40, %p41
    %p43 = scmp.ne.s32.totalorder %s32, %s33
    %p44 = scmp.eq.s32.totalorder %s24, 0
    %p45 = por %p43, %p44
    %p46 = scmp.ne.s32.totalorder %s32, %s33
    %p47 = scmp.eq.s32.totalorder %s25, 1
    %p48 = por %p46, %p47
    %p50 = scmp.ne.s32.totalorder %s33, %s49
    %p51 = scmp.eq.s32.totalorder %s25, 0
    %p52 = por %p50, %p51
    %s54 = sadd.s32 %s53, 1
    %p57 = scmp.eq.s32.totalorder %s19, 1
    %p58 = scmp.ne.s32.totalorder %s53, %s55
    %p59 = scmp.eq.s32.totalorder %s19, 0
    %p60 = por %p58, %p59
    %p61 = scmp.ne.s32.totalorder %s53, %s55
    %p62 = scmp.eq.s32.totalorder %s24, 1
    %p63 = por %p61, %p62
    %p64 = scmp.ne.s32.totalorder %s55, %s56
    %p65 = scmp.eq.s32.totalorder %s24, 0
    %p66 = por %p64, %p65
    %p67 = scmp.ne.s32.totalorder %s55, %s56
    %p68 = scmp.eq.s32.totalorder %s25, 1
    %p69 = por %p67, %p68
    %p71 = scmp.ne.s32.totalorder %s56, %s70
    %p72 = scmp.eq.s32.totalorder %s25, 0
    %p73 = por %p71, %p72
    %s75 = sadd.s32 %s74, 1
    %p78 = scmp.eq.s32.totalorder %s19, 1
    %p79 = scmp.ne.s32.totalorder %s74, %s76
    %p80 = scmp.eq.s32.totalorder %s19, 0
    %p81 = por %p79, %p80
    %p82 = scmp.ne.s32.totalorder %s74, %s76
    %p83 = scmp.eq.s32.totalorder %s24, 1
    %p84 = por %p82, %p83
    %p85 = scmp.ne.s32.totalorder %s76, %s77
    %p86 = scmp.eq.s32.totalorder %s24, 0
    %p87 = por %p85, %p86
    %p88 = scmp.ne.s32.totalorder %s76, %s77
    %p89 = scmp.eq.s32.totalorder %s25, 1
    %p90 = por %p88, %p89
    %p92 = scmp.ne.s32.totalorder %s77, %s91
    %p93 = scmp.eq.s32.totalorder %s25, 0
    %p94 = por %p92, %p93
    %s96 = sadd.s32 %s95, 1
    %p99 = scmp.eq.s32.totalorder %s19, 1
    %p100 = scmp.ne.s32.totalorder %s95, %s97
    %p101 = scmp.eq.s32.totalorder %s19, 0
    %p102 = por %p100, %p101
    %p103 = scmp.ne.s32.totalorder %s95, %s97
    %p104 = scmp.eq.s32.totalorder %s24, 1
    %p105 = por %p103, %p104
    %p106 = scmp.ne.s32.totalorder %s97, %s98
    %p107 = scmp.eq.s32.totalorder %s24, 0
    %p108 = por %p106, %p107
    %p109 = scmp.ne.s32.totalorder %s97, %s98
    %p110 = scmp.eq.s32.totalorder %s25, 1
    %p111 = por %p109, %p110
    %p113 = scmp.ne.s32.totalorder %s98, %s112
    %p114 = scmp.eq.s32.totalorder %s25, 0
    %p115 = por %p113, %p114
    %s117 = sadd.s32 %s116, 1
    %p120 = scmp.eq.s32.totalorder %s19, 1
    %p121 = scmp.ne.s32.totalorder %s116, %s118
    %p122 = scmp.eq.s32.totalorder %s19, 0
    %p123 = por %p121, %p122
    %p124 = scmp.ne.s32.totalorder %s116, %s118
    %p125 = scmp.eq.s32.totalorder %s24, 1
    %p126 = por %p124, %p125
    %p127 = scmp.ne.s32.totalorder %s118, %s119
    %p128 = scmp.eq.s32.totalorder %s24, 0
    %p129 = por %p127, %p128
    %p130 = scmp.ne.s32.totalorder %s118, %s119
    %p131 = scmp.eq.s32.totalorder %s25, 1
    %p132 = por %p130, %p131
    %p134 = scmp.ne.s32.totalorder %s119, %s133
    %p135 = scmp.eq.s32.totalorder %s25, 0
    %p136 = por %p134, %p135
    %s138 = sadd.s32 %s137, 1
    %p141 = scmp.eq.s32.totalorder %s19, 1
    %p142 = scmp.ne.s32.totalorder %s137, %s139
    %p143 = scmp.eq.s32.totalorder %s19, 0
    %p144 = por %p142, %p143
    %p145 = scmp.ne.s32.totalorder %s137, %s139
    %p146 = scmp.eq.s32.totalorder %s24, 1
    %p147 = por %p145, %p146
    %p148 = scmp.ne.s32.totalorder %s139, %s140
    %p149 = scmp.eq.s32.totalorder %s24, 0
    %p150 = por %p148, %p149
    %p151 = scmp.ne.s32.totalorder %s139, %s140
    %p152 = scmp.eq.s32.totalorder %s25, 1
    %p153 = por %p151, %p152
    %p155 = scmp.ne.s32.totalorder %s140, %s154
    %p156 = scmp.eq.s32.totalorder %s25, 0
    %p157 = por %p155, %p156
    %s159 = sadd.s32 %s158, 1
    %p162 = scmp.eq.s32.totalorder %s19, 1
    %p163 = scmp.ne.s32.totalorder %s158, %s160
    %p164 = scmp.eq.s32.totalorder %s19, 0
    %p165 = por %p163, %p164
    %p166 = scmp.ne.s32.totalorder %s158, %s160
    %p167 = scmp.eq.s32.totalorder %s24, 1
    %p168 = por %p166, %p167
    %p169 = scmp.ne.s32.totalorder %s160, %s161
    %p170 = scmp.eq.s32.totalorder %s24, 0
    %p171 = por %p169, %p170
    %p172 = scmp.ne.s32.totalorder %s160, %s161
    %p173 = scmp.eq.s32.totalorder %s25, 1
    %p174 = por %p172, %p173
    %p176 = scmp.ne.s32.totalorder %s161, %s175
    %p177 = scmp.eq.s32.totalorder %s25, 0
    %p178 = por %p176, %p177
    %s180 = sadd.s32 %s179, 1
    %p183 = scmp.eq.s32.totalorder %s19, 1
    %p184 = scmp.ne.s32.totalorder %s179, %s181
    %p185 = scmp.eq.s32.totalorder %s19, 0
    %p186 = por %p184, %p185
    %p187 = scmp.ne.s32.totalorder %s179, %s181
    %p188 = scmp.eq.s32.totalorder %s24, 1
    %p189 = por %p187, %p188
    %p190 = scmp.ne.s32.totalorder %s181, %s182
    %p191 = scmp.eq.s32.totalorder %s24, 0
    %p192 = por %p190, %p191
    %p193 = scmp.ne.s32.totalorder %s181, %s182
    %p194 = scmp.eq.s32.totalorder %s25, 1
    %p195 = por %p193, %p194
    %p197 = scmp.ne.s32.totalorder %s182, %s196
    %p198 = scmp.eq.s32.totalorder %s25, 0
    %p199 = por %p197, %p198
    %s201 = sadd.s32 %s200, 1
    %p204 = scmp.eq.s32.totalorder %s19, 1
    %p205 = scmp.ne.s32.totalorder %s200, %s202
    %p206 = scmp.eq.s32.totalorder %s19, 0
    %p207 = por %p205, %p206
    %p208 = scmp.ne.s32.totalorder %s200, %s202
    %p209 = scmp.eq.s32.totalorder %s24, 1
    %p210 = por %p208, %p209
    %p211 = scmp.ne.s32.totalorder %s202, %s203
    %p212 = scmp.eq.s32.totalorder %s24, 0
    %p213 = por %p211, %p212
    %p214 = scmp.ne.s32.totalorder %s202, %s203
    %p215 = scmp.eq.s32.totalorder %s25, 1
    %p216 = por %p214, %p215
    %p218 = scmp.ne.s32.totalorder %s203, %s217
    %p219 = scmp.eq.s32.totalorder %s25, 0
    %p220 = por %p218, %p219
    %s222 = sadd.s32 %s221, 1
    %p225 = scmp.eq.s32.totalorder %s19, 1
    %p226 = scmp.ne.s32.totalorder %s221, %s223
    %p227 = scmp.eq.s32.totalorder %s19, 0
    %p228 = por %p226, %p227
    %p229 = scmp.ne.s32.totalorder %s221, %s223
    %p230 = scmp.eq.s32.totalorder %s24, 1
    %p231 = por %p229, %p230
    %p232 = scmp.ne.s32.totalorder %s223, %s224
    %p233 = scmp.eq.s32.totalorder %s24, 0
    %p234 = por %p232, %p233
    %p235 = scmp.ne.s32.totalorder %s223, %s224
    %p236 = scmp.eq.s32.totalorder %s25, 1
    %p237 = por %p235, %p236
    %p239 = scmp.ne.s32.totalorder %s224, %s238
    %p240 = scmp.eq.s32.totalorder %s25, 0
    %p241 = por %p239, %p240
    %s243 = sadd.s32 %s242, 1
    %p246 = scmp.eq.s32.totalorder %s19, 1
    %p247 = scmp.ne.s32.totalorder %s242, %s244
    %p248 = scmp.eq.s32.totalorder %s19, 0
    %p249 = por %p247, %p248
    %p250 = scmp.ne.s32.totalorder %s242, %s244
    %p251 = scmp.eq.s32.totalorder %s24, 1
    %p252 = por %p250, %p251
    %p253 = scmp.ne.s32.totalorder %s244, %s245
    %p254 = scmp.eq.s32.totalorder %s24, 0
    %p255 = por %p253, %p254
    %p256 = scmp.ne.s32.totalorder %s244, %s245
    %p257 = scmp.eq.s32.totalorder %s25, 1
    %p258 = por %p256, %p257
    %p260 = scmp.ne.s32.totalorder %s245, %s259
    %p261 = scmp.eq.s32.totalorder %s25, 0
    %p262 = por %p260, %p261
    %s264 = sadd.s32 %s263, 1
    %p267 = scmp.eq.s32.totalorder %s19, 1
    %p268 = scmp.ne.s32.totalorder %s263, %s265
    %p269 = scmp.eq.s32.totalorder %s19, 0
    %p270 = por %p268, %p269
    %p271 = scmp.ne.s32.totalorder %s263, %s265
    %p272 = scmp.eq.s32.totalorder %s24, 1
    %p273 = por %p271, %p272
    %p274 = scmp.ne.s32.totalorder %s265, %s266
    %p275 = scmp.eq.s32.totalorder %s24, 0
    %p276 = por %p274, %p275
    %p277 = scmp.ne.s32.totalorder %s265, %s266
    %p278 = scmp.eq.s32.totalorder %s25, 1
    %p279 = por %p277, %p278
    %p281 = scmp.ne.s32.totalorder %s266, %s280
    %p282 = scmp.eq.s32.totalorder %s25, 0
    %p283 = por %p281, %p282
    %s285 = sadd.s32 %s284, 1
    %p288 = scmp.eq.s32.totalorder %s19, 1
    %p289 = scmp.ne.s32.totalorder %s284, %s286
    %p290 = scmp.eq.s32.totalorder %s19, 0
    %p291 = por %p289, %p290
    %p292 = scmp.ne.s32.totalorder %s284, %s286
    %p293 = scmp.eq.s32.totalorder %s24, 1
    %p294 = por %p292, %p293
    %p295 = scmp.ne.s32.totalorder %s286, %s287
    %p296 = scmp.eq.s32.totalorder %s24, 0
    %p297 = por %p295, %p296
    %p298 = scmp.ne.s32.totalorder %s286, %s287
    %p299 = scmp.eq.s32.totalorder %s25, 1
    %p300 = por %p298, %p299
    %p302 = scmp.ne.s32.totalorder %s287, %s301
    %p303 = scmp.eq.s32.totalorder %s25, 0
    %p304 = por %p302, %p303
    %s305 = ssub.s32 %s19, %s26
    %p306 = scmp.eq.s32.totalorder %s305, 0
    %s308 = sadd.s32 %s307, 1
    %s309 = scalar_select %p306, %s307, %s308
    %p312 = pneg %p306
    %p313 = scmp.eq.s32.totalorder %s19, 1
    %p314 = por %p312, %p313
    %p315 = scmp.ne.s32.totalorder %s307, %s310
    %p316 = scmp.eq.s32.totalorder %s19, 0
    %p317 = por %p315, %p316
    %p318 = scmp.ne.s32.totalorder %s307, %s310
    %p319 = scmp.eq.s32.totalorder %s24, 1
    %p320 = por %p318, %p319
    %p321 = scmp.ne.s32.totalorder %s310, %s311
    %p322 = scmp.eq.s32.totalorder %s24, 0
    %p323 = por %p321, %p322
    %p324 = scmp.ne.s32.totalorder %s310, %s311
    %p325 = scmp.eq.s32.totalorder %s25, 1
    %p326 = por %p324, %p325
    %p328 = scmp.ne.s32.totalorder %s311, %s327
    %p329 = scmp.eq.s32.totalorder %s25, 0
    %p330 = por %p328, %p329
    %p331 = scmp.le.s32.totalorder 1, %s19
    %p332 = scmp.lt.s32.totalorder %s19, 3
    %p333 = pnand %p331, %p332
    %p334 = pneg %p333
    // Predicated region
    $region9: #{block_forward.3} parent=5 // pred_check
      _
    $region10: #{block_forward.3} parent=5 // pred_check_branch
      %336 = sbr.rel (%p333) target = $region12
    $region11: #{block_forward.3} parent=5 // pred_region
      %s337 = ssub.s32 %s19, 1
      // Predicated region
      $region13: #{block_forward.3} parent=11 // pred_check
        %p338 = pneg %p66
      $region14: #{block_forward.3} parent=11 // pred_check_branch
        %340 = sbr.rel (%p338) target = $region16
      $region15: #{block_forward.3} parent=11 // pred_region
        _
      $region16: #{block_forward.3} parent=11 // pred_fallthru
        _
      // Predicated region
      $region17: #{block_forward.3} parent=11 // pred_check
        %p341 = pneg %p87
      $region18: #{block_forward.3} parent=11 // pred_check_branch
        %343 = sbr.rel (%p341) target = $region20
      $region19: #{block_forward.3} parent=11 // pred_region
        _
      $region20: #{block_forward.3} parent=11 // pred_fallthru
        _
      // Predicated region
      $region21: #{block_forward.3} parent=11 // pred_check
        %p344 = pneg %p108
      $region22: #{block_forward.3} parent=11 // pred_check_branch
        %346 = sbr.rel (%p344) target = $region24
      $region23: #{block_forward.3} parent=11 // pred_region
        _
      $region24: #{block_forward.3} parent=11 // pred_fallthru
        _
      // Predicated region
      $region25: #{block_forward.3} parent=11 // pred_check
        %p347 = pneg %p129
      $region26: #{block_forward.3} parent=11 // pred_check_branch
        %349 = sbr.rel (%p347) target = $region28
      $region27: #{block_forward.3} parent=11 // pred_region
        _
      $region28: #{block_forward.3} parent=11 // pred_fallthru
        _
      // Predicated region
      $region29: #{block_forward.3} parent=11 // pred_check
        %p350 = pneg %p150
      $region30: #{block_forward.3} parent=11 // pred_check_branch
        %352 = sbr.rel (%p350) target = $region32
      $region31: #{block_forward.3} parent=11 // pred_region
        _
      $region32: #{block_forward.3} parent=11 // pred_fallthru
        _
      // Predicated region
      $region33: #{block_forward.3} parent=11 // pred_check
        %p353 = pneg %p171
      $region34: #{block_forward.3} parent=11 // pred_check_branch
        %355 = sbr.rel (%p353) target = $region36
      $region35: #{block_forward.3} parent=11 // pred_region
        _
      $region36: #{block_forward.3} parent=11 // pred_fallthru
        _
      // Predicated region
      $region37: #{block_forward.3} parent=11 // pred_check
        %p356 = pneg %p192
      $region38: #{block_forward.3} parent=11 // pred_check_branch
        %358 = sbr.rel (%p356) target = $region40
      $region39: #{block_forward.3} parent=11 // pred_region
        _
      $region40: #{block_forward.3} parent=11 // pred_fallthru
        _
      // Predicated region
      $region41: #{block_forward.3} parent=11 // pred_check
        %p359 = pneg %p213
      $region42: #{block_forward.3} parent=11 // pred_check_branch
        %361 = sbr.rel (%p359) target = $region44
      $region43: #{block_forward.3} parent=11 // pred_region
        _
      $region44: #{block_forward.3} parent=11 // pred_fallthru
        _
      // Predicated region
      $region45: #{block_forward.3} parent=11 // pred_check
        %p362 = pneg %p234
      $region46: #{block_forward.3} parent=11 // pred_check_branch
        %364 = sbr.rel (%p362) target = $region48
      $region47: #{block_forward.3} parent=11 // pred_region
        _
      $region48: #{block_forward.3} parent=11 // pred_fallthru
        _
      // Predicated region
      $region49: #{block_forward.3} parent=11 // pred_check
        %p365 = pneg %p255
      $region50: #{block_forward.3} parent=11 // pred_check_branch
        %367 = sbr.rel (%p365) target = $region52
      $region51: #{block_forward.3} parent=11 // pred_region
        _
      $region52: #{block_forward.3} parent=11 // pred_fallthru
        _
      // Predicated region
      $region53: #{block_forward.3} parent=11 // pred_check
        %p368 = pneg %p276
      $region54: #{block_forward.3} parent=11 // pred_check_branch
        %370 = sbr.rel (%p368) target = $region56
      $region55: #{block_forward.3} parent=11 // pred_region
        _
      $region56: #{block_forward.3} parent=11 // pred_fallthru
        _
      // Predicated region
      $region57: #{block_forward.3} parent=11 // pred_check
        %p371 = pneg %p297
      $region58: #{block_forward.3} parent=11 // pred_check_branch
        %373 = sbr.rel (%p371) target = $region60
      $region59: #{block_forward.3} parent=11 // pred_region
        _
      $region60: #{block_forward.3} parent=11 // pred_fallthru
        _
    $region12: #{block_forward.3} parent=5 // pred_fallthru
      _
    %p374 = scmp.lt.s32.totalorder %s19, 2
    // Predicated region
    $region61: #{block_forward.3} parent=5 // pred_check
      %p375 = pneg %p374
    $region62: #{block_forward.3} parent=5 // pred_check_branch
      %377 = sbr.rel (%p375) target = $region64
    $region63: #{block_forward.3} parent=5 // pred_region
      // Predicated region
      $region65: #{block_forward.3} parent=63 // pred_check
        %p378 = pneg %p39
      $region66: #{block_forward.3} parent=63 // pred_check_branch
        %380 = sbr.rel (%p378) target = $region68
      $region67: #{block_forward.3} parent=63 // pred_region
        %p381 = scmp.lt.s32.totalorder %s19, 1
        %s382 = scalar_select %p381, %s19, 1
        %s383 = smul.addr %s382, 6
        %s384 = smul.addr %s383, 8
        %s385 = scalar_lea.vmem %s0, %s384
      $region68: #{block_forward.3} parent=63 // pred_fallthru
        _
    $region64: #{block_forward.3} parent=5 // pred_fallthru
      _
    %p386 = scmp.le.s32.totalorder 1, %s19
    %p387 = scmp.lt.s32.totalorder %s19, 3
    %p388 = pnand %p386, %p387
    %p389 = pneg %p388
    // Predicated region
    $region69: #{block_forward.3} parent=5 // pred_check
      _
    $region70: #{block_forward.3} parent=5 // pred_check_branch
      %391 = sbr.rel (%p388) target = $region72
    $region71: #{block_forward.3} parent=5 // pred_region
      %s392 = ssub.s32 %s19, 1
      %p393 = scmp.lt.s32.totalorder %s24, 1
      %s394 = scalar_select %p393, %s24, 1
      %s395 = smul.addr %s394, 6
      %s396 = smul.addr %s395, 8
      %s397 = scalar_lea.vmem %s0, %s396
      %p398 = pneg %p45
      %p399 = pneg %p42
      %p400 = pneg %p66
      %p401 = pneg %p63
      %p402 = pneg %p87
      %p403 = pneg %p84
      %p404 = pneg %p108
      %p405 = pneg %p105
      %p406 = pneg %p129
      %p407 = pneg %p126
      %p408 = pneg %p150
      %p409 = pneg %p147
      %p410 = pneg %p171
      %p411 = pneg %p168
      %p412 = pneg %p192
      %p413 = pneg %p189
      %p414 = pneg %p213
      %p415 = pneg %p210
      %p416 = pneg %p234
      %p417 = pneg %p231
      %p418 = pneg %p255
      %p419 = pneg %p252
      %p420 = pneg %p276
      %p421 = pneg %p273
      %p422 = pneg %p297
      %p423 = pneg %p294
      %p424 = pneg %p323
      %p425 = pneg %p320
      %p426 = scmp.lt.s32.totalorder %s24, 1
      %s427 = scalar_select %p426, %s24, 1
      %s428 = smul.addr %s427, 6
      %s429 = smul.addr %s428, 8
      %s430 = scalar_lea.vmem %s13, %s429
      %p431 = scmp.lt.s32.totalorder %s24, 1
      %s432 = scalar_select %p431, %s24, 1
      %s433 = smul.addr %s432, 6
      %s434 = smul.addr %s433, 8
      %s435 = scalar_lea.vmem %s0, %s434
      %p436 = scmp.lt.s32.totalorder %s24, 1
      %s437 = scalar_select %p436, %s24, 1
      %s438 = smul.addr %s437, 6
      %s439 = smul.addr %s438, 8
      %s440 = scalar_lea.vmem %s13, %s439
      %v442 = vld [vmem:[%s435] sm:$0xff]
      %v443 = vld [vmem:[%s435 + $0x8] sm:$0xff]
      %v444 = vld [vmem:[%s435 + $0x10] sm:$0xff]
      %v445 = vld [vmem:[%s435 + $0x18] sm:$0xff]
      %v446 = vld [vmem:[%s435 + $0x20] sm:$0xff]
      %v447 = vld [vmem:[%s435 + $0x28] sm:$0xff]
      %v448 = vld [vmem:[%s10] sm:$0xff]
      %v449 = vld [vmem:[%s10 + $0x8] sm:$0xff]
      %v450 = vld [vmem:[%s10 + $0x10] sm:$0xff]
      %v451 = vld [vmem:[%s10 + $0x18] sm:$0x1]
      %v452 = vld [vmem:[%s10 + $0x20] sm:$0x1]
      %v453 = vld [vmem:[%s10 + $0x28] sm:$0x1]
      %v454 = vld [vmem:[%s12] sm:$0x7]
      %v455 = vld [vmem:[%s1] sm:$0xff]
      %v456 = vld [vmem:[%s1 + $0x8] sm:$0xff]
      %457 = vrot.lane.b32.xlu0 %v442, 19
      %v458 = vpop.permute.xlu0 %457
      %459 = vrot.lane.b32.xlu0 %v445, 19
      %v460 = vpop.permute.xlu0 %459
      %461 = vrot.lane.b32.xlu0 %v443, 19
      %v462 = vpop.permute.xlu0 %461
      %463 = vrot.lane.b32.xlu0 %v446, 19
      %v464 = vpop.permute.xlu0 %463
      %465 = vrot.lane.b32.xlu0 %v444, 19
      %v466 = vpop.permute.xlu0 %465
      %467 = vrot.lane.b32.xlu0 %v447, 19
      %v468 = vpop.permute.xlu0 %467
      %v469 = vlaneseq
      %v470 = vand.u32 %v469, 127
      %vm471 = vcmp.lt.s32.totalorder %v470, 19
      %v472 = vsel %vm471, %v462, %v466
      %v473 = vsel %vm471, %v464, %v468
      %v474 = vsel %vm471, %v458, %v462
      %v475 = vsel %vm471, %v460, %v464
      %v476 = vsel %vm471, %v466, %v458
      %v477 = vsel %vm471, %v468, %v460
      %v478 = vlaneseq
      %v479 = vshrl.u32 %v478, 7
      %v480 = vsub.s32 0, %v479
      %v481 = vrot.slane %v448, %v480
      %v482 = vlaneseq
      %v483 = vshrl.u32 %v482, 7
      %v484 = vsub.s32 0, %v483
      %v485 = vrot.slane %v449, %v484
      %v486 = vlaneseq
      %v487 = vshrl.u32 %v486, 7
      %v488 = vsub.s32 0, %v487
      %v489 = vrot.slane %v450, %v488
      %v490 = vmul.f32 %v481, %v476
      %v491 = vmul.f32 %v485, %v474
      %v492 = vmul.f32 %v489, %v472
      %v493 = vmul.f32 %v481, %v477
      %v494 = vmul.f32 %v485, %v475
      %v495 = vmul.f32 %v489, %v473
      %496 = vrot.lane.b32.xlu0 %v442, 18
      %v497 = vpop.permute.xlu0 %496
      %498 = vrot.lane.b32.xlu0 %v445, 18
      %v499 = vpop.permute.xlu0 %498
      %500 = vrot.lane.b32.xlu0 %v443, 18
      %v501 = vpop.permute.xlu0 %500
      %502 = vrot.lane.b32.xlu0 %v446, 18
      %v503 = vpop.permute.xlu0 %502
      %504 = vrot.lane.b32.xlu0 %v444, 18
      %v505 = vpop.permute.xlu0 %504
      %506 = vrot.lane.b32.xlu0 %v447, 18
      %v507 = vpop.permute.xlu0 %506
      %vm508 = vcmp.lt.s32.totalorder %v470, 18
      %v509 = vsel %vm508, %v501, %v505
      %v510 = vsel %vm508, %v503, %v507
      %v511 = vsel %vm508, %v497, %v501
      %v512 = vsel %vm508, %v499, %v503
      %v513 = vsel %vm508, %v505, %v497
      %v514 = vsel %vm508, %v507, %v499
      %v515 = vlaneseq
      %v516 = vshrl.u32 %v515, 7
      %v517 = vsub.s32 1, %v516
      %v518 = vrot.slane %v448, %v517
      %v519 = vlaneseq
      %v520 = vshrl.u32 %v519, 7
      %v521 = vsub.s32 1, %v520
      %v522 = vrot.slane %v449, %v521
      %v523 = vlaneseq
      %v524 = vshrl.u32 %v523, 7
      %v525 = vsub.s32 1, %v524
      %v526 = vrot.slane %v450, %v525
      %v527 = vmul.f32 %v518, %v513
      %v528 = vmul.f32 %v522, %v511
      %v529 = vmul.f32 %v526, %v509
      %v530 = vmul.f32 %v518, %v514
      %v531 = vmul.f32 %v522, %v512
      %v532 = vmul.f32 %v526, %v510
      %533 = vrot.lane.b32.xlu0 %v442, 17
      %v534 = vpop.permute.xlu0 %533
      %535 = vrot.lane.b32.xlu0 %v445, 17
      %v536 = vpop.permute.xlu0 %535
      %537 = vrot.lane.b32.xlu0 %v443, 17
      %v538 = vpop.permute.xlu0 %537
      %539 = vrot.lane.b32.xlu0 %v446, 17
      %v540 = vpop.permute.xlu0 %539
      %541 = vrot.lane.b32.xlu0 %v444, 17
      %v542 = vpop.permute.xlu0 %541
      %543 = vrot.lane.b32.xlu0 %v447, 17
      %v544 = vpop.permute.xlu0 %543
      %vm545 = vcmp.lt.s32.totalorder %v470, 17
      %v546 = vsel %vm545, %v538, %v542
      %v547 = vsel %vm545, %v540, %v544
      %v548 = vsel %vm545, %v534, %v538
      %v549 = vsel %vm545, %v536, %v540
      %v550 = vsel %vm545, %v542, %v534
      %v551 = vsel %vm545, %v544, %v536
      %v552 = vlaneseq
      %v553 = vshrl.u32 %v552, 7
      %v554 = vsub.s32 2, %v553
      %v555 = vrot.slane %v448, %v554
      %v556 = vlaneseq
      %v557 = vshrl.u32 %v556, 7
      %v558 = vsub.s32 2, %v557
      %v559 = vrot.slane %v449, %v558
      %v560 = vlaneseq
      %v561 = vshrl.u32 %v560, 7
      %v562 = vsub.s32 2, %v561
      %v563 = vrot.slane %v450, %v562
      %v564 = vmul.f32 %v555, %v550
      %v565 = vmul.f32 %v559, %v548
      %v566 = vmul.f32 %v563, %v546
      %v567 = vmul.f32 %v555, %v551
      %v568 = vmul.f32 %v559, %v549
      %v569 = vmul.f32 %v563, %v547
      %570 = vrot.lane.b32.xlu0 %v442, 1
      %v571 = vpop.permute.xlu0 %570
      %572 = vrot.lane.b32.xlu0 %v445, 1
      %v573 = vpop.permute.xlu0 %572
      %574 = vrot.lane.b32.xlu0 %v443, 1
      %v575 = vpop.permute.xlu0 %574
      %576 = vrot.lane.b32.xlu0 %v446, 1
      %v577 = vpop.permute.xlu0 %576
      %578 = vrot.lane.b32.xlu0 %v444, 1
      %v579 = vpop.permute.xlu0 %578
      %580 = vrot.lane.b32.xlu0 %v447, 1
      %v581 = vpop.permute.xlu0 %580
      %vm582 = vcmp.lt.s32.totalorder %v470, 1
      %v583 = vsel %vm582, %v575, %v579
      %v584 = vsel %vm582, %v577, %v581
      %v585 = vsel %vm582, %v571, %v575
      %v586 = vsel %vm582, %v573, %v577
      %v587 = vsel %vm582, %v579, %v571
      %v588 = vsel %vm582, %v581, %v573
      %v589 = vlaneseq
      %v590 = vshrl.u32 %v589, 7
      %v591 = vsub.s32 3, %v590
      %v592 = vrot.slane %v448, %v591
      %v593 = vlaneseq
      %v594 = vshrl.u32 %v593, 7
      %v595 = vsub.s32 3, %v594
      %v596 = vrot.slane %v449, %v595
      %v597 = vlaneseq
      %v598 = vshrl.u32 %v597, 7
      %v599 = vsub.s32 3, %v598
      %v600 = vrot.slane %v450, %v599
      %v601 = vmul.f32 %v592, %v587
      %v602 = vmul.f32 %v596, %v585
      %v603 = vmul.f32 %v600, %v583
      %v604 = vmul.f32 %v592, %v588
      %v605 = vmul.f32 %v596, %v586
      %v606 = vmul.f32 %v600, %v584
      %v607 = vlaneseq
      %v608 = vshrl.u32 %v607, 7
      %v609 = vsub.s32 4, %v608
      %v610 = vrot.slane %v448, %v609
      %v611 = vlaneseq
      %v612 = vshrl.u32 %v611, 7
      %v613 = vsub.s32 4, %v612
      %v614 = vrot.slane %v449, %v613
      %v615 = vlaneseq
      %v616 = vshrl.u32 %v615, 7
      %v617 = vsub.s32 4, %v616
      %v618 = vrot.slane %v450, %v617
      %v619 = vmul.f32 %v610, %v442
      %v620 = vmul.f32 %v614, %v443
      %v621 = vmul.f32 %v618, %v444
      %v622 = vmul.f32 %v610, %v445
      %v623 = vmul.f32 %v614, %v446
      %v624 = vmul.f32 %v618, %v447
      %625 = vrot.lane.b32.xlu0 %v442, 127
      %v626 = vpop.permute.xlu0 %625
      %627 = vrot.lane.b32.xlu0 %v445, 127
      %v628 = vpop.permute.xlu0 %627
      %629 = vrot.lane.b32.xlu0 %v443, 127
      %v630 = vpop.permute.xlu0 %629
      %631 = vrot.lane.b32.xlu0 %v446, 127
      %v632 = vpop.permute.xlu0 %631
      %633 = vrot.lane.b32.xlu0 %v444, 127
      %v634 = vpop.permute.xlu0 %633
      %635 = vrot.lane.b32.xlu0 %v447, 127
      %v636 = vpop.permute.xlu0 %635
      %vm637 = vcmp.lt.s32.totalorder %v470, 127
      %v638 = vsel %vm637, %v630, %v634
      %v639 = vsel %vm637, %v632, %v636
      %v640 = vsel %vm637, %v626, %v630
      %v641 = vsel %vm637, %v628, %v632
      %v642 = vsel %vm637, %v634, %v626
      %v643 = vsel %vm637, %v636, %v628
      %v644 = vlaneseq
      %v645 = vshrl.u32 %v644, 7
      %v646 = vsub.s32 5, %v645
      %v647 = vrot.slane %v448, %v646
      %v648 = vlaneseq
      %v649 = vshrl.u32 %v648, 7
      %v650 = vsub.s32 5, %v649
      %v651 = vrot.slane %v449, %v650
      %v652 = vlaneseq
      %v653 = vshrl.u32 %v652, 7
      %v654 = vsub.s32 5, %v653
      %v655 = vrot.slane %v450, %v654
      %v656 = vmul.f32 %v647, %v640
      %v657 = vmul.f32 %v651, %v638
      %v658 = vmul.f32 %v655, %v642
      %v659 = vmul.f32 %v647, %v641
      %v660 = vmul.f32 %v651, %v639
      %v661 = vmul.f32 %v655, %v643
      %662 = vrot.lane.b32.xlu0 %v442, 111
      %v663 = vpop.permute.xlu0 %662
      %664 = vrot.lane.b32.xlu0 %v445, 111
      %v665 = vpop.permute.xlu0 %664
      %666 = vrot.lane.b32.xlu0 %v443, 111
      %v667 = vpop.permute.xlu0 %666
      %668 = vrot.lane.b32.xlu0 %v446, 111
      %v669 = vpop.permute.xlu0 %668
      %670 = vrot.lane.b32.xlu0 %v444, 111
      %v671 = vpop.permute.xlu0 %670
      %672 = vrot.lane.b32.xlu0 %v447, 111
      %v673 = vpop.permute.xlu0 %672
      %vm674 = vcmp.lt.s32.totalorder %v470, 111
      %v675 = vsel %vm674, %v667, %v671
      %v676 = vsel %vm674, %v669, %v673
      %v677 = vsel %vm674, %v663, %v667
      %v678 = vsel %vm674, %v665, %v669
      %v679 = vsel %vm674, %v671, %v663
      %v680 = vsel %vm674, %v673, %v665
      %v681 = vlaneseq
      %v682 = vshrl.u32 %v681, 7
      %v683 = vsub.s32 6, %v682
      %v684 = vrot.slane %v448, %v683
      %v685 = vlaneseq
      %v686 = vshrl.u32 %v685, 7
      %v687 = vsub.s32 6, %v686
      %v688 = vrot.slane %v449, %v687
      %v689 = vlaneseq
      %v690 = vshrl.u32 %v689, 7
      %v691 = vsub.s32 6, %v690
      %v692 = vrot.slane %v450, %v691
      %v693 = vmul.f32 %v684, %v677
      %v694 = vmul.f32 %v688, %v675
      %v695 = vmul.f32 %v692, %v679
      %v696 = vmul.f32 %v684, %v678
      %v697 = vmul.f32 %v688, %v676
      %v698 = vmul.f32 %v692, %v680
      %699 = vrot.lane.b32.xlu0 %v442, 110
      %v700 = vpop.permute.xlu0 %699
      %701 = vrot.lane.b32.xlu0 %v445, 110
      %v702 = vpop.permute.xlu0 %701
      %703 = vrot.lane.b32.xlu0 %v443, 110
      %v704 = vpop.permute.xlu0 %703
      %705 = vrot.lane.b32.xlu0 %v446, 110
      %v706 = vpop.permute.xlu0 %705
      %707 = vrot.lane.b32.xlu0 %v444, 110
      %v708 = vpop.permute.xlu0 %707
      %709 = vrot.lane.b32.xlu0 %v447, 110
      %v710 = vpop.permute.xlu0 %709
      %vm711 = vcmp.lt.s32.totalorder %v470, 110
      %v712 = vsel %vm711, %v704, %v708
      %v713 = vsel %vm711, %v706, %v710
      %v714 = vsel %vm711, %v700, %v704
      %v715 = vsel %vm711, %v702, %v706
      %v716 = vsel %vm711, %v708, %v700
      %v717 = vsel %vm711, %v710, %v702
      %v718 = vlaneseq
      %v719 = vshrl.u32 %v718, 7
      %v720 = vsub.s32 7, %v719
      %v721 = vrot.slane %v448, %v720
      %v722 = vlaneseq
      %v723 = vshrl.u32 %v722, 7
      %v724 = vsub.s32 7, %v723
      %v725 = vrot.slane %v449, %v724
      %v726 = vlaneseq
      %v727 = vshrl.u32 %v726, 7
      %v728 = vsub.s32 7, %v727
      %v729 = vrot.slane %v450, %v728
      %v730 = vmul.f32 %v721, %v714
      %v731 = vmul.f32 %v725, %v712
      %v732 = vmul.f32 %v729, %v716
      %v733 = vmul.f32 %v721, %v715
      %v734 = vmul.f32 %v725, %v713
      %v735 = vmul.f32 %v729, %v717
      %736 = vrot.lane.b32.xlu0 %v442, 109
      %v737 = vpop.permute.xlu0 %736
      %738 = vrot.lane.b32.xlu0 %v445, 109
      %v739 = vpop.permute.xlu0 %738
      %740 = vrot.lane.b32.xlu0 %v443, 109
      %v741 = vpop.permute.xlu0 %740
      %742 = vrot.lane.b32.xlu0 %v446, 109
      %v743 = vpop.permute.xlu0 %742
      %744 = vrot.lane.b32.xlu0 %v444, 109
      %v745 = vpop.permute.xlu0 %744
      %746 = vrot.lane.b32.xlu0 %v447, 109
      %v747 = vpop.permute.xlu0 %746
      %vm748 = vcmp.lt.s32.totalorder %v470, 109
      %v749 = vsel %vm748, %v741, %v745
      %v750 = vsel %vm748, %v743, %v747
      %v751 = vsel %vm748, %v737, %v741
      %v752 = vsel %vm748, %v739, %v743
      %v753 = vsel %vm748, %v745, %v737
      %v754 = vsel %vm748, %v747, %v739
      %v755 = vlaneseq
      %v756 = vshrl.u32 %v755, 7
      %v757 = vsub.s32 0, %v756
      %v758 = vrot.slane %v451, %v757
      %v759 = vlaneseq
      %v760 = vshrl.u32 %v759, 7
      %v761 = vsub.s32 0, %v760
      %v762 = vrot.slane %v452, %v761
      %v763 = vlaneseq
      %v764 = vshrl.u32 %v763, 7
      %v765 = vsub.s32 0, %v764
      %v766 = vrot.slane %v453, %v765
      %v767 = vmul.f32 %v758, %v751
      %v768 = vmul.f32 %v762, %v749
      %v769 = vmul.f32 %v766, %v753
      %v770 = vmul.f32 %v758, %v752
      %v771 = vmul.f32 %v762, %v750
      %v772 = vmul.f32 %v766, %v754
      %v773 = vpack.c.bf16 %v493, %v490
      %v774 = vpack.c.bf16 %v494, %v491
      %v775 = vpack.c.bf16 %v495, %v492
      %v776 = vpack.c.bf16 %v530, %v527
      %v777 = vpack.c.bf16 %v531, %v528
      %v778 = vpack.c.bf16 %v532, %v529
      %v779 = vpack.c.bf16 %v567, %v564
      %v780 = vpack.c.bf16 %v568, %v565
      %v781 = vpack.c.bf16 %v569, %v566
      %v782 = vpack.c.bf16 %v604, %v601
      %v783 = vpack.c.bf16 %v605, %v602
      %v784 = vpack.c.bf16 %v606, %v603
      %v785 = vpack.c.bf16 %v622, %v619
      %v786 = vpack.c.bf16 %v623, %v620
      %v787 = vpack.c.bf16 %v624, %v621
      %v788 = vpack.c.bf16 %v659, %v656
      %v789 = vpack.c.bf16 %v660, %v657
      %v790 = vpack.c.bf16 %v661, %v658
      %v791 = vpack.c.bf16 %v696, %v693
      %v792 = vpack.c.bf16 %v697, %v694
      %v793 = vpack.c.bf16 %v698, %v695
      %v794 = vpack.c.bf16 %v733, %v730
      %v795 = vpack.c.bf16 %v734, %v731
      %v796 = vpack.c.bf16 %v735, %v732
      %v797 = vpack.c.bf16 %v770, %v767
      %v798 = vpack.c.bf16 %v771, %v768
      %v799 = vpack.c.bf16 %v772, %v769
      %v802 = vunpack.c.l.b16 %v455
      %v803 = vunpack.c.h.b16 %v455
      %v804 = vunpack.c.l.b16 %v456
      %v805 = vunpack.c.h.b16 %v456
      %v806 = vpack.c.b16 %v804, %v802
      %v807 = vpack.c.b16 %v805, %v803
      %vm809 = vcmask 130048
      %v811 = vsel %vm809, %v807, 0
      %813 = vmatprep.subr.bf16.mxu0 %v795
      %814 = vmatpush1.bf16.msra.mxu0 %v794
      %815 = vmatprep.subr.bf16.mxu0 %v792
      %816 = vmatpush1.bf16.msra.mxu0 %v791
      %817 = vmatprep.subr.bf16.mxu0 %v789
      %818 = vmatpush1.bf16.msra.mxu0 %v788
      %819 = vmatprep.subr.bf16.mxu0 %v786
      %820 = vmatpush1.bf16.msra.mxu0 %v785
      %821 = vmatprep.subr.bf16.mxu0 %v783
      %822 = vmatpush1.bf16.msra.mxu0 %v782
      %823 = vmatprep.subr.bf16.mxu0 %v780
      %824 = vmatpush1.bf16.msra.mxu0 %v779
      %825 = vmatprep.subr.bf16.mxu0 %v777
      %826 = vmatpush1.bf16.msra.mxu0 %v776
      %827 = vmatprep.subr.bf16.mxu0 %v774
      %828 = vmatpush1.bf16.msra.mxu0 %v773
      %829 = vmatprep.subr.bf16.mxu0 0
      %830 = vmatpush2.bf16.msra.mxu0 0
      %831 = vmatprep.subr.bf16.mxu0 0
      %832 = vmatpush2.bf16.msra.mxu0 0
      %833 = vmatprep.subr.bf16.mxu0 0
      %834 = vmatpush2.bf16.msra.mxu0 0
      %835 = vmatprep.subr.bf16.mxu0 0
      %836 = vmatpush2.bf16.msra.mxu0 0
      %837 = vmatprep.subr.bf16.mxu0 0
      %838 = vmatpush2.bf16.msra.mxu0 0
      %839 = vmatprep.subr.bf16.mxu0 0
      %840 = vmatpush2.bf16.msra.mxu0 0
      %841 = vmatprep.subr.bf16.mxu0 0
      %842 = vmatpush2.bf16.msra.mxu0 0
      %843 = vmatprep.subr.bf16.mxu0 %v798
      %844 = vmatpush2.bf16.msra.mxu0 %v797
      %845 = vmatprep.mubr.bf16.mxu0 %v811
      %846 = vmatmul.mubr.bf16.gmra.mxu0 %v806
      %v847 = vpop.f32.mrf.mxu0
      %v848 = vadd.f32 0.0, %v847
      %v849 = vpop.f32.mrf.mxu0
      %v850 = vadd.f32 0.0, %v849
      %v851 = vpop.f32.mrf.mxu0
      %v852 = vadd.f32 0.0, %v851
      %v853 = vpop.f32.mrf.mxu0
      %v854 = vadd.f32 0.0, %v853
      %855 = vdwg.mxu0
      %856 = vmatprep.subr.bf16.mxu0 0
      %857 = vmatpush1.bf16.msra.mxu0 %v796
      %858 = vmatprep.subr.bf16.mxu0 0
      %859 = vmatpush1.bf16.msra.mxu0 %v793
      %860 = vmatprep.subr.bf16.mxu0 0
      %861 = vmatpush1.bf16.msra.mxu0 %v790
      %862 = vmatprep.subr.bf16.mxu0 0
      %863 = vmatpush1.bf16.msra.mxu0 %v787
      %864 = vmatprep.subr.bf16.mxu0 0
      %865 = vmatpush1.bf16.msra.mxu0 %v784
      %866 = vmatprep.subr.bf16.mxu0 0
      %867 = vmatpush1.bf16.msra.mxu0 %v781
      %868 = vmatprep.subr.bf16.mxu0 0
      %869 = vmatpush1.bf16.msra.mxu0 %v778
      %870 = vmatprep.subr.bf16.mxu0 0
      %871 = vmatpush1.bf16.msra.mxu0 %v775
      %872 = vmatprep.subr.bf16.mxu0 0
      %873 = vmatpush2.bf16.msra.mxu0 0
      %874 = vmatprep.subr.bf16.mxu0 0
      %875 = vmatpush2.bf16.msra.mxu0 0
      %876 = vmatprep.subr.bf16.mxu0 0
      %877 = vmatpush2.bf16.msra.mxu0 0
      %878 = vmatprep.subr.bf16.mxu0 0
      %879 = vmatpush2.bf16.msra.mxu0 0
      %880 = vmatprep.subr.bf16.mxu0 0
      %881 = vmatpush2.bf16.msra.mxu0 0
      %882 = vmatprep.subr.bf16.mxu0 0
      %883 = vmatpush2.bf16.msra.mxu0 0
      %884 = vmatprep.subr.bf16.mxu0 0
      %885 = vmatpush2.bf16.msra.mxu0 0
      %886 = vmatprep.subr.bf16.mxu0 0
      %887 = vmatpush2.bf16.msra.mxu0 %v799
      %888 = vmatprep.mubr.bf16.mxu0 %v811
      %889 = vmatmul.mubr.bf16.gmra.mxu0 %v806
      %v890 = vpop.f32.mrf.mxu0
      %v891 = vadd.f32 0.0, %v890
      %v892 = vpop.f32.mrf.mxu0
      %v893 = vpop.f32.mrf.mxu0
      %v894 = vadd.f32 0.0, %v893
      %v895 = vpop.f32.mrf.mxu0
      %896 = vdwg.mxu0
      %v897 = vld [vmem:[%s2] sm:$0xff]
      %v898 = vld [vmem:[%s2 + $0x8] sm:$0xff]
      %900 = vset.pattern.permute.xlu0 0
      %901 = vperm.xlu0 %900, %v897
      %v902 = vpop.permute.xlu0 %901
      %905 = vset.pattern.permute.xlu0 0
      %906 = vperm.xlu0 %905, %v898
      %v907 = vpop.permute.xlu0 %906
      %v909 = vmul.f32 %v848, %v902
      %v910 = vmul.f32 %v850, %v902
      %v911 = vmul.f32 %v891, %v902
      %v912 = vmul.f32 %v852, %v907
      %v913 = vmul.f32 %v854, %v907
      %v914 = vmul.f32 %v894, %v907
      %v915 = vld [vmem:[%s3] sm:$0xff]
      %v916 = vld [vmem:[%s3 + $0x8] sm:$0xff]
      %918 = vset.pattern.permute.xlu0 0
      %919 = vperm.xlu0 %918, %v915
      %v920 = vpop.permute.xlu0 %919
      %923 = vset.pattern.permute.xlu0 0
      %924 = vperm.xlu0 %923, %v916
      %v925 = vpop.permute.xlu0 %924
      %v927 = vadd.f32 %v909, %v920
      %v928 = vadd.f32 %v910, %v920
      %v929 = vadd.f32 %v911, %v920
      %v930 = vadd.f32 %v912, %v925
      %v931 = vadd.f32 %v913, %v925
      %v932 = vadd.f32 %v914, %v925
      %v933 = vmax.f32 %v927, 0.0
      %v934 = vmax.f32 %v928, 0.0
      %v935 = vmax.f32 %v929, 0.0
      %v936 = vmax.f32 %v930, 0.0
      %v937 = vmax.f32 %v931, 0.0
      %v938 = vmax.f32 %v932, 0.0
      %v939 = vld [vmem:[%s4] sm:$0xff]
      %v940 = vld [vmem:[%s4 + $0x8] sm:$0xff]
      %941 = vrot.lane.b32.xlu0 %v933, 19
      %v942 = vpop.permute.xlu0 %941
      %943 = vrot.lane.b32.xlu0 %v936, 19
      %v944 = vpop.permute.xlu0 %943
      %945 = vrot.lane.b32.xlu0 %v934, 19
      %v946 = vpop.permute.xlu0 %945
      %947 = vrot.lane.b32.xlu0 %v937, 19
      %v948 = vpop.permute.xlu0 %947
      %949 = vrot.lane.b32.xlu0 %v935, 19
      %v950 = vpop.permute.xlu0 %949
      %951 = vrot.lane.b32.xlu0 %v938, 19
      %v952 = vpop.permute.xlu0 %951
      %v953 = vsel %vm471, %v946, %v950
      %v954 = vsel %vm471, %v948, %v952
      %v955 = vsel %vm471, %v942, %v946
      %v956 = vsel %vm471, %v944, %v948
      %v957 = vsel %vm471, %v950, %v942
      %v958 = vsel %vm471, %v952, %v944
      %v959 = vmul.f32 %v481, %v957
      %v960 = vmul.f32 %v485, %v955
      %v961 = vmul.f32 %v489, %v953
      %v962 = vmul.f32 %v481, %v958
      %v963 = vmul.f32 %v485, %v956
      %v964 = vmul.f32 %v489, %v954
      %965 = vrot.lane.b32.xlu0 %v933, 18
      %v966 = vpop.permute.xlu0 %965
      %967 = vrot.lane.b32.xlu0 %v936, 18
      %v968 = vpop.permute.xlu0 %967
      %969 = vrot.lane.b32.xlu0 %v934, 18
      %v970 = vpop.permute.xlu0 %969
      %971 = vrot.lane.b32.xlu0 %v937, 18
      %v972 = vpop.permute.xlu0 %971
      %973 = vrot.lane.b32.xlu0 %v935, 18
      %v974 = vpop.permute.xlu0 %973
      %975 = vrot.lane.b32.xlu0 %v938, 18
      %v976 = vpop.permute.xlu0 %975
      %v977 = vsel %vm508, %v970, %v974
      %v978 = vsel %vm508, %v972, %v976
      %v979 = vsel %vm508, %v966, %v970
      %v980 = vsel %vm508, %v968, %v972
      %v981 = vsel %vm508, %v974, %v966
      %v982 = vsel %vm508, %v976, %v968
      %v983 = vmul.f32 %v518, %v981
      %v984 = vmul.f32 %v522, %v979
      %v985 = vmul.f32 %v526, %v977
      %v986 = vmul.f32 %v518, %v982
      %v987 = vmul.f32 %v522, %v980
      %v988 = vmul.f32 %v526, %v978
      %989 = vrot.lane.b32.xlu0 %v933, 17
      %v990 = vpop.permute.xlu0 %989
      %991 = vrot.lane.b32.xlu0 %v936, 17
      %v992 = vpop.permute.xlu0 %991
      %993 = vrot.lane.b32.xlu0 %v934, 17
      %v994 = vpop.permute.xlu0 %993
      %995 = vrot.lane.b32.xlu0 %v937, 17
      %v996 = vpop.permute.xlu0 %995
      %997 = vrot.lane.b32.xlu0 %v935, 17
      %v998 = vpop.permute.xlu0 %997
      %999 = vrot.lane.b32.xlu0 %v938, 17
      %v1000 = vpop.permute.xlu0 %999
      %v1001 = vsel %vm545, %v994, %v998
      %v1002 = vsel %vm545, %v996, %v1000
      %v1003 = vsel %vm545, %v990, %v994
      %v1004 = vsel %vm545, %v992, %v996
      %v1005 = vsel %vm545, %v998, %v990
      %v1006 = vsel %vm545, %v1000, %v992
      %v1007 = vmul.f32 %v555, %v1005
      %v1008 = vmul.f32 %v559, %v1003
      %v1009 = vmul.f32 %v563, %v1001
      %v1010 = vmul.f32 %v555, %v1006
      %v1011 = vmul.f32 %v559, %v1004
      %v1012 = vmul.f32 %v563, %v1002
      %1013 = vrot.lane.b32.xlu0 %v933, 1
      %v1014 = vpop.permute.xlu0 %1013
      %1015 = vrot.lane.b32.xlu0 %v936, 1
      %v1016 = vpop.permute.xlu0 %1015
      %1017 = vrot.lane.b32.xlu0 %v934, 1
      %v1018 = vpop.permute.xlu0 %1017
      %1019 = vrot.lane.b32.xlu0 %v937, 1
      %v1020 = vpop.permute.xlu0 %1019
      %1021 = vrot.lane.b32.xlu0 %v935, 1
      %v1022 = vpop.permute.xlu0 %1021
      %1023 = vrot.lane.b32.xlu0 %v938, 1
      %v1024 = vpop.permute.xlu0 %1023
      %v1025 = vsel %vm582, %v1018, %v1022
      %v1026 = vsel %vm582, %v1020, %v1024
      %v1027 = vsel %vm582, %v1014, %v1018
      %v1028 = vsel %vm582, %v1016, %v1020
      %v1029 = vsel %vm582, %v1022, %v1014
      %v1030 = vsel %vm582, %v1024, %v1016
      %v1031 = vmul.f32 %v592, %v1029
      %v1032 = vmul.f32 %v596, %v1027
      %v1033 = vmul.f32 %v600, %v1025
      %v1034 = vmul.f32 %v592, %v1030
      %v1035 = vmul.f32 %v596, %v1028
      %v1036 = vmul.f32 %v600, %v1026
      %v1037 = vmul.f32 %v610, %v933
      %v1038 = vmul.f32 %v614, %v934
      %v1039 = vmul.f32 %v618, %v935
      %v1040 = vmul.f32 %v610, %v936
      %v1041 = vmul.f32 %v614, %v937
      %v1042 = vmul.f32 %v618, %v938
      %1043 = vrot.lane.b32.xlu0 %v933, 127
      %v1044 = vpop.permute.xlu0 %1043
      %1045 = vrot.lane.b32.xlu0 %v936, 127
      %v1046 = vpop.permute.xlu0 %1045
      %1047 = vrot.lane.b32.xlu0 %v934, 127
      %v1048 = vpop.permute.xlu0 %1047
      %1049 = vrot.lane.b32.xlu0 %v937, 127
      %v1050 = vpop.permute.xlu0 %1049
      %1051 = vrot.lane.b32.xlu0 %v935, 127
      %v1052 = vpop.permute.xlu0 %1051
      %1053 = vrot.lane.b32.xlu0 %v938, 127
      %v1054 = vpop.permute.xlu0 %1053
      %v1055 = vsel %vm637, %v1048, %v1052
      %v1056 = vsel %vm637, %v1050, %v1054
      %v1057 = vsel %vm637, %v1044, %v1048
      %v1058 = vsel %vm637, %v1046, %v1050
      %v1059 = vsel %vm637, %v1052, %v1044
      %v1060 = vsel %vm637, %v1054, %v1046
      %v1061 = vmul.f32 %v647, %v1057
      %v1062 = vmul.f32 %v651, %v1055
      %v1063 = vmul.f32 %v655, %v1059
      %v1064 = vmul.f32 %v647, %v1058
      %v1065 = vmul.f32 %v651, %v1056
      %v1066 = vmul.f32 %v655, %v1060
      %1067 = vrot.lane.b32.xlu0 %v933, 111
      %v1068 = vpop.permute.xlu0 %1067
      %1069 = vrot.lane.b32.xlu0 %v936, 111
      %v1070 = vpop.permute.xlu0 %1069
      %1071 = vrot.lane.b32.xlu0 %v934, 111
      %v1072 = vpop.permute.xlu0 %1071
      %1073 = vrot.lane.b32.xlu0 %v937, 111
      %v1074 = vpop.permute.xlu0 %1073
      %1075 = vrot.lane.b32.xlu0 %v935, 111
      %v1076 = vpop.permute.xlu0 %1075
      %1077 = vrot.lane.b32.xlu0 %v938, 111
      %v1078 = vpop.permute.xlu0 %1077
      %v1079 = vsel %vm674, %v1072, %v1076
      %v1080 = vsel %vm674, %v1074, %v1078
      %v1081 = vsel %vm674, %v1068, %v1072
      %v1082 = vsel %vm674, %v1070, %v1074
      %v1083 = vsel %vm674, %v1076, %v1068
      %v1084 = vsel %vm674, %v1078, %v1070
      %v1085 = vmul.f32 %v684, %v1081
      %v1086 = vmul.f32 %v688, %v1079
      %v1087 = vmul.f32 %v692, %v1083
      %v1088 = vmul.f32 %v684, %v1082
      %v1089 = vmul.f32 %v688, %v1080
      %v1090 = vmul.f32 %v692, %v1084
      %1091 = vrot.lane.b32.xlu0 %v933, 110
      %v1092 = vpop.permute.xlu0 %1091
      %1093 = vrot.lane.b32.xlu0 %v936, 110
      %v1094 = vpop.permute.xlu0 %1093
      %1095 = vrot.lane.b32.xlu0 %v934, 110
      %v1096 = vpop.permute.xlu0 %1095
      %1097 = vrot.lane.b32.xlu0 %v937, 110
      %v1098 = vpop.permute.xlu0 %1097
      %1099 = vrot.lane.b32.xlu0 %v935, 110
      %v1100 = vpop.permute.xlu0 %1099
      %1101 = vrot.lane.b32.xlu0 %v938, 110
      %v1102 = vpop.permute.xlu0 %1101
      %v1103 = vsel %vm711, %v1096, %v1100
      %v1104 = vsel %vm711, %v1098, %v1102
      %v1105 = vsel %vm711, %v1092, %v1096
      %v1106 = vsel %vm711, %v1094, %v1098
      %v1107 = vsel %vm711, %v1100, %v1092
      %v1108 = vsel %vm711, %v1102, %v1094
      %v1109 = vmul.f32 %v721, %v1105
      %v1110 = vmul.f32 %v725, %v1103
      %v1111 = vmul.f32 %v729, %v1107
      %v1112 = vmul.f32 %v721, %v1106
      %v1113 = vmul.f32 %v725, %v1104
      %v1114 = vmul.f32 %v729, %v1108
      %1115 = vrot.lane.b32.xlu0 %v933, 109
      %v1116 = vpop.permute.xlu0 %1115
      %1117 = vrot.lane.b32.xlu0 %v936, 109
      %v1118 = vpop.permute.xlu0 %1117
      %1119 = vrot.lane.b32.xlu0 %v934, 109
      %v1120 = vpop.permute.xlu0 %1119
      %1121 = vrot.lane.b32.xlu0 %v937, 109
      %v1122 = vpop.permute.xlu0 %1121
      %1123 = vrot.lane.b32.xlu0 %v935, 109
      %v1124 = vpop.permute.xlu0 %1123
      %1125 = vrot.lane.b32.xlu0 %v938, 109
      %v1126 = vpop.permute.xlu0 %1125
      %v1127 = vsel %vm748, %v1120, %v1124
      %v1128 = vsel %vm748, %v1122, %v1126
      %v1129 = vsel %vm748, %v1116, %v1120
      %v1130 = vsel %vm748, %v1118, %v1122
      %v1131 = vsel %vm748, %v1124, %v1116
      %v1132 = vsel %vm748, %v1126, %v1118
      %v1133 = vmul.f32 %v758, %v1129
      %v1134 = vmul.f32 %v762, %v1127
      %v1135 = vmul.f32 %v766, %v1131
      %v1136 = vmul.f32 %v758, %v1130
      %v1137 = vmul.f32 %v762, %v1128
      %v1138 = vmul.f32 %v766, %v1132
      %v1139 = vpack.c.bf16 %v962, %v959
      %v1140 = vpack.c.bf16 %v963, %v960
      %v1141 = vpack.c.bf16 %v964, %v961
      %v1142 = vpack.c.bf16 %v986, %v983
      %v1143 = vpack.c.bf16 %v987, %v984
      %v1144 = vpack.c.bf16 %v988, %v985
      %v1145 = vpack.c.bf16 %v1010, %v1007
      %v1146 = vpack.c.bf16 %v1011, %v1008
      %v1147 = vpack.c.bf16 %v1012, %v1009
      %v1148 = vpack.c.bf16 %v1034, %v1031
      %v1149 = vpack.c.bf16 %v1035, %v1032
      %v1150 = vpack.c.bf16 %v1036, %v1033
      %v1151 = vpack.c.bf16 %v1040, %v1037
      %v1152 = vpack.c.bf16 %v1041, %v1038
      %v1153 = vpack.c.bf16 %v1042, %v1039
      %v1154 = vpack.c.bf16 %v1064, %v1061
      %v1155 = vpack.c.bf16 %v1065, %v1062
      %v1156 = vpack.c.bf16 %v1066, %v1063
      %v1157 = vpack.c.bf16 %v1088, %v1085
      %v1158 = vpack.c.bf16 %v1089, %v1086
      %v1159 = vpack.c.bf16 %v1090, %v1087
      %v1160 = vpack.c.bf16 %v1112, %v1109
      %v1161 = vpack.c.bf16 %v1113, %v1110
      %v1162 = vpack.c.bf16 %v1114, %v1111
      %v1163 = vpack.c.bf16 %v1136, %v1133
      %v1164 = vpack.c.bf16 %v1137, %v1134
      %v1165 = vpack.c.bf16 %v1138, %v1135
      %v1168 = vunpack.c.l.b16 %v939
      %v1169 = vunpack.c.h.b16 %v939
      %v1170 = vunpack.c.l.b16 %v940
      %v1171 = vunpack.c.h.b16 %v940
      %v1172 = vpack.c.b16 %v1170, %v1168
      %v1173 = vpack.c.b16 %v1171, %v1169
      %v1176 = vsel %vm809, %v1173, 0
      %1178 = vmatprep.subr.bf16.mxu0 %v1161
      %1179 = vmatpush1.bf16.msra.mxu0 %v1160
      %1180 = vmatprep.subr.bf16.mxu0 %v1158
      %1181 = vmatpush1.bf16.msra.mxu0 %v1157
      %1182 = vmatprep.subr.bf16.mxu0 %v1155
      %1183 = vmatpush1.bf16.msra.mxu0 %v1154
      %1184 = vmatprep.subr.bf16.mxu0 %v1152
      %1185 = vmatpush1.bf16.msra.mxu0 %v1151
      %1186 = vmatprep.subr.bf16.mxu0 %v1149
      %1187 = vmatpush1.bf16.msra.mxu0 %v1148
      %1188 = vmatprep.subr.bf16.mxu0 %v1146
      %1189 = vmatpush1.bf16.msra.mxu0 %v1145
      %1190 = vmatprep.subr.bf16.mxu0 %v1143
      %1191 = vmatpush1.bf16.msra.mxu0 %v1142
      %1192 = vmatprep.subr.bf16.mxu0 %v1140
      %1193 = vmatpush1.bf16.msra.mxu0 %v1139
      %1194 = vmatprep.subr.bf16.mxu0 0
      %1195 = vmatpush2.bf16.msra.mxu0 0
      %1196 = vmatprep.subr.bf16.mxu0 0
      %1197 = vmatpush2.bf16.msra.mxu0 0
      %1198 = vmatprep.subr.bf16.mxu0 0
      %1199 = vmatpush2.bf16.msra.mxu0 0
      %1200 = vmatprep.subr.bf16.mxu0 0
      %1201 = vmatpush2.bf16.msra.mxu0 0
      %1202 = vmatprep.subr.bf16.mxu0 0
      %1203 = vmatpush2.bf16.msra.mxu0 0
      %1204 = vmatprep.subr.bf16.mxu0 0
      %1205 = vmatpush2.bf16.msra.mxu0 0
      %1206 = vmatprep.subr.bf16.mxu0 0
      %1207 = vmatpush2.bf16.msra.mxu0 0
      %1208 = vmatprep.subr.bf16.mxu0 %v1164
      %1209 = vmatpush2.bf16.msra.mxu0 %v1163
      %1210 = vmatprep.mubr.bf16.mxu0 %v1176
      %1211 = vmatmul.mubr.bf16.gmra.mxu0 %v1172
      %v1212 = vpop.f32.mrf.mxu0
      %v1213 = vadd.f32 0.0, %v1212
      %v1214 = vpop.f32.mrf.mxu0
      %v1215 = vadd.f32 0.0, %v1214
      %v1216 = vpop.f32.mrf.mxu0
      %v1217 = vadd.f32 0.0, %v1216
      %v1218 = vpop.f32.mrf.mxu0
      %v1219 = vadd.f32 0.0, %v1218
      %1220 = vdwg.mxu0
      %1221 = vmatprep.subr.bf16.mxu0 0
      %1222 = vmatpush1.bf16.msra.mxu0 %v1162
      %1223 = vmatprep.subr.bf16.mxu0 0
      %1224 = vmatpush1.bf16.msra.mxu0 %v1159
      %1225 = vmatprep.subr.bf16.mxu0 0
      %1226 = vmatpush1.bf16.msra.mxu0 %v1156
      %1227 = vmatprep.subr.bf16.mxu0 0
      %1228 = vmatpush1.bf16.msra.mxu0 %v1153
      %1229 = vmatprep.subr.bf16.mxu0 0
      %1230 = vmatpush1.bf16.msra.mxu0 %v1150
      %1231 = vmatprep.subr.bf16.mxu0 0
      %1232 = vmatpush1.bf16.msra.mxu0 %v1147
      %1233 = vmatprep.subr.bf16.mxu0 0
      %1234 = vmatpush1.bf16.msra.mxu0 %v1144
      %1235 = vmatprep.subr.bf16.mxu0 0
      %1236 = vmatpush1.bf16.msra.mxu0 %v1141
      %1237 = vmatprep.subr.bf16.mxu0 0
      %1238 = vmatpush2.bf16.msra.mxu0 0
      %1239 = vmatprep.subr.bf16.mxu0 0
      %1240 = vmatpush2.bf16.msra.mxu0 0
      %1241 = vmatprep.subr.bf16.mxu0 0
      %1242 = vmatpush2.bf16.msra.mxu0 0
      %1243 = vmatprep.subr.bf16.mxu0 0
      %1244 = vmatpush2.bf16.msra.mxu0 0
      %1245 = vmatprep.subr.bf16.mxu0 0
      %1246 = vmatpush2.bf16.msra.mxu0 0
      %1247 = vmatprep.subr.bf16.mxu0 0
      %1248 = vmatpush2.bf16.msra.mxu0 0
      %1249 = vmatprep.subr.bf16.mxu0 0
      %1250 = vmatpush2.bf16.msra.mxu0 0
      %1251 = vmatprep.subr.bf16.mxu0 0
      %1252 = vmatpush2.bf16.msra.mxu0 %v1165
      %1253 = vmatprep.mubr.bf16.mxu0 %v1176
      %1254 = vmatmul.mubr.bf16.gmra.mxu0 %v1172
      %v1255 = vpop.f32.mrf.mxu0
      %v1256 = vadd.f32 0.0, %v1255
      %v1257 = vpop.f32.mrf.mxu0
      %v1258 = vpop.f32.mrf.mxu0
      %v1259 = vadd.f32 0.0, %v1258
      %v1260 = vpop.f32.mrf.mxu0
      %1261 = vdwg.mxu0
      %v1262 = vld [vmem:[%s5] sm:$0xff]
      %v1263 = vld [vmem:[%s5 + $0x8] sm:$0xff]
      %1265 = vset.pattern.permute.xlu0 0
      %1266 = vperm.xlu0 %1265, %v1262
      %v1267 = vpop.permute.xlu0 %1266
      %1270 = vset.pattern.permute.xlu0 0
      %1271 = vperm.xlu0 %1270, %v1263
      %v1272 = vpop.permute.xlu0 %1271
      %v1274 = vmul.f32 %v1213, %v1267
      %v1275 = vmul.f32 %v1215, %v1267
      %v1276 = vmul.f32 %v1256, %v1267
      %v1277 = vmul.f32 %v1217, %v1272
      %v1278 = vmul.f32 %v1219, %v1272
      %v1279 = vmul.f32 %v1259, %v1272
      %v1280 = vld [vmem:[%s6] sm:$0xff]
      %v1281 = vld [vmem:[%s6 + $0x8] sm:$0xff]
      %1283 = vset.pattern.permute.xlu0 0
      %1284 = vperm.xlu0 %1283, %v1280
      %v1285 = vpop.permute.xlu0 %1284
      %1288 = vset.pattern.permute.xlu0 0
      %1289 = vperm.xlu0 %1288, %v1281
      %v1290 = vpop.permute.xlu0 %1289
      %v1292 = vadd.f32 %v1274, %v1285
      %v1293 = vadd.f32 %v1275, %v1285
      %v1294 = vadd.f32 %v1276, %v1285
      %v1295 = vadd.f32 %v1277, %v1290
      %v1296 = vadd.f32 %v1278, %v1290
      %v1297 = vadd.f32 %v1279, %v1290
      %v1299 = vlaneseq
      %v1300 = vshrl.u32 %v1299, 7
      %v1301 = vsub.s32 0, %v1300
      %v1302 = vrot.slane %v454, %v1301
      %v1303 = vlaneseq
      %v1304 = vshrl.u32 %v1303, 7
      %v1305 = vsub.s32 1, %v1304
      %v1306 = vrot.slane %v454, %v1305
      %v1307 = vlaneseq
      %v1308 = vshrl.u32 %v1307, 7
      %v1309 = vsub.s32 2, %v1308
      %v1310 = vrot.slane %v454, %v1309
      %v1314 = vmul.f32 %v1292, %v1302
      %v1315 = vmul.f32 %v1293, %v1306
      %v1316 = vmul.f32 %v1294, %v1310
      %v1317 = vmul.f32 %v1295, %v1302
      %v1318 = vmul.f32 %v1296, %v1306
      %v1319 = vmul.f32 %v1297, %v1310
      %v1320 = vadd.f32 %v1314, %v1315
      %v1321 = vadd.f32 %v1320, %v1316
      %1322 = vadd.xlane.f32.xlu0 %v1321
      %v1323 = vpop.xlane.xlu0 %1322
      %v1324 = vadd.f32 %v1317, %v1318
      %v1325 = vadd.f32 %v1324, %v1319
      %1326 = vadd.xlane.f32.xlu0 %v1325
      %v1327 = vpop.xlane.xlu0 %1326
      %v1328 = vmul.f32 %v1323, 0.00390625
      %v1329 = vmul.f32 %v1327, 0.00390625
      %vm1330 = vcmp.gt.f32.partialorder %v454, 0.0
      %v1331 = vsel %vm1330, 1, 0
      %v1332 = vlaneseq
      %v1333 = vshrl.u32 %v1332, 7
      %v1334 = vsub.s32 0, %v1333
      %v1335 = vrot.slane %v1331, %v1334
      %v1336 = vlaneseq
      %v1337 = vshrl.u32 %v1336, 7
      %v1338 = vsub.s32 1, %v1337
      %v1339 = vrot.slane %v1331, %v1338
      %v1340 = vlaneseq
      %v1341 = vshrl.u32 %v1340, 7
      %v1342 = vsub.s32 2, %v1341
      %v1343 = vrot.slane %v1331, %v1342
      %vm1344 = vcmp.eq.s32.totalorder %v1335, 1
      %vm1345 = vcmp.eq.s32.totalorder %v1339, 1
      %vm1346 = vcmp.eq.s32.totalorder %v1343, 1
      %v1347 = vsel %vm1344, %v1292, -inf
      %v1348 = vsel %vm1345, %v1293, -inf
      %v1349 = vsel %vm1346, %v1294, -inf
      %v1350 = vsel %vm1344, %v1295, -inf
      %v1351 = vsel %vm1345, %v1296, -inf
      %v1352 = vsel %vm1346, %v1297, -inf
      %v1353 = vmax.f32 %v1347, %v1349
      %v1354 = vmax.f32 %v1353, %v1348
      %1355 = vmax.xlane.f32.xlu0 %v1354
      %v1356 = vpop.xlane.xlu0 %1355
      %v1357 = vmax.f32 %v1350, %v1352
      %v1358 = vmax.f32 %v1357, %v1351
      %1359 = vmax.xlane.f32.xlu0 %v1358
      %v1360 = vpop.xlane.xlu0 %1359
      %v1361 = vld [vmem:[%s7] sm:$0xff]
      %v1362 = vld [vmem:[%s7 + $0x8] sm:$0xff]
      %v1363 = vmul.f32 %v1361, %v1328
      %v1364 = vmul.f32 %v1362, %v1329
      %vm1365 = vcmask 7168
      %v1366 = vsel %vm1365, %v1363, 0.0
      %v1367 = vsel %vm1365, %v1364, 0.0
      %v1368 = vadd.f32 %v1366, %v1367
      %v1369 = vrot.slane %v1368, 4
      %v1370 = vadd.f32 %v1368, %v1369
      %v1371 = vrot.slane %v1370, 2
      %v1372 = vadd.f32 %v1370, %v1371
      %v1373 = vrot.slane %v1372, 1
      %v1374 = vadd.f32 %v1372, %v1373
      %v1375 = vmax.f32 %v1374, 0.0
      %v1376 = vld [vmem:[%s8] sm:$0xff]
      %v1377 = vld [vmem:[%s8 + $0x8] sm:$0xff]
      %v1378 = vmul.f32 %v1376, %v1375
      %v1379 = vmul.f32 %v1377, %v1375
      %v1380 = vadd.f32 %v1378, 0.0
      %v1381 = vadd.f32 %v1379, 0.0
      %v1382 = vmul.f32 %v1361, %v1356
      %v1383 = vmul.f32 %v1362, %v1360
      %v1384 = vsel %vm1365, %v1382, 0.0
      %v1385 = vsel %vm1365, %v1383, 0.0
      %v1386 = vadd.f32 %v1384, %v1385
      %v1387 = vrot.slane %v1386, 4
      %v1388 = vadd.f32 %v1386, %v1387
      %v1389 = vrot.slane %v1388, 2
      %v1390 = vadd.f32 %v1388, %v1389
      %v1391 = vrot.slane %v1390, 1
      %v1392 = vadd.f32 %v1390, %v1391
      %v1393 = vmax.f32 %v1392, 0.0
      %v1394 = vmul.f32 %v1376, %v1393
      %v1395 = vmul.f32 %v1377, %v1393
      %v1396 = vadd.f32 %v1394, 0.0
      %v1397 = vadd.f32 %v1395, 0.0
      %v1398 = vadd.f32 %v1380, %v1396
      %v1399 = vadd.f32 %v1381, %v1397
      %v1400 = vxor.u32 %v1398, 2147483648
      %v1401 = vxor.u32 %v1399, 2147483648
      %v1402 = vmul.f32 %v1400, 1.442695
      %v1403 = vpow.pop %v1402
      %v1404 = vmul.f32 %v1401, 1.442695
      %v1405 = vpow.pop %v1404
      %v1406 = vadd.f32 %v1403, 1.0
      %v1407 = vadd.f32 %v1405, 1.0
      %v1408 = vrcp.pop %v1406
      %v1409 = vmul.f32 1.0, %v1408
      %v1410 = vrcp.pop %v1407
      %v1411 = vmul.f32 1.0, %v1410
      %1413 = vset.pattern.permute.xlu0 0
      %1414 = vperm.xlu0 %1413, %v1409
      %v1415 = vpop.permute.xlu0 %1414
      %1418 = vset.pattern.permute.xlu0 0
      %1419 = vperm.xlu0 %1418, %v1411
      %v1420 = vpop.permute.xlu0 %1419
      %v1422 = vmul.f32 %v1415, %v1314
      %v1423 = vmul.f32 %v1415, %v1315
      %v1424 = vmul.f32 %v1415, %v1316
      %v1425 = vmul.f32 %v1420, %v1317
      %v1426 = vmul.f32 %v1420, %v1318
      %v1427 = vmul.f32 %v1420, %v1319
      %v1428 = vadd.f32 %v1422, %v1425
      %v1429 = vrot.slane %v1428, 4
      %v1430 = vadd.f32 %v1428, %v1429
      %v1431 = vrot.slane %v1430, 2
      %v1432 = vadd.f32 %v1430, %v1431
      %v1433 = vrot.slane %v1432, 1
      %v1434 = vadd.f32 %v1432, %v1433
      %v1435 = vadd.f32 %v1423, %v1426
      %v1436 = vrot.slane %v1435, 4
      %v1437 = vadd.f32 %v1435, %v1436
      %v1438 = vrot.slane %v1437, 2
      %v1439 = vadd.f32 %v1437, %v1438
      %v1440 = vrot.slane %v1439, 1
      %v1441 = vadd.f32 %v1439, %v1440
      %v1442 = vadd.f32 %v1424, %v1427
      %v1443 = vrot.slane %v1442, 4
      %v1444 = vadd.f32 %v1442, %v1443
      %v1445 = vrot.slane %v1444, 2
      %v1446 = vadd.f32 %v1444, %v1445
      %v1447 = vrot.slane %v1446, 1
      %v1448 = vadd.f32 %v1446, %v1447
      %v1449 = vrcp.pop 16.0
      %v1450 = vmul.f32 %v1434, %v1449
      %v1451 = vmul.f32 %v1441, %v1449
      %v1452 = vmul.f32 %v1448, %v1449
      %v1453 = vmax.f32 %v1422, %v1425
      %v1454 = vrot.slane %v1453, 4
      %v1455 = vmax.f32 %v1453, %v1454
      %v1456 = vrot.slane %v1455, 2
      %v1457 = vmax.f32 %v1455, %v1456
      %v1458 = vrot.slane %v1457, 1
      %v1459 = vmax.f32 %v1457, %v1458
      %v1460 = vmax.f32 %v1423, %v1426
      %v1461 = vrot.slane %v1460, 4
      %v1462 = vmax.f32 %v1460, %v1461
      %v1463 = vrot.slane %v1462, 2
      %v1464 = vmax.f32 %v1462, %v1463
      %v1465 = vrot.slane %v1464, 1
      %v1466 = vmax.f32 %v1464, %v1465
      %v1467 = vmax.f32 %v1424, %v1427
      %v1468 = vrot.slane %v1467, 4
      %v1469 = vmax.f32 %v1467, %v1468
      %v1470 = vrot.slane %v1469, 2
      %v1471 = vmax.f32 %v1469, %v1470
      %v1472 = vrot.slane %v1471, 1
      %v1473 = vmax.f32 %v1471, %v1472
      %v1474 = vld [vmem:[%s11] sm:$0xff]
      %v1475 = vld [vmem:[%s11 + $0x8] sm:$0xff]
      %v1476 = vld [vmem:[%s11 + $0x10] sm:$0xff]
      %v1477 = vld [vmem:[%s11 + $0x18] sm:$0xff]
      %v1478 = vld [vmem:[%s11 + $0x20] sm:$0xff]
      %v1479 = vld [vmem:[%s11 + $0x28] sm:$0xff]
      %v1480 = vld [vmem:[%s11 + $0x30] sm:$0xff]
      %v1481 = vld [vmem:[%s11 + $0x38] sm:$0xff]
      %v1482 = vld [vmem:[%s11 + $0x40] sm:$0xff]
      %v1483 = vld [vmem:[%s11 + $0x48] sm:$0xff]
      %v1484 = vld [vmem:[%s11 + $0x50] sm:$0xff]
      %v1485 = vld [vmem:[%s11 + $0x58] sm:$0xff]
      %v1486 = vld [vmem:[%s11 + $0x60] sm:$0xff]
      %v1487 = vld [vmem:[%s11 + $0x68] sm:$0xff]
      %v1488 = vld [vmem:[%s11 + $0x70] sm:$0xff]
      %v1489 = vld [vmem:[%s11 + $0x78] sm:$0xff]
      %v1490 = vld [vmem:[%s11 + $0x80] sm:$0xff]
      %v1491 = vld [vmem:[%s11 + $0x88] sm:$0xff]
      %v1492 = vld [vmem:[%s11 + $0x90] sm:$0x1]
      %v1493 = vld [vmem:[%s11 + $0x98] sm:$0x1]
      %v1494 = vld [vmem:[%s11 + $0xa0] sm:$0x1]
      %v1495 = vld [vmem:[%s9] sm:$0x3]
      %1496 = vrot.lane.b32.xlu0 %v1450, 57
      %v1497 = vpop.permute.xlu0 %1496
      %1498 = vrot.lane.b32.xlu0 %v1451, 57
      %v1499 = vpop.permute.xlu0 %1498
      %1500 = vrot.lane.b32.xlu0 %v1452, 57
      %v1501 = vpop.permute.xlu0 %1500
      %vm1502 = vcmp.lt.s32.totalorder %v470, 57
      %v1503 = vsel %vm1502, %v1499, %v1501
      %v1504 = vsel %vm1502, %v1497, %v1499
      %v1505 = vsel %vm1502, %v1501, %v1497
      %1506 = vrot.lane.b32.xlu0 %v1459, 57
      %v1507 = vpop.permute.xlu0 %1506
      %1508 = vrot.lane.b32.xlu0 %v1466, 57
      %v1509 = vpop.permute.xlu0 %1508
      %1510 = vrot.lane.b32.xlu0 %v1473, 57
      %v1511 = vpop.permute.xlu0 %1510
      %v1512 = vsel %vm1502, %v1509, %v1511
      %v1513 = vsel %vm1502, %v1507, %v1509
      %v1514 = vsel %vm1502, %v1511, %v1507
      %1516 = vset.pattern.permute.xlu0 0
      %1517 = vperm.xlu0 %1516, %v1495
      %v1518 = vpop.permute.xlu0 %1517
      %v1520 = vmul.f32 %v1518, %v1505
      %v1521 = vmul.f32 %v1518, %v1504
      %v1522 = vmul.f32 %v1518, %v1503
      %v1526 = vrot.slane %v1514, 7
      %v1527 = vrot.slane %v1513, 7
      %v1528 = vrot.slane %v1512, 7
      %v1532 = vmul.f32 %v1518, %v1526
      %v1533 = vmul.f32 %v1518, %v1527
      %v1534 = vmul.f32 %v1518, %v1528
      %v1538 = vrot.slane %v1532, 1
      %v1539 = vrot.slane %v1533, 1
      %v1540 = vrot.slane %v1534, 1
      %v1544 = vadd.f32 %v1520, %v1538
      %v1545 = vadd.f32 %v1521, %v1539
      %v1546 = vadd.f32 %v1522, %v1540
      %v1547 = vmul.f32 %v1474, %v1544
      %v1548 = vmul.f32 %v1475, %v1545
      %v1549 = vmul.f32 %v1476, %v1546
      %v1550 = vadd.f32 %v1547, 0.0
      %v1551 = vadd.f32 %v1548, 0.0
      %v1552 = vadd.f32 %v1549, 0.0
      %1553 = vrot.lane.b32.xlu0 %v1450, 56
      %v1554 = vpop.permute.xlu0 %1553
      %1555 = vrot.lane.b32.xlu0 %v1451, 56
      %v1556 = vpop.permute.xlu0 %1555
      %1557 = vrot.lane.b32.xlu0 %v1452, 56
      %v1558 = vpop.permute.xlu0 %1557
      %vm1559 = vcmp.lt.s32.totalorder %v470, 56
      %v1560 = vsel %vm1559, %v1556, %v1558
      %v1561 = vsel %vm1559, %v1554, %v1556
      %v1562 = vsel %vm1559, %v1558, %v1554
      %1563 = vrot.lane.b32.xlu0 %v1459, 56
      %v1564 = vpop.permute.xlu0 %1563
      %1565 = vrot.lane.b32.xlu0 %v1466, 56
      %v1566 = vpop.permute.xlu0 %1565
      %1567 = vrot.lane.b32.xlu0 %v1473, 56
      %v1568 = vpop.permute.xlu0 %1567
      %v1569 = vsel %vm1559, %v1566, %v1568
      %v1570 = vsel %vm1559, %v1564, %v1566
      %v1571 = vsel %vm1559, %v1568, %v1564
      %1572 = vset.pattern.permute.xlu0 1
      %1573 = vperm.xlu0 %1572, %v1495
      %v1574 = vpop.permute.xlu0 %1573
      %v1576 = vmul.f32 %v1574, %v1562
      %v1577 = vmul.f32 %v1574, %v1561
      %v1578 = vmul.f32 %v1574, %v1560
      %v1582 = vrot.slane %v1571, 7
      %v1583 = vrot.slane %v1570, 7
      %v1584 = vrot.slane %v1569, 7
      %v1588 = vmul.f32 %v1574, %v1582
      %v1589 = vmul.f32 %v1574, %v1583
      %v1590 = vmul.f32 %v1574, %v1584
      %v1594 = vrot.slane %v1588, 1
      %v1595 = vrot.slane %v1589, 1
      %v1596 = vrot.slane %v1590, 1
      %v1600 = vadd.f32 %v1576, %v1594
      %v1601 = vadd.f32 %v1577, %v1595
      %v1602 = vadd.f32 %v1578, %v1596
      %v1606 = vrot.slane %v1600, 7
      %v1607 = vrot.slane %v1601, 7
      %v1608 = vrot.slane %v1602, 7
      %v1612 = vmul.f32 %v1474, %v1606
      %v1613 = vmul.f32 %v1475, %v1607
      %v1614 = vmul.f32 %v1476, %v1608
      %v1618 = vrot.slane %v1612, 1
      %v1619 = vrot.slane %v1613, 1
      %v1620 = vrot.slane %v1614, 1
      %v1624 = vadd.f32 %v1550, %v1618
      %v1625 = vadd.f32 %v1551, %v1619
      %v1626 = vadd.f32 %v1552, %v1620
      %1627 = vrot.lane.b32.xlu0 %v1450, 55
      %v1628 = vpop.permute.xlu0 %1627
      %1629 = vrot.lane.b32.xlu0 %v1451, 55
      %v1630 = vpop.permute.xlu0 %1629
      %1631 = vrot.lane.b32.xlu0 %v1452, 55
      %v1632 = vpop.permute.xlu0 %1631
      %vm1633 = vcmp.lt.s32.totalorder %v470, 55
      %v1634 = vsel %vm1633, %v1630, %v1632
      %v1635 = vsel %vm1633, %v1628, %v1630
      %v1636 = vsel %vm1633, %v1632, %v1628
      %1637 = vrot.lane.b32.xlu0 %v1459, 55
      %v1638 = vpop.permute.xlu0 %1637
      %1639 = vrot.lane.b32.xlu0 %v1466, 55
      %v1640 = vpop.permute.xlu0 %1639
      %1641 = vrot.lane.b32.xlu0 %v1473, 55
      %v1642 = vpop.permute.xlu0 %1641
      %v1643 = vsel %vm1633, %v1640, %v1642
      %v1644 = vsel %vm1633, %v1638, %v1640
      %v1645 = vsel %vm1633, %v1642, %v1638
      %1646 = vset.pattern.permute.xlu0 2
      %1647 = vperm.xlu0 %1646, %v1495
      %v1648 = vpop.permute.xlu0 %1647
      %v1650 = vmul.f32 %v1648, %v1636
      %v1651 = vmul.f32 %v1648, %v1635
      %v1652 = vmul.f32 %v1648, %v1634
      %v1656 = vrot.slane %v1645, 7
      %v1657 = vrot.slane %v1644, 7
      %v1658 = vrot.slane %v1643, 7
      %v1662 = vmul.f32 %v1648, %v1656
      %v1663 = vmul.f32 %v1648, %v1657
      %v1664 = vmul.f32 %v1648, %v1658
      %v1668 = vrot.slane %v1662, 1
      %v1669 = vrot.slane %v1663, 1
      %v1670 = vrot.slane %v1664, 1
      %v1674 = vadd.f32 %v1650, %v1668
      %v1675 = vadd.f32 %v1651, %v1669
      %v1676 = vadd.f32 %v1652, %v1670
      %v1680 = vrot.slane %v1674, 6
      %v1681 = vrot.slane %v1675, 6
      %v1682 = vrot.slane %v1676, 6
      %v1686 = vmul.f32 %v1474, %v1680
      %v1687 = vmul.f32 %v1475, %v1681
      %v1688 = vmul.f32 %v1476, %v1682
      %v1692 = vrot.slane %v1686, 2
      %v1693 = vrot.slane %v1687, 2
      %v1694 = vrot.slane %v1688, 2
      %v1698 = vadd.f32 %v1624, %v1692
      %v1699 = vadd.f32 %v1625, %v1693
      %v1700 = vadd.f32 %v1626, %v1694
      %1701 = vrot.lane.b32.xlu0 %v1450, 54
      %v1702 = vpop.permute.xlu0 %1701
      %1703 = vrot.lane.b32.xlu0 %v1451, 54
      %v1704 = vpop.permute.xlu0 %1703
      %1705 = vrot.lane.b32.xlu0 %v1452, 54
      %v1706 = vpop.permute.xlu0 %1705
      %vm1707 = vcmp.lt.s32.totalorder %v470, 54
      %v1708 = vsel %vm1707, %v1704, %v1706
      %v1709 = vsel %vm1707, %v1702, %v1704
      %v1710 = vsel %vm1707, %v1706, %v1702
      %1711 = vrot.lane.b32.xlu0 %v1459, 54
      %v1712 = vpop.permute.xlu0 %1711
      %1713 = vrot.lane.b32.xlu0 %v1466, 54
      %v1714 = vpop.permute.xlu0 %1713
      %1715 = vrot.lane.b32.xlu0 %v1473, 54
      %v1716 = vpop.permute.xlu0 %1715
      %v1717 = vsel %vm1707, %v1714, %v1716
      %v1718 = vsel %vm1707, %v1712, %v1714
      %v1719 = vsel %vm1707, %v1716, %v1712
      %1720 = vset.pattern.permute.xlu0 3
      %1721 = vperm.xlu0 %1720, %v1495
      %v1722 = vpop.permute.xlu0 %1721
      %v1724 = vmul.f32 %v1722, %v1710
      %v1725 = vmul.f32 %v1722, %v1709
      %v1726 = vmul.f32 %v1722, %v1708
      %v1730 = vrot.slane %v1719, 7
      %v1731 = vrot.slane %v1718, 7
      %v1732 = vrot.slane %v1717, 7
      %v1736 = vmul.f32 %v1722, %v1730
      %v1737 = vmul.f32 %v1722, %v1731
      %v1738 = vmul.f32 %v1722, %v1732
      %v1742 = vrot.slane %v1736, 1
      %v1743 = vrot.slane %v1737, 1
      %v1744 = vrot.slane %v1738, 1
      %v1748 = vadd.f32 %v1724, %v1742
      %v1749 = vadd.f32 %v1725, %v1743
      %v1750 = vadd.f32 %v1726, %v1744
      %v1754 = vrot.slane %v1748, 5
      %v1755 = vrot.slane %v1749, 5
      %v1756 = vrot.slane %v1750, 5
      %v1760 = vmul.f32 %v1474, %v1754
      %v1761 = vmul.f32 %v1475, %v1755
      %v1762 = vmul.f32 %v1476, %v1756
      %v1766 = vrot.slane %v1760, 3
      %v1767 = vrot.slane %v1761, 3
      %v1768 = vrot.slane %v1762, 3
      %v1772 = vadd.f32 %v1698, %v1766
      %v1773 = vadd.f32 %v1699, %v1767
      %v1774 = vadd.f32 %v1700, %v1768
      %1775 = vrot.lane.b32.xlu0 %v1450, 53
      %v1776 = vpop.permute.xlu0 %1775
      %1777 = vrot.lane.b32.xlu0 %v1451, 53
      %v1778 = vpop.permute.xlu0 %1777
      %1779 = vrot.lane.b32.xlu0 %v1452, 53
      %v1780 = vpop.permute.xlu0 %1779
      %vm1781 = vcmp.lt.s32.totalorder %v470, 53
      %v1782 = vsel %vm1781, %v1778, %v1780
      %v1783 = vsel %vm1781, %v1776, %v1778
      %v1784 = vsel %vm1781, %v1780, %v1776
      %1785 = vrot.lane.b32.xlu0 %v1459, 53
      %v1786 = vpop.permute.xlu0 %1785
      %1787 = vrot.lane.b32.xlu0 %v1466, 53
      %v1788 = vpop.permute.xlu0 %1787
      %1789 = vrot.lane.b32.xlu0 %v1473, 53
      %v1790 = vpop.permute.xlu0 %1789
      %v1791 = vsel %vm1781, %v1788, %v1790
      %v1792 = vsel %vm1781, %v1786, %v1788
      %v1793 = vsel %vm1781, %v1790, %v1786
      %1794 = vset.pattern.permute.xlu0 4
      %1795 = vperm.xlu0 %1794, %v1495
      %v1796 = vpop.permute.xlu0 %1795
      %v1798 = vmul.f32 %v1796, %v1784
      %v1799 = vmul.f32 %v1796, %v1783
      %v1800 = vmul.f32 %v1796, %v1782
      %v1804 = vrot.slane %v1793, 7
      %v1805 = vrot.slane %v1792, 7
      %v1806 = vrot.slane %v1791, 7
      %v1810 = vmul.f32 %v1796, %v1804
      %v1811 = vmul.f32 %v1796, %v1805
      %v1812 = vmul.f32 %v1796, %v1806
      %v1816 = vrot.slane %v1810, 1
      %v1817 = vrot.slane %v1811, 1
      %v1818 = vrot.slane %v1812, 1
      %v1822 = vadd.f32 %v1798, %v1816
      %v1823 = vadd.f32 %v1799, %v1817
      %v1824 = vadd.f32 %v1800, %v1818
      %v1828 = vrot.slane %v1822, 4
      %v1829 = vrot.slane %v1823, 4
      %v1830 = vrot.slane %v1824, 4
      %v1834 = vmul.f32 %v1474, %v1828
      %v1835 = vmul.f32 %v1475, %v1829
      %v1836 = vmul.f32 %v1476, %v1830
      %v1840 = vrot.slane %v1834, 4
      %v1841 = vrot.slane %v1835, 4
      %v1842 = vrot.slane %v1836, 4
      %v1846 = vadd.f32 %v1772, %v1840
      %v1847 = vadd.f32 %v1773, %v1841
      %v1848 = vadd.f32 %v1774, %v1842
      %1849 = vrot.lane.b32.xlu0 %v1450, 52
      %v1850 = vpop.permute.xlu0 %1849
      %1851 = vrot.lane.b32.xlu0 %v1451, 52
      %v1852 = vpop.permute.xlu0 %1851
      %1853 = vrot.lane.b32.xlu0 %v1452, 52
      %v1854 = vpop.permute.xlu0 %1853
      %vm1855 = vcmp.lt.s32.totalorder %v470, 52
      %v1856 = vsel %vm1855, %v1852, %v1854
      %v1857 = vsel %vm1855, %v1850, %v1852
      %v1858 = vsel %vm1855, %v1854, %v1850
      %1859 = vrot.lane.b32.xlu0 %v1459, 52
      %v1860 = vpop.permute.xlu0 %1859
      %1861 = vrot.lane.b32.xlu0 %v1466, 52
      %v1862 = vpop.permute.xlu0 %1861
      %1863 = vrot.lane.b32.xlu0 %v1473, 52
      %v1864 = vpop.permute.xlu0 %1863
      %v1865 = vsel %vm1855, %v1862, %v1864
      %v1866 = vsel %vm1855, %v1860, %v1862
      %v1867 = vsel %vm1855, %v1864, %v1860
      %1868 = vset.pattern.permute.xlu0 5
      %1869 = vperm.xlu0 %1868, %v1495
      %v1870 = vpop.permute.xlu0 %1869
      %v1872 = vmul.f32 %v1870, %v1858
      %v1873 = vmul.f32 %v1870, %v1857
      %v1874 = vmul.f32 %v1870, %v1856
      %v1878 = vrot.slane %v1867, 7
      %v1879 = vrot.slane %v1866, 7
      %v1880 = vrot.slane %v1865, 7
      %v1884 = vmul.f32 %v1870, %v1878
      %v1885 = vmul.f32 %v1870, %v1879
      %v1886 = vmul.f32 %v1870, %v1880
      %v1890 = vrot.slane %v1884, 1
      %v1891 = vrot.slane %v1885, 1
      %v1892 = vrot.slane %v1886, 1
      %v1896 = vadd.f32 %v1872, %v1890
      %v1897 = vadd.f32 %v1873, %v1891
      %v1898 = vadd.f32 %v1874, %v1892
      %v1902 = vrot.slane %v1896, 3
      %v1903 = vrot.slane %v1897, 3
      %v1904 = vrot.slane %v1898, 3
      %v1908 = vmul.f32 %v1474, %v1902
      %v1909 = vmul.f32 %v1475, %v1903
      %v1910 = vmul.f32 %v1476, %v1904
      %v1914 = vrot.slane %v1908, 5
      %v1915 = vrot.slane %v1909, 5
      %v1916 = vrot.slane %v1910, 5
      %v1920 = vadd.f32 %v1846, %v1914
      %v1921 = vadd.f32 %v1847, %v1915
      %v1922 = vadd.f32 %v1848, %v1916
      %1923 = vrot.lane.b32.xlu0 %v1450, 51
      %v1924 = vpop.permute.xlu0 %1923
      %1925 = vrot.lane.b32.xlu0 %v1451, 51
      %v1926 = vpop.permute.xlu0 %1925
      %1927 = vrot.lane.b32.xlu0 %v1452, 51
      %v1928 = vpop.permute.xlu0 %1927
      %vm1929 = vcmp.lt.s32.totalorder %v470, 51
      %v1930 = vsel %vm1929, %v1926, %v1928
      %v1931 = vsel %vm1929, %v1924, %v1926
      %v1932 = vsel %vm1929, %v1928, %v1924
      %1933 = vrot.lane.b32.xlu0 %v1459, 51
      %v1934 = vpop.permute.xlu0 %1933
      %1935 = vrot.lane.b32.xlu0 %v1466, 51
      %v1936 = vpop.permute.xlu0 %1935
      %1937 = vrot.lane.b32.xlu0 %v1473, 51
      %v1938 = vpop.permute.xlu0 %1937
      %v1939 = vsel %vm1929, %v1936, %v1938
      %v1940 = vsel %vm1929, %v1934, %v1936
      %v1941 = vsel %vm1929, %v1938, %v1934
      %1942 = vset.pattern.permute.xlu0 6
      %1943 = vperm.xlu0 %1942, %v1495
      %v1944 = vpop.permute.xlu0 %1943
      %v1946 = vmul.f32 %v1944, %v1932
      %v1947 = vmul.f32 %v1944, %v1931
      %v1948 = vmul.f32 %v1944, %v1930
      %v1952 = vrot.slane %v1941, 7
      %v1953 = vrot.slane %v1940, 7
      %v1954 = vrot.slane %v1939, 7
      %v1958 = vmul.f32 %v1944, %v1952
      %v1959 = vmul.f32 %v1944, %v1953
      %v1960 = vmul.f32 %v1944, %v1954
      %v1964 = vrot.slane %v1958, 1
      %v1965 = vrot.slane %v1959, 1
      %v1966 = vrot.slane %v1960, 1
      %v1970 = vadd.f32 %v1946, %v1964
      %v1971 = vadd.f32 %v1947, %v1965
      %v1972 = vadd.f32 %v1948, %v1966
      %v1976 = vrot.slane %v1970, 2
      %v1977 = vrot.slane %v1971, 2
      %v1978 = vrot.slane %v1972, 2
      %v1982 = vmul.f32 %v1474, %v1976
      %v1983 = vmul.f32 %v1475, %v1977
      %v1984 = vmul.f32 %v1476, %v1978
      %v1988 = vrot.slane %v1982, 6
      %v1989 = vrot.slane %v1983, 6
      %v1990 = vrot.slane %v1984, 6
      %v1994 = vadd.f32 %v1920, %v1988
      %v1995 = vadd.f32 %v1921, %v1989
      %v1996 = vadd.f32 %v1922, %v1990
      %1997 = vrot.lane.b32.xlu0 %v1450, 39
      %v1998 = vpop.permute.xlu0 %1997
      %1999 = vrot.lane.b32.xlu0 %v1451, 39
      %v2000 = vpop.permute.xlu0 %1999
      %2001 = vrot.lane.b32.xlu0 %v1452, 39
      %v2002 = vpop.permute.xlu0 %2001
      %vm2003 = vcmp.lt.s32.totalorder %v470, 39
      %v2004 = vsel %vm2003, %v2000, %v2002
      %v2005 = vsel %vm2003, %v1998, %v2000
      %v2006 = vsel %vm2003, %v2002, %v1998
      %2007 = vrot.lane.b32.xlu0 %v1459, 39
      %v2008 = vpop.permute.xlu0 %2007
      %2009 = vrot.lane.b32.xlu0 %v1466, 39
      %v2010 = vpop.permute.xlu0 %2009
      %2011 = vrot.lane.b32.xlu0 %v1473, 39
      %v2012 = vpop.permute.xlu0 %2011
      %v2013 = vsel %vm2003, %v2010, %v2012
      %v2014 = vsel %vm2003, %v2008, %v2010
      %v2015 = vsel %vm2003, %v2012, %v2008
      %2016 = vset.pattern.permute.xlu0 7
      %2017 = vperm.xlu0 %2016, %v1495
      %v2018 = vpop.permute.xlu0 %2017
      %v2020 = vmul.f32 %v2018, %v2006
      %v2021 = vmul.f32 %v2018, %v2005
      %v2022 = vmul.f32 %v2018, %v2004
      %v2026 = vrot.slane %v2015, 7
      %v2027 = vrot.slane %v2014, 7
      %v2028 = vrot.slane %v2013, 7
      %v2032 = vmul.f32 %v2018, %v2026
      %v2033 = vmul.f32 %v2018, %v2027
      %v2034 = vmul.f32 %v2018, %v2028
      %v2038 = vrot.slane %v2032, 1
      %v2039 = vrot.slane %v2033, 1
      %v2040 = vrot.slane %v2034, 1
      %v2044 = vadd.f32 %v2020, %v2038
      %v2045 = vadd.f32 %v2021, %v2039
      %v2046 = vadd.f32 %v2022, %v2040
      %v2050 = vrot.slane %v2044, 1
      %v2051 = vrot.slane %v2045, 1
      %v2052 = vrot.slane %v2046, 1
      %v2056 = vmul.f32 %v1474, %v2050
      %v2057 = vmul.f32 %v1475, %v2051
      %v2058 = vmul.f32 %v1476, %v2052
      %v2062 = vrot.slane %v2056, 7
      %v2063 = vrot.slane %v2057, 7
      %v2064 = vrot.slane %v2058, 7
      %v2068 = vadd.f32 %v1994, %v2062
      %v2069 = vadd.f32 %v1995, %v2063
      %v2070 = vadd.f32 %v1996, %v2064
      %2071 = vrot.lane.b32.xlu0 %v1450, 38
      %v2072 = vpop.permute.xlu0 %2071
      %2073 = vrot.lane.b32.xlu0 %v1451, 38
      %v2074 = vpop.permute.xlu0 %2073
      %2075 = vrot.lane.b32.xlu0 %v1452, 38
      %v2076 = vpop.permute.xlu0 %2075
      %vm2077 = vcmp.lt.s32.totalorder %v470, 38
      %v2078 = vsel %vm2077, %v2074, %v2076
      %v2079 = vsel %vm2077, %v2072, %v2074
      %v2080 = vsel %vm2077, %v2076, %v2072
      %2081 = vrot.lane.b32.xlu0 %v1459, 38
      %v2082 = vpop.permute.xlu0 %2081
      %2083 = vrot.lane.b32.xlu0 %v1466, 38
      %v2084 = vpop.permute.xlu0 %2083
      %2085 = vrot.lane.b32.xlu0 %v1473, 38
      %v2086 = vpop.permute.xlu0 %2085
      %v2087 = vsel %vm2077, %v2084, %v2086
      %v2088 = vsel %vm2077, %v2082, %v2084
      %v2089 = vsel %vm2077, %v2086, %v2082
      %2090 = vset.pattern.permute.xlu0 8
      %2091 = vperm.xlu0 %2090, %v1495
      %v2092 = vpop.permute.xlu0 %2091
      %v2094 = vmul.f32 %v2092, %v2080
      %v2095 = vmul.f32 %v2092, %v2079
      %v2096 = vmul.f32 %v2092, %v2078
      %v2100 = vrot.slane %v2089, 7
      %v2101 = vrot.slane %v2088, 7
      %v2102 = vrot.slane %v2087, 7
      %v2106 = vmul.f32 %v2092, %v2100
      %v2107 = vmul.f32 %v2092, %v2101
      %v2108 = vmul.f32 %v2092, %v2102
      %v2112 = vrot.slane %v2106, 1
      %v2113 = vrot.slane %v2107, 1
      %v2114 = vrot.slane %v2108, 1
      %v2118 = vadd.f32 %v2094, %v2112
      %v2119 = vadd.f32 %v2095, %v2113
      %v2120 = vadd.f32 %v2096, %v2114
      %v2121 = vmul.f32 %v1477, %v2118
      %v2122 = vmul.f32 %v1478, %v2119
      %v2123 = vmul.f32 %v1479, %v2120
      %v2124 = vadd.f32 %v2068, %v2121
      %v2125 = vadd.f32 %v2069, %v2122
      %v2126 = vadd.f32 %v2070, %v2123
      %2127 = vrot.lane.b32.xlu0 %v1450, 37
      %v2128 = vpop.permute.xlu0 %2127
      %2129 = vrot.lane.b32.xlu0 %v1451, 37
      %v2130 = vpop.permute.xlu0 %2129
      %2131 = vrot.lane.b32.xlu0 %v1452, 37
      %v2132 = vpop.permute.xlu0 %2131
      %vm2133 = vcmp.lt.s32.totalorder %v470, 37
      %v2134 = vsel %vm2133, %v2130, %v2132
      %v2135 = vsel %vm2133, %v2128, %v2130
      %v2136 = vsel %vm2133, %v2132, %v2128
      %2137 = vrot.lane.b32.xlu0 %v1459, 37
      %v2138 = vpop.permute.xlu0 %2137
      %2139 = vrot.lane.b32.xlu0 %v1466, 37
      %v2140 = vpop.permute.xlu0 %2139
      %2141 = vrot.lane.b32.xlu0 %v1473, 37
      %v2142 = vpop.permute.xlu0 %2141
      %v2143 = vsel %vm2133, %v2140, %v2142
      %v2144 = vsel %vm2133, %v2138, %v2140
      %v2145 = vsel %vm2133, %v2142, %v2138
      %2146 = vset.pattern.permute.xlu0 9
      %2147 = vperm.xlu0 %2146, %v1495
      %v2148 = vpop.permute.xlu0 %2147
      %v2150 = vmul.f32 %v2148, %v2136
      %v2151 = vmul.f32 %v2148, %v2135
      %v2152 = vmul.f32 %v2148, %v2134
      %v2156 = vrot.slane %v2145, 7
      %v2157 = vrot.slane %v2144, 7
      %v2158 = vrot.slane %v2143, 7
      %v2162 = vmul.f32 %v2148, %v2156
      %v2163 = vmul.f32 %v2148, %v2157
      %v2164 = vmul.f32 %v2148, %v2158
      %v2168 = vrot.slane %v2162, 1
      %v2169 = vrot.slane %v2163, 1
      %v2170 = vrot.slane %v2164, 1
      %v2174 = vadd.f32 %v2150, %v2168
      %v2175 = vadd.f32 %v2151, %v2169
      %v2176 = vadd.f32 %v2152, %v2170
      %v2180 = vrot.slane %v2174, 7
      %v2181 = vrot.slane %v2175, 7
      %v2182 = vrot.slane %v2176, 7
      %v2186 = vmul.f32 %v1477, %v2180
      %v2187 = vmul.f32 %v1478, %v2181
      %v2188 = vmul.f32 %v1479, %v2182
      %v2192 = vrot.slane %v2186, 1
      %v2193 = vrot.slane %v2187, 1
      %v2194 = vrot.slane %v2188, 1
      %v2198 = vadd.f32 %v2124, %v2192
      %v2199 = vadd.f32 %v2125, %v2193
      %v2200 = vadd.f32 %v2126, %v2194
      %2201 = vrot.lane.b32.xlu0 %v1450, 36
      %v2202 = vpop.permute.xlu0 %2201
      %2203 = vrot.lane.b32.xlu0 %v1451, 36
      %v2204 = vpop.permute.xlu0 %2203
      %2205 = vrot.lane.b32.xlu0 %v1452, 36
      %v2206 = vpop.permute.xlu0 %2205
      %vm2207 = vcmp.lt.s32.totalorder %v470, 36
      %v2208 = vsel %vm2207, %v2204, %v2206
      %v2209 = vsel %vm2207, %v2202, %v2204
      %v2210 = vsel %vm2207, %v2206, %v2202
      %2211 = vrot.lane.b32.xlu0 %v1459, 36
      %v2212 = vpop.permute.xlu0 %2211
      %2213 = vrot.lane.b32.xlu0 %v1466, 36
      %v2214 = vpop.permute.xlu0 %2213
      %2215 = vrot.lane.b32.xlu0 %v1473, 36
      %v2216 = vpop.permute.xlu0 %2215
      %v2217 = vsel %vm2207, %v2214, %v2216
      %v2218 = vsel %vm2207, %v2212, %v2214
      %v2219 = vsel %vm2207, %v2216, %v2212
      %2220 = vset.pattern.permute.xlu0 10
      %2221 = vperm.xlu0 %2220, %v1495
      %v2222 = vpop.permute.xlu0 %2221
      %v2224 = vmul.f32 %v2222, %v2210
      %v2225 = vmul.f32 %v2222, %v2209
      %v2226 = vmul.f32 %v2222, %v2208
      %v2230 = vrot.slane %v2219, 7
      %v2231 = vrot.slane %v2218, 7
      %v2232 = vrot.slane %v2217, 7
      %v2236 = vmul.f32 %v2222, %v2230
      %v2237 = vmul.f32 %v2222, %v2231
      %v2238 = vmul.f32 %v2222, %v2232
      %v2242 = vrot.slane %v2236, 1
      %v2243 = vrot.slane %v2237, 1
      %v2244 = vrot.slane %v2238, 1
      %v2248 = vadd.f32 %v2224, %v2242
      %v2249 = vadd.f32 %v2225, %v2243
      %v2250 = vadd.f32 %v2226, %v2244
      %v2254 = vrot.slane %v2248, 6
      %v2255 = vrot.slane %v2249, 6
      %v2256 = vrot.slane %v2250, 6
      %v2260 = vmul.f32 %v1477, %v2254
      %v2261 = vmul.f32 %v1478, %v2255
      %v2262 = vmul.f32 %v1479, %v2256
      %v2266 = vrot.slane %v2260, 2
      %v2267 = vrot.slane %v2261, 2
      %v2268 = vrot.slane %v2262, 2
      %v2272 = vadd.f32 %v2198, %v2266
      %v2273 = vadd.f32 %v2199, %v2267
      %v2274 = vadd.f32 %v2200, %v2268
      %2275 = vrot.lane.b32.xlu0 %v1450, 35
      %v2276 = vpop.permute.xlu0 %2275
      %2277 = vrot.lane.b32.xlu0 %v1451, 35
      %v2278 = vpop.permute.xlu0 %2277
      %2279 = vrot.lane.b32.xlu0 %v1452, 35
      %v2280 = vpop.permute.xlu0 %2279
      %vm2281 = vcmp.lt.s32.totalorder %v470, 35
      %v2282 = vsel %vm2281, %v2278, %v2280
      %v2283 = vsel %vm2281, %v2276, %v2278
      %v2284 = vsel %vm2281, %v2280, %v2276
      %2285 = vrot.lane.b32.xlu0 %v1459, 35
      %v2286 = vpop.permute.xlu0 %2285
      %2287 = vrot.lane.b32.xlu0 %v1466, 35
      %v2288 = vpop.permute.xlu0 %2287
      %2289 = vrot.lane.b32.xlu0 %v1473, 35
      %v2290 = vpop.permute.xlu0 %2289
      %v2291 = vsel %vm2281, %v2288, %v2290
      %v2292 = vsel %vm2281, %v2286, %v2288
      %v2293 = vsel %vm2281, %v2290, %v2286
      %2294 = vset.pattern.permute.xlu0 11
      %2295 = vperm.xlu0 %2294, %v1495
      %v2296 = vpop.permute.xlu0 %2295
      %v2298 = vmul.f32 %v2296, %v2284
      %v2299 = vmul.f32 %v2296, %v2283
      %v2300 = vmul.f32 %v2296, %v2282
      %v2304 = vrot.slane %v2293, 7
      %v2305 = vrot.slane %v2292, 7
      %v2306 = vrot.slane %v2291, 7
      %v2310 = vmul.f32 %v2296, %v2304
      %v2311 = vmul.f32 %v2296, %v2305
      %v2312 = vmul.f32 %v2296, %v2306
      %v2316 = vrot.slane %v2310, 1
      %v2317 = vrot.slane %v2311, 1
      %v2318 = vrot.slane %v2312, 1
      %v2322 = vadd.f32 %v2298, %v2316
      %v2323 = vadd.f32 %v2299, %v2317
      %v2324 = vadd.f32 %v2300, %v2318
      %v2328 = vrot.slane %v2322, 5
      %v2329 = vrot.slane %v2323, 5
      %v2330 = vrot.slane %v2324, 5
      %v2334 = vmul.f32 %v1477, %v2328
      %v2335 = vmul.f32 %v1478, %v2329
      %v2336 = vmul.f32 %v1479, %v2330
      %v2340 = vrot.slane %v2334, 3
      %v2341 = vrot.slane %v2335, 3
      %v2342 = vrot.slane %v2336, 3
      %v2346 = vadd.f32 %v2272, %v2340
      %v2347 = vadd.f32 %v2273, %v2341
      %v2348 = vadd.f32 %v2274, %v2342
      %2349 = vrot.lane.b32.xlu0 %v1450, 34
      %v2350 = vpop.permute.xlu0 %2349
      %2351 = vrot.lane.b32.xlu0 %v1451, 34
      %v2352 = vpop.permute.xlu0 %2351
      %2353 = vrot.lane.b32.xlu0 %v1452, 34
      %v2354 = vpop.permute.xlu0 %2353
      %vm2355 = vcmp.lt.s32.totalorder %v470, 34
      %v2356 = vsel %vm2355, %v2352, %v2354
      %v2357 = vsel %vm2355, %v2350, %v2352
      %v2358 = vsel %vm2355, %v2354, %v2350
      %2359 = vrot.lane.b32.xlu0 %v1459, 34
      %v2360 = vpop.permute.xlu0 %2359
      %2361 = vrot.lane.b32.xlu0 %v1466, 34
      %v2362 = vpop.permute.xlu0 %2361
      %2363 = vrot.lane.b32.xlu0 %v1473, 34
      %v2364 = vpop.permute.xlu0 %2363
      %v2365 = vsel %vm2355, %v2362, %v2364
      %v2366 = vsel %vm2355, %v2360, %v2362
      %v2367 = vsel %vm2355, %v2364, %v2360
      %2368 = vset.pattern.permute.xlu0 12
      %2369 = vperm.xlu0 %2368, %v1495
      %v2370 = vpop.permute.xlu0 %2369
      %v2372 = vmul.f32 %v2370, %v2358
      %v2373 = vmul.f32 %v2370, %v2357
      %v2374 = vmul.f32 %v2370, %v2356
      %v2378 = vrot.slane %v2367, 7
      %v2379 = vrot.slane %v2366, 7
      %v2380 = vrot.slane %v2365, 7
      %v2384 = vmul.f32 %v2370, %v2378
      %v2385 = vmul.f32 %v2370, %v2379
      %v2386 = vmul.f32 %v2370, %v2380
      %v2390 = vrot.slane %v2384, 1
      %v2391 = vrot.slane %v2385, 1
      %v2392 = vrot.slane %v2386, 1
      %v2396 = vadd.f32 %v2372, %v2390
      %v2397 = vadd.f32 %v2373, %v2391
      %v2398 = vadd.f32 %v2374, %v2392
      %v2402 = vrot.slane %v2396, 4
      %v2403 = vrot.slane %v2397, 4
      %v2404 = vrot.slane %v2398, 4
      %v2408 = vmul.f32 %v1477, %v2402
      %v2409 = vmul.f32 %v1478, %v2403
      %v2410 = vmul.f32 %v1479, %v2404
      %v2414 = vrot.slane %v2408, 4
      %v2415 = vrot.slane %v2409, 4
      %v2416 = vrot.slane %v2410, 4
      %v2420 = vadd.f32 %v2346, %v2414
      %v2421 = vadd.f32 %v2347, %v2415
      %v2422 = vadd.f32 %v2348, %v2416
      %2423 = vrot.lane.b32.xlu0 %v1450, 33
      %v2424 = vpop.permute.xlu0 %2423
      %2425 = vrot.lane.b32.xlu0 %v1451, 33
      %v2426 = vpop.permute.xlu0 %2425
      %2427 = vrot.lane.b32.xlu0 %v1452, 33
      %v2428 = vpop.permute.xlu0 %2427
      %vm2429 = vcmp.lt.s32.totalorder %v470, 33
      %v2430 = vsel %vm2429, %v2426, %v2428
      %v2431 = vsel %vm2429, %v2424, %v2426
      %v2432 = vsel %vm2429, %v2428, %v2424
      %2433 = vrot.lane.b32.xlu0 %v1459, 33
      %v2434 = vpop.permute.xlu0 %2433
      %2435 = vrot.lane.b32.xlu0 %v1466, 33
      %v2436 = vpop.permute.xlu0 %2435
      %2437 = vrot.lane.b32.xlu0 %v1473, 33
      %v2438 = vpop.permute.xlu0 %2437
      %v2439 = vsel %vm2429, %v2436, %v2438
      %v2440 = vsel %vm2429, %v2434, %v2436
      %v2441 = vsel %vm2429, %v2438, %v2434
      %2442 = vset.pattern.permute.xlu0 13
      %2443 = vperm.xlu0 %2442, %v1495
      %v2444 = vpop.permute.xlu0 %2443
      %v2446 = vmul.f32 %v2444, %v2432
      %v2447 = vmul.f32 %v2444, %v2431
      %v2448 = vmul.f32 %v2444, %v2430
      %v2452 = vrot.slane %v2441, 7
      %v2453 = vrot.slane %v2440, 7
      %v2454 = vrot.slane %v2439, 7
      %v2458 = vmul.f32 %v2444, %v2452
      %v2459 = vmul.f32 %v2444, %v2453
      %v2460 = vmul.f32 %v2444, %v2454
      %v2464 = vrot.slane %v2458, 1
      %v2465 = vrot.slane %v2459, 1
      %v2466 = vrot.slane %v2460, 1
      %v2470 = vadd.f32 %v2446, %v2464
      %v2471 = vadd.f32 %v2447, %v2465
      %v2472 = vadd.f32 %v2448, %v2466
      %v2476 = vrot.slane %v2470, 3
      %v2477 = vrot.slane %v2471, 3
      %v2478 = vrot.slane %v2472, 3
      %v2482 = vmul.f32 %v1477, %v2476
      %v2483 = vmul.f32 %v1478, %v2477
      %v2484 = vmul.f32 %v1479, %v2478
      %v2488 = vrot.slane %v2482, 5
      %v2489 = vrot.slane %v2483, 5
      %v2490 = vrot.slane %v2484, 5
      %v2494 = vadd.f32 %v2420, %v2488
      %v2495 = vadd.f32 %v2421, %v2489
      %v2496 = vadd.f32 %v2422, %v2490
      %2497 = vrot.lane.b32.xlu0 %v1450, 21
      %v2498 = vpop.permute.xlu0 %2497
      %2499 = vrot.lane.b32.xlu0 %v1451, 21
      %v2500 = vpop.permute.xlu0 %2499
      %2501 = vrot.lane.b32.xlu0 %v1452, 21
      %v2502 = vpop.permute.xlu0 %2501
      %vm2503 = vcmp.lt.s32.totalorder %v470, 21
      %v2504 = vsel %vm2503, %v2500, %v2502
      %v2505 = vsel %vm2503, %v2498, %v2500
      %v2506 = vsel %vm2503, %v2502, %v2498
      %2507 = vrot.lane.b32.xlu0 %v1459, 21
      %v2508 = vpop.permute.xlu0 %2507
      %2509 = vrot.lane.b32.xlu0 %v1466, 21
      %v2510 = vpop.permute.xlu0 %2509
      %2511 = vrot.lane.b32.xlu0 %v1473, 21
      %v2512 = vpop.permute.xlu0 %2511
      %v2513 = vsel %vm2503, %v2510, %v2512
      %v2514 = vsel %vm2503, %v2508, %v2510
      %v2515 = vsel %vm2503, %v2512, %v2508
      %2516 = vset.pattern.permute.xlu0 14
      %2517 = vperm.xlu0 %2516, %v1495
      %v2518 = vpop.permute.xlu0 %2517
      %v2520 = vmul.f32 %v2518, %v2506
      %v2521 = vmul.f32 %v2518, %v2505
      %v2522 = vmul.f32 %v2518, %v2504
      %v2526 = vrot.slane %v2515, 7
      %v2527 = vrot.slane %v2514, 7
      %v2528 = vrot.slane %v2513, 7
      %v2532 = vmul.f32 %v2518, %v2526
      %v2533 = vmul.f32 %v2518, %v2527
      %v2534 = vmul.f32 %v2518, %v2528
      %v2538 = vrot.slane %v2532, 1
      %v2539 = vrot.slane %v2533, 1
      %v2540 = vrot.slane %v2534, 1
      %v2544 = vadd.f32 %v2520, %v2538
      %v2545 = vadd.f32 %v2521, %v2539
      %v2546 = vadd.f32 %v2522, %v2540
      %v2550 = vrot.slane %v2544, 2
      %v2551 = vrot.slane %v2545, 2
      %v2552 = vrot.slane %v2546, 2
      %v2556 = vmul.f32 %v1477, %v2550
      %v2557 = vmul.f32 %v1478, %v2551
      %v2558 = vmul.f32 %v1479, %v2552
      %v2562 = vrot.slane %v2556, 6
      %v2563 = vrot.slane %v2557, 6
      %v2564 = vrot.slane %v2558, 6
      %v2568 = vadd.f32 %v2494, %v2562
      %v2569 = vadd.f32 %v2495, %v2563
      %v2570 = vadd.f32 %v2496, %v2564
      %2571 = vrot.lane.b32.xlu0 %v1450, 20
      %v2572 = vpop.permute.xlu0 %2571
      %2573 = vrot.lane.b32.xlu0 %v1451, 20
      %v2574 = vpop.permute.xlu0 %2573
      %2575 = vrot.lane.b32.xlu0 %v1452, 20
      %v2576 = vpop.permute.xlu0 %2575
      %vm2577 = vcmp.lt.s32.totalorder %v470, 20
      %v2578 = vsel %vm2577, %v2574, %v2576
      %v2579 = vsel %vm2577, %v2572, %v2574
      %v2580 = vsel %vm2577, %v2576, %v2572
      %2581 = vrot.lane.b32.xlu0 %v1459, 20
      %v2582 = vpop.permute.xlu0 %2581
      %2583 = vrot.lane.b32.xlu0 %v1466, 20
      %v2584 = vpop.permute.xlu0 %2583
      %2585 = vrot.lane.b32.xlu0 %v1473, 20
      %v2586 = vpop.permute.xlu0 %2585
      %v2587 = vsel %vm2577, %v2584, %v2586
      %v2588 = vsel %vm2577, %v2582, %v2584
      %v2589 = vsel %vm2577, %v2586, %v2582
      %2590 = vset.pattern.permute.xlu0 15
      %2591 = vperm.xlu0 %2590, %v1495
      %v2592 = vpop.permute.xlu0 %2591
      %v2594 = vmul.f32 %v2592, %v2580
      %v2595 = vmul.f32 %v2592, %v2579
      %v2596 = vmul.f32 %v2592, %v2578
      %v2600 = vrot.slane %v2589, 7
      %v2601 = vrot.slane %v2588, 7
      %v2602 = vrot.slane %v2587, 7
      %v2606 = vmul.f32 %v2592, %v2600
      %v2607 = vmul.f32 %v2592, %v2601
      %v2608 = vmul.f32 %v2592, %v2602
      %v2612 = vrot.slane %v2606, 1
      %v2613 = vrot.slane %v2607, 1
      %v2614 = vrot.slane %v2608, 1
      %v2618 = vadd.f32 %v2594, %v2612
      %v2619 = vadd.f32 %v2595, %v2613
      %v2620 = vadd.f32 %v2596, %v2614
      %v2624 = vrot.slane %v2618, 1
      %v2625 = vrot.slane %v2619, 1
      %v2626 = vrot.slane %v2620, 1
      %v2630 = vmul.f32 %v1477, %v2624
      %v2631 = vmul.f32 %v1478, %v2625
      %v2632 = vmul.f32 %v1479, %v2626
      %v2636 = vrot.slane %v2630, 7
      %v2637 = vrot.slane %v2631, 7
      %v2638 = vrot.slane %v2632, 7
      %v2642 = vadd.f32 %v2568, %v2636
      %v2643 = vadd.f32 %v2569, %v2637
      %v2644 = vadd.f32 %v2570, %v2638
      %2645 = vrot.lane.b32.xlu0 %v1450, 19
      %v2646 = vpop.permute.xlu0 %2645
      %2647 = vrot.lane.b32.xlu0 %v1451, 19
      %v2648 = vpop.permute.xlu0 %2647
      %2649 = vrot.lane.b32.xlu0 %v1452, 19
      %v2650 = vpop.permute.xlu0 %2649
      %v2651 = vsel %vm471, %v2648, %v2650
      %v2652 = vsel %vm471, %v2646, %v2648
      %v2653 = vsel %vm471, %v2650, %v2646
      %2654 = vrot.lane.b32.xlu0 %v1459, 19
      %v2655 = vpop.permute.xlu0 %2654
      %2656 = vrot.lane.b32.xlu0 %v1466, 19
      %v2657 = vpop.permute.xlu0 %2656
      %2658 = vrot.lane.b32.xlu0 %v1473, 19
      %v2659 = vpop.permute.xlu0 %2658
      %v2660 = vsel %vm471, %v2657, %v2659
      %v2661 = vsel %vm471, %v2655, %v2657
      %v2662 = vsel %vm471, %v2659, %v2655
      %2663 = vset.pattern.permute.xlu0 16
      %2664 = vperm.xlu0 %2663, %v1495
      %v2665 = vpop.permute.xlu0 %2664
      %v2667 = vmul.f32 %v2665, %v2653
      %v2668 = vmul.f32 %v2665, %v2652
      %v2669 = vmul.f32 %v2665, %v2651
      %v2673 = vrot.slane %v2662, 7
      %v2674 = vrot.slane %v2661, 7
      %v2675 = vrot.slane %v2660, 7
      %v2679 = vmul.f32 %v2665, %v2673
      %v2680 = vmul.f32 %v2665, %v2674
      %v2681 = vmul.f32 %v2665, %v2675
      %v2685 = vrot.slane %v2679, 1
      %v2686 = vrot.slane %v2680, 1
      %v2687 = vrot.slane %v2681, 1
      %v2691 = vadd.f32 %v2667, %v2685
      %v2692 = vadd.f32 %v2668, %v2686
      %v2693 = vadd.f32 %v2669, %v2687
      %v2694 = vmul.f32 %v1480, %v2691
      %v2695 = vmul.f32 %v1481, %v2692
      %v2696 = vmul.f32 %v1482, %v2693
      %v2697 = vadd.f32 %v2642, %v2694
      %v2698 = vadd.f32 %v2643, %v2695
      %v2699 = vadd.f32 %v2644, %v2696
      %2700 = vrot.lane.b32.xlu0 %v1450, 18
      %v2701 = vpop.permute.xlu0 %2700
      %2702 = vrot.lane.b32.xlu0 %v1451, 18
      %v2703 = vpop.permute.xlu0 %2702
      %2704 = vrot.lane.b32.xlu0 %v1452, 18
      %v2705 = vpop.permute.xlu0 %2704
      %v2706 = vsel %vm508, %v2703, %v2705
      %v2707 = vsel %vm508, %v2701, %v2703
      %v2708 = vsel %vm508, %v2705, %v2701
      %2709 = vrot.lane.b32.xlu0 %v1459, 18
      %v2710 = vpop.permute.xlu0 %2709
      %2711 = vrot.lane.b32.xlu0 %v1466, 18
      %v2712 = vpop.permute.xlu0 %2711
      %2713 = vrot.lane.b32.xlu0 %v1473, 18
      %v2714 = vpop.permute.xlu0 %2713
      %v2715 = vsel %vm508, %v2712, %v2714
      %v2716 = vsel %vm508, %v2710, %v2712
      %v2717 = vsel %vm508, %v2714, %v2710
      %2718 = vset.pattern.permute.xlu0 17
      %2719 = vperm.xlu0 %2718, %v1495
      %v2720 = vpop.permute.xlu0 %2719
      %v2722 = vmul.f32 %v2720, %v2708
      %v2723 = vmul.f32 %v2720, %v2707
      %v2724 = vmul.f32 %v2720, %v2706
      %v2728 = vrot.slane %v2717, 7
      %v2729 = vrot.slane %v2716, 7
      %v2730 = vrot.slane %v2715, 7
      %v2734 = vmul.f32 %v2720, %v2728
      %v2735 = vmul.f32 %v2720, %v2729
      %v2736 = vmul.f32 %v2720, %v2730
      %v2740 = vrot.slane %v2734, 1
      %v2741 = vrot.slane %v2735, 1
      %v2742 = vrot.slane %v2736, 1
      %v2746 = vadd.f32 %v2722, %v2740
      %v2747 = vadd.f32 %v2723, %v2741
      %v2748 = vadd.f32 %v2724, %v2742
      %v2752 = vrot.slane %v2746, 7
      %v2753 = vrot.slane %v2747, 7
      %v2754 = vrot.slane %v2748, 7
      %v2758 = vmul.f32 %v1480, %v2752
      %v2759 = vmul.f32 %v1481, %v2753
      %v2760 = vmul.f32 %v1482, %v2754
      %v2764 = vrot.slane %v2758, 1
      %v2765 = vrot.slane %v2759, 1
      %v2766 = vrot.slane %v2760, 1
      %v2770 = vadd.f32 %v2697, %v2764
      %v2771 = vadd.f32 %v2698, %v2765
      %v2772 = vadd.f32 %v2699, %v2766
      %2773 = vrot.lane.b32.xlu0 %v1450, 17
      %v2774 = vpop.permute.xlu0 %2773
      %2775 = vrot.lane.b32.xlu0 %v1451, 17
      %v2776 = vpop.permute.xlu0 %2775
      %2777 = vrot.lane.b32.xlu0 %v1452, 17
      %v2778 = vpop.permute.xlu0 %2777
      %v2779 = vsel %vm545, %v2776, %v2778
      %v2780 = vsel %vm545, %v2774, %v2776
      %v2781 = vsel %vm545, %v2778, %v2774
      %2782 = vrot.lane.b32.xlu0 %v1459, 17
      %v2783 = vpop.permute.xlu0 %2782
      %2784 = vrot.lane.b32.xlu0 %v1466, 17
      %v2785 = vpop.permute.xlu0 %2784
      %2786 = vrot.lane.b32.xlu0 %v1473, 17
      %v2787 = vpop.permute.xlu0 %2786
      %v2788 = vsel %vm545, %v2785, %v2787
      %v2789 = vsel %vm545, %v2783, %v2785
      %v2790 = vsel %vm545, %v2787, %v2783
      %2791 = vset.pattern.permute.xlu0 18
      %2792 = vperm.xlu0 %2791, %v1495
      %v2793 = vpop.permute.xlu0 %2792
      %v2795 = vmul.f32 %v2793, %v2781
      %v2796 = vmul.f32 %v2793, %v2780
      %v2797 = vmul.f32 %v2793, %v2779
      %v2801 = vrot.slane %v2790, 7
      %v2802 = vrot.slane %v2789, 7
      %v2803 = vrot.slane %v2788, 7
      %v2807 = vmul.f32 %v2793, %v2801
      %v2808 = vmul.f32 %v2793, %v2802
      %v2809 = vmul.f32 %v2793, %v2803
      %v2813 = vrot.slane %v2807, 1
      %v2814 = vrot.slane %v2808, 1
      %v2815 = vrot.slane %v2809, 1
      %v2819 = vadd.f32 %v2795, %v2813
      %v2820 = vadd.f32 %v2796, %v2814
      %v2821 = vadd.f32 %v2797, %v2815
      %v2825 = vrot.slane %v2819, 6
      %v2826 = vrot.slane %v2820, 6
      %v2827 = vrot.slane %v2821, 6
      %v2831 = vmul.f32 %v1480, %v2825
      %v2832 = vmul.f32 %v1481, %v2826
      %v2833 = vmul.f32 %v1482, %v2827
      %v2837 = vrot.slane %v2831, 2
      %v2838 = vrot.slane %v2832, 2
      %v2839 = vrot.slane %v2833, 2
      %v2843 = vadd.f32 %v2770, %v2837
      %v2844 = vadd.f32 %v2771, %v2838
      %v2845 = vadd.f32 %v2772, %v2839
      %2846 = vrot.lane.b32.xlu0 %v1450, 16
      %v2847 = vpop.permute.xlu0 %2846
      %2848 = vrot.lane.b32.xlu0 %v1451, 16
      %v2849 = vpop.permute.xlu0 %2848
      %2850 = vrot.lane.b32.xlu0 %v1452, 16
      %v2851 = vpop.permute.xlu0 %2850
      %vm2852 = vcmp.lt.s32.totalorder %v470, 16
      %v2853 = vsel %vm2852, %v2849, %v2851
      %v2854 = vsel %vm2852, %v2847, %v2849
      %v2855 = vsel %vm2852, %v2851, %v2847
      %2856 = vrot.lane.b32.xlu0 %v1459, 16
      %v2857 = vpop.permute.xlu0 %2856
      %2858 = vrot.lane.b32.xlu0 %v1466, 16
      %v2859 = vpop.permute.xlu0 %2858
      %2860 = vrot.lane.b32.xlu0 %v1473, 16
      %v2861 = vpop.permute.xlu0 %2860
      %v2862 = vsel %vm2852, %v2859, %v2861
      %v2863 = vsel %vm2852, %v2857, %v2859
      %v2864 = vsel %vm2852, %v2861, %v2857
      %2865 = vset.pattern.permute.xlu0 19
      %2866 = vperm.xlu0 %2865, %v1495
      %v2867 = vpop.permute.xlu0 %2866
      %v2869 = vmul.f32 %v2867, %v2855
      %v2870 = vmul.f32 %v2867, %v2854
      %v2871 = vmul.f32 %v2867, %v2853
      %v2875 = vrot.slane %v2864, 7
      %v2876 = vrot.slane %v2863, 7
      %v2877 = vrot.slane %v2862, 7
      %v2881 = vmul.f32 %v2867, %v2875
      %v2882 = vmul.f32 %v2867, %v2876
      %v2883 = vmul.f32 %v2867, %v2877
      %v2887 = vrot.slane %v2881, 1
      %v2888 = vrot.slane %v2882, 1
      %v2889 = vrot.slane %v2883, 1
      %v2893 = vadd.f32 %v2869, %v2887
      %v2894 = vadd.f32 %v2870, %v2888
      %v2895 = vadd.f32 %v2871, %v2889
      %v2899 = vrot.slane %v2893, 5
      %v2900 = vrot.slane %v2894, 5
      %v2901 = vrot.slane %v2895, 5
      %v2905 = vmul.f32 %v1480, %v2899
      %v2906 = vmul.f32 %v1481, %v2900
      %v2907 = vmul.f32 %v1482, %v2901
      %v2911 = vrot.slane %v2905, 3
      %v2912 = vrot.slane %v2906, 3
      %v2913 = vrot.slane %v2907, 3
      %v2917 = vadd.f32 %v2843, %v2911
      %v2918 = vadd.f32 %v2844, %v2912
      %v2919 = vadd.f32 %v2845, %v2913
      %2920 = vrot.lane.b32.xlu0 %v1450, 15
      %v2921 = vpop.permute.xlu0 %2920
      %2922 = vrot.lane.b32.xlu0 %v1451, 15
      %v2923 = vpop.permute.xlu0 %2922
      %2924 = vrot.lane.b32.xlu0 %v1452, 15
      %v2925 = vpop.permute.xlu0 %2924
      %vm2926 = vcmp.lt.s32.totalorder %v470, 15
      %v2927 = vsel %vm2926, %v2923, %v2925
      %v2928 = vsel %vm2926, %v2921, %v2923
      %v2929 = vsel %vm2926, %v2925, %v2921
      %2930 = vrot.lane.b32.xlu0 %v1459, 15
      %v2931 = vpop.permute.xlu0 %2930
      %2932 = vrot.lane.b32.xlu0 %v1466, 15
      %v2933 = vpop.permute.xlu0 %2932
      %2934 = vrot.lane.b32.xlu0 %v1473, 15
      %v2935 = vpop.permute.xlu0 %2934
      %v2936 = vsel %vm2926, %v2933, %v2935
      %v2937 = vsel %vm2926, %v2931, %v2933
      %v2938 = vsel %vm2926, %v2935, %v2931
      %2939 = vset.pattern.permute.xlu0 20
      %2940 = vperm.xlu0 %2939, %v1495
      %v2941 = vpop.permute.xlu0 %2940
      %v2943 = vmul.f32 %v2941, %v2929
      %v2944 = vmul.f32 %v2941, %v2928
      %v2945 = vmul.f32 %v2941, %v2927
      %v2949 = vrot.slane %v2938, 7
      %v2950 = vrot.slane %v2937, 7
      %v2951 = vrot.slane %v2936, 7
      %v2955 = vmul.f32 %v2941, %v2949
      %v2956 = vmul.f32 %v2941, %v2950
      %v2957 = vmul.f32 %v2941, %v2951
      %v2961 = vrot.slane %v2955, 1
      %v2962 = vrot.slane %v2956, 1
      %v2963 = vrot.slane %v2957, 1
      %v2967 = vadd.f32 %v2943, %v2961
      %v2968 = vadd.f32 %v2944, %v2962
      %v2969 = vadd.f32 %v2945, %v2963
      %v2973 = vrot.slane %v2967, 4
      %v2974 = vrot.slane %v2968, 4
      %v2975 = vrot.slane %v2969, 4
      %v2979 = vmul.f32 %v1480, %v2973
      %v2980 = vmul.f32 %v1481, %v2974
      %v2981 = vmul.f32 %v1482, %v2975
      %v2985 = vrot.slane %v2979, 4
      %v2986 = vrot.slane %v2980, 4
      %v2987 = vrot.slane %v2981, 4
      %v2991 = vadd.f32 %v2917, %v2985
      %v2992 = vadd.f32 %v2918, %v2986
      %v2993 = vadd.f32 %v2919, %v2987
      %2994 = vrot.lane.b32.xlu0 %v1450, 3
      %v2995 = vpop.permute.xlu0 %2994
      %2996 = vrot.lane.b32.xlu0 %v1451, 3
      %v2997 = vpop.permute.xlu0 %2996
      %2998 = vrot.lane.b32.xlu0 %v1452, 3
      %v2999 = vpop.permute.xlu0 %2998
      %vm3000 = vcmp.lt.s32.totalorder %v470, 3
      %v3001 = vsel %vm3000, %v2997, %v2999
      %v3002 = vsel %vm3000, %v2995, %v2997
      %v3003 = vsel %vm3000, %v2999, %v2995
      %3004 = vrot.lane.b32.xlu0 %v1459, 3
      %v3005 = vpop.permute.xlu0 %3004
      %3006 = vrot.lane.b32.xlu0 %v1466, 3
      %v3007 = vpop.permute.xlu0 %3006
      %3008 = vrot.lane.b32.xlu0 %v1473, 3
      %v3009 = vpop.permute.xlu0 %3008
      %v3010 = vsel %vm3000, %v3007, %v3009
      %v3011 = vsel %vm3000, %v3005, %v3007
      %v3012 = vsel %vm3000, %v3009, %v3005
      %3013 = vset.pattern.permute.xlu0 21
      %3014 = vperm.xlu0 %3013, %v1495
      %v3015 = vpop.permute.xlu0 %3014
      %v3017 = vmul.f32 %v3015, %v3003
      %v3018 = vmul.f32 %v3015, %v3002
      %v3019 = vmul.f32 %v3015, %v3001
      %v3023 = vrot.slane %v3012, 7
      %v3024 = vrot.slane %v3011, 7
      %v3025 = vrot.slane %v3010, 7
      %v3029 = vmul.f32 %v3015, %v3023
      %v3030 = vmul.f32 %v3015, %v3024
      %v3031 = vmul.f32 %v3015, %v3025
      %v3035 = vrot.slane %v3029, 1
      %v3036 = vrot.slane %v3030, 1
      %v3037 = vrot.slane %v3031, 1
      %v3041 = vadd.f32 %v3017, %v3035
      %v3042 = vadd.f32 %v3018, %v3036
      %v3043 = vadd.f32 %v3019, %v3037
      %v3047 = vrot.slane %v3041, 3
      %v3048 = vrot.slane %v3042, 3
      %v3049 = vrot.slane %v3043, 3
      %v3053 = vmul.f32 %v1480, %v3047
      %v3054 = vmul.f32 %v1481, %v3048
      %v3055 = vmul.f32 %v1482, %v3049
      %v3059 = vrot.slane %v3053, 5
      %v3060 = vrot.slane %v3054, 5
      %v3061 = vrot.slane %v3055, 5
      %v3065 = vadd.f32 %v2991, %v3059
      %v3066 = vadd.f32 %v2992, %v3060
      %v3067 = vadd.f32 %v2993, %v3061
      %3068 = vrot.lane.b32.xlu0 %v1450, 2
      %v3069 = vpop.permute.xlu0 %3068
      %3070 = vrot.lane.b32.xlu0 %v1451, 2
      %v3071 = vpop.permute.xlu0 %3070
      %3072 = vrot.lane.b32.xlu0 %v1452, 2
      %v3073 = vpop.permute.xlu0 %3072
      %vm3074 = vcmp.lt.s32.totalorder %v470, 2
      %v3075 = vsel %vm3074, %v3071, %v3073
      %v3076 = vsel %vm3074, %v3069, %v3071
      %v3077 = vsel %vm3074, %v3073, %v3069
      %3078 = vrot.lane.b32.xlu0 %v1459, 2
      %v3079 = vpop.permute.xlu0 %3078
      %3080 = vrot.lane.b32.xlu0 %v1466, 2
      %v3081 = vpop.permute.xlu0 %3080
      %3082 = vrot.lane.b32.xlu0 %v1473, 2
      %v3083 = vpop.permute.xlu0 %3082
      %v3084 = vsel %vm3074, %v3081, %v3083
      %v3085 = vsel %vm3074, %v3079, %v3081
      %v3086 = vsel %vm3074, %v3083, %v3079
      %3087 = vset.pattern.permute.xlu0 22
      %3088 = vperm.xlu0 %3087, %v1495
      %v3089 = vpop.permute.xlu0 %3088
      %v3091 = vmul.f32 %v3089, %v3077
      %v3092 = vmul.f32 %v3089, %v3076
      %v3093 = vmul.f32 %v3089, %v3075
      %v3097 = vrot.slane %v3086, 7
      %v3098 = vrot.slane %v3085, 7
      %v3099 = vrot.slane %v3084, 7
      %v3103 = vmul.f32 %v3089, %v3097
      %v3104 = vmul.f32 %v3089, %v3098
      %v3105 = vmul.f32 %v3089, %v3099
      %v3109 = vrot.slane %v3103, 1
      %v3110 = vrot.slane %v3104, 1
      %v3111 = vrot.slane %v3105, 1
      %v3115 = vadd.f32 %v3091, %v3109
      %v3116 = vadd.f32 %v3092, %v3110
      %v3117 = vadd.f32 %v3093, %v3111
      %v3121 = vrot.slane %v3115, 2
      %v3122 = vrot.slane %v3116, 2
      %v3123 = vrot.slane %v3117, 2
      %v3127 = vmul.f32 %v1480, %v3121
      %v3128 = vmul.f32 %v1481, %v3122
      %v3129 = vmul.f32 %v1482, %v3123
      %v3133 = vrot.slane %v3127, 6
      %v3134 = vrot.slane %v3128, 6
      %v3135 = vrot.slane %v3129, 6
      %v3139 = vadd.f32 %v3065, %v3133
      %v3140 = vadd.f32 %v3066, %v3134
      %v3141 = vadd.f32 %v3067, %v3135
      %3142 = vrot.lane.b32.xlu0 %v1450, 1
      %v3143 = vpop.permute.xlu0 %3142
      %3144 = vrot.lane.b32.xlu0 %v1451, 1
      %v3145 = vpop.permute.xlu0 %3144
      %3146 = vrot.lane.b32.xlu0 %v1452, 1
      %v3147 = vpop.permute.xlu0 %3146
      %v3148 = vsel %vm582, %v3145, %v3147
      %v3149 = vsel %vm582, %v3143, %v3145
      %v3150 = vsel %vm582, %v3147, %v3143
      %3151 = vrot.lane.b32.xlu0 %v1459, 1
      %v3152 = vpop.permute.xlu0 %3151
      %3153 = vrot.lane.b32.xlu0 %v1466, 1
      %v3154 = vpop.permute.xlu0 %3153
      %3155 = vrot.lane.b32.xlu0 %v1473, 1
      %v3156 = vpop.permute.xlu0 %3155
      %v3157 = vsel %vm582, %v3154, %v3156
      %v3158 = vsel %vm582, %v3152, %v3154
      %v3159 = vsel %vm582, %v3156, %v3152
      %3160 = vset.pattern.permute.xlu0 23
      %3161 = vperm.xlu0 %3160, %v1495
      %v3162 = vpop.permute.xlu0 %3161
      %v3164 = vmul.f32 %v3162, %v3150
      %v3165 = vmul.f32 %v3162, %v3149
      %v3166 = vmul.f32 %v3162, %v3148
      %v3170 = vrot.slane %v3159, 7
      %v3171 = vrot.slane %v3158, 7
      %v3172 = vrot.slane %v3157, 7
      %v3176 = vmul.f32 %v3162, %v3170
      %v3177 = vmul.f32 %v3162, %v3171
      %v3178 = vmul.f32 %v3162, %v3172
      %v3182 = vrot.slane %v3176, 1
      %v3183 = vrot.slane %v3177, 1
      %v3184 = vrot.slane %v3178, 1
      %v3188 = vadd.f32 %v3164, %v3182
      %v3189 = vadd.f32 %v3165, %v3183
      %v3190 = vadd.f32 %v3166, %v3184
      %v3194 = vrot.slane %v3188, 1
      %v3195 = vrot.slane %v3189, 1
      %v3196 = vrot.slane %v3190, 1
      %v3200 = vmul.f32 %v1480, %v3194
      %v3201 = vmul.f32 %v1481, %v3195
      %v3202 = vmul.f32 %v1482, %v3196
      %v3206 = vrot.slane %v3200, 7
      %v3207 = vrot.slane %v3201, 7
      %v3208 = vrot.slane %v3202, 7
      %v3212 = vadd.f32 %v3139, %v3206
      %v3213 = vadd.f32 %v3140, %v3207
      %v3214 = vadd.f32 %v3141, %v3208
      %3215 = vset.pattern.permute.xlu0 24
      %3216 = vperm.xlu0 %3215, %v1495
      %v3217 = vpop.permute.xlu0 %3216
      %v3219 = vmul.f32 %v3217, %v1450
      %v3220 = vmul.f32 %v3217, %v1451
      %v3221 = vmul.f32 %v3217, %v1452
      %v3222 = vmul.f32 %v3217, %v1459
      %v3223 = vmul.f32 %v3217, %v1466
      %v3224 = vmul.f32 %v3217, %v1473
      %v3228 = vrot.slane %v3222, 1
      %v3229 = vrot.slane %v3223, 1
      %v3230 = vrot.slane %v3224, 1
      %v3234 = vadd.f32 %v3219, %v3228
      %v3235 = vadd.f32 %v3220, %v3229
      %v3236 = vadd.f32 %v3221, %v3230
      %v3237 = vmul.f32 %v1483, %v3234
      %v3238 = vmul.f32 %v1484, %v3235
      %v3239 = vmul.f32 %v1485, %v3236
      %v3240 = vadd.f32 %v3212, %v3237
      %v3241 = vadd.f32 %v3213, %v3238
      %v3242 = vadd.f32 %v3214, %v3239
      %3243 = vrot.lane.b32.xlu0 %v1450, 127
      %v3244 = vpop.permute.xlu0 %3243
      %3245 = vrot.lane.b32.xlu0 %v1451, 127
      %v3246 = vpop.permute.xlu0 %3245
      %3247 = vrot.lane.b32.xlu0 %v1452, 127
      %v3248 = vpop.permute.xlu0 %3247
      %v3249 = vsel %vm637, %v3246, %v3248
      %v3250 = vsel %vm637, %v3244, %v3246
      %v3251 = vsel %vm637, %v3248, %v3244
      %3252 = vrot.lane.b32.xlu0 %v1459, 127
      %v3253 = vpop.permute.xlu0 %3252
      %3254 = vrot.lane.b32.xlu0 %v1466, 127
      %v3255 = vpop.permute.xlu0 %3254
      %3256 = vrot.lane.b32.xlu0 %v1473, 127
      %v3257 = vpop.permute.xlu0 %3256
      %v3258 = vsel %vm637, %v3255, %v3257
      %v3259 = vsel %vm637, %v3253, %v3255
      %v3260 = vsel %vm637, %v3257, %v3253
      %3261 = vset.pattern.permute.xlu0 25
      %3262 = vperm.xlu0 %3261, %v1495
      %v3263 = vpop.permute.xlu0 %3262
      %v3265 = vmul.f32 %v3263, %v3250
      %v3266 = vmul.f32 %v3263, %v3249
      %v3267 = vmul.f32 %v3263, %v3251
      %v3271 = vrot.slane %v3259, 7
      %v3272 = vrot.slane %v3258, 7
      %v3273 = vrot.slane %v3260, 7
      %v3277 = vmul.f32 %v3263, %v3271
      %v3278 = vmul.f32 %v3263, %v3272
      %v3279 = vmul.f32 %v3263, %v3273
      %v3283 = vrot.slane %v3277, 1
      %v3284 = vrot.slane %v3278, 1
      %v3285 = vrot.slane %v3279, 1
      %v3289 = vadd.f32 %v3265, %v3283
      %v3290 = vadd.f32 %v3266, %v3284
      %v3291 = vadd.f32 %v3267, %v3285
      %v3295 = vrot.slane %v3289, 7
      %v3296 = vrot.slane %v3290, 7
      %v3297 = vrot.slane %v3291, 7
      %v3301 = vmul.f32 %v1483, %v3295
      %v3302 = vmul.f32 %v1484, %v3296
      %v3303 = vmul.f32 %v1485, %v3297
      %v3307 = vrot.slane %v3301, 1
      %v3308 = vrot.slane %v3302, 1
      %v3309 = vrot.slane %v3303, 1
      %v3313 = vadd.f32 %v3240, %v3307
      %v3314 = vadd.f32 %v3241, %v3308
      %v3315 = vadd.f32 %v3242, %v3309
      %3316 = vrot.lane.b32.xlu0 %v1450, 126
      %v3317 = vpop.permute.xlu0 %3316
      %3318 = vrot.lane.b32.xlu0 %v1451, 126
      %v3319 = vpop.permute.xlu0 %3318
      %3320 = vrot.lane.b32.xlu0 %v1452, 126
      %v3321 = vpop.permute.xlu0 %3320
      %vm3322 = vcmp.lt.s32.totalorder %v470, 126
      %v3323 = vsel %vm3322, %v3319, %v3321
      %v3324 = vsel %vm3322, %v3317, %v3319
      %v3325 = vsel %vm3322, %v3321, %v3317
      %3326 = vrot.lane.b32.xlu0 %v1459, 126
      %v3327 = vpop.permute.xlu0 %3326
      %3328 = vrot.lane.b32.xlu0 %v1466, 126
      %v3329 = vpop.permute.xlu0 %3328
      %3330 = vrot.lane.b32.xlu0 %v1473, 126
      %v3331 = vpop.permute.xlu0 %3330
      %v3332 = vsel %vm3322, %v3329, %v3331
      %v3333 = vsel %vm3322, %v3327, %v3329
      %v3334 = vsel %vm3322, %v3331, %v3327
      %3335 = vset.pattern.permute.xlu0 26
      %3336 = vperm.xlu0 %3335, %v1495
      %v3337 = vpop.permute.xlu0 %3336
      %v3339 = vmul.f32 %v3337, %v3324
      %v3340 = vmul.f32 %v3337, %v3323
      %v3341 = vmul.f32 %v3337, %v3325
      %v3345 = vrot.slane %v3333, 7
      %v3346 = vrot.slane %v3332, 7
      %v3347 = vrot.slane %v3334, 7
      %v3351 = vmul.f32 %v3337, %v3345
      %v3352 = vmul.f32 %v3337, %v3346
      %v3353 = vmul.f32 %v3337, %v3347
      %v3357 = vrot.slane %v3351, 1
      %v3358 = vrot.slane %v3352, 1
      %v3359 = vrot.slane %v3353, 1
      %v3363 = vadd.f32 %v3339, %v3357
      %v3364 = vadd.f32 %v3340, %v3358
      %v3365 = vadd.f32 %v3341, %v3359
      %v3369 = vrot.slane %v3363, 6
      %v3370 = vrot.slane %v3364, 6
      %v3371 = vrot.slane %v3365, 6
      %v3375 = vmul.f32 %v1483, %v3369
      %v3376 = vmul.f32 %v1484, %v3370
      %v3377 = vmul.f32 %v1485, %v3371
      %v3381 = vrot.slane %v3375, 2
      %v3382 = vrot.slane %v3376, 2
      %v3383 = vrot.slane %v3377, 2
      %v3387 = vadd.f32 %v3313, %v3381
      %v3388 = vadd.f32 %v3314, %v3382
      %v3389 = vadd.f32 %v3315, %v3383
      %3390 = vrot.lane.b32.xlu0 %v1450, 125
      %v3391 = vpop.permute.xlu0 %3390
      %3392 = vrot.lane.b32.xlu0 %v1451, 125
      %v3393 = vpop.permute.xlu0 %3392
      %3394 = vrot.lane.b32.xlu0 %v1452, 125
      %v3395 = vpop.permute.xlu0 %3394
      %vm3396 = vcmp.lt.s32.totalorder %v470, 125
      %v3397 = vsel %vm3396, %v3393, %v3395
      %v3398 = vsel %vm3396, %v3391, %v3393
      %v3399 = vsel %vm3396, %v3395, %v3391
      %3400 = vrot.lane.b32.xlu0 %v1459, 125
      %v3401 = vpop.permute.xlu0 %3400
      %3402 = vrot.lane.b32.xlu0 %v1466, 125
      %v3403 = vpop.permute.xlu0 %3402
      %3404 = vrot.lane.b32.xlu0 %v1473, 125
      %v3405 = vpop.permute.xlu0 %3404
      %v3406 = vsel %vm3396, %v3403, %v3405
      %v3407 = vsel %vm3396, %v3401, %v3403
      %v3408 = vsel %vm3396, %v3405, %v3401
      %3409 = vset.pattern.permute.xlu0 27
      %3410 = vperm.xlu0 %3409, %v1495
      %v3411 = vpop.permute.xlu0 %3410
      %v3413 = vmul.f32 %v3411, %v3398
      %v3414 = vmul.f32 %v3411, %v3397
      %v3415 = vmul.f32 %v3411, %v3399
      %v3419 = vrot.slane %v3407, 7
      %v3420 = vrot.slane %v3406, 7
      %v3421 = vrot.slane %v3408, 7
      %v3425 = vmul.f32 %v3411, %v3419
      %v3426 = vmul.f32 %v3411, %v3420
      %v3427 = vmul.f32 %v3411, %v3421
      %v3431 = vrot.slane %v3425, 1
      %v3432 = vrot.slane %v3426, 1
      %v3433 = vrot.slane %v3427, 1
      %v3437 = vadd.f32 %v3413, %v3431
      %v3438 = vadd.f32 %v3414, %v3432
      %v3439 = vadd.f32 %v3415, %v3433
      %v3443 = vrot.slane %v3437, 5
      %v3444 = vrot.slane %v3438, 5
      %v3445 = vrot.slane %v3439, 5
      %v3449 = vmul.f32 %v1483, %v3443
      %v3450 = vmul.f32 %v1484, %v3444
      %v3451 = vmul.f32 %v1485, %v3445
      %v3455 = vrot.slane %v3449, 3
      %v3456 = vrot.slane %v3450, 3
      %v3457 = vrot.slane %v3451, 3
      %v3461 = vadd.f32 %v3387, %v3455
      %v3462 = vadd.f32 %v3388, %v3456
      %v3463 = vadd.f32 %v3389, %v3457
      %3464 = vrot.lane.b32.xlu0 %v1450, 113
      %v3465 = vpop.permute.xlu0 %3464
      %3466 = vrot.lane.b32.xlu0 %v1451, 113
      %v3467 = vpop.permute.xlu0 %3466
      %3468 = vrot.lane.b32.xlu0 %v1452, 113
      %v3469 = vpop.permute.xlu0 %3468
      %vm3470 = vcmp.lt.s32.totalorder %v470, 113
      %v3471 = vsel %vm3470, %v3467, %v3469
      %v3472 = vsel %vm3470, %v3465, %v3467
      %v3473 = vsel %vm3470, %v3469, %v3465
      %3474 = vrot.lane.b32.xlu0 %v1459, 113
      %v3475 = vpop.permute.xlu0 %3474
      %3476 = vrot.lane.b32.xlu0 %v1466, 113
      %v3477 = vpop.permute.xlu0 %3476
      %3478 = vrot.lane.b32.xlu0 %v1473, 113
      %v3479 = vpop.permute.xlu0 %3478
      %v3480 = vsel %vm3470, %v3477, %v3479
      %v3481 = vsel %vm3470, %v3475, %v3477
      %v3482 = vsel %vm3470, %v3479, %v3475
      %3483 = vset.pattern.permute.xlu0 28
      %3484 = vperm.xlu0 %3483, %v1495
      %v3485 = vpop.permute.xlu0 %3484
      %v3487 = vmul.f32 %v3485, %v3472
      %v3488 = vmul.f32 %v3485, %v3471
      %v3489 = vmul.f32 %v3485, %v3473
      %v3493 = vrot.slane %v3481, 7
      %v3494 = vrot.slane %v3480, 7
      %v3495 = vrot.slane %v3482, 7
      %v3499 = vmul.f32 %v3485, %v3493
      %v3500 = vmul.f32 %v3485, %v3494
      %v3501 = vmul.f32 %v3485, %v3495
      %v3505 = vrot.slane %v3499, 1
      %v3506 = vrot.slane %v3500, 1
      %v3507 = vrot.slane %v3501, 1
      %v3511 = vadd.f32 %v3487, %v3505
      %v3512 = vadd.f32 %v3488, %v3506
      %v3513 = vadd.f32 %v3489, %v3507
      %v3517 = vrot.slane %v3511, 4
      %v3518 = vrot.slane %v3512, 4
      %v3519 = vrot.slane %v3513, 4
      %v3523 = vmul.f32 %v1483, %v3517
      %v3524 = vmul.f32 %v1484, %v3518
      %v3525 = vmul.f32 %v1485, %v3519
      %v3529 = vrot.slane %v3523, 4
      %v3530 = vrot.slane %v3524, 4
      %v3531 = vrot.slane %v3525, 4
      %v3535 = vadd.f32 %v3461, %v3529
      %v3536 = vadd.f32 %v3462, %v3530
      %v3537 = vadd.f32 %v3463, %v3531
      %3538 = vrot.lane.b32.xlu0 %v1450, 112
      %v3539 = vpop.permute.xlu0 %3538
      %3540 = vrot.lane.b32.xlu0 %v1451, 112
      %v3541 = vpop.permute.xlu0 %3540
      %3542 = vrot.lane.b32.xlu0 %v1452, 112
      %v3543 = vpop.permute.xlu0 %3542
      %vm3544 = vcmp.lt.s32.totalorder %v470, 112
      %v3545 = vsel %vm3544, %v3541, %v3543
      %v3546 = vsel %vm3544, %v3539, %v3541
      %v3547 = vsel %vm3544, %v3543, %v3539
      %3548 = vrot.lane.b32.xlu0 %v1459, 112
      %v3549 = vpop.permute.xlu0 %3548
      %3550 = vrot.lane.b32.xlu0 %v1466, 112
      %v3551 = vpop.permute.xlu0 %3550
      %3552 = vrot.lane.b32.xlu0 %v1473, 112
      %v3553 = vpop.permute.xlu0 %3552
      %v3554 = vsel %vm3544, %v3551, %v3553
      %v3555 = vsel %vm3544, %v3549, %v3551
      %v3556 = vsel %vm3544, %v3553, %v3549
      %3557 = vset.pattern.permute.xlu0 29
      %3558 = vperm.xlu0 %3557, %v1495
      %v3559 = vpop.permute.xlu0 %3558
      %v3561 = vmul.f32 %v3559, %v3546
      %v3562 = vmul.f32 %v3559, %v3545
      %v3563 = vmul.f32 %v3559, %v3547
      %v3567 = vrot.slane %v3555, 7
      %v3568 = vrot.slane %v3554, 7
      %v3569 = vrot.slane %v3556, 7
      %v3573 = vmul.f32 %v3559, %v3567
      %v3574 = vmul.f32 %v3559, %v3568
      %v3575 = vmul.f32 %v3559, %v3569
      %v3579 = vrot.slane %v3573, 1
      %v3580 = vrot.slane %v3574, 1
      %v3581 = vrot.slane %v3575, 1
      %v3585 = vadd.f32 %v3561, %v3579
      %v3586 = vadd.f32 %v3562, %v3580
      %v3587 = vadd.f32 %v3563, %v3581
      %v3591 = vrot.slane %v3585, 3
      %v3592 = vrot.slane %v3586, 3
      %v3593 = vrot.slane %v3587, 3
      %v3597 = vmul.f32 %v1483, %v3591
      %v3598 = vmul.f32 %v1484, %v3592
      %v3599 = vmul.f32 %v1485, %v3593
      %v3603 = vrot.slane %v3597, 5
      %v3604 = vrot.slane %v3598, 5
      %v3605 = vrot.slane %v3599, 5
      %v3609 = vadd.f32 %v3535, %v3603
      %v3610 = vadd.f32 %v3536, %v3604
      %v3611 = vadd.f32 %v3537, %v3605
      %3612 = vrot.lane.b32.xlu0 %v1450, 111
      %v3613 = vpop.permute.xlu0 %3612
      %3614 = vrot.lane.b32.xlu0 %v1451, 111
      %v3615 = vpop.permute.xlu0 %3614
      %3616 = vrot.lane.b32.xlu0 %v1452, 111
      %v3617 = vpop.permute.xlu0 %3616
      %v3618 = vsel %vm674, %v3615, %v3617
      %v3619 = vsel %vm674, %v3613, %v3615
      %v3620 = vsel %vm674, %v3617, %v3613
      %3621 = vrot.lane.b32.xlu0 %v1459, 111
      %v3622 = vpop.permute.xlu0 %3621
      %3623 = vrot.lane.b32.xlu0 %v1466, 111
      %v3624 = vpop.permute.xlu0 %3623
      %3625 = vrot.lane.b32.xlu0 %v1473, 111
      %v3626 = vpop.permute.xlu0 %3625
      %v3627 = vsel %vm674, %v3624, %v3626
      %v3628 = vsel %vm674, %v3622, %v3624
      %v3629 = vsel %vm674, %v3626, %v3622
      %3630 = vset.pattern.permute.xlu0 30
      %3631 = vperm.xlu0 %3630, %v1495
      %v3632 = vpop.permute.xlu0 %3631
      %v3634 = vmul.f32 %v3632, %v3619
      %v3635 = vmul.f32 %v3632, %v3618
      %v3636 = vmul.f32 %v3632, %v3620
      %v3640 = vrot.slane %v3628, 7
      %v3641 = vrot.slane %v3627, 7
      %v3642 = vrot.slane %v3629, 7
      %v3646 = vmul.f32 %v3632, %v3640
      %v3647 = vmul.f32 %v3632, %v3641
      %v3648 = vmul.f32 %v3632, %v3642
      %v3652 = vrot.slane %v3646, 1
      %v3653 = vrot.slane %v3647, 1
      %v3654 = vrot.slane %v3648, 1
      %v3658 = vadd.f32 %v3634, %v3652
      %v3659 = vadd.f32 %v3635, %v3653
      %v3660 = vadd.f32 %v3636, %v3654
      %v3664 = vrot.slane %v3658, 2
      %v3665 = vrot.slane %v3659, 2
      %v3666 = vrot.slane %v3660, 2
      %v3670 = vmul.f32 %v1483, %v3664
      %v3671 = vmul.f32 %v1484, %v3665
      %v3672 = vmul.f32 %v1485, %v3666
      %v3676 = vrot.slane %v3670, 6
      %v3677 = vrot.slane %v3671, 6
      %v3678 = vrot.slane %v3672, 6
      %v3682 = vadd.f32 %v3609, %v3676
      %v3683 = vadd.f32 %v3610, %v3677
      %v3684 = vadd.f32 %v3611, %v3678
      %3685 = vrot.lane.b32.xlu0 %v1450, 110
      %v3686 = vpop.permute.xlu0 %3685
      %3687 = vrot.lane.b32.xlu0 %v1451, 110
      %v3688 = vpop.permute.xlu0 %3687
      %3689 = vrot.lane.b32.xlu0 %v1452, 110
      %v3690 = vpop.permute.xlu0 %3689
      %v3691 = vsel %vm711, %v3688, %v3690
      %v3692 = vsel %vm711, %v3686, %v3688
      %v3693 = vsel %vm711, %v3690, %v3686
      %3694 = vrot.lane.b32.xlu0 %v1459, 110
      %v3695 = vpop.permute.xlu0 %3694
      %3696 = vrot.lane.b32.xlu0 %v1466, 110
      %v3697 = vpop.permute.xlu0 %3696
      %3698 = vrot.lane.b32.xlu0 %v1473, 110
      %v3699 = vpop.permute.xlu0 %3698
      %v3700 = vsel %vm711, %v3697, %v3699
      %v3701 = vsel %vm711, %v3695, %v3697
      %v3702 = vsel %vm711, %v3699, %v3695
      %3703 = vset.pattern.permute.xlu0 31
      %3704 = vperm.xlu0 %3703, %v1495
      %v3705 = vpop.permute.xlu0 %3704
      %v3707 = vmul.f32 %v3705, %v3692
      %v3708 = vmul.f32 %v3705, %v3691
      %v3709 = vmul.f32 %v3705, %v3693
      %v3713 = vrot.slane %v3701, 7
      %v3714 = vrot.slane %v3700, 7
      %v3715 = vrot.slane %v3702, 7
      %v3719 = vmul.f32 %v3705, %v3713
      %v3720 = vmul.f32 %v3705, %v3714
      %v3721 = vmul.f32 %v3705, %v3715
      %v3725 = vrot.slane %v3719, 1
      %v3726 = vrot.slane %v3720, 1
      %v3727 = vrot.slane %v3721, 1
      %v3731 = vadd.f32 %v3707, %v3725
      %v3732 = vadd.f32 %v3708, %v3726
      %v3733 = vadd.f32 %v3709, %v3727
      %v3737 = vrot.slane %v3731, 1
      %v3738 = vrot.slane %v3732, 1
      %v3739 = vrot.slane %v3733, 1
      %v3743 = vmul.f32 %v1483, %v3737
      %v3744 = vmul.f32 %v1484, %v3738
      %v3745 = vmul.f32 %v1485, %v3739
      %v3749 = vrot.slane %v3743, 7
      %v3750 = vrot.slane %v3744, 7
      %v3751 = vrot.slane %v3745, 7
      %v3755 = vadd.f32 %v3682, %v3749
      %v3756 = vadd.f32 %v3683, %v3750
      %v3757 = vadd.f32 %v3684, %v3751
      %3758 = vrot.lane.b32.xlu0 %v1450, 109
      %v3759 = vpop.permute.xlu0 %3758
      %3760 = vrot.lane.b32.xlu0 %v1451, 109
      %v3761 = vpop.permute.xlu0 %3760
      %3762 = vrot.lane.b32.xlu0 %v1452, 109
      %v3763 = vpop.permute.xlu0 %3762
      %v3764 = vsel %vm748, %v3761, %v3763
      %v3765 = vsel %vm748, %v3759, %v3761
      %v3766 = vsel %vm748, %v3763, %v3759
      %3767 = vrot.lane.b32.xlu0 %v1459, 109
      %v3768 = vpop.permute.xlu0 %3767
      %3769 = vrot.lane.b32.xlu0 %v1466, 109
      %v3770 = vpop.permute.xlu0 %3769
      %3771 = vrot.lane.b32.xlu0 %v1473, 109
      %v3772 = vpop.permute.xlu0 %3771
      %v3773 = vsel %vm748, %v3770, %v3772
      %v3774 = vsel %vm748, %v3768, %v3770
      %v3775 = vsel %vm748, %v3772, %v3768
      %3776 = vset.pattern.permute.xlu0 32
      %3777 = vperm.xlu0 %3776, %v1495
      %v3778 = vpop.permute.xlu0 %3777
      %v3780 = vmul.f32 %v3778, %v3765
      %v3781 = vmul.f32 %v3778, %v3764
      %v3782 = vmul.f32 %v3778, %v3766
      %v3786 = vrot.slane %v3774, 7
      %v3787 = vrot.slane %v3773, 7
      %v3788 = vrot.slane %v3775, 7
      %v3792 = vmul.f32 %v3778, %v3786
      %v3793 = vmul.f32 %v3778, %v3787
      %v3794 = vmul.f32 %v3778, %v3788
      %v3798 = vrot.slane %v3792, 1
      %v3799 = vrot.slane %v3793, 1
      %v3800 = vrot.slane %v3794, 1
      %v3804 = vadd.f32 %v3780, %v3798
      %v3805 = vadd.f32 %v3781, %v3799
      %v3806 = vadd.f32 %v3782, %v3800
      %v3807 = vmul.f32 %v1486, %v3804
      %v3808 = vmul.f32 %v1487, %v3805
      %v3809 = vmul.f32 %v1488, %v3806
      %v3810 = vadd.f32 %v3755, %v3807
      %v3811 = vadd.f32 %v3756, %v3808
      %v3812 = vadd.f32 %v3757, %v3809
      %3813 = vrot.lane.b32.xlu0 %v1450, 108
      %v3814 = vpop.permute.xlu0 %3813
      %3815 = vrot.lane.b32.xlu0 %v1451, 108
      %v3816 = vpop.permute.xlu0 %3815
      %3817 = vrot.lane.b32.xlu0 %v1452, 108
      %v3818 = vpop.permute.xlu0 %3817
      %vm3819 = vcmp.lt.s32.totalorder %v470, 108
      %v3820 = vsel %vm3819, %v3816, %v3818
      %v3821 = vsel %vm3819, %v3814, %v3816
      %v3822 = vsel %vm3819, %v3818, %v3814
      %3823 = vrot.lane.b32.xlu0 %v1459, 108
      %v3824 = vpop.permute.xlu0 %3823
      %3825 = vrot.lane.b32.xlu0 %v1466, 108
      %v3826 = vpop.permute.xlu0 %3825
      %3827 = vrot.lane.b32.xlu0 %v1473, 108
      %v3828 = vpop.permute.xlu0 %3827
      %v3829 = vsel %vm3819, %v3826, %v3828
      %v3830 = vsel %vm3819, %v3824, %v3826
      %v3831 = vsel %vm3819, %v3828, %v3824
      %3832 = vset.pattern.permute.xlu0 33
      %3833 = vperm.xlu0 %3832, %v1495
      %v3834 = vpop.permute.xlu0 %3833
      %v3836 = vmul.f32 %v3834, %v3821
      %v3837 = vmul.f32 %v3834, %v3820
      %v3838 = vmul.f32 %v3834, %v3822
      %v3842 = vrot.slane %v3830, 7
      %v3843 = vrot.slane %v3829, 7
      %v3844 = vrot.slane %v3831, 7
      %v3848 = vmul.f32 %v3834, %v3842
      %v3849 = vmul.f32 %v3834, %v3843
      %v3850 = vmul.f32 %v3834, %v3844
      %v3854 = vrot.slane %v3848, 1
      %v3855 = vrot.slane %v3849, 1
      %v3856 = vrot.slane %v3850, 1
      %v3860 = vadd.f32 %v3836, %v3854
      %v3861 = vadd.f32 %v3837, %v3855
      %v3862 = vadd.f32 %v3838, %v3856
      %v3866 = vrot.slane %v3860, 7
      %v3867 = vrot.slane %v3861, 7
      %v3868 = vrot.slane %v3862, 7
      %v3872 = vmul.f32 %v1486, %v3866
      %v3873 = vmul.f32 %v1487, %v3867
      %v3874 = vmul.f32 %v1488, %v3868
      %v3878 = vrot.slane %v3872, 1
      %v3879 = vrot.slane %v3873, 1
      %v3880 = vrot.slane %v3874, 1
      %v3884 = vadd.f32 %v3810, %v3878
      %v3885 = vadd.f32 %v3811, %v3879
      %v3886 = vadd.f32 %v3812, %v3880
      %3887 = vrot.lane.b32.xlu0 %v1450, 107
      %v3888 = vpop.permute.xlu0 %3887
      %3889 = vrot.lane.b32.xlu0 %v1451, 107
      %v3890 = vpop.permute.xlu0 %3889
      %3891 = vrot.lane.b32.xlu0 %v1452, 107
      %v3892 = vpop.permute.xlu0 %3891
      %vm3893 = vcmp.lt.s32.totalorder %v470, 107
      %v3894 = vsel %vm3893, %v3890, %v3892
      %v3895 = vsel %vm3893, %v3888, %v3890
      %v3896 = vsel %vm3893, %v3892, %v3888
      %3897 = vrot.lane.b32.xlu0 %v1459, 107
      %v3898 = vpop.permute.xlu0 %3897
      %3899 = vrot.lane.b32.xlu0 %v1466, 107
      %v3900 = vpop.permute.xlu0 %3899
      %3901 = vrot.lane.b32.xlu0 %v1473, 107
      %v3902 = vpop.permute.xlu0 %3901
      %v3903 = vsel %vm3893, %v3900, %v3902
      %v3904 = vsel %vm3893, %v3898, %v3900
      %v3905 = vsel %vm3893, %v3902, %v3898
      %3906 = vset.pattern.permute.xlu0 34
      %3907 = vperm.xlu0 %3906, %v1495
      %v3908 = vpop.permute.xlu0 %3907
      %v3910 = vmul.f32 %v3908, %v3895
      %v3911 = vmul.f32 %v3908, %v3894
      %v3912 = vmul.f32 %v3908, %v3896
      %v3916 = vrot.slane %v3904, 7
      %v3917 = vrot.slane %v3903, 7
      %v3918 = vrot.slane %v3905, 7
      %v3922 = vmul.f32 %v3908, %v3916
      %v3923 = vmul.f32 %v3908, %v3917
      %v3924 = vmul.f32 %v3908, %v3918
      %v3928 = vrot.slane %v3922, 1
      %v3929 = vrot.slane %v3923, 1
      %v3930 = vrot.slane %v3924, 1
      %v3934 = vadd.f32 %v3910, %v3928
      %v3935 = vadd.f32 %v3911, %v3929
      %v3936 = vadd.f32 %v3912, %v3930
      %v3940 = vrot.slane %v3934, 6
      %v3941 = vrot.slane %v3935, 6
      %v3942 = vrot.slane %v3936, 6
      %v3946 = vmul.f32 %v1486, %v3940
      %v3947 = vmul.f32 %v1487, %v3941
      %v3948 = vmul.f32 %v1488, %v3942
      %v3952 = vrot.slane %v3946, 2
      %v3953 = vrot.slane %v3947, 2
      %v3954 = vrot.slane %v3948, 2
      %v3958 = vadd.f32 %v3884, %v3952
      %v3959 = vadd.f32 %v3885, %v3953
      %v3960 = vadd.f32 %v3886, %v3954
      %3961 = vrot.lane.b32.xlu0 %v1450, 95
      %v3962 = vpop.permute.xlu0 %3961
      %3963 = vrot.lane.b32.xlu0 %v1451, 95
      %v3964 = vpop.permute.xlu0 %3963
      %3965 = vrot.lane.b32.xlu0 %v1452, 95
      %v3966 = vpop.permute.xlu0 %3965
      %vm3967 = vcmp.lt.s32.totalorder %v470, 95
      %v3968 = vsel %vm3967, %v3964, %v3966
      %v3969 = vsel %vm3967, %v3962, %v3964
      %v3970 = vsel %vm3967, %v3966, %v3962
      %3971 = vrot.lane.b32.xlu0 %v1459, 95
      %v3972 = vpop.permute.xlu0 %3971
      %3973 = vrot.lane.b32.xlu0 %v1466, 95
      %v3974 = vpop.permute.xlu0 %3973
      %3975 = vrot.lane.b32.xlu0 %v1473, 95
      %v3976 = vpop.permute.xlu0 %3975
      %v3977 = vsel %vm3967, %v3974, %v3976
      %v3978 = vsel %vm3967, %v3972, %v3974
      %v3979 = vsel %vm3967, %v3976, %v3972
      %3980 = vset.pattern.permute.xlu0 35
      %3981 = vperm.xlu0 %3980, %v1495
      %v3982 = vpop.permute.xlu0 %3981
      %v3984 = vmul.f32 %v3982, %v3969
      %v3985 = vmul.f32 %v3982, %v3968
      %v3986 = vmul.f32 %v3982, %v3970
      %v3990 = vrot.slane %v3978, 7
      %v3991 = vrot.slane %v3977, 7
      %v3992 = vrot.slane %v3979, 7
      %v3996 = vmul.f32 %v3982, %v3990
      %v3997 = vmul.f32 %v3982, %v3991
      %v3998 = vmul.f32 %v3982, %v3992
      %v4002 = vrot.slane %v3996, 1
      %v4003 = vrot.slane %v3997, 1
      %v4004 = vrot.slane %v3998, 1
      %v4008 = vadd.f32 %v3984, %v4002
      %v4009 = vadd.f32 %v3985, %v4003
      %v4010 = vadd.f32 %v3986, %v4004
      %v4014 = vrot.slane %v4008, 5
      %v4015 = vrot.slane %v4009, 5
      %v4016 = vrot.slane %v4010, 5
      %v4020 = vmul.f32 %v1486, %v4014
      %v4021 = vmul.f32 %v1487, %v4015
      %v4022 = vmul.f32 %v1488, %v4016
      %v4026 = vrot.slane %v4020, 3
      %v4027 = vrot.slane %v4021, 3
      %v4028 = vrot.slane %v4022, 3
      %v4032 = vadd.f32 %v3958, %v4026
      %v4033 = vadd.f32 %v3959, %v4027
      %v4034 = vadd.f32 %v3960, %v4028
      %4035 = vrot.lane.b32.xlu0 %v1450, 94
      %v4036 = vpop.permute.xlu0 %4035
      %4037 = vrot.lane.b32.xlu0 %v1451, 94
      %v4038 = vpop.permute.xlu0 %4037
      %4039 = vrot.lane.b32.xlu0 %v1452, 94
      %v4040 = vpop.permute.xlu0 %4039
      %vm4041 = vcmp.lt.s32.totalorder %v470, 94
      %v4042 = vsel %vm4041, %v4038, %v4040
      %v4043 = vsel %vm4041, %v4036, %v4038
      %v4044 = vsel %vm4041, %v4040, %v4036
      %4045 = vrot.lane.b32.xlu0 %v1459, 94
      %v4046 = vpop.permute.xlu0 %4045
      %4047 = vrot.lane.b32.xlu0 %v1466, 94
      %v4048 = vpop.permute.xlu0 %4047
      %4049 = vrot.lane.b32.xlu0 %v1473, 94
      %v4050 = vpop.permute.xlu0 %4049
      %v4051 = vsel %vm4041, %v4048, %v4050
      %v4052 = vsel %vm4041, %v4046, %v4048
      %v4053 = vsel %vm4041, %v4050, %v4046
      %4054 = vset.pattern.permute.xlu0 36
      %4055 = vperm.xlu0 %4054, %v1495
      %v4056 = vpop.permute.xlu0 %4055
      %v4058 = vmul.f32 %v4056, %v4043
      %v4059 = vmul.f32 %v4056, %v4042
      %v4060 = vmul.f32 %v4056, %v4044
      %v4064 = vrot.slane %v4052, 7
      %v4065 = vrot.slane %v4051, 7
      %v4066 = vrot.slane %v4053, 7
      %v4070 = vmul.f32 %v4056, %v4064
      %v4071 = vmul.f32 %v4056, %v4065
      %v4072 = vmul.f32 %v4056, %v4066
      %v4076 = vrot.slane %v4070, 1
      %v4077 = vrot.slane %v4071, 1
      %v4078 = vrot.slane %v4072, 1
      %v4082 = vadd.f32 %v4058, %v4076
      %v4083 = vadd.f32 %v4059, %v4077
      %v4084 = vadd.f32 %v4060, %v4078
      %v4088 = vrot.slane %v4082, 4
      %v4089 = vrot.slane %v4083, 4
      %v4090 = vrot.slane %v4084, 4
      %v4094 = vmul.f32 %v1486, %v4088
      %v4095 = vmul.f32 %v1487, %v4089
      %v4096 = vmul.f32 %v1488, %v4090
      %v4100 = vrot.slane %v4094, 4
      %v4101 = vrot.slane %v4095, 4
      %v4102 = vrot.slane %v4096, 4
      %v4106 = vadd.f32 %v4032, %v4100
      %v4107 = vadd.f32 %v4033, %v4101
      %v4108 = vadd.f32 %v4034, %v4102
      %4109 = vrot.lane.b32.xlu0 %v1450, 93
      %v4110 = vpop.permute.xlu0 %4109
      %4111 = vrot.lane.b32.xlu0 %v1451, 93
      %v4112 = vpop.permute.xlu0 %4111
      %4113 = vrot.lane.b32.xlu0 %v1452, 93
      %v4114 = vpop.permute.xlu0 %4113
      %vm4115 = vcmp.lt.s32.totalorder %v470, 93
      %v4116 = vsel %vm4115, %v4112, %v4114
      %v4117 = vsel %vm4115, %v4110, %v4112
      %v4118 = vsel %vm4115, %v4114, %v4110
      %4119 = vrot.lane.b32.xlu0 %v1459, 93
      %v4120 = vpop.permute.xlu0 %4119
      %4121 = vrot.lane.b32.xlu0 %v1466, 93
      %v4122 = vpop.permute.xlu0 %4121
      %4123 = vrot.lane.b32.xlu0 %v1473, 93
      %v4124 = vpop.permute.xlu0 %4123
      %v4125 = vsel %vm4115, %v4122, %v4124
      %v4126 = vsel %vm4115, %v4120, %v4122
      %v4127 = vsel %vm4115, %v4124, %v4120
      %4128 = vset.pattern.permute.xlu0 37
      %4129 = vperm.xlu0 %4128, %v1495
      %v4130 = vpop.permute.xlu0 %4129
      %v4132 = vmul.f32 %v4130, %v4117
      %v4133 = vmul.f32 %v4130, %v4116
      %v4134 = vmul.f32 %v4130, %v4118
      %v4138 = vrot.slane %v4126, 7
      %v4139 = vrot.slane %v4125, 7
      %v4140 = vrot.slane %v4127, 7
      %v4144 = vmul.f32 %v4130, %v4138
      %v4145 = vmul.f32 %v4130, %v4139
      %v4146 = vmul.f32 %v4130, %v4140
      %v4150 = vrot.slane %v4144, 1
      %v4151 = vrot.slane %v4145, 1
      %v4152 = vrot.slane %v4146, 1
      %v4156 = vadd.f32 %v4132, %v4150
      %v4157 = vadd.f32 %v4133, %v4151
      %v4158 = vadd.f32 %v4134, %v4152
      %v4162 = vrot.slane %v4156, 3
      %v4163 = vrot.slane %v4157, 3
      %v4164 = vrot.slane %v4158, 3
      %v4168 = vmul.f32 %v1486, %v4162
      %v4169 = vmul.f32 %v1487, %v4163
      %v4170 = vmul.f32 %v1488, %v4164
      %v4174 = vrot.slane %v4168, 5
      %v4175 = vrot.slane %v4169, 5
      %v4176 = vrot.slane %v4170, 5
      %v4180 = vadd.f32 %v4106, %v4174
      %v4181 = vadd.f32 %v4107, %v4175
      %v4182 = vadd.f32 %v4108, %v4176
      %4183 = vrot.lane.b32.xlu0 %v1450, 92
      %v4184 = vpop.permute.xlu0 %4183
      %4185 = vrot.lane.b32.xlu0 %v1451, 92
      %v4186 = vpop.permute.xlu0 %4185
      %4187 = vrot.lane.b32.xlu0 %v1452, 92
      %v4188 = vpop.permute.xlu0 %4187
      %vm4189 = vcmp.lt.s32.totalorder %v470, 92
      %v4190 = vsel %vm4189, %v4186, %v4188
      %v4191 = vsel %vm4189, %v4184, %v4186
      %v4192 = vsel %vm4189, %v4188, %v4184
      %4193 = vrot.lane.b32.xlu0 %v1459, 92
      %v4194 = vpop.permute.xlu0 %4193
      %4195 = vrot.lane.b32.xlu0 %v1466, 92
      %v4196 = vpop.permute.xlu0 %4195
      %4197 = vrot.lane.b32.xlu0 %v1473, 92
      %v4198 = vpop.permute.xlu0 %4197
      %v4199 = vsel %vm4189, %v4196, %v4198
      %v4200 = vsel %vm4189, %v4194, %v4196
      %v4201 = vsel %vm4189, %v4198, %v4194
      %4202 = vset.pattern.permute.xlu0 38
      %4203 = vperm.xlu0 %4202, %v1495
      %v4204 = vpop.permute.xlu0 %4203
      %v4206 = vmul.f32 %v4204, %v4191
      %v4207 = vmul.f32 %v4204, %v4190
      %v4208 = vmul.f32 %v4204, %v4192
      %v4212 = vrot.slane %v4200, 7
      %v4213 = vrot.slane %v4199, 7
      %v4214 = vrot.slane %v4201, 7
      %v4218 = vmul.f32 %v4204, %v4212
      %v4219 = vmul.f32 %v4204, %v4213
      %v4220 = vmul.f32 %v4204, %v4214
      %v4224 = vrot.slane %v4218, 1
      %v4225 = vrot.slane %v4219, 1
      %v4226 = vrot.slane %v4220, 1
      %v4230 = vadd.f32 %v4206, %v4224
      %v4231 = vadd.f32 %v4207, %v4225
      %v4232 = vadd.f32 %v4208, %v4226
      %v4236 = vrot.slane %v4230, 2
      %v4237 = vrot.slane %v4231, 2
      %v4238 = vrot.slane %v4232, 2
      %v4242 = vmul.f32 %v1486, %v4236
      %v4243 = vmul.f32 %v1487, %v4237
      %v4244 = vmul.f32 %v1488, %v4238
      %v4248 = vrot.slane %v4242, 6
      %v4249 = vrot.slane %v4243, 6
      %v4250 = vrot.slane %v4244, 6
      %v4254 = vadd.f32 %v4180, %v4248
      %v4255 = vadd.f32 %v4181, %v4249
      %v4256 = vadd.f32 %v4182, %v4250
      %4257 = vrot.lane.b32.xlu0 %v1450, 91
      %v4258 = vpop.permute.xlu0 %4257
      %4259 = vrot.lane.b32.xlu0 %v1451, 91
      %v4260 = vpop.permute.xlu0 %4259
      %4261 = vrot.lane.b32.xlu0 %v1452, 91
      %v4262 = vpop.permute.xlu0 %4261
      %vm4263 = vcmp.lt.s32.totalorder %v470, 91
      %v4264 = vsel %vm4263, %v4260, %v4262
      %v4265 = vsel %vm4263, %v4258, %v4260
      %v4266 = vsel %vm4263, %v4262, %v4258
      %4267 = vrot.lane.b32.xlu0 %v1459, 91
      %v4268 = vpop.permute.xlu0 %4267
      %4269 = vrot.lane.b32.xlu0 %v1466, 91
      %v4270 = vpop.permute.xlu0 %4269
      %4271 = vrot.lane.b32.xlu0 %v1473, 91
      %v4272 = vpop.permute.xlu0 %4271
      %v4273 = vsel %vm4263, %v4270, %v4272
      %v4274 = vsel %vm4263, %v4268, %v4270
      %v4275 = vsel %vm4263, %v4272, %v4268
      %4276 = vset.pattern.permute.xlu0 39
      %4277 = vperm.xlu0 %4276, %v1495
      %v4278 = vpop.permute.xlu0 %4277
      %v4280 = vmul.f32 %v4278, %v4265
      %v4281 = vmul.f32 %v4278, %v4264
      %v4282 = vmul.f32 %v4278, %v4266
      %v4286 = vrot.slane %v4274, 7
      %v4287 = vrot.slane %v4273, 7
      %v4288 = vrot.slane %v4275, 7
      %v4292 = vmul.f32 %v4278, %v4286
      %v4293 = vmul.f32 %v4278, %v4287
      %v4294 = vmul.f32 %v4278, %v4288
      %v4298 = vrot.slane %v4292, 1
      %v4299 = vrot.slane %v4293, 1
      %v4300 = vrot.slane %v4294, 1
      %v4304 = vadd.f32 %v4280, %v4298
      %v4305 = vadd.f32 %v4281, %v4299
      %v4306 = vadd.f32 %v4282, %v4300
      %v4310 = vrot.slane %v4304, 1
      %v4311 = vrot.slane %v4305, 1
      %v4312 = vrot.slane %v4306, 1
      %v4316 = vmul.f32 %v1486, %v4310
      %v4317 = vmul.f32 %v1487, %v4311
      %v4318 = vmul.f32 %v1488, %v4312
      %v4322 = vrot.slane %v4316, 7
      %v4323 = vrot.slane %v4317, 7
      %v4324 = vrot.slane %v4318, 7
      %v4328 = vadd.f32 %v4254, %v4322
      %v4329 = vadd.f32 %v4255, %v4323
      %v4330 = vadd.f32 %v4256, %v4324
      %4331 = vrot.lane.b32.xlu0 %v1450, 90
      %v4332 = vpop.permute.xlu0 %4331
      %4333 = vrot.lane.b32.xlu0 %v1451, 90
      %v4334 = vpop.permute.xlu0 %4333
      %4335 = vrot.lane.b32.xlu0 %v1452, 90
      %v4336 = vpop.permute.xlu0 %4335
      %vm4337 = vcmp.lt.s32.totalorder %v470, 90
      %v4338 = vsel %vm4337, %v4334, %v4336
      %v4339 = vsel %vm4337, %v4332, %v4334
      %v4340 = vsel %vm4337, %v4336, %v4332
      %4341 = vrot.lane.b32.xlu0 %v1459, 90
      %v4342 = vpop.permute.xlu0 %4341
      %4343 = vrot.lane.b32.xlu0 %v1466, 90
      %v4344 = vpop.permute.xlu0 %4343
      %4345 = vrot.lane.b32.xlu0 %v1473, 90
      %v4346 = vpop.permute.xlu0 %4345
      %v4347 = vsel %vm4337, %v4344, %v4346
      %v4348 = vsel %vm4337, %v4342, %v4344
      %v4349 = vsel %vm4337, %v4346, %v4342
      %4350 = vset.pattern.permute.xlu0 40
      %4351 = vperm.xlu0 %4350, %v1495
      %v4352 = vpop.permute.xlu0 %4351
      %v4354 = vmul.f32 %v4352, %v4339
      %v4355 = vmul.f32 %v4352, %v4338
      %v4356 = vmul.f32 %v4352, %v4340
      %v4360 = vrot.slane %v4348, 7
      %v4361 = vrot.slane %v4347, 7
      %v4362 = vrot.slane %v4349, 7
      %v4366 = vmul.f32 %v4352, %v4360
      %v4367 = vmul.f32 %v4352, %v4361
      %v4368 = vmul.f32 %v4352, %v4362
      %v4372 = vrot.slane %v4366, 1
      %v4373 = vrot.slane %v4367, 1
      %v4374 = vrot.slane %v4368, 1
      %v4378 = vadd.f32 %v4354, %v4372
      %v4379 = vadd.f32 %v4355, %v4373
      %v4380 = vadd.f32 %v4356, %v4374
      %v4381 = vmul.f32 %v1489, %v4378
      %v4382 = vmul.f32 %v1490, %v4379
      %v4383 = vmul.f32 %v1491, %v4380
      %v4384 = vadd.f32 %v4328, %v4381
      %v4385 = vadd.f32 %v4329, %v4382
      %v4386 = vadd.f32 %v4330, %v4383
      %4387 = vrot.lane.b32.xlu0 %v1450, 89
      %v4388 = vpop.permute.xlu0 %4387
      %4389 = vrot.lane.b32.xlu0 %v1451, 89
      %v4390 = vpop.permute.xlu0 %4389
      %4391 = vrot.lane.b32.xlu0 %v1452, 89
      %v4392 = vpop.permute.xlu0 %4391
      %vm4393 = vcmp.lt.s32.totalorder %v470, 89
      %v4394 = vsel %vm4393, %v4390, %v4392
      %v4395 = vsel %vm4393, %v4388, %v4390
      %v4396 = vsel %vm4393, %v4392, %v4388
      %4397 = vrot.lane.b32.xlu0 %v1459, 89
      %v4398 = vpop.permute.xlu0 %4397
      %4399 = vrot.lane.b32.xlu0 %v1466, 89
      %v4400 = vpop.permute.xlu0 %4399
      %4401 = vrot.lane.b32.xlu0 %v1473, 89
      %v4402 = vpop.permute.xlu0 %4401
      %v4403 = vsel %vm4393, %v4400, %v4402
      %v4404 = vsel %vm4393, %v4398, %v4400
      %v4405 = vsel %vm4393, %v4402, %v4398
      %4406 = vset.pattern.permute.xlu0 41
      %4407 = vperm.xlu0 %4406, %v1495
      %v4408 = vpop.permute.xlu0 %4407
      %v4410 = vmul.f32 %v4408, %v4395
      %v4411 = vmul.f32 %v4408, %v4394
      %v4412 = vmul.f32 %v4408, %v4396
      %v4416 = vrot.slane %v4404, 7
      %v4417 = vrot.slane %v4403, 7
      %v4418 = vrot.slane %v4405, 7
      %v4422 = vmul.f32 %v4408, %v4416
      %v4423 = vmul.f32 %v4408, %v4417
      %v4424 = vmul.f32 %v4408, %v4418
      %v4428 = vrot.slane %v4422, 1
      %v4429 = vrot.slane %v4423, 1
      %v4430 = vrot.slane %v4424, 1
      %v4434 = vadd.f32 %v4410, %v4428
      %v4435 = vadd.f32 %v4411, %v4429
      %v4436 = vadd.f32 %v4412, %v4430
      %v4440 = vrot.slane %v4434, 7
      %v4441 = vrot.slane %v4435, 7
      %v4442 = vrot.slane %v4436, 7
      %v4446 = vmul.f32 %v1489, %v4440
      %v4447 = vmul.f32 %v1490, %v4441
      %v4448 = vmul.f32 %v1491, %v4442
      %v4452 = vrot.slane %v4446, 1
      %v4453 = vrot.slane %v4447, 1
      %v4454 = vrot.slane %v4448, 1
      %v4458 = vadd.f32 %v4384, %v4452
      %v4459 = vadd.f32 %v4385, %v4453
      %v4460 = vadd.f32 %v4386, %v4454
      %4461 = vrot.lane.b32.xlu0 %v1450, 77
      %v4462 = vpop.permute.xlu0 %4461
      %4463 = vrot.lane.b32.xlu0 %v1451, 77
      %v4464 = vpop.permute.xlu0 %4463
      %4465 = vrot.lane.b32.xlu0 %v1452, 77
      %v4466 = vpop.permute.xlu0 %4465
      %vm4467 = vcmp.lt.s32.totalorder %v470, 77
      %v4468 = vsel %vm4467, %v4464, %v4466
      %v4469 = vsel %vm4467, %v4462, %v4464
      %v4470 = vsel %vm4467, %v4466, %v4462
      %4471 = vrot.lane.b32.xlu0 %v1459, 77
      %v4472 = vpop.permute.xlu0 %4471
      %4473 = vrot.lane.b32.xlu0 %v1466, 77
      %v4474 = vpop.permute.xlu0 %4473
      %4475 = vrot.lane.b32.xlu0 %v1473, 77
      %v4476 = vpop.permute.xlu0 %4475
      %v4477 = vsel %vm4467, %v4474, %v4476
      %v4478 = vsel %vm4467, %v4472, %v4474
      %v4479 = vsel %vm4467, %v4476, %v4472
      %4480 = vset.pattern.permute.xlu0 42
      %4481 = vperm.xlu0 %4480, %v1495
      %v4482 = vpop.permute.xlu0 %4481
      %v4484 = vmul.f32 %v4482, %v4469
      %v4485 = vmul.f32 %v4482, %v4468
      %v4486 = vmul.f32 %v4482, %v4470
      %v4490 = vrot.slane %v4478, 7
      %v4491 = vrot.slane %v4477, 7
      %v4492 = vrot.slane %v4479, 7
      %v4496 = vmul.f32 %v4482, %v4490
      %v4497 = vmul.f32 %v4482, %v4491
      %v4498 = vmul.f32 %v4482, %v4492
      %v4502 = vrot.slane %v4496, 1
      %v4503 = vrot.slane %v4497, 1
      %v4504 = vrot.slane %v4498, 1
      %v4508 = vadd.f32 %v4484, %v4502
      %v4509 = vadd.f32 %v4485, %v4503
      %v4510 = vadd.f32 %v4486, %v4504
      %v4514 = vrot.slane %v4508, 6
      %v4515 = vrot.slane %v4509, 6
      %v4516 = vrot.slane %v4510, 6
      %v4520 = vmul.f32 %v1489, %v4514
      %v4521 = vmul.f32 %v1490, %v4515
      %v4522 = vmul.f32 %v1491, %v4516
      %v4526 = vrot.slane %v4520, 2
      %v4527 = vrot.slane %v4521, 2
      %v4528 = vrot.slane %v4522, 2
      %v4532 = vadd.f32 %v4458, %v4526
      %v4533 = vadd.f32 %v4459, %v4527
      %v4534 = vadd.f32 %v4460, %v4528
      %4535 = vrot.lane.b32.xlu0 %v1450, 76
      %v4536 = vpop.permute.xlu0 %4535
      %4537 = vrot.lane.b32.xlu0 %v1451, 76
      %v4538 = vpop.permute.xlu0 %4537
      %4539 = vrot.lane.b32.xlu0 %v1452, 76
      %v4540 = vpop.permute.xlu0 %4539
      %vm4541 = vcmp.lt.s32.totalorder %v470, 76
      %v4542 = vsel %vm4541, %v4538, %v4540
      %v4543 = vsel %vm4541, %v4536, %v4538
      %v4544 = vsel %vm4541, %v4540, %v4536
      %4545 = vrot.lane.b32.xlu0 %v1459, 76
      %v4546 = vpop.permute.xlu0 %4545
      %4547 = vrot.lane.b32.xlu0 %v1466, 76
      %v4548 = vpop.permute.xlu0 %4547
      %4549 = vrot.lane.b32.xlu0 %v1473, 76
      %v4550 = vpop.permute.xlu0 %4549
      %v4551 = vsel %vm4541, %v4548, %v4550
      %v4552 = vsel %vm4541, %v4546, %v4548
      %v4553 = vsel %vm4541, %v4550, %v4546
      %4554 = vset.pattern.permute.xlu0 43
      %4555 = vperm.xlu0 %4554, %v1495
      %v4556 = vpop.permute.xlu0 %4555
      %v4558 = vmul.f32 %v4556, %v4543
      %v4559 = vmul.f32 %v4556, %v4542
      %v4560 = vmul.f32 %v4556, %v4544
      %v4564 = vrot.slane %v4552, 7
      %v4565 = vrot.slane %v4551, 7
      %v4566 = vrot.slane %v4553, 7
      %v4570 = vmul.f32 %v4556, %v4564
      %v4571 = vmul.f32 %v4556, %v4565
      %v4572 = vmul.f32 %v4556, %v4566
      %v4576 = vrot.slane %v4570, 1
      %v4577 = vrot.slane %v4571, 1
      %v4578 = vrot.slane %v4572, 1
      %v4582 = vadd.f32 %v4558, %v4576
      %v4583 = vadd.f32 %v4559, %v4577
      %v4584 = vadd.f32 %v4560, %v4578
      %v4588 = vrot.slane %v4582, 5
      %v4589 = vrot.slane %v4583, 5
      %v4590 = vrot.slane %v4584, 5
      %v4594 = vmul.f32 %v1489, %v4588
      %v4595 = vmul.f32 %v1490, %v4589
      %v4596 = vmul.f32 %v1491, %v4590
      %v4600 = vrot.slane %v4594, 3
      %v4601 = vrot.slane %v4595, 3
      %v4602 = vrot.slane %v4596, 3
      %v4606 = vadd.f32 %v4532, %v4600
      %v4607 = vadd.f32 %v4533, %v4601
      %v4608 = vadd.f32 %v4534, %v4602
      %4609 = vrot.lane.b32.xlu0 %v1450, 75
      %v4610 = vpop.permute.xlu0 %4609
      %4611 = vrot.lane.b32.xlu0 %v1451, 75
      %v4612 = vpop.permute.xlu0 %4611
      %4613 = vrot.lane.b32.xlu0 %v1452, 75
      %v4614 = vpop.permute.xlu0 %4613
      %vm4615 = vcmp.lt.s32.totalorder %v470, 75
      %v4616 = vsel %vm4615, %v4612, %v4614
      %v4617 = vsel %vm4615, %v4610, %v4612
      %v4618 = vsel %vm4615, %v4614, %v4610
      %4619 = vrot.lane.b32.xlu0 %v1459, 75
      %v4620 = vpop.permute.xlu0 %4619
      %4621 = vrot.lane.b32.xlu0 %v1466, 75
      %v4622 = vpop.permute.xlu0 %4621
      %4623 = vrot.lane.b32.xlu0 %v1473, 75
      %v4624 = vpop.permute.xlu0 %4623
      %v4625 = vsel %vm4615, %v4622, %v4624
      %v4626 = vsel %vm4615, %v4620, %v4622
      %v4627 = vsel %vm4615, %v4624, %v4620
      %4628 = vset.pattern.permute.xlu0 44
      %4629 = vperm.xlu0 %4628, %v1495
      %v4630 = vpop.permute.xlu0 %4629
      %v4632 = vmul.f32 %v4630, %v4617
      %v4633 = vmul.f32 %v4630, %v4616
      %v4634 = vmul.f32 %v4630, %v4618
      %v4638 = vrot.slane %v4626, 7
      %v4639 = vrot.slane %v4625, 7
      %v4640 = vrot.slane %v4627, 7
      %v4644 = vmul.f32 %v4630, %v4638
      %v4645 = vmul.f32 %v4630, %v4639
      %v4646 = vmul.f32 %v4630, %v4640
      %v4650 = vrot.slane %v4644, 1
      %v4651 = vrot.slane %v4645, 1
      %v4652 = vrot.slane %v4646, 1
      %v4656 = vadd.f32 %v4632, %v4650
      %v4657 = vadd.f32 %v4633, %v4651
      %v4658 = vadd.f32 %v4634, %v4652
      %v4662 = vrot.slane %v4656, 4
      %v4663 = vrot.slane %v4657, 4
      %v4664 = vrot.slane %v4658, 4
      %v4668 = vmul.f32 %v1489, %v4662
      %v4669 = vmul.f32 %v1490, %v4663
      %v4670 = vmul.f32 %v1491, %v4664
      %v4674 = vrot.slane %v4668, 4
      %v4675 = vrot.slane %v4669, 4
      %v4676 = vrot.slane %v4670, 4
      %v4680 = vadd.f32 %v4606, %v4674
      %v4681 = vadd.f32 %v4607, %v4675
      %v4682 = vadd.f32 %v4608, %v4676
      %4683 = vrot.lane.b32.xlu0 %v1450, 74
      %v4684 = vpop.permute.xlu0 %4683
      %4685 = vrot.lane.b32.xlu0 %v1451, 74
      %v4686 = vpop.permute.xlu0 %4685
      %4687 = vrot.lane.b32.xlu0 %v1452, 74
      %v4688 = vpop.permute.xlu0 %4687
      %vm4689 = vcmp.lt.s32.totalorder %v470, 74
      %v4690 = vsel %vm4689, %v4686, %v4688
      %v4691 = vsel %vm4689, %v4684, %v4686
      %v4692 = vsel %vm4689, %v4688, %v4684
      %4693 = vrot.lane.b32.xlu0 %v1459, 74
      %v4694 = vpop.permute.xlu0 %4693
      %4695 = vrot.lane.b32.xlu0 %v1466, 74
      %v4696 = vpop.permute.xlu0 %4695
      %4697 = vrot.lane.b32.xlu0 %v1473, 74
      %v4698 = vpop.permute.xlu0 %4697
      %v4699 = vsel %vm4689, %v4696, %v4698
      %v4700 = vsel %vm4689, %v4694, %v4696
      %v4701 = vsel %vm4689, %v4698, %v4694
      %4702 = vset.pattern.permute.xlu0 45
      %4703 = vperm.xlu0 %4702, %v1495
      %v4704 = vpop.permute.xlu0 %4703
      %v4706 = vmul.f32 %v4704, %v4691
      %v4707 = vmul.f32 %v4704, %v4690
      %v4708 = vmul.f32 %v4704, %v4692
      %v4712 = vrot.slane %v4700, 7
      %v4713 = vrot.slane %v4699, 7
      %v4714 = vrot.slane %v4701, 7
      %v4718 = vmul.f32 %v4704, %v4712
      %v4719 = vmul.f32 %v4704, %v4713
      %v4720 = vmul.f32 %v4704, %v4714
      %v4724 = vrot.slane %v4718, 1
      %v4725 = vrot.slane %v4719, 1
      %v4726 = vrot.slane %v4720, 1
      %v4730 = vadd.f32 %v4706, %v4724
      %v4731 = vadd.f32 %v4707, %v4725
      %v4732 = vadd.f32 %v4708, %v4726
      %v4736 = vrot.slane %v4730, 3
      %v4737 = vrot.slane %v4731, 3
      %v4738 = vrot.slane %v4732, 3
      %v4742 = vmul.f32 %v1489, %v4736
      %v4743 = vmul.f32 %v1490, %v4737
      %v4744 = vmul.f32 %v1491, %v4738
      %v4748 = vrot.slane %v4742, 5
      %v4749 = vrot.slane %v4743, 5
      %v4750 = vrot.slane %v4744, 5
      %v4754 = vadd.f32 %v4680, %v4748
      %v4755 = vadd.f32 %v4681, %v4749
      %v4756 = vadd.f32 %v4682, %v4750
      %4757 = vrot.lane.b32.xlu0 %v1450, 73
      %v4758 = vpop.permute.xlu0 %4757
      %4759 = vrot.lane.b32.xlu0 %v1451, 73
      %v4760 = vpop.permute.xlu0 %4759
      %4761 = vrot.lane.b32.xlu0 %v1452, 73
      %v4762 = vpop.permute.xlu0 %4761
      %vm4763 = vcmp.lt.s32.totalorder %v470, 73
      %v4764 = vsel %vm4763, %v4760, %v4762
      %v4765 = vsel %vm4763, %v4758, %v4760
      %v4766 = vsel %vm4763, %v4762, %v4758
      %4767 = vrot.lane.b32.xlu0 %v1459, 73
      %v4768 = vpop.permute.xlu0 %4767
      %4769 = vrot.lane.b32.xlu0 %v1466, 73
      %v4770 = vpop.permute.xlu0 %4769
      %4771 = vrot.lane.b32.xlu0 %v1473, 73
      %v4772 = vpop.permute.xlu0 %4771
      %v4773 = vsel %vm4763, %v4770, %v4772
      %v4774 = vsel %vm4763, %v4768, %v4770
      %v4775 = vsel %vm4763, %v4772, %v4768
      %4776 = vset.pattern.permute.xlu0 46
      %4777 = vperm.xlu0 %4776, %v1495
      %v4778 = vpop.permute.xlu0 %4777
      %v4780 = vmul.f32 %v4778, %v4765
      %v4781 = vmul.f32 %v4778, %v4764
      %v4782 = vmul.f32 %v4778, %v4766
      %v4786 = vrot.slane %v4774, 7
      %v4787 = vrot.slane %v4773, 7
      %v4788 = vrot.slane %v4775, 7
      %v4792 = vmul.f32 %v4778, %v4786
      %v4793 = vmul.f32 %v4778, %v4787
      %v4794 = vmul.f32 %v4778, %v4788
      %v4798 = vrot.slane %v4792, 1
      %v4799 = vrot.slane %v4793, 1
      %v4800 = vrot.slane %v4794, 1
      %v4804 = vadd.f32 %v4780, %v4798
      %v4805 = vadd.f32 %v4781, %v4799
      %v4806 = vadd.f32 %v4782, %v4800
      %v4810 = vrot.slane %v4804, 2
      %v4811 = vrot.slane %v4805, 2
      %v4812 = vrot.slane %v4806, 2
      %v4816 = vmul.f32 %v1489, %v4810
      %v4817 = vmul.f32 %v1490, %v4811
      %v4818 = vmul.f32 %v1491, %v4812
      %v4822 = vrot.slane %v4816, 6
      %v4823 = vrot.slane %v4817, 6
      %v4824 = vrot.slane %v4818, 6
      %v4828 = vadd.f32 %v4754, %v4822
      %v4829 = vadd.f32 %v4755, %v4823
      %v4830 = vadd.f32 %v4756, %v4824
      %4831 = vrot.lane.b32.xlu0 %v1450, 72
      %v4832 = vpop.permute.xlu0 %4831
      %4833 = vrot.lane.b32.xlu0 %v1451, 72
      %v4834 = vpop.permute.xlu0 %4833
      %4835 = vrot.lane.b32.xlu0 %v1452, 72
      %v4836 = vpop.permute.xlu0 %4835
      %vm4837 = vcmp.lt.s32.totalorder %v470, 72
      %v4838 = vsel %vm4837, %v4834, %v4836
      %v4839 = vsel %vm4837, %v4832, %v4834
      %v4840 = vsel %vm4837, %v4836, %v4832
      %4841 = vrot.lane.b32.xlu0 %v1459, 72
      %v4842 = vpop.permute.xlu0 %4841
      %4843 = vrot.lane.b32.xlu0 %v1466, 72
      %v4844 = vpop.permute.xlu0 %4843
      %4845 = vrot.lane.b32.xlu0 %v1473, 72
      %v4846 = vpop.permute.xlu0 %4845
      %v4847 = vsel %vm4837, %v4844, %v4846
      %v4848 = vsel %vm4837, %v4842, %v4844
      %v4849 = vsel %vm4837, %v4846, %v4842
      %4850 = vset.pattern.permute.xlu0 47
      %4851 = vperm.xlu0 %4850, %v1495
      %v4852 = vpop.permute.xlu0 %4851
      %v4854 = vmul.f32 %v4852, %v4839
      %v4855 = vmul.f32 %v4852, %v4838
      %v4856 = vmul.f32 %v4852, %v4840
      %v4860 = vrot.slane %v4848, 7
      %v4861 = vrot.slane %v4847, 7
      %v4862 = vrot.slane %v4849, 7
      %v4866 = vmul.f32 %v4852, %v4860
      %v4867 = vmul.f32 %v4852, %v4861
      %v4868 = vmul.f32 %v4852, %v4862
      %v4872 = vrot.slane %v4866, 1
      %v4873 = vrot.slane %v4867, 1
      %v4874 = vrot.slane %v4868, 1
      %v4878 = vadd.f32 %v4854, %v4872
      %v4879 = vadd.f32 %v4855, %v4873
      %v4880 = vadd.f32 %v4856, %v4874
      %v4884 = vrot.slane %v4878, 1
      %v4885 = vrot.slane %v4879, 1
      %v4886 = vrot.slane %v4880, 1
      %v4890 = vmul.f32 %v1489, %v4884
      %v4891 = vmul.f32 %v1490, %v4885
      %v4892 = vmul.f32 %v1491, %v4886
      %v4896 = vrot.slane %v4890, 7
      %v4897 = vrot.slane %v4891, 7
      %v4898 = vrot.slane %v4892, 7
      %v4902 = vadd.f32 %v4828, %v4896
      %v4903 = vadd.f32 %v4829, %v4897
      %v4904 = vadd.f32 %v4830, %v4898
      %4905 = vrot.lane.b32.xlu0 %v1450, 71
      %v4906 = vpop.permute.xlu0 %4905
      %4907 = vrot.lane.b32.xlu0 %v1451, 71
      %v4908 = vpop.permute.xlu0 %4907
      %4909 = vrot.lane.b32.xlu0 %v1452, 71
      %v4910 = vpop.permute.xlu0 %4909
      %vm4911 = vcmp.lt.s32.totalorder %v470, 71
      %v4912 = vsel %vm4911, %v4908, %v4910
      %v4913 = vsel %vm4911, %v4906, %v4908
      %v4914 = vsel %vm4911, %v4910, %v4906
      %4915 = vrot.lane.b32.xlu0 %v1459, 71
      %v4916 = vpop.permute.xlu0 %4915
      %4917 = vrot.lane.b32.xlu0 %v1466, 71
      %v4918 = vpop.permute.xlu0 %4917
      %4919 = vrot.lane.b32.xlu0 %v1473, 71
      %v4920 = vpop.permute.xlu0 %4919
      %v4921 = vsel %vm4911, %v4918, %v4920
      %v4922 = vsel %vm4911, %v4916, %v4918
      %v4923 = vsel %vm4911, %v4920, %v4916
      %4924 = vset.pattern.permute.xlu0 48
      %4925 = vperm.xlu0 %4924, %v1495
      %v4926 = vpop.permute.xlu0 %4925
      %v4928 = vmul.f32 %v4926, %v4913
      %v4929 = vmul.f32 %v4926, %v4912
      %v4930 = vmul.f32 %v4926, %v4914
      %v4934 = vrot.slane %v4922, 7
      %v4935 = vrot.slane %v4921, 7
      %v4936 = vrot.slane %v4923, 7
      %v4940 = vmul.f32 %v4926, %v4934
      %v4941 = vmul.f32 %v4926, %v4935
      %v4942 = vmul.f32 %v4926, %v4936
      %v4946 = vrot.slane %v4940, 1
      %v4947 = vrot.slane %v4941, 1
      %v4948 = vrot.slane %v4942, 1
      %v4952 = vadd.f32 %v4928, %v4946
      %v4953 = vadd.f32 %v4929, %v4947
      %v4954 = vadd.f32 %v4930, %v4948
      %v4955 = vmul.f32 %v1492, %v4952
      %v4956 = vmul.f32 %v1493, %v4953
      %v4957 = vmul.f32 %v1494, %v4954
      %v4958 = vadd.f32 %v4902, %v4955
      %v4959 = vadd.f32 %v4903, %v4956
      %v4960 = vadd.f32 %v4904, %v4957
      %v4961 = vxor.u32 %v4958, 2147483648
      %v4962 = vxor.u32 %v4959, 2147483648
      %v4963 = vxor.u32 %v4960, 2147483648
      %v4964 = vmul.f32 %v4961, 1.442695
      %v4965 = vpow.pop %v4964
      %v4966 = vmul.f32 %v4962, 1.442695
      %v4967 = vpow.pop %v4966
      %v4968 = vmul.f32 %v4963, 1.442695
      %v4969 = vpow.pop %v4968
      %v4970 = vadd.f32 %v4965, 1.0
      %v4971 = vadd.f32 %v4967, 1.0
      %v4972 = vadd.f32 %v4969, 1.0
      %v4973 = vrcp.pop %v4970
      %v4974 = vmul.f32 1.0, %v4973
      %v4975 = vrcp.pop %v4971
      %v4976 = vmul.f32 1.0, %v4975
      %v4977 = vrcp.pop %v4972
      %v4978 = vmul.f32 1.0, %v4977
      %v4979 = vlaneseq
      %v4980 = vshrl.u32 %v4979, 7
      %v4981 = vsub.s32 0, %v4980
      %v4982 = vrot.slane %v4974, %v4981
      %v4983 = vlaneseq
      %v4984 = vshrl.u32 %v4983, 7
      %v4985 = vsub.s32 0, %v4984
      %v4986 = vrot.slane %v4976, %v4985
      %v4987 = vlaneseq
      %v4988 = vshrl.u32 %v4987, 7
      %v4989 = vsub.s32 0, %v4988
      %v4990 = vrot.slane %v4978, %v4989
      %v4991 = vmul.f32 %v4982, %v1422
      %v4992 = vmul.f32 %v4986, %v1423
      %v4993 = vmul.f32 %v4990, %v1424
      %v4994 = vmul.f32 %v4982, %v1425
      %v4995 = vmul.f32 %v4986, %v1426
      %v4996 = vmul.f32 %v4990, %v1427
      %v4997 = vadd.f32 %v4991, %v442
      %v4998 = vadd.f32 %v4992, %v443
      %v4999 = vadd.f32 %v4993, %v444
      %v5000 = vadd.f32 %v4994, %v445
      %v5001 = vadd.f32 %v4995, %v446
      %v5002 = vadd.f32 %v4996, %v447
      %v5003 = vmax.f32 %v4997, 0.0
      %v5004 = vmax.f32 %v4998, 0.0
      %v5005 = vmax.f32 %v4999, 0.0
      %v5006 = vmax.f32 %v5000, 0.0
      %v5007 = vmax.f32 %v5001, 0.0
      %v5008 = vmax.f32 %v5002, 0.0
      %5009 = vst [vmem:[%s440] sm:$0xff] %v5003
      %5010 = vst [vmem:[%s440 + $0x8] sm:$0xff] %v5004
      %5011 = vst [vmem:[%s440 + $0x10] sm:$0xff] %v5005
      %5012 = vst [vmem:[%s440 + $0x18] sm:$0xff] %v5006
      %5013 = vst [vmem:[%s440 + $0x20] sm:$0xff] %v5007
      %5014 = vst [vmem:[%s440 + $0x28] sm:$0xff] %v5008
      %p5015 = scmp.lt.s32.totalorder %s24, 1
      %s5016 = scalar_select %p5015, %s24, 1
      %s5017 = smul.addr %s5016, 6
      %s5018 = smul.addr %s5017, 8
      %s5019 = scalar_lea.vmem %s13, %s5018
      // Predicated region
      $region73: #{block_forward.3} parent=71 // pred_check
        %p5020 = pneg %p320
      $region74: #{block_forward.3} parent=71 // pred_check_branch
        %5022 = sbr.rel (%p5020) target = $region76
      $region75: #{block_forward.3} parent=71 // pred_region
        _
      $region76: #{block_forward.3} parent=71 // pred_fallthru
        _
    $region72: #{block_forward.3} parent=5 // pred_fallthru
      _
    %p5023 = scmp.le.s32.totalorder 2, %s19
    // Predicated region
    $region77: #{block_forward.3} parent=5 // pred_check
      %p5024 = pneg %p5023
    $region78: #{block_forward.3} parent=5 // pred_check_branch
      %5026 = sbr.rel (%p5024) target = $region80
    $region79: #{block_forward.3} parent=5 // pred_region
      %s5027 = ssub.s32 %s19, 2
      // Predicated region
      $region81: #{block_forward.3} parent=79 // pred_check
        %p5028 = pneg %p326
      $region82: #{block_forward.3} parent=79 // pred_check_branch
        %5030 = sbr.rel (%p5028) target = $region84
      $region83: #{block_forward.3} parent=79 // pred_region
        %p5031 = scmp.lt.s32.totalorder %s25, 1
        %s5032 = scalar_select %p5031, %s25, 1
        %s5033 = smul.addr %s5032, 6
        %s5034 = smul.addr %s5033, 8
        %s5035 = scalar_lea.vmem %s13, %s5034
      $region84: #{block_forward.3} parent=79 // pred_fallthru
        _
    $region80: #{block_forward.3} parent=5 // pred_fallthru
      _
  $region6: #{block_forward.3} parent=0 // loop_footer
    %s23 = sadd.s32 1, %s19
  $region7: #{block_forward.3} parent=0 // loop_footer_branch
    %18 = sbr.rel target = $region3
  $region8: #{block_forward.3} parent=0 // loop_exit
    _

</llo_original>
